<compile_context>
chip_gen: v7x
topology: tpu7x:2x2x1
jax: 0.10.0
libtpu: 0.0.40
codegen_flags: <defaults>
</compile_context>

<pallas_src>
import functools

import numpy as np

import jax
import jax.numpy as jnp
from jax.experimental import pallas as pl
from jax.experimental.pallas import tpu as pltpu

EPS = 1e-6


# ---------------------------------------------------------------------------
# In-kernel helpers (elementwise / lane-reduce only -> guaranteed lowerable).
# ---------------------------------------------------------------------------
def _erf(x):
    # Abramowitz & Stegun 7.1.26 rational approximation, |err| < 1.5e-7.
    a1, a2, a3, a4, a5 = 0.254829592, -0.284496736, 1.421413741, -1.453152027, 1.061405429
    p = 0.3275911
    s = jnp.where(x < 0.0, -1.0, 1.0)
    z = jnp.abs(x)
    t = 1.0 / (1.0 + p * z)
    poly = ((((a5 * t + a4) * t + a3) * t + a2) * t + a1) * t
    return s * (1.0 - poly * jnp.exp(-z * z))


def _gelu_exact(x):
    # torch.nn.GELU() default (erf form): 0.5 * x * (1 + erf(x / sqrt(2)))
    return 0.5 * x * (1.0 + _erf(x * 0.7071067811865476))


def _layernorm(v, g, b):
    # torch.nn.LayerNorm(dims, eps=1e-6): biased variance, eps inside sqrt.
    mu = jnp.mean(v, axis=-1, keepdims=True)
    var = jnp.mean(jnp.square(v - mu), axis=-1, keepdims=True)
    return (v - mu) / jnp.sqrt(var + EPS) * g + b


# ---------------------------------------------------------------------------
# Fused Block kernel (B == 1, n_heads == 1 -- the only executable reference
# configuration).  Grid: (n_row_tiles,), one output-row tile per step.
# Each step recomputes the tiny attention (T x D) redundantly; the MLP (the
# only non-trivial work) is split across tiles so both v7x TensorCores get work.
# ---------------------------------------------------------------------------
def _block_fused_kernel(x_ref, g1_ref, be1_ref, wqkv_ref, bqkv_ref, wp_ref, bp_ref,
                        g2_ref, be2_ref, w1_ref, bf1_ref, w2_ref, bf2_ref,
                        out_ref, *, T, D, n_i):
    x = x_ref[...]                                                      # (T, D)

    # ---- attention branch: attn(norm1(x)) --------------------------------
    xn = _layernorm(x, g1_ref[...], be1_ref[...])                       # norm1
    # fused qkv Linear: one (T,D)@(D,3D) MXU op + one bias add.
    qkv = jnp.dot(xn, wqkv_ref[...], preferred_element_type=jnp.float32) + bqkv_ref[...]
    q = qkv[:, 0 * D:1 * D]
    k = qkv[:, 1 * D:2 * D]
    v = qkv[:, 2 * D:3 * D]
    raw = jax.lax.dot_general(q, k, (((1,), (1,)), ((), ())),
                              preferred_element_type=jnp.float32)       # (T, T)
    # reference: dp = (q@k^T)**scale ; softmax over dim=1 (heads).  With a
    # single head that softmax is exactly 1.0 where dp is finite and NaN where
    # the power of a negative score produced NaN -> pure NaN mask.
    # (Edge case: raw == +inf gives NaN in the reference, 1.0 here.)
    attn = jnp.where(raw < 0.0, jnp.float32(jnp.nan), jnp.float32(1.0))
    wa = jnp.dot(attn, v, preferred_element_type=jnp.float32)           # (T, D)
    # proj (Linear(dims, dims)) on the per-head features (no flatten in ref).
    ao = jnp.dot(wa, wp_ref[...], preferred_element_type=jnp.float32) + bp_ref[...]

    # ---- rank-4 broadcast residual (B==1, H==1): y[i, j, :] = x[j] + ao[i] --
    rows = []
    if n_i == T:
        # single tile: static row slices of ao.
        for h in range(T):
            rows.append(ao[h:h + 1, :] + x)
    else:
        # row-tiled (v7x): this grid step owns attention tokens [t0, t0 + n_i).
        t0 = pl.program_id(0) * n_i
        tok = jax.lax.broadcasted_iota(jnp.int32, (T, 1), 0)
        for h in range(n_i):
            # NaN-safe dynamic row select: where() replaces unselected (possibly
            # NaN) rows with 0.0 before the sublane reduce.
            ao_h = jnp.sum(jnp.where(tok == t0 + h, ao, 0.0),
                           axis=0, keepdims=True)                       # (1, D)
            rows.append(ao_h + x)
    y = jnp.concatenate(rows, axis=0) if len(rows) > 1 else rows[0]     # (n_i*T, D)

    # ---- MLP branch: y + fc2(gelu(fc1(norm2(y)))) -------------------------
    yn = _layernorm(y, g2_ref[...], be2_ref[...])                       # norm2
    h = jnp.dot(yn, w1_ref[...], preferred_element_type=jnp.float32) + bf1_ref[...]
    h = _gelu_exact(h)                                                  # nn.GELU()
    # w2_ref is the UNtransposed fc2 weight (D, hidden): lane-dense block,
    # contract over the hidden axis.
    mlp = jax.lax.dot_general(h, w2_ref[...], (((1,), (1,)), ((), ())),
                              preferred_element_type=jnp.float32)
    # dropout p = 0 -> identity; residual + fc2 bias folded into the one store.
    out_ref[...] = y + mlp + bf2_ref[...]


def _default_row_tiles(T):
    # Split output rows in 2 only on dual-TensorCore chips (v7x); on single-TC
    # v5e/v6e an extra grid step is pure serial overhead for this tiny kernel.
    try:
        kind = jax.devices()[0].device_kind.lower()
    except Exception:
        return 1
    if "v7" not in kind:
        return 1
    if T % 2 == 0 and ((T // 2) * T) % 8 == 0:
        return 2
    return 1


def prepare_block_params(p):
    """One-time weight layout prep (transposes / bias reshapes done ONCE,
    not per forward call)."""
    D = p["w_proj"].shape[0]
    hidden = p["w_fc1"].shape[0]
    return dict(
        ln1_g=jnp.asarray(p["ln1_g"]).reshape(1, D),
        ln1_b=jnp.asarray(p["ln1_b"]).reshape(1, D),
        ln2_g=jnp.asarray(p["ln2_g"]).reshape(1, D),
        ln2_b=jnp.asarray(p["ln2_b"]).reshape(1, D),
        wqkv_t=jnp.asarray(p["w_qkv"]).T,                    # (D, 3D)
        b_qkv=jnp.asarray(p["b_qkv"]).reshape(1, 3 * D),
        wp_t=jnp.asarray(p["w_proj"]).T,                     # (D, D)
        b_proj=jnp.asarray(p["b_proj"]).reshape(1, D),
        w1_t=jnp.asarray(p["w_fc1"]).T,                      # (D, hidden)
        b_fc1=jnp.asarray(p["b_fc1"]).reshape(1, hidden),
        w2=jnp.asarray(p["w_fc2"]),                          # (D, hidden) untransposed
        b_fc2=jnp.asarray(p["b_fc2"]).reshape(1, D),
    )


def vit_block_forward(x, prep, n_heads=1, row_tiles=None):
    B, T, D = x.shape
    if n_heads != 1:
        # TODO(synk): reference proj Linear(dims, dims) is shape-inconsistent
        # for n_heads > 1 (it is applied to head_dims without flattening).
        raise ValueError("n_heads > 1 is shape-inconsistent in the reference module")
    if B != 1:
        # TODO(synk): reference residual x + attn_out broadcasts (B,T,D) with
        # (B,T,1,D); only B == 1 is supported here (rank-4 (1,T,T,D) result).
        raise ValueError("only B == 1 is supported (reference broadcast residual)")

    hidden = prep["w1_t"].shape[1]
    n_tiles = _default_row_tiles(T) if row_tiles is None else int(row_tiles)
    if T % n_tiles != 0 or ((T // n_tiles) * T) % 8 != 0:
        n_tiles = 1
    n_i = T // n_tiles

    def full(r, c):
        return pl.BlockSpec((r, c), lambda t: (0, 0))

    out2 = pl.pallas_call(
        functools.partial(_block_fused_kernel, T=T, D=D, n_i=n_i),
        grid=(n_tiles,),
        in_specs=[
            full(T, D),                           # x (one batch element)
            full(1, D), full(1, D),               # norm1 gamma / beta
            full(D, 3 * D), full(1, 3 * D),       # W_qkv^T (fused), b_qkv
            full(D, D), full(1, D),               # W_proj^T, b_proj
            full(1, D), full(1, D),               # norm2 gamma / beta
            full(D, hidden), full(1, hidden),     # W_fc1^T, b_fc1
            full(D, hidden), full(1, D),          # W_fc2 (untransposed), b_fc2
        ],
        out_specs=pl.BlockSpec((n_i * T, D), lambda t: (t, 0)),
        out_shape=jax.ShapeDtypeStruct((T * T, D), jnp.float32),
        compiler_params=pltpu.CompilerParams(dimension_semantics=("parallel",)),
    )(x.reshape(T, D),
      prep["ln1_g"], prep["ln1_b"],
      prep["wqkv_t"], prep["b_qkv"],
      prep["wp_t"], prep["b_proj"],
      prep["ln2_g"], prep["ln2_b"],
      prep["w1_t"], prep["b_fc1"],
      prep["w2"], prep["b_fc2"])

    # Free reshape of a contiguous row-major buffer to the reference's
    # rank-4 broadcast-residual shape.
    return out2.reshape(B, T, T, D)


# ---------------------------------------------------------------------------
# Deterministic parameter init (shapes follow the PyTorch module __init__).
# ---------------------------------------------------------------------------
def init_block_params(key, dims, mlp_ratio=4.0, std=0.05):
    hidden = int(dims ** mlp_ratio)   # reference: int(dims ** mlp_ratio), NOT dims*ratio
    ks = jax.random.split(key, 4)

    def linear(k, out_f, in_f):
        kw, kb = jax.random.split(k)
        return (std * jax.random.normal(kw, (out_f, in_f), jnp.float32),
                std * jax.random.normal(kb, (out_f,), jnp.float32))

    w_qkv, b_qkv = linear(ks[0], 3 * dims, dims)
    w_proj, b_proj = linear(ks[1], dims, dims)
    w_fc1, b_fc1 = linear(ks[2], hidden, dims)
    w_fc2, b_fc2 = linear(ks[3], dims, hidden)
    ones, zeros = jnp.ones((dims,), jnp.float32), jnp.zeros((dims,), jnp.float32)
    return dict(ln1_g=ones, ln1_b=zeros, ln2_g=ones, ln2_b=zeros,
                w_qkv=w_qkv, b_qkv=b_qkv, w_proj=w_proj, b_proj=b_proj,
                w_fc1=w_fc1, b_fc1=b_fc1, w_fc2=w_fc2, b_fc2=b_fc2)


# ---------------------------------------------------------------------------
# Pure-JAX reference (direct transcription of the torch code) for checking.
# ---------------------------------------------------------------------------
def block_forward_ref(x, p, n_heads):
    B, T, D = x.shape
    dh = D // n_heads
    scale = dh ** (-0.5)
    h1 = _layernorm(x, p["ln1_g"], p["ln1_b"])
    qkv = h1 @ p["w_qkv"].T + p["b_qkv"]
    qkv = qkv.reshape(B, T, 3, n_heads, dh).transpose(2, 0, 3, 1, 4)
    q, k, v = qkv[0], qkv[1], qkv[2]
    dp = jnp.power(jnp.einsum("bhtd,bhsd->bhts", q, k), scale)   # ** scale
    attn = jax.nn.softmax(dp, axis=1)                            # softmax over heads
    wa = jnp.einsum("bhts,bhsd->bhtd", attn, v).transpose(0, 2, 1, 3)
    ao = wa @ p["w_proj"].T + p["b_proj"]
    y = x + ao                                                   # rank-4 broadcast
    h2 = _layernorm(y, p["ln2_g"], p["ln2_b"])
    m = jax.nn.gelu(h2 @ p["w_fc1"].T + p["b_fc1"], approximate=False)
    return y + (m @ p["w_fc2"].T + p["b_fc2"])


if __name__ == "__main__":
    key = jax.random.PRNGKey(0)
    kx, kp = jax.random.split(key, 2)

    # n_heads = 1 is the only value for which the reference proj Linear is shape
    # consistent; B = 1 makes the reference residual broadcast valid.
    B, T, D, H = 1, 8, 8, 1
    params = init_block_params(kp, D)                 # hidden = 8**4 = 4096
    prep = prepare_block_params(params)
    x = jax.random.normal(kx, (B, T, D), jnp.float32)

    fwd = jax.jit(lambda xx: vit_block_forward(xx, prep, n_heads=H))
    out = fwd(x)                                      # (1, 8, 8, 8) per reference broadcast
    jax.block_until_ready(out)

    # Check 1: full block vs pure-JAX transcription of the torch code.  The
    # reference's (q @ k^T) ** scale yields NaNs for negative scores, so the
    # output is NaN-dominated; equal-NaN comparison verifies the pattern too.
    ref = block_forward_ref(x, params, H)
    np.testing.assert_allclose(np.asarray(out), np.asarray(ref), rtol=2e-3, atol=2e-3)

    # Check 2: fully finite path (not masked by NaNs).  Force all raw scores
    # positive by zeroing the q/k weights and giving them positive biases, and
    # exercise the row-tiled (v7x-style) grid explicitly with row_tiles=2.
    p_fin = dict(params)
    p_fin["w_qkv"] = params["w_qkv"].at[:2 * D, :].set(0.0)
    p_fin["b_qkv"] = params["b_qkv"].at[:2 * D].set(0.5)
    prep_fin = prepare_block_params(p_fin)
    out_fin = vit_block_forward(x, prep_fin, n_heads=H, row_tiles=2)
    jax.block_until_ready(out_fin)
    ref_fin = block_forward_ref(x, p_fin, H)
    assert not np.any(np.isnan(np.asarray(ref_fin)))
    np.testing.assert_allclose(np.asarray(out_fin), np.asarray(ref_fin),
                               rtol=2e-3, atol=2e-3)

    print("KERNEL_OK")
</pallas_src>

<mosaic_0001>
module attributes {stable_mosaic.version = 11 : i64} {
  func.func @_block_fused_kernel(%arg0: i32, %arg1: memref<8x8xf32, #tpu.memory_space<vmem>>, %arg2: memref<1x8xf32, #tpu.memory_space<vmem>>, %arg3: memref<1x8xf32, #tpu.memory_space<vmem>>, %arg4: memref<8x24xf32, #tpu.memory_space<vmem>>, %arg5: memref<1x24xf32, #tpu.memory_space<vmem>>, %arg6: memref<8x8xf32, #tpu.memory_space<vmem>>, %arg7: memref<1x8xf32, #tpu.memory_space<vmem>>, %arg8: memref<1x8xf32, #tpu.memory_space<vmem>>, %arg9: memref<1x8xf32, #tpu.memory_space<vmem>>, %arg10: memref<8x4096xf32, #tpu.memory_space<vmem>>, %arg11: memref<1x4096xf32, #tpu.memory_space<vmem>>, %arg12: memref<8x4096xf32, #tpu.memory_space<vmem>>, %arg13: memref<1x8xf32, #tpu.memory_space<vmem>>, %arg14: memref<64x8xf32, #tpu.memory_space<vmem>>) attributes {dimension_semantics = [#tpu.dimension_semantics<parallel>], iteration_bounds = array<i64: 1>, scalar_prefetch = 0 : i64, scratch_operands = 0 : i64, tpu.core_type = #tpu.core_type<tc>, window_params = [{pipeline_mode = #tpu.pipeline_mode<synchronous>, transform_indices = @transform_0, window_bounds = array<i64: 8, 8>}, {pipeline_mode = #tpu.pipeline_mode<synchronous>, transform_indices = @transform_1, window_bounds = array<i64: 1, 8>}, {pipeline_mode = #tpu.pipeline_mode<synchronous>, transform_indices = @transform_2, window_bounds = array<i64: 1, 8>}, {pipeline_mode = #tpu.pipeline_mode<synchronous>, transform_indices = @transform_3, window_bounds = array<i64: 8, 24>}, {pipeline_mode = #tpu.pipeline_mode<synchronous>, transform_indices = @transform_4, window_bounds = array<i64: 1, 24>}, {pipeline_mode = #tpu.pipeline_mode<synchronous>, transform_indices = @transform_5, window_bounds = array<i64: 8, 8>}, {pipeline_mode = #tpu.pipeline_mode<synchronous>, transform_indices = @transform_6, window_bounds = array<i64: 1, 8>}, {pipeline_mode = #tpu.pipeline_mode<synchronous>, transform_indices = @transform_7, window_bounds = array<i64: 1, 8>}, {pipeline_mode = #tpu.pipeline_mode<synchronous>, transform_indices = @transform_8, window_bounds = array<i64: 1, 8>}, {pipeline_mode = #tpu.pipeline_mode<synchronous>, transform_indices = @transform_9, window_bounds = array<i64: 8, 4096>}, {pipeline_mode = #tpu.pipeline_mode<synchronous>, transform_indices = @transform_10, window_bounds = array<i64: 1, 4096>}, {pipeline_mode = #tpu.pipeline_mode<synchronous>, transform_indices = @transform_11, window_bounds = array<i64: 8, 4096>}, {pipeline_mode = #tpu.pipeline_mode<synchronous>, transform_indices = @transform_12, window_bounds = array<i64: 1, 8>}, {transform_indices = @transform_13, window_bounds = array<i64: 64, 8>}]} {
    %c0 = arith.constant 0 : index
    %c0_0 = arith.constant 0 : index
    %0 = vector.load %arg1[%c0, %c0_0] : memref<8x8xf32, #tpu.memory_space<vmem>>, vector<8x8xf32>
    %c0_1 = arith.constant 0 : index
    %c0_2 = arith.constant 0 : index
    %1 = vector.load %arg2[%c0_1, %c0_2] : memref<1x8xf32, #tpu.memory_space<vmem>>, vector<1x8xf32>
    %c0_3 = arith.constant 0 : index
    %c0_4 = arith.constant 0 : index
    %2 = vector.load %arg3[%c0_3, %c0_4] : memref<1x8xf32, #tpu.memory_space<vmem>>, vector<1x8xf32>
    %cst = arith.constant dense<0.000000e+00> : vector<8xf32>
    %3 = vector.multi_reduction <add>, %0, %cst [1] : vector<8x8xf32> to vector<8xf32>
    %4 = vector.shape_cast %3 : vector<8xf32> to vector<8x1xf32>
    %cst_5 = arith.constant 8.000000e+00 : f32
    %5 = vector.broadcast %cst_5 : f32 to vector<8x1xf32>
    %6 = arith.divf %4, %5 : vector<8x1xf32>
    %7 = vector.broadcast %6 : vector<8x1xf32> to vector<8x8xf32>
    %8 = arith.subf %0, %7 : vector<8x8xf32>
    %9 = arith.mulf %8, %8 : vector<8x8xf32>
    %cst_6 = arith.constant dense<0.000000e+00> : vector<8xf32>
    %10 = vector.multi_reduction <add>, %9, %cst_6 [1] : vector<8x8xf32> to vector<8xf32>
    %11 = vector.shape_cast %10 : vector<8xf32> to vector<8x1xf32>
    %cst_7 = arith.constant 8.000000e+00 : f32
    %12 = vector.broadcast %cst_7 : f32 to vector<8x1xf32>
    %13 = arith.divf %11, %12 : vector<8x1xf32>
    %14 = vector.broadcast %6 : vector<8x1xf32> to vector<8x8xf32>
    %15 = arith.subf %0, %14 : vector<8x8xf32>
    %cst_8 = arith.constant 9.99999997E-7 : f32
    %16 = vector.broadcast %cst_8 : f32 to vector<8x1xf32>
    %17 = arith.addf %13, %16 : vector<8x1xf32>
    %18 = math.sqrt %17 : vector<8x1xf32>
    %19 = vector.broadcast %18 : vector<8x1xf32> to vector<8x8xf32>
    %20 = arith.divf %15, %19 : vector<8x8xf32>
    %21 = vector.broadcast %1 : vector<1x8xf32> to vector<8x8xf32>
    %22 = arith.mulf %20, %21 : vector<8x8xf32>
    %23 = vector.broadcast %2 : vector<1x8xf32> to vector<8x8xf32>
    %24 = arith.addf %22, %23 : vector<8x8xf32>
    %c0_9 = arith.constant 0 : index
    %c0_10 = arith.constant 0 : index
    %25 = vector.load %arg4[%c0_9, %c0_10] : memref<8x24xf32, #tpu.memory_space<vmem>>, vector<8x24xf32>
    %cst_11 = arith.constant dense<0.000000e+00> : vector<8x24xf32>
    %26 = tpu.matmul %24, %25, %cst_11 {dimension_numbers = #tpu.dot_dimension_numbers<[1], [0], [0], [1], [0, 0, 1, 1], [], []>} : vector<8x8xf32>, vector<8x24xf32>, vector<8x24xf32> -> vector<8x24xf32>
    %c0_12 = arith.constant 0 : index
    %c0_13 = arith.constant 0 : index
    %27 = vector.load %arg5[%c0_12, %c0_13] : memref<1x24xf32, #tpu.memory_space<vmem>>, vector<1x24xf32>
    %28 = vector.broadcast %27 : vector<1x24xf32> to vector<8x24xf32>
    %29 = arith.addf %26, %28 : vector<8x24xf32>
    %30 = vector.extract_strided_slice %29 {offsets = [0, 0], sizes = [8, 8], strides = [1, 1]} : vector<8x24xf32> to vector<8x8xf32>
    %31 = vector.extract_strided_slice %29 {offsets = [0, 8], sizes = [8, 8], strides = [1, 1]} : vector<8x24xf32> to vector<8x8xf32>
    %32 = vector.extract_strided_slice %29 {offsets = [0, 16], sizes = [8, 8], strides = [1, 1]} : vector<8x24xf32> to vector<8x8xf32>
    %cst_14 = arith.constant dense<0.000000e+00> : vector<8x8xf32>
    %33 = tpu.matmul %30, %31, %cst_14 {dimension_numbers = #tpu.dot_dimension_numbers<[1], [1], [0], [0], [0, 0, 1, 0], [], []>} : vector<8x8xf32>, vector<8x8xf32>, vector<8x8xf32> -> vector<8x8xf32>
    %cst_15 = arith.constant 0.000000e+00 : f32
    %34 = vector.broadcast %cst_15 : f32 to vector<8x8xf32>
    %35 = arith.cmpf olt, %33, %34 : vector<8x8xf32>
    %cst_16 = arith.constant 0x7FC00000 : f32
    %cst_17 = arith.constant 1.000000e+00 : f32
    %36 = vector.broadcast %cst_16 : f32 to vector<8x8xf32>
    %37 = vector.broadcast %cst_17 : f32 to vector<8x8xf32>
    %38 = arith.select %35, %36, %37 : vector<8x8xi1>, vector<8x8xf32>
    %cst_18 = arith.constant dense<0.000000e+00> : vector<8x8xf32>
    %39 = tpu.matmul %38, %32, %cst_18 {dimension_numbers = #tpu.dot_dimension_numbers<[1], [0], [0], [1], [0, 0, 1, 1], [], []>} : vector<8x8xf32>, vector<8x8xf32>, vector<8x8xf32> -> vector<8x8xf32>
    %c0_19 = arith.constant 0 : index
    %c0_20 = arith.constant 0 : index
    %40 = vector.load %arg6[%c0_19, %c0_20] : memref<8x8xf32, #tpu.memory_space<vmem>>, vector<8x8xf32>
    %cst_21 = arith.constant dense<0.000000e+00> : vector<8x8xf32>
    %41 = tpu.matmul %39, %40, %cst_21 {dimension_numbers = #tpu.dot_dimension_numbers<[1], [0], [0], [1], [0, 0, 1, 1], [], []>} : vector<8x8xf32>, vector<8x8xf32>, vector<8x8xf32> -> vector<8x8xf32>
    %c0_22 = arith.constant 0 : index
    %c0_23 = arith.constant 0 : index
    %42 = vector.load %arg7[%c0_22, %c0_23] : memref<1x8xf32, #tpu.memory_space<vmem>>, vector<1x8xf32>
    %43 = vector.broadcast %42 : vector<1x8xf32> to vector<8x8xf32>
    %44 = arith.addf %41, %43 : vector<8x8xf32>
    %45 = vector.extract_strided_slice %44 {offsets = [0, 0], sizes = [1, 8], strides = [1, 1]} : vector<8x8xf32> to vector<1x8xf32>
    %46 = vector.broadcast %45 : vector<1x8xf32> to vector<8x8xf32>
    %47 = arith.addf %46, %0 : vector<8x8xf32>
    %48 = vector.extract_strided_slice %44 {offsets = [1, 0], sizes = [1, 8], strides = [1, 1]} : vector<8x8xf32> to vector<1x8xf32>
    %49 = vector.broadcast %48 : vector<1x8xf32> to vector<8x8xf32>
    %50 = arith.addf %49, %0 : vector<8x8xf32>
    %51 = vector.extract_strided_slice %44 {offsets = [2, 0], sizes = [1, 8], strides = [1, 1]} : vector<8x8xf32> to vector<1x8xf32>
    %52 = vector.broadcast %51 : vector<1x8xf32> to vector<8x8xf32>
    %53 = arith.addf %52, %0 : vector<8x8xf32>
    %54 = vector.extract_strided_slice %44 {offsets = [3, 0], sizes = [1, 8], strides = [1, 1]} : vector<8x8xf32> to vector<1x8xf32>
    %55 = vector.broadcast %54 : vector<1x8xf32> to vector<8x8xf32>
    %56 = arith.addf %55, %0 : vector<8x8xf32>
    %57 = vector.extract_strided_slice %44 {offsets = [4, 0], sizes = [1, 8], strides = [1, 1]} : vector<8x8xf32> to vector<1x8xf32>
    %58 = vector.broadcast %57 : vector<1x8xf32> to vector<8x8xf32>
    %59 = arith.addf %58, %0 : vector<8x8xf32>
    %60 = vector.extract_strided_slice %44 {offsets = [5, 0], sizes = [1, 8], strides = [1, 1]} : vector<8x8xf32> to vector<1x8xf32>
    %61 = vector.broadcast %60 : vector<1x8xf32> to vector<8x8xf32>
    %62 = arith.addf %61, %0 : vector<8x8xf32>
    %63 = vector.extract_strided_slice %44 {offsets = [6, 0], sizes = [1, 8], strides = [1, 1]} : vector<8x8xf32> to vector<1x8xf32>
    %64 = vector.broadcast %63 : vector<1x8xf32> to vector<8x8xf32>
    %65 = arith.addf %64, %0 : vector<8x8xf32>
    %66 = vector.extract_strided_slice %44 {offsets = [7, 0], sizes = [1, 8], strides = [1, 1]} : vector<8x8xf32> to vector<1x8xf32>
    %67 = vector.broadcast %66 : vector<1x8xf32> to vector<8x8xf32>
    %68 = arith.addf %67, %0 : vector<8x8xf32>
    %69 = tpu.concatenate %47, %50, %53, %56, %59, %62, %65, %68 in 0 : vector<8x8xf32>, vector<8x8xf32>, vector<8x8xf32>, vector<8x8xf32>, vector<8x8xf32>, vector<8x8xf32>, vector<8x8xf32>, vector<8x8xf32> -> vector<64x8xf32>
    %c0_24 = arith.constant 0 : index
    %c0_25 = arith.constant 0 : index
    %70 = vector.load %arg8[%c0_24, %c0_25] : memref<1x8xf32, #tpu.memory_space<vmem>>, vector<1x8xf32>
    %c0_26 = arith.constant 0 : index
    %c0_27 = arith.constant 0 : index
    %71 = vector.load %arg9[%c0_26, %c0_27] : memref<1x8xf32, #tpu.memory_space<vmem>>, vector<1x8xf32>
    %cst_28 = arith.constant dense<0.000000e+00> : vector<64xf32>
    %72 = vector.multi_reduction <add>, %69, %cst_28 [1] : vector<64x8xf32> to vector<64xf32>
    %73 = vector.shape_cast %72 : vector<64xf32> to vector<64x1xf32>
    %cst_29 = arith.constant 8.000000e+00 : f32
    %74 = vector.broadcast %cst_29 : f32 to vector<64x1xf32>
    %75 = arith.divf %73, %74 : vector<64x1xf32>
    %76 = vector.broadcast %75 : vector<64x1xf32> to vector<64x8xf32>
    %77 = arith.subf %69, %76 : vector<64x8xf32>
    %78 = arith.mulf %77, %77 : vector<64x8xf32>
    %cst_30 = arith.constant dense<0.000000e+00> : vector<64xf32>
    %79 = vector.multi_reduction <add>, %78, %cst_30 [1] : vector<64x8xf32> to vector<64xf32>
    %80 = vector.shape_cast %79 : vector<64xf32> to vector<64x1xf32>
    %cst_31 = arith.constant 8.000000e+00 : f32
    %81 = vector.broadcast %cst_31 : f32 to vector<64x1xf32>
    %82 = arith.divf %80, %81 : vector<64x1xf32>
    %83 = vector.broadcast %75 : vector<64x1xf32> to vector<64x8xf32>
    %84 = arith.subf %69, %83 : vector<64x8xf32>
    %cst_32 = arith.constant 9.99999997E-7 : f32
    %85 = vector.broadcast %cst_32 : f32 to vector<64x1xf32>
    %86 = arith.addf %82, %85 : vector<64x1xf32>
    %87 = math.sqrt %86 : vector<64x1xf32>
    %88 = vector.broadcast %87 : vector<64x1xf32> to vector<64x8xf32>
    %89 = arith.divf %84, %88 : vector<64x8xf32>
    %90 = vector.broadcast %70 : vector<1x8xf32> to vector<64x8xf32>
    %91 = arith.mulf %89, %90 : vector<64x8xf32>
    %92 = vector.broadcast %71 : vector<1x8xf32> to vector<64x8xf32>
    %93 = arith.addf %91, %92 : vector<64x8xf32>
    %c0_33 = arith.constant 0 : index
    %c0_34 = arith.constant 0 : index
    %94 = vector.load %arg10[%c0_33, %c0_34] : memref<8x4096xf32, #tpu.memory_space<vmem>>, vector<8x4096xf32>
    %cst_35 = arith.constant dense<0.000000e+00> : vector<64x4096xf32>
    %95 = tpu.matmul %93, %94, %cst_35 {dimension_numbers = #tpu.dot_dimension_numbers<[1], [0], [0], [1], [0, 0, 1, 1], [], []>} : vector<64x8xf32>, vector<8x4096xf32>, vector<64x4096xf32> -> vector<64x4096xf32>
    %c0_36 = arith.constant 0 : index
    %c0_37 = arith.constant 0 : index
    %96 = vector.load %arg11[%c0_36, %c0_37] : memref<1x4096xf32, #tpu.memory_space<vmem>>, vector<1x4096xf32>
    %97 = vector.broadcast %96 : vector<1x4096xf32> to vector<64x4096xf32>
    %98 = arith.addf %95, %97 : vector<64x4096xf32>
    %cst_38 = arith.constant 5.000000e-01 : f32
    %99 = vector.broadcast %cst_38 : f32 to vector<64x4096xf32>
    %100 = arith.mulf %99, %98 : vector<64x4096xf32>
    %cst_39 = arith.constant 0.707106769 : f32
    %101 = vector.broadcast %cst_39 : f32 to vector<64x4096xf32>
    %102 = arith.mulf %98, %101 : vector<64x4096xf32>
    %cst_40 = arith.constant 0.000000e+00 : f32
    %103 = vector.broadcast %cst_40 : f32 to vector<64x4096xf32>
    %104 = arith.cmpf olt, %102, %103 : vector<64x4096xf32>
    %cst_41 = arith.constant -1.000000e+00 : f32
    %cst_42 = arith.constant 1.000000e+00 : f32
    %105 = vector.broadcast %cst_41 : f32 to vector<64x4096xf32>
    %106 = vector.broadcast %cst_42 : f32 to vector<64x4096xf32>
    %107 = arith.select %104, %105, %106 : vector<64x4096xi1>, vector<64x4096xf32>
    %108 = math.absf %102 : vector<64x4096xf32>
    %cst_43 = arith.constant 0.327591091 : f32
    %109 = vector.broadcast %cst_43 : f32 to vector<64x4096xf32>
    %110 = arith.mulf %109, %108 : vector<64x4096xf32>
    %cst_44 = arith.constant 1.000000e+00 : f32
    %111 = vector.broadcast %cst_44 : f32 to vector<64x4096xf32>
    %112 = arith.addf %111, %110 : vector<64x4096xf32>
    %cst_45 = arith.constant 1.000000e+00 : f32
    %113 = vector.broadcast %cst_45 : f32 to vector<64x4096xf32>
    %114 = arith.divf %113, %112 : vector<64x4096xf32>
    %cst_46 = arith.constant 1.06140542 : f32
    %115 = vector.broadcast %cst_46 : f32 to vector<64x4096xf32>
    %116 = arith.mulf %115, %114 : vector<64x4096xf32>
    %cst_47 = arith.constant -1.45315206 : f32
    %117 = vector.broadcast %cst_47 : f32 to vector<64x4096xf32>
    %118 = arith.addf %116, %117 : vector<64x4096xf32>
    %119 = arith.mulf %118, %114 : vector<64x4096xf32>
    %cst_48 = arith.constant 1.42141378 : f32
    %120 = vector.broadcast %cst_48 : f32 to vector<64x4096xf32>
    %121 = arith.addf %119, %120 : vector<64x4096xf32>
    %122 = arith.mulf %121, %114 : vector<64x4096xf32>
    %cst_49 = arith.constant -0.284496725 : f32
    %123 = vector.broadcast %cst_49 : f32 to vector<64x4096xf32>
    %124 = arith.addf %122, %123 : vector<64x4096xf32>
    %125 = arith.mulf %124, %114 : vector<64x4096xf32>
    %cst_50 = arith.constant 0.254829586 : f32
    %126 = vector.broadcast %cst_50 : f32 to vector<64x4096xf32>
    %127 = arith.addf %125, %126 : vector<64x4096xf32>
    %128 = arith.mulf %127, %114 : vector<64x4096xf32>
    %cst_51 = arith.constant 0.000000e+00 : f32
    %129 = vector.broadcast %cst_51 : f32 to vector<64x4096xf32>
    %130 = arith.subf %129, %108 : vector<64x4096xf32>
    %131 = arith.mulf %130, %108 : vector<64x4096xf32>
    %132 = math.exp %131 : vector<64x4096xf32>
    %133 = arith.mulf %128, %132 : vector<64x4096xf32>
    %cst_52 = arith.constant 1.000000e+00 : f32
    %134 = vector.broadcast %cst_52 : f32 to vector<64x4096xf32>
    %135 = arith.subf %134, %133 : vector<64x4096xf32>
    %136 = arith.mulf %107, %135 : vector<64x4096xf32>
    %cst_53 = arith.constant 1.000000e+00 : f32
    %137 = vector.broadcast %cst_53 : f32 to vector<64x4096xf32>
    %138 = arith.addf %137, %136 : vector<64x4096xf32>
    %139 = arith.mulf %100, %138 : vector<64x4096xf32>
    %c0_54 = arith.constant 0 : index
    %c0_55 = arith.constant 0 : index
    %140 = vector.load %arg12[%c0_54, %c0_55] : memref<8x4096xf32, #tpu.memory_space<vmem>>, vector<8x4096xf32>
    %cst_56 = arith.constant dense<0.000000e+00> : vector<64x8xf32>
    %141 = tpu.matmul %139, %140, %cst_56 {dimension_numbers = #tpu.dot_dimension_numbers<[1], [1], [0], [0], [0, 0, 1, 0], [], []>} : vector<64x4096xf32>, vector<8x4096xf32>, vector<64x8xf32> -> vector<64x8xf32>
    %142 = arith.addf %69, %141 : vector<64x8xf32>
    %c0_57 = arith.constant 0 : index
    %c0_58 = arith.constant 0 : index
    %143 = vector.load %arg13[%c0_57, %c0_58] : memref<1x8xf32, #tpu.memory_space<vmem>>, vector<1x8xf32>
    %144 = vector.broadcast %143 : vector<1x8xf32> to vector<64x8xf32>
    %145 = arith.addf %142, %144 : vector<64x8xf32>
    %c0_59 = arith.constant 0 : index
    %c0_60 = arith.constant 0 : index
    %146 = vector.load %arg14[%c0_59, %c0_60] : memref<64x8xf32, #tpu.memory_space<vmem>>, vector<64x8xf32>
    tpu.vector_store %arg14[%c0_59, %c0_60], %145 {strides = array<i32>} : memref<64x8xf32, #tpu.memory_space<vmem>>, vector<64x8xf32>,
    return
  }
  func.func @transform_0(%arg0: i32) -> (i32, i32) {
    %c0_i32 = arith.constant 0 : i32
    %c0_i32_0 = arith.constant 0 : i32
    %c0_i32_1 = arith.constant 0 : i32
    return %c0_i32, %c0_i32_0 : i32, i32
  }
  func.func @transform_1(%arg0: i32) -> (i32, i32) {
    %c0_i32 = arith.constant 0 : i32
    %c0_i32_0 = arith.constant 0 : i32
    %c0_i32_1 = arith.constant 0 : i32
    return %c0_i32, %c0_i32_0 : i32, i32
  }
  func.func @transform_2(%arg0: i32) -> (i32, i32) {
    %c0_i32 = arith.constant 0 : i32
    %c0_i32_0 = arith.constant 0 : i32
    %c0_i32_1 = arith.constant 0 : i32
    return %c0_i32, %c0_i32_0 : i32, i32
  }
  func.func @transform_3(%arg0: i32) -> (i32, i32) {
    %c0_i32 = arith.constant 0 : i32
    %c0_i32_0 = arith.constant 0 : i32
    %c0_i32_1 = arith.constant 0 : i32
    return %c0_i32, %c0_i32_0 : i32, i32
  }
  func.func @transform_4(%arg0: i32) -> (i32, i32) {
    %c0_i32 = arith.constant 0 : i32
    %c0_i32_0 = arith.constant 0 : i32
    %c0_i32_1 = arith.constant 0 : i32
    return %c0_i32, %c0_i32_0 : i32, i32
  }
  func.func @transform_5(%arg0: i32) -> (i32, i32) {
    %c0_i32 = arith.constant 0 : i32
    %c0_i32_0 = arith.constant 0 : i32
    %c0_i32_1 = arith.constant 0 : i32
    return %c0_i32, %c0_i32_0 : i32, i32
  }
  func.func @transform_6(%arg0: i32) -> (i32, i32) {
    %c0_i32 = arith.constant 0 : i32
    %c0_i32_0 = arith.constant 0 : i32
    %c0_i32_1 = arith.constant 0 : i32
    return %c0_i32, %c0_i32_0 : i32, i32
  }
  func.func @transform_7(%arg0: i32) -> (i32, i32) {
    %c0_i32 = arith.constant 0 : i32
    %c0_i32_0 = arith.constant 0 : i32
    %c0_i32_1 = arith.constant 0 : i32
    return %c0_i32, %c0_i32_0 : i32, i32
  }
  func.func @transform_8(%arg0: i32) -> (i32, i32) {
    %c0_i32 = arith.constant 0 : i32
    %c0_i32_0 = arith.constant 0 : i32
    %c0_i32_1 = arith.constant 0 : i32
    return %c0_i32, %c0_i32_0 : i32, i32
  }
  func.func @transform_9(%arg0: i32) -> (i32, i32) {
    %c0_i32 = arith.constant 0 : i32
    %c0_i32_0 = arith.constant 0 : i32
    %c0_i32_1 = arith.constant 0 : i32
    return %c0_i32, %c0_i32_0 : i32, i32
  }
  func.func @transform_10(%arg0: i32) -> (i32, i32) {
    %c0_i32 = arith.constant 0 : i32
    %c0_i32_0 = arith.constant 0 : i32
    %c0_i32_1 = arith.constant 0 : i32
    return %c0_i32, %c0_i32_0 : i32, i32
  }
  func.func @transform_11(%arg0: i32) -> (i32, i32) {
    %c0_i32 = arith.constant 0 : i32
    %c0_i32_0 = arith.constant 0 : i32
    %c0_i32_1 = arith.constant 0 : i32
    return %c0_i32, %c0_i32_0 : i32, i32
  }
  func.func @transform_12(%arg0: i32) -> (i32, i32) {
    %c0_i32 = arith.constant 0 : i32
    %c0_i32_0 = arith.constant 0 : i32
    %c0_i32_1 = arith.constant 0 : i32
    return %c0_i32, %c0_i32_0 : i32, i32
  }
  func.func @transform_13(%arg0: i32) -> (i32, i32) {
    %c0_i32 = arith.constant 0 : i32
    %c0_i32_0 = arith.constant 0 : i32
    return %arg0, %c0_i32 : i32, i32
  }
}

</mosaic_0001>

<llo_original>
// kernel: _lambda_.1
$region0: #{_lambda_.1}
  #allocation0 [shape = 'u32[]', space=smem, size = 0x4, offset = 0x4, fixed_abs, tag = 'smem constant byte address 0x4 - core index']
  #allocation1 [shape = 'u32[144,128]{1,0:T(1,128)}', space=vmem, size = 0x12000, scoped, tag = 'internal scratch']
  %s0 = inlined_call_operand.vmem [shape: f32[8,8], index: 0, kind: input, shape index: {}]
  %s1 = inlined_call_operand.vmem [shape: f32[1,8], index: 1, kind: input, shape index: {}, may-alias: {1,7}]
  %s2 = inlined_call_operand.vmem [shape: f32[1,8], index: 2, kind: input, shape index: {}, may-alias: {2,8}]
  %s3 = inlined_call_operand.hbm [shape: f32[8,24], index: 3, kind: input, shape index: {}]
  %s4 = inlined_call_operand.hbm [shape: f32[1,24], index: 4, kind: input, shape index: {}]
  %s5 = inlined_call_operand.hbm [shape: f32[8,8], index: 5, kind: input, shape index: {}]
  %s6 = inlined_call_operand.hbm [shape: f32[1,8], index: 6, kind: input, shape index: {}]
  %s7 = inlined_call_operand.vmem [shape: f32[1,8], index: 7, kind: input, shape index: {}, may-alias: {1,7}]
  %s8 = inlined_call_operand.vmem [shape: f32[1,8], index: 8, kind: input, shape index: {}, may-alias: {2,8}]
  %s9 = inlined_call_operand.hbm [shape: f32[8,4096], index: 9, kind: input, shape index: {}]
  %s10 = inlined_call_operand.vmem [shape: f32[1,4096], index: 10, kind: input, shape index: {}]
  %s11 = inlined_call_operand.hbm [shape: f32[8,4096], index: 11, kind: input, shape index: {}]
  %s12 = inlined_call_operand.vmem [shape: f32[1,8], index: 12, kind: input, shape index: {}]
  %s13 = inlined_call_operand.hbm [shape: f32[64,8], index: 13, kind: output, shape index: {}]
  %s14 = sld [smem:[#allocation0]]
  $region86: #{_lambda_.1} parent=0
    _
  %s16 = ssub.s32 1, %s14
  %s17 = scalar_select 0, %s16, %s14
  $region1: #{_lambda_.1} parent=0
    #allocation2 [shape = 'u8[4096]{0}', space=vmem, size = 0x1000, scoped, tag = 'input window, operand 3, single buffered']
    #allocation3 [shape = 's32[1]{0}', space=sflag, size = 0x4, scoped, tag = 'scoped memory for _lambda_.1']
    #allocation4 [shape = 's32[1]{0}', space=sflag, size = 0x4, scoped, tag = 'scoped memory for _lambda_.1']
    #allocation5 [shape = 'u8[512]{0}', space=vmem, size = 0x400, scoped, tag = 'input window, operand 4, single buffered']
    #allocation6 [shape = 's32[1]{0}', space=sflag, size = 0x4, scoped, tag = 'scoped memory for _lambda_.1']
    #allocation7 [shape = 'u8[4096]{0}', space=vmem, size = 0x1000, scoped, tag = 'input window, operand 5, single buffered']
    #allocation8 [shape = 'u8[512]{0}', space=vmem, size = 0x400, scoped, tag = 'input window, operand 6, single buffered']
    #allocation9 [shape = 's32[1]{0}', space=sflag, size = 0x4, scoped, tag = 'scoped memory for _lambda_.1']
    #allocation10 [shape = 'u8[131072]{0}', space=vmem, size = 0x20000, scoped, tag = 'input window, operand 9, single buffered']
    #allocation11 [shape = 'u8[131072]{0}', space=vmem, size = 0x20000, scoped, tag = 'input window, operand 11, single buffered']
    #allocation12 [shape = 's32[1]{0}', space=sflag, size = 0x4, scoped, tag = 'scoped memory for _lambda_.1']
    #allocation13 [shape = 'u8[32768]{0}', space=vmem, size = 0x8000, scoped, tag = 'output window, operand 0, single buffered']
    %18 = vsyncpa [#allocation3], 0
    %19 = vsyncpa [#allocation6], 0
    %20 = vsyncpa [#allocation9], 0
    %21 = vsyncpa [#allocation12], 0
    %22 = vsyncpa [#allocation4], 0
    // Predicated region
    $region2: #{_lambda_.1} parent=1 // pred_check
      _
    $region3: #{_lambda_.1} parent=1 // pred_check_branch
      %24 = sbr.rel (0) target = $region5
    $region4: #{_lambda_.1} parent=1 // pred_region
      _
    $region5: #{_lambda_.1} parent=1 // pred_fallthru
      _
    // Predicated region
    $region6: #{_lambda_.1} parent=1 // pred_check
      _
    $region7: #{_lambda_.1} parent=1 // pred_check_branch
      %26 = sbr.rel (0) target = $region9
    $region8: #{_lambda_.1} parent=1 // pred_region
      _
    $region9: #{_lambda_.1} parent=1 // pred_fallthru
      _
    // Predicated region
    $region10: #{_lambda_.1} parent=1 // pred_check
      _
    $region11: #{_lambda_.1} parent=1 // pred_check_branch
      %28 = sbr.rel (0) target = $region13
    $region12: #{_lambda_.1} parent=1 // pred_region
      _
    $region13: #{_lambda_.1} parent=1 // pred_fallthru
      _
    // Predicated region
    $region14: #{_lambda_.1} parent=1 // pred_check
      _
    $region15: #{_lambda_.1} parent=1 // pred_check_branch
      %30 = sbr.rel (0) target = $region17
    $region16: #{_lambda_.1} parent=1 // pred_region
      %s32 = ssub.s32 128, 128
      %33 = vsyncadd [#allocation3], %s32
      %s35 = sshll.u32 [#allocation2], 4
      %s36 = int_to_ptr.vmem [resolvable:$true] %s35
      %38 = dma.hbm_to_vmem [thread:$0]  %s3, 128, %s36, [#allocation3]
    $region17: #{_lambda_.1} parent=1 // pred_fallthru
      _
    // Predicated region
    $region18: #{_lambda_.1} parent=1 // pred_check
      _
    $region19: #{_lambda_.1} parent=1 // pred_check_branch
      %40 = sbr.rel (0) target = $region21
    $region20: #{_lambda_.1} parent=1 // pred_region
      %s42 = ssub.s32 16, 16
      %43 = vsyncadd [#allocation6], %s42
      %s45 = sshll.u32 [#allocation5], 4
      %s46 = int_to_ptr.vmem [resolvable:$true] %s45
      %48 = dma.hbm_to_vmem [thread:$0]  %s4, 16, %s46, [#allocation6]
    $region21: #{_lambda_.1} parent=1 // pred_fallthru
      _
    // Predicated region
    $region22: #{_lambda_.1} parent=1 // pred_check
      _
    $region23: #{_lambda_.1} parent=1 // pred_check_branch
      %50 = sbr.rel (0) target = $region25
    $region24: #{_lambda_.1} parent=1 // pred_region
      %s52 = ssub.s32 128, 128
      %53 = vsyncadd [#allocation6], %s52
      %s55 = sshll.u32 [#allocation7], 4
      %s56 = int_to_ptr.vmem [resolvable:$true] %s55
      %58 = dma.hbm_to_vmem [thread:$0]  %s5, 128, %s56, [#allocation6]
    $region25: #{_lambda_.1} parent=1 // pred_fallthru
      _
    // Predicated region
    $region26: #{_lambda_.1} parent=1 // pred_check
      _
    $region27: #{_lambda_.1} parent=1 // pred_check_branch
      %60 = sbr.rel (0) target = $region29
    $region28: #{_lambda_.1} parent=1 // pred_region
      %s62 = ssub.s32 16, 16
      %63 = vsyncadd [#allocation9], %s62
      %s65 = sshll.u32 [#allocation8], 4
      %s66 = int_to_ptr.vmem [resolvable:$true] %s65
      %68 = dma.hbm_to_vmem [thread:$0]  %s6, 16, %s66, [#allocation9]
    $region29: #{_lambda_.1} parent=1 // pred_fallthru
      _
    // Predicated region
    $region30: #{_lambda_.1} parent=1 // pred_check
      _
    $region31: #{_lambda_.1} parent=1 // pred_check_branch
      %70 = sbr.rel (0) target = $region33
    $region32: #{_lambda_.1} parent=1 // pred_region
      _
    $region33: #{_lambda_.1} parent=1 // pred_fallthru
      _
    // Predicated region
    $region34: #{_lambda_.1} parent=1 // pred_check
      _
    $region35: #{_lambda_.1} parent=1 // pred_check_branch
      %72 = sbr.rel (0) target = $region37
    $region36: #{_lambda_.1} parent=1 // pred_region
      _
    $region37: #{_lambda_.1} parent=1 // pred_fallthru
      _
    // Predicated region
    $region38: #{_lambda_.1} parent=1 // pred_check
      _
    $region39: #{_lambda_.1} parent=1 // pred_check_branch
      %74 = sbr.rel (0) target = $region41
    $region40: #{_lambda_.1} parent=1 // pred_region
      %s76 = ssub.s32 4096, 4096
      %77 = vsyncadd [#allocation9], %s76
      %s79 = sshll.u32 [#allocation10], 4
      %s80 = int_to_ptr.vmem [resolvable:$true] %s79
      %82 = dma.hbm_to_vmem [thread:$0]  %s9, 4096, %s80, [#allocation9]
    $region41: #{_lambda_.1} parent=1 // pred_fallthru
      _
    // Predicated region
    $region42: #{_lambda_.1} parent=1 // pred_check
      _
    $region43: #{_lambda_.1} parent=1 // pred_check_branch
      %84 = sbr.rel (0) target = $region45
    $region44: #{_lambda_.1} parent=1 // pred_region
      _
    $region45: #{_lambda_.1} parent=1 // pred_fallthru
      _
    // Predicated region
    $region46: #{_lambda_.1} parent=1 // pred_check
      _
    $region47: #{_lambda_.1} parent=1 // pred_check_branch
      %86 = sbr.rel (0) target = $region49
    $region48: #{_lambda_.1} parent=1 // pred_region
      %s88 = ssub.s32 4096, 4096
      %89 = vsyncadd [#allocation12], %s88
      %s91 = sshll.u32 [#allocation11], 4
      %s92 = int_to_ptr.vmem [resolvable:$true] %s91
      %94 = dma.hbm_to_vmem [thread:$0]  %s11, 4096, %s92, [#allocation12]
    $region49: #{_lambda_.1} parent=1 // pred_fallthru
      _
    // Predicated region
    $region50: #{_lambda_.1} parent=1 // pred_check
      _
    $region51: #{_lambda_.1} parent=1 // pred_check_branch
      %96 = sbr.rel (0) target = $region53
    $region52: #{_lambda_.1} parent=1 // pred_region
      _
    $region53: #{_lambda_.1} parent=1 // pred_fallthru
      _
    // Predicated region
    $region54: #{_lambda_.1} parent=1 // pred_check
      _
    $region55: #{_lambda_.1} parent=1 // pred_check_branch
      %98 = sbr.rel (0) target = $region57
    $region56: #{_lambda_.1} parent=1 // pred_region
      %99 = dma.done [#allocation3], 128
    $region57: #{_lambda_.1} parent=1 // pred_fallthru
      _
    // Predicated region
    $region58: #{_lambda_.1} parent=1 // pred_check
      _
    $region59: #{_lambda_.1} parent=1 // pred_check_branch
      %101 = sbr.rel (0) target = $region61
    $region60: #{_lambda_.1} parent=1 // pred_region
      %102 = dma.done [#allocation6], 16
    $region61: #{_lambda_.1} parent=1 // pred_fallthru
      _
    // Predicated region
    $region62: #{_lambda_.1} parent=1 // pred_check
      _
    $region63: #{_lambda_.1} parent=1 // pred_check_branch
      %104 = sbr.rel (0) target = $region65
    $region64: #{_lambda_.1} parent=1 // pred_region
      %105 = dma.done [#allocation6], 128
    $region65: #{_lambda_.1} parent=1 // pred_fallthru
      _
    // Predicated region
    $region66: #{_lambda_.1} parent=1 // pred_check
      _
    $region67: #{_lambda_.1} parent=1 // pred_check_branch
      %107 = sbr.rel (0) target = $region69
    $region68: #{_lambda_.1} parent=1 // pred_region
      %108 = dma.done [#allocation9], 16
    $region69: #{_lambda_.1} parent=1 // pred_fallthru
      _
    // Predicated region
    $region70: #{_lambda_.1} parent=1 // pred_check
      _
    $region71: #{_lambda_.1} parent=1 // pred_check_branch
      %110 = sbr.rel (0) target = $region73
    $region72: #{_lambda_.1} parent=1 // pred_region
      %111 = dma.done [#allocation9], 4096
    $region73: #{_lambda_.1} parent=1 // pred_fallthru
      _
    // Predicated region
    $region74: #{_lambda_.1} parent=1 // pred_check
      _
    $region75: #{_lambda_.1} parent=1 // pred_check_branch
      %113 = sbr.rel (0) target = $region77
    $region76: #{_lambda_.1} parent=1 // pred_region
      %114 = dma.done [#allocation12], 4096
    $region77: #{_lambda_.1} parent=1 // pred_fallthru
      _
    %v115 = vld [vmem:[%s0] sm:$0xff]
    %v116 = vld [vmem:[%s1] sm:$0x1]
    %v117 = vld [vmem:[%s2] sm:$0x1]
    %vm118 = vcmask 64512
    %v119 = vsel %vm118, %v115, 0.0
    %120 = vadd.xlane.f32.xlu0 %v119
    %v121 = vpop.xlane.xlu0 %120
    %v122 = vrcp.pop 8.0
    %v123 = vmul.f32 %v121, %v122
    %v124 = vsub.f32 %v115, %v123
    %v125 = vmul.f32 %v124, %v124
    %v126 = vsel %vm118, %v125, 0.0
    %127 = vadd.xlane.f32.xlu0 %v126
    %v128 = vpop.xlane.xlu0 %127
    %v129 = vmul.f32 %v128, %v122
    %v130 = vadd.f32 %v129, 1e-06
    %v131 = vrsqrt.pop %v130
    %v132 = vmul.f32 %v130, %v131
    %vm133 = vcmp.eq.f32.partialorder %v130, inf
    %v134 = vsel %vm133, %v130, %v132
    %vm135 = vcmp.eq.f32.partialorder %v130, 0.0
    %v136 = vand.u32 %v130, 2147483648
    %v137 = vsel %vm135, %v136, %v134
    %v138 = vrcp.pop %v137
    %v139 = vmul.f32 %v124, %v138
    %v141 = vlaneseq
    %v142 = vshrl.u32 %v141, 7
    %v143 = vsub.s32 0, %v142
    %v144 = vrot.slane %v116, %v143
    %v146 = vmul.f32 %v139, %v144
    %v148 = vlaneseq
    %v149 = vshrl.u32 %v148, 7
    %v150 = vsub.s32 0, %v149
    %v151 = vrot.slane %v117, %v150
    %v153 = vadd.f32 %v146, %v151
    %v154 = vld [vmem:[#allocation2] sm:$0xff]
    %v155 = vld [vmem:[#allocation5] sm:$0x1]
    %v157 = vlaneseq
    %v158 = vshrl.u32 %v157, 7
    %v159 = vsub.s32 0, %v158
    %v160 = vrot.slane %v155, %v159
    %v163 = vsel %vm118, %v153, 0
    %165 = vmatprep.subr.mxu0 0.0
    %166 = vmatpush1.msra.mxu0 %v154
    %167 = vmatprep.subr.mxu0 0.0
    %168 = vmatpush1.msra.mxu0 0.0
    %169 = vmatprep.subr.mxu0 0.0
    %170 = vmatpush1.msra.mxu0 0.0
    %171 = vmatprep.subr.mxu0 0.0
    %172 = vmatpush1.msra.mxu0 0.0
    %173 = vmatprep.subr.mxu0 0.0
    %174 = vmatpush1.msra.mxu0 0.0
    %175 = vmatprep.subr.mxu0 0.0
    %176 = vmatpush1.msra.mxu0 0.0
    %177 = vmatprep.subr.mxu0 0.0
    %178 = vmatpush1.msra.mxu0 0.0
    %179 = vmatprep.subr.mxu0 0.0
    %180 = vmatpush1.msra.mxu0 0.0
    %181 = vmatprep.subr.mxu0 0.0
    %182 = vmatpush1.msra.mxu0 0.0
    %183 = vmatprep.subr.mxu0 0.0
    %184 = vmatpush1.msra.mxu0 0.0
    %185 = vmatprep.subr.mxu0 0.0
    %186 = vmatpush1.msra.mxu0 0.0
    %187 = vmatprep.subr.mxu0 0.0
    %188 = vmatpush1.msra.mxu0 0.0
    %189 = vmatprep.subr.mxu0 0.0
    %190 = vmatpush1.msra.mxu0 0.0
    %191 = vmatprep.subr.mxu0 0.0
    %192 = vmatpush1.msra.mxu0 0.0
    %193 = vmatprep.subr.mxu0 0.0
    %194 = vmatpush1.msra.mxu0 0.0
    %195 = vmatprep.subr.mxu0 0.0
    %196 = vmatpush1.msra.mxu0 0.0
    %197 = vmatprep.subr.mxu0 0.0
    %198 = vmatpush1.msra.mxu0 0.0
    %199 = vmatprep.subr.mxu0 0.0
    %200 = vmatpush1.msra.mxu0 0.0
    %201 = vmatprep.subr.mxu0 0.0
    %202 = vmatpush1.msra.mxu0 0.0
    %203 = vmatprep.subr.mxu0 0.0
    %204 = vmatpush1.msra.mxu0 0.0
    %205 = vmatprep.subr.mxu0 0.0
    %206 = vmatpush1.msra.mxu0 0.0
    %207 = vmatprep.subr.mxu0 0.0
    %208 = vmatpush1.msra.mxu0 0.0
    %209 = vmatprep.subr.mxu0 0.0
    %210 = vmatpush1.msra.mxu0 0.0
    %211 = vmatprep.subr.mxu0 0.0
    %212 = vmatpush1.msra.mxu0 0.0
    %213 = vmatprep.subr.mxu0 0.0
    %214 = vmatpush1.msra.mxu0 0.0
    %215 = vmatprep.subr.mxu0 0.0
    %216 = vmatpush1.msra.mxu0 0.0
    %217 = vmatprep.subr.mxu0 0.0
    %218 = vmatpush1.msra.mxu0 0.0
    %219 = vmatprep.subr.mxu0 0.0
    %220 = vmatpush1.msra.mxu0 0.0
    %221 = vmatprep.subr.mxu0 0.0
    %222 = vmatpush1.msra.mxu0 0.0
    %223 = vmatprep.subr.mxu0 0.0
    %224 = vmatpush1.msra.mxu0 0.0
    %225 = vmatprep.subr.mxu0 0.0
    %226 = vmatpush1.msra.mxu0 0.0
    %227 = vmatprep.subr.mxu0 0.0
    %228 = vmatpush1.msra.mxu0 0.0
    %229 = vmatprep.mubr.f32.mxu0 0.0
    %230 = vmatmul.mubr.f32.gmra.mrb[0].mxu0 %v163
    %v231 = vpop.f32.mrb[0].mxu0
    %v232 = vadd.f32 %v160, %v231
    %v233 = vpop.f32.mrb[0].mxu0
    %234 = vdwg.mxu0
    %236 = vrot.lane.b32.xlu0 %v232, 120
    %v237 = vpop.permute.xlu0 %236
    %v238 = vsel %vm118, %v232, 0
    %v240 = vsel %vm118, %v237, 0
    %242 = vmatprep.subr.mxu0 0.0
    %243 = vmatpush1.xpose.msra.mxu0 %v240
    %244 = vmatprep.subr.mxu0 0.0
    %245 = vmatpush1.xpose.msra.mxu0 0.0
    %246 = vmatprep.subr.mxu0 0.0
    %247 = vmatpush1.xpose.msra.mxu0 0.0
    %248 = vmatprep.subr.mxu0 0.0
    %249 = vmatpush1.xpose.msra.mxu0 0.0
    %250 = vmatprep.subr.mxu0 0.0
    %251 = vmatpush1.xpose.msra.mxu0 0.0
    %252 = vmatprep.subr.mxu0 0.0
    %253 = vmatpush1.xpose.msra.mxu0 0.0
    %254 = vmatprep.subr.mxu0 0.0
    %255 = vmatpush1.xpose.msra.mxu0 0.0
    %256 = vmatprep.subr.mxu0 0.0
    %257 = vmatpush1.xpose.msra.mxu0 0.0
    %258 = vmatprep.subr.mxu0 0.0
    %259 = vmatpush1.xpose.msra.mxu0 0.0
    %260 = vmatprep.subr.mxu0 0.0
    %261 = vmatpush1.xpose.msra.mxu0 0.0
    %262 = vmatprep.subr.mxu0 0.0
    %263 = vmatpush1.xpose.msra.mxu0 0.0
    %264 = vmatprep.subr.mxu0 0.0
    %265 = vmatpush1.xpose.msra.mxu0 0.0
    %266 = vmatprep.subr.mxu0 0.0
    %267 = vmatpush1.xpose.msra.mxu0 0.0
    %268 = vmatprep.subr.mxu0 0.0
    %269 = vmatpush1.xpose.msra.mxu0 0.0
    %270 = vmatprep.subr.mxu0 0.0
    %271 = vmatpush1.xpose.msra.mxu0 0.0
    %272 = vmatprep.subr.mxu0 0.0
    %273 = vmatpush1.xpose.msra.mxu0 0.0
    %274 = vmatprep.subr.mxu0 0.0
    %275 = vmatpush1.xpose.msra.mxu0 0.0
    %276 = vmatprep.subr.mxu0 0.0
    %277 = vmatpush1.xpose.msra.mxu0 0.0
    %278 = vmatprep.subr.mxu0 0.0
    %279 = vmatpush1.xpose.msra.mxu0 0.0
    %280 = vmatprep.subr.mxu0 0.0
    %281 = vmatpush1.xpose.msra.mxu0 0.0
    %282 = vmatprep.subr.mxu0 0.0
    %283 = vmatpush1.xpose.msra.mxu0 0.0
    %284 = vmatprep.subr.mxu0 0.0
    %285 = vmatpush1.xpose.msra.mxu0 0.0
    %286 = vmatprep.subr.mxu0 0.0
    %287 = vmatpush1.xpose.msra.mxu0 0.0
    %288 = vmatprep.subr.mxu0 0.0
    %289 = vmatpush1.xpose.msra.mxu0 0.0
    %290 = vmatprep.subr.mxu0 0.0
    %291 = vmatpush1.xpose.msra.mxu0 0.0
    %292 = vmatprep.subr.mxu0 0.0
    %293 = vmatpush1.xpose.msra.mxu0 0.0
    %294 = vmatprep.subr.mxu0 0.0
    %295 = vmatpush1.xpose.msra.mxu0 0.0
    %296 = vmatprep.subr.mxu0 0.0
    %297 = vmatpush1.xpose.msra.mxu0 0.0
    %298 = vmatprep.subr.mxu0 0.0
    %299 = vmatpush1.xpose.msra.mxu0 0.0
    %300 = vmatprep.subr.mxu0 0.0
    %301 = vmatpush1.xpose.msra.mxu0 0.0
    %302 = vmatprep.subr.mxu0 0.0
    %303 = vmatpush1.xpose.msra.mxu0 0.0
    %304 = vmatprep.subr.mxu0 0.0
    %305 = vmatpush1.xpose.msra.mxu0 0.0
    %306 = vmatprep.mubr.f32.mxu0 0.0
    %307 = vmatmul.mubr.f32.gmra.mrb[0].mxu0 %v238
    %v308 = vpop.f32.mrb[0].mxu0
    %v309 = vadd.f32 0.0, %v308
    %v310 = vpop.f32.mrb[0].mxu0
    %311 = vdwg.mxu0
    %vm312 = vcmp.lt.f32.partialorder %v309, 0.0
    %v313 = vsel %vm312, nan, 1.0
    %314 = vrot.lane.b32.xlu0 %v232, 112
    %v315 = vpop.permute.xlu0 %314
    %v318 = vsel %vm118, %v313, 0
    %320 = vmatprep.subr.mxu0 0.0
    %321 = vmatpush1.msra.mxu0 %v315
    %322 = vmatprep.subr.mxu0 0.0
    %323 = vmatpush1.msra.mxu0 0.0
    %324 = vmatprep.subr.mxu0 0.0
    %325 = vmatpush1.msra.mxu0 0.0
    %326 = vmatprep.subr.mxu0 0.0
    %327 = vmatpush1.msra.mxu0 0.0
    %328 = vmatprep.subr.mxu0 0.0
    %329 = vmatpush1.msra.mxu0 0.0
    %330 = vmatprep.subr.mxu0 0.0
    %331 = vmatpush1.msra.mxu0 0.0
    %332 = vmatprep.subr.mxu0 0.0
    %333 = vmatpush1.msra.mxu0 0.0
    %334 = vmatprep.subr.mxu0 0.0
    %335 = vmatpush1.msra.mxu0 0.0
    %336 = vmatprep.subr.mxu0 0.0
    %337 = vmatpush1.msra.mxu0 0.0
    %338 = vmatprep.subr.mxu0 0.0
    %339 = vmatpush1.msra.mxu0 0.0
    %340 = vmatprep.subr.mxu0 0.0
    %341 = vmatpush1.msra.mxu0 0.0
    %342 = vmatprep.subr.mxu0 0.0
    %343 = vmatpush1.msra.mxu0 0.0
    %344 = vmatprep.subr.mxu0 0.0
    %345 = vmatpush1.msra.mxu0 0.0
    %346 = vmatprep.subr.mxu0 0.0
    %347 = vmatpush1.msra.mxu0 0.0
    %348 = vmatprep.subr.mxu0 0.0
    %349 = vmatpush1.msra.mxu0 0.0
    %350 = vmatprep.subr.mxu0 0.0
    %351 = vmatpush1.msra.mxu0 0.0
    %352 = vmatprep.subr.mxu0 0.0
    %353 = vmatpush1.msra.mxu0 0.0
    %354 = vmatprep.subr.mxu0 0.0
    %355 = vmatpush1.msra.mxu0 0.0
    %356 = vmatprep.subr.mxu0 0.0
    %357 = vmatpush1.msra.mxu0 0.0
    %358 = vmatprep.subr.mxu0 0.0
    %359 = vmatpush1.msra.mxu0 0.0
    %360 = vmatprep.subr.mxu0 0.0
    %361 = vmatpush1.msra.mxu0 0.0
    %362 = vmatprep.subr.mxu0 0.0
    %363 = vmatpush1.msra.mxu0 0.0
    %364 = vmatprep.subr.mxu0 0.0
    %365 = vmatpush1.msra.mxu0 0.0
    %366 = vmatprep.subr.mxu0 0.0
    %367 = vmatpush1.msra.mxu0 0.0
    %368 = vmatprep.subr.mxu0 0.0
    %369 = vmatpush1.msra.mxu0 0.0
    %370 = vmatprep.subr.mxu0 0.0
    %371 = vmatpush1.msra.mxu0 0.0
    %372 = vmatprep.subr.mxu0 0.0
    %373 = vmatpush1.msra.mxu0 0.0
    %374 = vmatprep.subr.mxu0 0.0
    %375 = vmatpush1.msra.mxu0 0.0
    %376 = vmatprep.subr.mxu0 0.0
    %377 = vmatpush1.msra.mxu0 0.0
    %378 = vmatprep.subr.mxu0 0.0
    %379 = vmatpush1.msra.mxu0 0.0
    %380 = vmatprep.subr.mxu0 0.0
    %381 = vmatpush1.msra.mxu0 0.0
    %382 = vmatprep.subr.mxu0 0.0
    %383 = vmatpush1.msra.mxu0 0.0
    %384 = vmatprep.mubr.f32.mxu0 0.0
    %385 = vmatmul.mubr.f32.gmra.mrb[0].mxu0 %v318
    %v386 = vpop.f32.mrb[0].mxu0
    %v387 = vadd.f32 0.0, %v386
    %v388 = vpop.f32.mrb[0].mxu0
    %389 = vdwg.mxu0
    %v390 = vld [vmem:[#allocation7] sm:$0xff]
    %v391 = vld [vmem:[#allocation8] sm:$0x1]
    %v393 = vlaneseq
    %v394 = vshrl.u32 %v393, 7
    %v395 = vsub.s32 0, %v394
    %v396 = vrot.slane %v391, %v395
    %v399 = vsel %vm118, %v387, 0
    %401 = vmatprep.subr.mxu0 0.0
    %402 = vmatpush1.msra.mxu0 %v390
    %403 = vmatprep.subr.mxu0 0.0
    %404 = vmatpush1.msra.mxu0 0.0
    %405 = vmatprep.subr.mxu0 0.0
    %406 = vmatpush1.msra.mxu0 0.0
    %407 = vmatprep.subr.mxu0 0.0
    %408 = vmatpush1.msra.mxu0 0.0
    %409 = vmatprep.subr.mxu0 0.0
    %410 = vmatpush1.msra.mxu0 0.0
    %411 = vmatprep.subr.mxu0 0.0
    %412 = vmatpush1.msra.mxu0 0.0
    %413 = vmatprep.subr.mxu0 0.0
    %414 = vmatpush1.msra.mxu0 0.0
    %415 = vmatprep.subr.mxu0 0.0
    %416 = vmatpush1.msra.mxu0 0.0
    %417 = vmatprep.subr.mxu0 0.0
    %418 = vmatpush1.msra.mxu0 0.0
    %419 = vmatprep.subr.mxu0 0.0
    %420 = vmatpush1.msra.mxu0 0.0
    %421 = vmatprep.subr.mxu0 0.0
    %422 = vmatpush1.msra.mxu0 0.0
    %423 = vmatprep.subr.mxu0 0.0
    %424 = vmatpush1.msra.mxu0 0.0
    %425 = vmatprep.subr.mxu0 0.0
    %426 = vmatpush1.msra.mxu0 0.0
    %427 = vmatprep.subr.mxu0 0.0
    %428 = vmatpush1.msra.mxu0 0.0
    %429 = vmatprep.subr.mxu0 0.0
    %430 = vmatpush1.msra.mxu0 0.0
    %431 = vmatprep.subr.mxu0 0.0
    %432 = vmatpush1.msra.mxu0 0.0
    %433 = vmatprep.subr.mxu0 0.0
    %434 = vmatpush1.msra.mxu0 0.0
    %435 = vmatprep.subr.mxu0 0.0
    %436 = vmatpush1.msra.mxu0 0.0
    %437 = vmatprep.subr.mxu0 0.0
    %438 = vmatpush1.msra.mxu0 0.0
    %439 = vmatprep.subr.mxu0 0.0
    %440 = vmatpush1.msra.mxu0 0.0
    %441 = vmatprep.subr.mxu0 0.0
    %442 = vmatpush1.msra.mxu0 0.0
    %443 = vmatprep.subr.mxu0 0.0
    %444 = vmatpush1.msra.mxu0 0.0
    %445 = vmatprep.subr.mxu0 0.0
    %446 = vmatpush1.msra.mxu0 0.0
    %447 = vmatprep.subr.mxu0 0.0
    %448 = vmatpush1.msra.mxu0 0.0
    %449 = vmatprep.subr.mxu0 0.0
    %450 = vmatpush1.msra.mxu0 0.0
    %451 = vmatprep.subr.mxu0 0.0
    %452 = vmatpush1.msra.mxu0 0.0
    %453 = vmatprep.subr.mxu0 0.0
    %454 = vmatpush1.msra.mxu0 0.0
    %455 = vmatprep.subr.mxu0 0.0
    %456 = vmatpush1.msra.mxu0 0.0
    %457 = vmatprep.subr.mxu0 0.0
    %458 = vmatpush1.msra.mxu0 0.0
    %459 = vmatprep.subr.mxu0 0.0
    %460 = vmatpush1.msra.mxu0 0.0
    %461 = vmatprep.subr.mxu0 0.0
    %462 = vmatpush1.msra.mxu0 0.0
    %463 = vmatprep.subr.mxu0 0.0
    %464 = vmatpush1.msra.mxu0 0.0
    %465 = vmatprep.mubr.f32.mxu0 0.0
    %466 = vmatmul.mubr.f32.gmra.mrb[0].mxu0 %v399
    %v467 = vpop.f32.mrb[0].mxu0
    %v468 = vadd.f32 %v396, %v467
    %v469 = vpop.f32.mrb[0].mxu0
    %470 = vdwg.mxu0
    %v471 = vlaneseq
    %v472 = vshrl.u32 %v471, 7
    %v473 = vsub.s32 0, %v472
    %v474 = vrot.slane %v468, %v473
    %v475 = vadd.f32 %v474, %v115
    %v476 = vlaneseq
    %v477 = vshrl.u32 %v476, 7
    %v478 = vsub.s32 1, %v477
    %v479 = vrot.slane %v468, %v478
    %v480 = vadd.f32 %v479, %v115
    %v481 = vlaneseq
    %v482 = vshrl.u32 %v481, 7
    %v483 = vsub.s32 2, %v482
    %v484 = vrot.slane %v468, %v483
    %v485 = vadd.f32 %v484, %v115
    %v486 = vlaneseq
    %v487 = vshrl.u32 %v486, 7
    %v488 = vsub.s32 3, %v487
    %v489 = vrot.slane %v468, %v488
    %v490 = vadd.f32 %v489, %v115
    %v491 = vlaneseq
    %v492 = vshrl.u32 %v491, 7
    %v493 = vsub.s32 4, %v492
    %v494 = vrot.slane %v468, %v493
    %v495 = vadd.f32 %v494, %v115
    %v496 = vlaneseq
    %v497 = vshrl.u32 %v496, 7
    %v498 = vsub.s32 5, %v497
    %v499 = vrot.slane %v468, %v498
    %v500 = vadd.f32 %v499, %v115
    %v501 = vlaneseq
    %v502 = vshrl.u32 %v501, 7
    %v503 = vsub.s32 6, %v502
    %v504 = vrot.slane %v468, %v503
    %v505 = vadd.f32 %v504, %v115
    %v506 = vlaneseq
    %v507 = vshrl.u32 %v506, 7
    %v508 = vsub.s32 7, %v507
    %v509 = vrot.slane %v468, %v508
    %v510 = vadd.f32 %v509, %v115
    %v511 = vld [vmem:[%s7] sm:$0x1]
    %v512 = vld [vmem:[%s8] sm:$0x1]
    %v513 = vsel %vm118, %v475, 0.0
    %514 = vadd.xlane.f32.xlu0 %v513
    %v515 = vpop.xlane.xlu0 %514
    %v516 = vsel %vm118, %v480, 0.0
    %517 = vadd.xlane.f32.xlu0 %v516
    %v518 = vpop.xlane.xlu0 %517
    %v519 = vsel %vm118, %v485, 0.0
    %520 = vadd.xlane.f32.xlu0 %v519
    %v521 = vpop.xlane.xlu0 %520
    %v522 = vsel %vm118, %v490, 0.0
    %523 = vadd.xlane.f32.xlu0 %v522
    %v524 = vpop.xlane.xlu0 %523
    %v525 = vsel %vm118, %v495, 0.0
    %526 = vadd.xlane.f32.xlu0 %v525
    %v527 = vpop.xlane.xlu0 %526
    %v528 = vsel %vm118, %v500, 0.0
    %529 = vadd.xlane.f32.xlu0 %v528
    %v530 = vpop.xlane.xlu0 %529
    %v531 = vsel %vm118, %v505, 0.0
    %532 = vadd.xlane.f32.xlu0 %v531
    %v533 = vpop.xlane.xlu0 %532
    %v534 = vsel %vm118, %v510, 0.0
    %535 = vadd.xlane.f32.xlu0 %v534
    %v536 = vpop.xlane.xlu0 %535
    %v537 = vmul.f32 %v515, %v122
    %v538 = vmul.f32 %v518, %v122
    %v539 = vmul.f32 %v521, %v122
    %v540 = vmul.f32 %v524, %v122
    %v541 = vmul.f32 %v527, %v122
    %v542 = vmul.f32 %v530, %v122
    %v543 = vmul.f32 %v533, %v122
    %v544 = vmul.f32 %v536, %v122
    %v545 = vsub.f32 %v475, %v537
    %v546 = vsub.f32 %v480, %v538
    %v547 = vsub.f32 %v485, %v539
    %v548 = vsub.f32 %v490, %v540
    %v549 = vsub.f32 %v495, %v541
    %v550 = vsub.f32 %v500, %v542
    %v551 = vsub.f32 %v505, %v543
    %v552 = vsub.f32 %v510, %v544
    %v553 = vmul.f32 %v545, %v545
    %v554 = vmul.f32 %v546, %v546
    %v555 = vmul.f32 %v547, %v547
    %v556 = vmul.f32 %v548, %v548
    %v557 = vmul.f32 %v549, %v549
    %v558 = vmul.f32 %v550, %v550
    %v559 = vmul.f32 %v551, %v551
    %v560 = vmul.f32 %v552, %v552
    %v561 = vsel %vm118, %v553, 0.0
    %562 = vadd.xlane.f32.xlu0 %v561
    %v563 = vpop.xlane.xlu0 %562
    %v564 = vsel %vm118, %v554, 0.0
    %565 = vadd.xlane.f32.xlu0 %v564
    %v566 = vpop.xlane.xlu0 %565
    %v567 = vsel %vm118, %v555, 0.0
    %568 = vadd.xlane.f32.xlu0 %v567
    %v569 = vpop.xlane.xlu0 %568
    %v570 = vsel %vm118, %v556, 0.0
    %571 = vadd.xlane.f32.xlu0 %v570
    %v572 = vpop.xlane.xlu0 %571
    %v573 = vsel %vm118, %v557, 0.0
    %574 = vadd.xlane.f32.xlu0 %v573
    %v575 = vpop.xlane.xlu0 %574
    %v576 = vsel %vm118, %v558, 0.0
    %577 = vadd.xlane.f32.xlu0 %v576
    %v578 = vpop.xlane.xlu0 %577
    %v579 = vsel %vm118, %v559, 0.0
    %580 = vadd.xlane.f32.xlu0 %v579
    %v581 = vpop.xlane.xlu0 %580
    %v582 = vsel %vm118, %v560, 0.0
    %583 = vadd.xlane.f32.xlu0 %v582
    %v584 = vpop.xlane.xlu0 %583
    %v585 = vmul.f32 %v563, %v122
    %v586 = vmul.f32 %v566, %v122
    %v587 = vmul.f32 %v569, %v122
    %v588 = vmul.f32 %v572, %v122
    %v589 = vmul.f32 %v575, %v122
    %v590 = vmul.f32 %v578, %v122
    %v591 = vmul.f32 %v581, %v122
    %v592 = vmul.f32 %v584, %v122
    %v593 = vadd.f32 %v585, 1e-06
    %v594 = vadd.f32 %v586, 1e-06
    %v595 = vadd.f32 %v587, 1e-06
    %v596 = vadd.f32 %v588, 1e-06
    %v597 = vadd.f32 %v589, 1e-06
    %v598 = vadd.f32 %v590, 1e-06
    %v599 = vadd.f32 %v591, 1e-06
    %v600 = vadd.f32 %v592, 1e-06
    %v601 = vrsqrt.pop %v593
    %v602 = vmul.f32 %v593, %v601
    %vm603 = vcmp.eq.f32.partialorder %v593, inf
    %v604 = vsel %vm603, %v593, %v602
    %vm605 = vcmp.eq.f32.partialorder %v593, 0.0
    %v606 = vand.u32 %v593, 2147483648
    %v607 = vsel %vm605, %v606, %v604
    %v608 = vrsqrt.pop %v594
    %v609 = vmul.f32 %v594, %v608
    %vm610 = vcmp.eq.f32.partialorder %v594, inf
    %v611 = vsel %vm610, %v594, %v609
    %vm612 = vcmp.eq.f32.partialorder %v594, 0.0
    %v613 = vand.u32 %v594, 2147483648
    %v614 = vsel %vm612, %v613, %v611
    %v615 = vrsqrt.pop %v595
    %v616 = vmul.f32 %v595, %v615
    %vm617 = vcmp.eq.f32.partialorder %v595, inf
    %v618 = vsel %vm617, %v595, %v616
    %vm619 = vcmp.eq.f32.partialorder %v595, 0.0
    %v620 = vand.u32 %v595, 2147483648
    %v621 = vsel %vm619, %v620, %v618
    %v622 = vrsqrt.pop %v596
    %v623 = vmul.f32 %v596, %v622
    %vm624 = vcmp.eq.f32.partialorder %v596, inf
    %v625 = vsel %vm624, %v596, %v623
    %vm626 = vcmp.eq.f32.partialorder %v596, 0.0
    %v627 = vand.u32 %v596, 2147483648
    %v628 = vsel %vm626, %v627, %v625
    %v629 = vrsqrt.pop %v597
    %v630 = vmul.f32 %v597, %v629
    %vm631 = vcmp.eq.f32.partialorder %v597, inf
    %v632 = vsel %vm631, %v597, %v630
    %vm633 = vcmp.eq.f32.partialorder %v597, 0.0
    %v634 = vand.u32 %v597, 2147483648
    %v635 = vsel %vm633, %v634, %v632
    %v636 = vrsqrt.pop %v598
    %v637 = vmul.f32 %v598, %v636
    %vm638 = vcmp.eq.f32.partialorder %v598, inf
    %v639 = vsel %vm638, %v598, %v637
    %vm640 = vcmp.eq.f32.partialorder %v598, 0.0
    %v641 = vand.u32 %v598, 2147483648
    %v642 = vsel %vm640, %v641, %v639
    %v643 = vrsqrt.pop %v599
    %v644 = vmul.f32 %v599, %v643
    %vm645 = vcmp.eq.f32.partialorder %v599, inf
    %v646 = vsel %vm645, %v599, %v644
    %vm647 = vcmp.eq.f32.partialorder %v599, 0.0
    %v648 = vand.u32 %v599, 2147483648
    %v649 = vsel %vm647, %v648, %v646
    %v650 = vrsqrt.pop %v600
    %v651 = vmul.f32 %v600, %v650
    %vm652 = vcmp.eq.f32.partialorder %v600, inf
    %v653 = vsel %vm652, %v600, %v651
    %vm654 = vcmp.eq.f32.partialorder %v600, 0.0
    %v655 = vand.u32 %v600, 2147483648
    %v656 = vsel %vm654, %v655, %v653
    %v657 = vrcp.pop %v607
    %v658 = vmul.f32 %v545, %v657
    %v659 = vrcp.pop %v614
    %v660 = vmul.f32 %v546, %v659
    %v661 = vrcp.pop %v621
    %v662 = vmul.f32 %v547, %v661
    %v663 = vrcp.pop %v628
    %v664 = vmul.f32 %v548, %v663
    %v665 = vrcp.pop %v635
    %v666 = vmul.f32 %v549, %v665
    %v667 = vrcp.pop %v642
    %v668 = vmul.f32 %v550, %v667
    %v669 = vrcp.pop %v649
    %v670 = vmul.f32 %v551, %v669
    %v671 = vrcp.pop %v656
    %v672 = vmul.f32 %v552, %v671
    %v674 = vlaneseq
    %v675 = vshrl.u32 %v674, 7
    %v676 = vsub.s32 0, %v675
    %v677 = vrot.slane %v511, %v676
    %v679 = vmul.f32 %v658, %v677
    %v680 = vmul.f32 %v660, %v677
    %v681 = vmul.f32 %v662, %v677
    %v682 = vmul.f32 %v664, %v677
    %v683 = vmul.f32 %v666, %v677
    %v684 = vmul.f32 %v668, %v677
    %v685 = vmul.f32 %v670, %v677
    %v686 = vmul.f32 %v672, %v677
    %v688 = vlaneseq
    %v689 = vshrl.u32 %v688, 7
    %v690 = vsub.s32 0, %v689
    %v691 = vrot.slane %v512, %v690
    %v693 = vadd.f32 %v679, %v691
    %v694 = vadd.f32 %v680, %v691
    %v695 = vadd.f32 %v681, %v691
    %v696 = vadd.f32 %v682, %v691
    %v697 = vadd.f32 %v683, %v691
    %v698 = vadd.f32 %v684, %v691
    %v699 = vadd.f32 %v685, %v691
    %v700 = vadd.f32 %v686, %v691
    %v701 = vld [vmem:[#allocation10] sm:$0xff]
    %v702 = vld [vmem:[#allocation10 + $0x8] sm:$0xff]
    %v703 = vld [vmem:[#allocation10 + $0x10] sm:$0xff]
    %v704 = vld [vmem:[#allocation10 + $0x18] sm:$0xff]
    %v705 = vld [vmem:[#allocation10 + $0x20] sm:$0xff]
    %v706 = vld [vmem:[#allocation10 + $0x28] sm:$0xff]
    %v707 = vld [vmem:[#allocation10 + $0x30] sm:$0xff]
    %v708 = vld [vmem:[#allocation10 + $0x38] sm:$0xff]
    %v709 = vld [vmem:[#allocation10 + $0x40] sm:$0xff]
    %v710 = vld [vmem:[#allocation10 + $0x48] sm:$0xff]
    %v711 = vld [vmem:[#allocation10 + $0x50] sm:$0xff]
    %v712 = vld [vmem:[#allocation10 + $0x58] sm:$0xff]
    %v713 = vld [vmem:[#allocation10 + $0x60] sm:$0xff]
    %v714 = vld [vmem:[#allocation10 + $0x68] sm:$0xff]
    %v715 = vld [vmem:[#allocation10 + $0x70] sm:$0xff]
    %v716 = vld [vmem:[#allocation10 + $0x78] sm:$0xff]
    %v717 = vld [vmem:[#allocation10 + $0x80] sm:$0xff]
    %v718 = vld [vmem:[#allocation10 + $0x88] sm:$0xff]
    %v719 = vld [vmem:[#allocation10 + $0x90] sm:$0xff]
    %v720 = vld [vmem:[#allocation10 + $0x98] sm:$0xff]
    %v721 = vld [vmem:[#allocation10 + $0xa0] sm:$0xff]
    %v722 = vld [vmem:[#allocation10 + $0xa8] sm:$0xff]
    %v723 = vld [vmem:[#allocation10 + $0xb0] sm:$0xff]
    %v724 = vld [vmem:[#allocation10 + $0xb8] sm:$0xff]
    %v725 = vld [vmem:[#allocation10 + $0xc0] sm:$0xff]
    %v726 = vld [vmem:[#allocation10 + $0xc8] sm:$0xff]
    %v727 = vld [vmem:[#allocation10 + $0xd0] sm:$0xff]
    %v728 = vld [vmem:[#allocation10 + $0xd8] sm:$0xff]
    %v729 = vld [vmem:[#allocation10 + $0xe0] sm:$0xff]
    %v730 = vld [vmem:[#allocation10 + $0xe8] sm:$0xff]
    %v731 = vld [vmem:[#allocation10 + $0xf0] sm:$0xff]
    %v732 = vld [vmem:[#allocation10 + $0xf8] sm:$0xff]
    %v733 = vld [vmem:[%s10] sm:$0xff]
    %v734 = vld [vmem:[%s10 + $0x8] sm:$0xff]
    %v735 = vld [vmem:[%s10 + $0x10] sm:$0xff]
    %v736 = vld [vmem:[%s10 + $0x18] sm:$0xff]
    %v741 = vlaneseq
    %v742 = vshrl.u32 %v741, 7
    %v743 = vsub.s32 0, %v742
    %v744 = vrot.slane %v733, %v743
    %v745 = vlaneseq
    %v746 = vshrl.u32 %v745, 7
    %v747 = vsub.s32 1, %v746
    %v748 = vrot.slane %v733, %v747
    %v749 = vlaneseq
    %v750 = vshrl.u32 %v749, 7
    %v751 = vsub.s32 2, %v750
    %v752 = vrot.slane %v733, %v751
    %v753 = vlaneseq
    %v754 = vshrl.u32 %v753, 7
    %v755 = vsub.s32 3, %v754
    %v756 = vrot.slane %v733, %v755
    %v757 = vlaneseq
    %v758 = vshrl.u32 %v757, 7
    %v759 = vsub.s32 4, %v758
    %v760 = vrot.slane %v733, %v759
    %v761 = vlaneseq
    %v762 = vshrl.u32 %v761, 7
    %v763 = vsub.s32 5, %v762
    %v764 = vrot.slane %v733, %v763
    %v765 = vlaneseq
    %v766 = vshrl.u32 %v765, 7
    %v767 = vsub.s32 6, %v766
    %v768 = vrot.slane %v733, %v767
    %v769 = vlaneseq
    %v770 = vshrl.u32 %v769, 7
    %v771 = vsub.s32 7, %v770
    %v772 = vrot.slane %v733, %v771
    %v773 = vlaneseq
    %v774 = vshrl.u32 %v773, 7
    %v775 = vsub.s32 0, %v774
    %v776 = vrot.slane %v734, %v775
    %v777 = vlaneseq
    %v778 = vshrl.u32 %v777, 7
    %v779 = vsub.s32 1, %v778
    %v780 = vrot.slane %v734, %v779
    %v781 = vlaneseq
    %v782 = vshrl.u32 %v781, 7
    %v783 = vsub.s32 2, %v782
    %v784 = vrot.slane %v734, %v783
    %v785 = vlaneseq
    %v786 = vshrl.u32 %v785, 7
    %v787 = vsub.s32 3, %v786
    %v788 = vrot.slane %v734, %v787
    %v789 = vlaneseq
    %v790 = vshrl.u32 %v789, 7
    %v791 = vsub.s32 4, %v790
    %v792 = vrot.slane %v734, %v791
    %v793 = vlaneseq
    %v794 = vshrl.u32 %v793, 7
    %v795 = vsub.s32 5, %v794
    %v796 = vrot.slane %v734, %v795
    %v797 = vlaneseq
    %v798 = vshrl.u32 %v797, 7
    %v799 = vsub.s32 6, %v798
    %v800 = vrot.slane %v734, %v799
    %v801 = vlaneseq
    %v802 = vshrl.u32 %v801, 7
    %v803 = vsub.s32 7, %v802
    %v804 = vrot.slane %v734, %v803
    %v805 = vlaneseq
    %v806 = vshrl.u32 %v805, 7
    %v807 = vsub.s32 0, %v806
    %v808 = vrot.slane %v735, %v807
    %v809 = vlaneseq
    %v810 = vshrl.u32 %v809, 7
    %v811 = vsub.s32 1, %v810
    %v812 = vrot.slane %v735, %v811
    %v813 = vlaneseq
    %v814 = vshrl.u32 %v813, 7
    %v815 = vsub.s32 2, %v814
    %v816 = vrot.slane %v735, %v815
    %v817 = vlaneseq
    %v818 = vshrl.u32 %v817, 7
    %v819 = vsub.s32 3, %v818
    %v820 = vrot.slane %v735, %v819
    %v821 = vlaneseq
    %v822 = vshrl.u32 %v821, 7
    %v823 = vsub.s32 4, %v822
    %v824 = vrot.slane %v735, %v823
    %v825 = vlaneseq
    %v826 = vshrl.u32 %v825, 7
    %v827 = vsub.s32 5, %v826
    %v828 = vrot.slane %v735, %v827
    %v829 = vlaneseq
    %v830 = vshrl.u32 %v829, 7
    %v831 = vsub.s32 6, %v830
    %v832 = vrot.slane %v735, %v831
    %v833 = vlaneseq
    %v834 = vshrl.u32 %v833, 7
    %v835 = vsub.s32 7, %v834
    %v836 = vrot.slane %v735, %v835
    %v837 = vlaneseq
    %v838 = vshrl.u32 %v837, 7
    %v839 = vsub.s32 0, %v838
    %v840 = vrot.slane %v736, %v839
    %v841 = vlaneseq
    %v842 = vshrl.u32 %v841, 7
    %v843 = vsub.s32 1, %v842
    %v844 = vrot.slane %v736, %v843
    %v845 = vlaneseq
    %v846 = vshrl.u32 %v845, 7
    %v847 = vsub.s32 2, %v846
    %v848 = vrot.slane %v736, %v847
    %v849 = vlaneseq
    %v850 = vshrl.u32 %v849, 7
    %v851 = vsub.s32 3, %v850
    %v852 = vrot.slane %v736, %v851
    %v853 = vlaneseq
    %v854 = vshrl.u32 %v853, 7
    %v855 = vsub.s32 4, %v854
    %v856 = vrot.slane %v736, %v855
    %v857 = vlaneseq
    %v858 = vshrl.u32 %v857, 7
    %v859 = vsub.s32 5, %v858
    %v860 = vrot.slane %v736, %v859
    %v861 = vlaneseq
    %v862 = vshrl.u32 %v861, 7
    %v863 = vsub.s32 6, %v862
    %v864 = vrot.slane %v736, %v863
    %v865 = vlaneseq
    %v866 = vshrl.u32 %v865, 7
    %v867 = vsub.s32 7, %v866
    %v868 = vrot.slane %v736, %v867
    %v902 = vsel %vm118, %v693, 0
    %v905 = vsel %vm118, %v694, 0
    %v908 = vsel %vm118, %v695, 0
    %v911 = vsel %vm118, %v696, 0
    %v914 = vsel %vm118, %v697, 0
    %v917 = vsel %vm118, %v698, 0
    %v920 = vsel %vm118, %v699, 0
    %v923 = vsel %vm118, %v700, 0
    %925 = vmatprep.subr.mxu0 %v702
    %926 = vmatpush1.msra.mxu0 %v701
    %927 = vmatprep.subr.mxu0 0.0
    %928 = vmatpush1.msra.mxu0 0.0
    %929 = vmatprep.subr.mxu0 0.0
    %930 = vmatpush1.msra.mxu0 0.0
    %931 = vmatprep.subr.mxu0 0.0
    %932 = vmatpush1.msra.mxu0 0.0
    %933 = vmatprep.subr.mxu0 0.0
    %934 = vmatpush1.msra.mxu0 0.0
    %935 = vmatprep.subr.mxu0 0.0
    %936 = vmatpush1.msra.mxu0 0.0
    %937 = vmatprep.subr.mxu0 0.0
    %938 = vmatpush1.msra.mxu0 0.0
    %939 = vmatprep.subr.mxu0 0.0
    %940 = vmatpush1.msra.mxu0 0.0
    %941 = vmatprep.subr.mxu0 0.0
    %942 = vmatpush1.msra.mxu0 0.0
    %943 = vmatprep.subr.mxu0 0.0
    %944 = vmatpush1.msra.mxu0 0.0
    %945 = vmatprep.subr.mxu0 0.0
    %946 = vmatpush1.msra.mxu0 0.0
    %947 = vmatprep.subr.mxu0 0.0
    %948 = vmatpush1.msra.mxu0 0.0
    %949 = vmatprep.subr.mxu0 0.0
    %950 = vmatpush1.msra.mxu0 0.0
    %951 = vmatprep.subr.mxu0 0.0
    %952 = vmatpush1.msra.mxu0 0.0
    %953 = vmatprep.subr.mxu0 0.0
    %954 = vmatpush1.msra.mxu0 0.0
    %955 = vmatprep.subr.mxu0 0.0
    %956 = vmatpush1.msra.mxu0 0.0
    %957 = vmatprep.subr.mxu0 0.0
    %958 = vmatpush1.msra.mxu0 0.0
    %959 = vmatprep.subr.mxu0 0.0
    %960 = vmatpush1.msra.mxu0 0.0
    %961 = vmatprep.subr.mxu0 0.0
    %962 = vmatpush1.msra.mxu0 0.0
    %963 = vmatprep.subr.mxu0 0.0
    %964 = vmatpush1.msra.mxu0 0.0
    %965 = vmatprep.subr.mxu0 0.0
    %966 = vmatpush1.msra.mxu0 0.0
    %967 = vmatprep.subr.mxu0 0.0
    %968 = vmatpush1.msra.mxu0 0.0
    %969 = vmatprep.subr.mxu0 0.0
    %970 = vmatpush1.msra.mxu0 0.0
    %971 = vmatprep.subr.mxu0 0.0
    %972 = vmatpush1.msra.mxu0 0.0
    %973 = vmatprep.subr.mxu0 0.0
    %974 = vmatpush1.msra.mxu0 0.0
    %975 = vmatprep.subr.mxu0 0.0
    %976 = vmatpush1.msra.mxu0 0.0
    %977 = vmatprep.subr.mxu0 0.0
    %978 = vmatpush1.msra.mxu0 0.0
    %979 = vmatprep.subr.mxu0 0.0
    %980 = vmatpush1.msra.mxu0 0.0
    %981 = vmatprep.subr.mxu0 0.0
    %982 = vmatpush1.msra.mxu0 0.0
    %983 = vmatprep.subr.mxu0 0.0
    %984 = vmatpush1.msra.mxu0 0.0
    %985 = vmatprep.subr.mxu0 0.0
    %986 = vmatpush1.msra.mxu0 0.0
    %987 = vmatprep.subr.mxu0 0.0
    %988 = vmatpush1.msra.mxu0 0.0
    %989 = vmatprep.mubr.f32.mxu0 0.0
    %990 = vmatmul.mubr.f32.gmra.mrb[0].mxu0 %v902
    %v991 = vpop.f32.mrb[0].mxu0
    %v992 = vadd.f32 %v744, %v991
    %v993 = vpop.f32.mrb[0].mxu0
    %v994 = vadd.f32 %v748, %v993
    %995 = vmatprep.mubr.f32.mxu0 0.0
    %996 = vmatmul.mubr.f32.gmra.mrb[0].mxu0 %v905
    %v997 = vpop.f32.mrb[0].mxu0
    %v998 = vadd.f32 %v744, %v997
    %v999 = vpop.f32.mrb[0].mxu0
    %v1000 = vadd.f32 %v748, %v999
    %1001 = vmatprep.mubr.f32.mxu0 0.0
    %1002 = vmatmul.mubr.f32.gmra.mrb[0].mxu0 %v908
    %v1003 = vpop.f32.mrb[0].mxu0
    %v1004 = vadd.f32 %v744, %v1003
    %v1005 = vpop.f32.mrb[0].mxu0
    %v1006 = vadd.f32 %v748, %v1005
    %1007 = vmatprep.mubr.f32.mxu0 0.0
    %1008 = vmatmul.mubr.f32.gmra.mrb[0].mxu0 %v911
    %v1009 = vpop.f32.mrb[0].mxu0
    %v1010 = vadd.f32 %v744, %v1009
    %v1011 = vpop.f32.mrb[0].mxu0
    %v1012 = vadd.f32 %v748, %v1011
    %1013 = vmatprep.mubr.f32.mxu0 0.0
    %1014 = vmatmul.mubr.f32.gmra.mrb[0].mxu0 %v914
    %v1015 = vpop.f32.mrb[0].mxu0
    %v1016 = vadd.f32 %v744, %v1015
    %v1017 = vpop.f32.mrb[0].mxu0
    %v1018 = vadd.f32 %v748, %v1017
    %1019 = vmatprep.mubr.f32.mxu0 0.0
    %1020 = vmatmul.mubr.f32.gmra.mrb[0].mxu0 %v917
    %v1021 = vpop.f32.mrb[0].mxu0
    %v1022 = vadd.f32 %v744, %v1021
    %v1023 = vpop.f32.mrb[0].mxu0
    %v1024 = vadd.f32 %v748, %v1023
    %1025 = vmatprep.mubr.f32.mxu0 0.0
    %1026 = vmatmul.mubr.f32.gmra.mrb[0].mxu0 %v920
    %v1027 = vpop.f32.mrb[0].mxu0
    %v1028 = vadd.f32 %v744, %v1027
    %v1029 = vpop.f32.mrb[0].mxu0
    %v1030 = vadd.f32 %v748, %v1029
    %1031 = vmatprep.mubr.f32.mxu0 0.0
    %1032 = vmatmul.mubr.f32.gmra.mrb[0].mxu0 %v923
    %v1033 = vpop.f32.mrb[0].mxu0
    %v1034 = vadd.f32 %v744, %v1033
    %v1035 = vpop.f32.mrb[0].mxu0
    %v1036 = vadd.f32 %v748, %v1035
    %1037 = vdwg.mxu0
    %1038 = vmatprep.subr.mxu0 %v704
    %1039 = vmatpush1.msra.mxu0 %v703
    %1040 = vmatprep.subr.mxu0 0.0
    %1041 = vmatpush1.msra.mxu0 0.0
    %1042 = vmatprep.subr.mxu0 0.0
    %1043 = vmatpush1.msra.mxu0 0.0
    %1044 = vmatprep.subr.mxu0 0.0
    %1045 = vmatpush1.msra.mxu0 0.0
    %1046 = vmatprep.subr.mxu0 0.0
    %1047 = vmatpush1.msra.mxu0 0.0
    %1048 = vmatprep.subr.mxu0 0.0
    %1049 = vmatpush1.msra.mxu0 0.0
    %1050 = vmatprep.subr.mxu0 0.0
    %1051 = vmatpush1.msra.mxu0 0.0
    %1052 = vmatprep.subr.mxu0 0.0
    %1053 = vmatpush1.msra.mxu0 0.0
    %1054 = vmatprep.subr.mxu0 0.0
    %1055 = vmatpush1.msra.mxu0 0.0
    %1056 = vmatprep.subr.mxu0 0.0
    %1057 = vmatpush1.msra.mxu0 0.0
    %1058 = vmatprep.subr.mxu0 0.0
    %1059 = vmatpush1.msra.mxu0 0.0
    %1060 = vmatprep.subr.mxu0 0.0
    %1061 = vmatpush1.msra.mxu0 0.0
    %1062 = vmatprep.subr.mxu0 0.0
    %1063 = vmatpush1.msra.mxu0 0.0
    %1064 = vmatprep.subr.mxu0 0.0
    %1065 = vmatpush1.msra.mxu0 0.0
    %1066 = vmatprep.subr.mxu0 0.0
    %1067 = vmatpush1.msra.mxu0 0.0
    %1068 = vmatprep.subr.mxu0 0.0
    %1069 = vmatpush1.msra.mxu0 0.0
    %1070 = vmatprep.subr.mxu0 0.0
    %1071 = vmatpush1.msra.mxu0 0.0
    %1072 = vmatprep.subr.mxu0 0.0
    %1073 = vmatpush1.msra.mxu0 0.0
    %1074 = vmatprep.subr.mxu0 0.0
    %1075 = vmatpush1.msra.mxu0 0.0
    %1076 = vmatprep.subr.mxu0 0.0
    %1077 = vmatpush1.msra.mxu0 0.0
    %1078 = vmatprep.subr.mxu0 0.0
    %1079 = vmatpush1.msra.mxu0 0.0
    %1080 = vmatprep.subr.mxu0 0.0
    %1081 = vmatpush1.msra.mxu0 0.0
    %1082 = vmatprep.subr.mxu0 0.0
    %1083 = vmatpush1.msra.mxu0 0.0
    %1084 = vmatprep.subr.mxu0 0.0
    %1085 = vmatpush1.msra.mxu0 0.0
    %1086 = vmatprep.subr.mxu0 0.0
    %1087 = vmatpush1.msra.mxu0 0.0
    %1088 = vmatprep.subr.mxu0 0.0
    %1089 = vmatpush1.msra.mxu0 0.0
    %1090 = vmatprep.subr.mxu0 0.0
    %1091 = vmatpush1.msra.mxu0 0.0
    %1092 = vmatprep.subr.mxu0 0.0
    %1093 = vmatpush1.msra.mxu0 0.0
    %1094 = vmatprep.subr.mxu0 0.0
    %1095 = vmatpush1.msra.mxu0 0.0
    %1096 = vmatprep.subr.mxu0 0.0
    %1097 = vmatpush1.msra.mxu0 0.0
    %1098 = vmatprep.subr.mxu0 0.0
    %1099 = vmatpush1.msra.mxu0 0.0
    %1100 = vmatprep.subr.mxu0 0.0
    %1101 = vmatpush1.msra.mxu0 0.0
    %1102 = vmatprep.mubr.f32.mxu0 0.0
    %1103 = vmatmul.mubr.f32.gmra.mrb[0].mxu0 %v902
    %v1104 = vpop.f32.mrb[0].mxu0
    %v1105 = vadd.f32 %v752, %v1104
    %v1106 = vpop.f32.mrb[0].mxu0
    %v1107 = vadd.f32 %v756, %v1106
    %1108 = vmatprep.mubr.f32.mxu0 0.0
    %1109 = vmatmul.mubr.f32.gmra.mrb[0].mxu0 %v905
    %v1110 = vpop.f32.mrb[0].mxu0
    %v1111 = vadd.f32 %v752, %v1110
    %v1112 = vpop.f32.mrb[0].mxu0
    %v1113 = vadd.f32 %v756, %v1112
    %1114 = vmatprep.mubr.f32.mxu0 0.0
    %1115 = vmatmul.mubr.f32.gmra.mrb[0].mxu0 %v908
    %v1116 = vpop.f32.mrb[0].mxu0
    %v1117 = vadd.f32 %v752, %v1116
    %v1118 = vpop.f32.mrb[0].mxu0
    %v1119 = vadd.f32 %v756, %v1118
    %1120 = vmatprep.mubr.f32.mxu0 0.0
    %1121 = vmatmul.mubr.f32.gmra.mrb[0].mxu0 %v911
    %v1122 = vpop.f32.mrb[0].mxu0
    %v1123 = vadd.f32 %v752, %v1122
    %v1124 = vpop.f32.mrb[0].mxu0
    %v1125 = vadd.f32 %v756, %v1124
    %1126 = vmatprep.mubr.f32.mxu0 0.0
    %1127 = vmatmul.mubr.f32.gmra.mrb[0].mxu0 %v914
    %v1128 = vpop.f32.mrb[0].mxu0
    %v1129 = vadd.f32 %v752, %v1128
    %v1130 = vpop.f32.mrb[0].mxu0
    %v1131 = vadd.f32 %v756, %v1130
    %1132 = vmatprep.mubr.f32.mxu0 0.0
    %1133 = vmatmul.mubr.f32.gmra.mrb[0].mxu0 %v917
    %v1134 = vpop.f32.mrb[0].mxu0
    %v1135 = vadd.f32 %v752, %v1134
    %v1136 = vpop.f32.mrb[0].mxu0
    %v1137 = vadd.f32 %v756, %v1136
    %1138 = vmatprep.mubr.f32.mxu0 0.0
    %1139 = vmatmul.mubr.f32.gmra.mrb[0].mxu0 %v920
    %v1140 = vpop.f32.mrb[0].mxu0
    %v1141 = vadd.f32 %v752, %v1140
    %v1142 = vpop.f32.mrb[0].mxu0
    %v1143 = vadd.f32 %v756, %v1142
    %1144 = vmatprep.mubr.f32.mxu0 0.0
    %1145 = vmatmul.mubr.f32.gmra.mrb[0].mxu0 %v923
    %v1146 = vpop.f32.mrb[0].mxu0
    %v1147 = vadd.f32 %v752, %v1146
    %v1148 = vpop.f32.mrb[0].mxu0
    %v1149 = vadd.f32 %v756, %v1148
    %1150 = vdwg.mxu0
    %1151 = vmatprep.subr.mxu0 %v706
    %1152 = vmatpush1.msra.mxu0 %v705
    %1153 = vmatprep.subr.mxu0 0.0
    %1154 = vmatpush1.msra.mxu0 0.0
    %1155 = vmatprep.subr.mxu0 0.0
    %1156 = vmatpush1.msra.mxu0 0.0
    %1157 = vmatprep.subr.mxu0 0.0
    %1158 = vmatpush1.msra.mxu0 0.0
    %1159 = vmatprep.subr.mxu0 0.0
    %1160 = vmatpush1.msra.mxu0 0.0
    %1161 = vmatprep.subr.mxu0 0.0
    %1162 = vmatpush1.msra.mxu0 0.0
    %1163 = vmatprep.subr.mxu0 0.0
    %1164 = vmatpush1.msra.mxu0 0.0
    %1165 = vmatprep.subr.mxu0 0.0
    %1166 = vmatpush1.msra.mxu0 0.0
    %1167 = vmatprep.subr.mxu0 0.0
    %1168 = vmatpush1.msra.mxu0 0.0
    %1169 = vmatprep.subr.mxu0 0.0
    %1170 = vmatpush1.msra.mxu0 0.0
    %1171 = vmatprep.subr.mxu0 0.0
    %1172 = vmatpush1.msra.mxu0 0.0
    %1173 = vmatprep.subr.mxu0 0.0
    %1174 = vmatpush1.msra.mxu0 0.0
    %1175 = vmatprep.subr.mxu0 0.0
    %1176 = vmatpush1.msra.mxu0 0.0
    %1177 = vmatprep.subr.mxu0 0.0
    %1178 = vmatpush1.msra.mxu0 0.0
    %1179 = vmatprep.subr.mxu0 0.0
    %1180 = vmatpush1.msra.mxu0 0.0
    %1181 = vmatprep.subr.mxu0 0.0
    %1182 = vmatpush1.msra.mxu0 0.0
    %1183 = vmatprep.subr.mxu0 0.0
    %1184 = vmatpush1.msra.mxu0 0.0
    %1185 = vmatprep.subr.mxu0 0.0
    %1186 = vmatpush1.msra.mxu0 0.0
    %1187 = vmatprep.subr.mxu0 0.0
    %1188 = vmatpush1.msra.mxu0 0.0
    %1189 = vmatprep.subr.mxu0 0.0
    %1190 = vmatpush1.msra.mxu0 0.0
    %1191 = vmatprep.subr.mxu0 0.0
    %1192 = vmatpush1.msra.mxu0 0.0
    %1193 = vmatprep.subr.mxu0 0.0
    %1194 = vmatpush1.msra.mxu0 0.0
    %1195 = vmatprep.subr.mxu0 0.0
    %1196 = vmatpush1.msra.mxu0 0.0
    %1197 = vmatprep.subr.mxu0 0.0
    %1198 = vmatpush1.msra.mxu0 0.0
    %1199 = vmatprep.subr.mxu0 0.0
    %1200 = vmatpush1.msra.mxu0 0.0
    %1201 = vmatprep.subr.mxu0 0.0
    %1202 = vmatpush1.msra.mxu0 0.0
    %1203 = vmatprep.subr.mxu0 0.0
    %1204 = vmatpush1.msra.mxu0 0.0
    %1205 = vmatprep.subr.mxu0 0.0
    %1206 = vmatpush1.msra.mxu0 0.0
    %1207 = vmatprep.subr.mxu0 0.0
    %1208 = vmatpush1.msra.mxu0 0.0
    %1209 = vmatprep.subr.mxu0 0.0
    %1210 = vmatpush1.msra.mxu0 0.0
    %1211 = vmatprep.subr.mxu0 0.0
    %1212 = vmatpush1.msra.mxu0 0.0
    %1213 = vmatprep.subr.mxu0 0.0
    %1214 = vmatpush1.msra.mxu0 0.0
    %1215 = vmatprep.mubr.f32.mxu0 0.0
    %1216 = vmatmul.mubr.f32.gmra.mrb[0].mxu0 %v902
    %v1217 = vpop.f32.mrb[0].mxu0
    %v1218 = vadd.f32 %v760, %v1217
    %v1219 = vpop.f32.mrb[0].mxu0
    %v1220 = vadd.f32 %v764, %v1219
    %1221 = vmatprep.mubr.f32.mxu0 0.0
    %1222 = vmatmul.mubr.f32.gmra.mrb[0].mxu0 %v905
    %v1223 = vpop.f32.mrb[0].mxu0
    %v1224 = vadd.f32 %v760, %v1223
    %v1225 = vpop.f32.mrb[0].mxu0
    %v1226 = vadd.f32 %v764, %v1225
    %1227 = vmatprep.mubr.f32.mxu0 0.0
    %1228 = vmatmul.mubr.f32.gmra.mrb[0].mxu0 %v908
    %v1229 = vpop.f32.mrb[0].mxu0
    %v1230 = vadd.f32 %v760, %v1229
    %v1231 = vpop.f32.mrb[0].mxu0
    %v1232 = vadd.f32 %v764, %v1231
    %1233 = vmatprep.mubr.f32.mxu0 0.0
    %1234 = vmatmul.mubr.f32.gmra.mrb[0].mxu0 %v911
    %v1235 = vpop.f32.mrb[0].mxu0
    %v1236 = vadd.f32 %v760, %v1235
    %v1237 = vpop.f32.mrb[0].mxu0
    %v1238 = vadd.f32 %v764, %v1237
    %1239 = vmatprep.mubr.f32.mxu0 0.0
    %1240 = vmatmul.mubr.f32.gmra.mrb[0].mxu0 %v914
    %v1241 = vpop.f32.mrb[0].mxu0
    %v1242 = vadd.f32 %v760, %v1241
    %v1243 = vpop.f32.mrb[0].mxu0
    %v1244 = vadd.f32 %v764, %v1243
    %1245 = vmatprep.mubr.f32.mxu0 0.0
    %1246 = vmatmul.mubr.f32.gmra.mrb[0].mxu0 %v917
    %v1247 = vpop.f32.mrb[0].mxu0
    %v1248 = vadd.f32 %v760, %v1247
    %v1249 = vpop.f32.mrb[0].mxu0
    %v1250 = vadd.f32 %v764, %v1249
    %1251 = vmatprep.mubr.f32.mxu0 0.0
    %1252 = vmatmul.mubr.f32.gmra.mrb[0].mxu0 %v920
    %v1253 = vpop.f32.mrb[0].mxu0
    %v1254 = vadd.f32 %v760, %v1253
    %v1255 = vpop.f32.mrb[0].mxu0
    %v1256 = vadd.f32 %v764, %v1255
    %1257 = vmatprep.mubr.f32.mxu0 0.0
    %1258 = vmatmul.mubr.f32.gmra.mrb[0].mxu0 %v923
    %v1259 = vpop.f32.mrb[0].mxu0
    %v1260 = vadd.f32 %v760, %v1259
    %v1261 = vpop.f32.mrb[0].mxu0
    %v1262 = vadd.f32 %v764, %v1261
    %1263 = vdwg.mxu0
    %1264 = vmatprep.subr.mxu0 %v708
    %1265 = vmatpush1.msra.mxu0 %v707
    %1266 = vmatprep.subr.mxu0 0.0
    %1267 = vmatpush1.msra.mxu0 0.0
    %1268 = vmatprep.subr.mxu0 0.0
    %1269 = vmatpush1.msra.mxu0 0.0
    %1270 = vmatprep.subr.mxu0 0.0
    %1271 = vmatpush1.msra.mxu0 0.0
    %1272 = vmatprep.subr.mxu0 0.0
    %1273 = vmatpush1.msra.mxu0 0.0
    %1274 = vmatprep.subr.mxu0 0.0
    %1275 = vmatpush1.msra.mxu0 0.0
    %1276 = vmatprep.subr.mxu0 0.0
    %1277 = vmatpush1.msra.mxu0 0.0
    %1278 = vmatprep.subr.mxu0 0.0
    %1279 = vmatpush1.msra.mxu0 0.0
    %1280 = vmatprep.subr.mxu0 0.0
    %1281 = vmatpush1.msra.mxu0 0.0
    %1282 = vmatprep.subr.mxu0 0.0
    %1283 = vmatpush1.msra.mxu0 0.0
    %1284 = vmatprep.subr.mxu0 0.0
    %1285 = vmatpush1.msra.mxu0 0.0
    %1286 = vmatprep.subr.mxu0 0.0
    %1287 = vmatpush1.msra.mxu0 0.0
    %1288 = vmatprep.subr.mxu0 0.0
    %1289 = vmatpush1.msra.mxu0 0.0
    %1290 = vmatprep.subr.mxu0 0.0
    %1291 = vmatpush1.msra.mxu0 0.0
    %1292 = vmatprep.subr.mxu0 0.0
    %1293 = vmatpush1.msra.mxu0 0.0
    %1294 = vmatprep.subr.mxu0 0.0
    %1295 = vmatpush1.msra.mxu0 0.0
    %1296 = vmatprep.subr.mxu0 0.0
    %1297 = vmatpush1.msra.mxu0 0.0
    %1298 = vmatprep.subr.mxu0 0.0
    %1299 = vmatpush1.msra.mxu0 0.0
    %1300 = vmatprep.subr.mxu0 0.0
    %1301 = vmatpush1.msra.mxu0 0.0
    %1302 = vmatprep.subr.mxu0 0.0
    %1303 = vmatpush1.msra.mxu0 0.0
    %1304 = vmatprep.subr.mxu0 0.0
    %1305 = vmatpush1.msra.mxu0 0.0
    %1306 = vmatprep.subr.mxu0 0.0
    %1307 = vmatpush1.msra.mxu0 0.0
    %1308 = vmatprep.subr.mxu0 0.0
    %1309 = vmatpush1.msra.mxu0 0.0
    %1310 = vmatprep.subr.mxu0 0.0
    %1311 = vmatpush1.msra.mxu0 0.0
    %1312 = vmatprep.subr.mxu0 0.0
    %1313 = vmatpush1.msra.mxu0 0.0
    %1314 = vmatprep.subr.mxu0 0.0
    %1315 = vmatpush1.msra.mxu0 0.0
    %1316 = vmatprep.subr.mxu0 0.0
    %1317 = vmatpush1.msra.mxu0 0.0
    %1318 = vmatprep.subr.mxu0 0.0
    %1319 = vmatpush1.msra.mxu0 0.0
    %1320 = vmatprep.subr.mxu0 0.0
    %1321 = vmatpush1.msra.mxu0 0.0
    %1322 = vmatprep.subr.mxu0 0.0
    %1323 = vmatpush1.msra.mxu0 0.0
    %1324 = vmatprep.subr.mxu0 0.0
    %1325 = vmatpush1.msra.mxu0 0.0
    %1326 = vmatprep.subr.mxu0 0.0
    %1327 = vmatpush1.msra.mxu0 0.0
    %1328 = vmatprep.mubr.f32.mxu0 0.0
    %1329 = vmatmul.mubr.f32.gmra.mrb[0].mxu0 %v902
    %v1330 = vpop.f32.mrb[0].mxu0
    %v1331 = vadd.f32 %v768, %v1330
    %v1332 = vpop.f32.mrb[0].mxu0
    %v1333 = vadd.f32 %v772, %v1332
    %1334 = vmatprep.mubr.f32.mxu0 0.0
    %1335 = vmatmul.mubr.f32.gmra.mrb[0].mxu0 %v905
    %v1336 = vpop.f32.mrb[0].mxu0
    %v1337 = vadd.f32 %v768, %v1336
    %v1338 = vpop.f32.mrb[0].mxu0
    %v1339 = vadd.f32 %v772, %v1338
    %1340 = vmatprep.mubr.f32.mxu0 0.0
    %1341 = vmatmul.mubr.f32.gmra.mrb[0].mxu0 %v908
    %v1342 = vpop.f32.mrb[0].mxu0
    %v1343 = vadd.f32 %v768, %v1342
    %v1344 = vpop.f32.mrb[0].mxu0
    %v1345 = vadd.f32 %v772, %v1344
    %1346 = vmatprep.mubr.f32.mxu0 0.0
    %1347 = vmatmul.mubr.f32.gmra.mrb[0].mxu0 %v911
    %v1348 = vpop.f32.mrb[0].mxu0
    %v1349 = vadd.f32 %v768, %v1348
    %v1350 = vpop.f32.mrb[0].mxu0
    %v1351 = vadd.f32 %v772, %v1350
    %1352 = vmatprep.mubr.f32.mxu0 0.0
    %1353 = vmatmul.mubr.f32.gmra.mrb[0].mxu0 %v914
    %v1354 = vpop.f32.mrb[0].mxu0
    %v1355 = vadd.f32 %v768, %v1354
    %v1356 = vpop.f32.mrb[0].mxu0
    %v1357 = vadd.f32 %v772, %v1356
    %1358 = vmatprep.mubr.f32.mxu0 0.0
    %1359 = vmatmul.mubr.f32.gmra.mrb[0].mxu0 %v917
    %v1360 = vpop.f32.mrb[0].mxu0
    %v1361 = vadd.f32 %v768, %v1360
    %v1362 = vpop.f32.mrb[0].mxu0
    %v1363 = vadd.f32 %v772, %v1362
    %1364 = vmatprep.mubr.f32.mxu0 0.0
    %1365 = vmatmul.mubr.f32.gmra.mrb[0].mxu0 %v920
    %v1366 = vpop.f32.mrb[0].mxu0
    %v1367 = vadd.f32 %v768, %v1366
    %v1368 = vpop.f32.mrb[0].mxu0
    %v1369 = vadd.f32 %v772, %v1368
    %1370 = vmatprep.mubr.f32.mxu0 0.0
    %1371 = vmatmul.mubr.f32.gmra.mrb[0].mxu0 %v923
    %v1372 = vpop.f32.mrb[0].mxu0
    %v1373 = vadd.f32 %v768, %v1372
    %v1374 = vpop.f32.mrb[0].mxu0
    %v1375 = vadd.f32 %v772, %v1374
    %1376 = vdwg.mxu0
    %1377 = vmatprep.subr.mxu0 %v710
    %1378 = vmatpush1.msra.mxu0 %v709
    %1379 = vmatprep.subr.mxu0 0.0
    %1380 = vmatpush1.msra.mxu0 0.0
    %1381 = vmatprep.subr.mxu0 0.0
    %1382 = vmatpush1.msra.mxu0 0.0
    %1383 = vmatprep.subr.mxu0 0.0
    %1384 = vmatpush1.msra.mxu0 0.0
    %1385 = vmatprep.subr.mxu0 0.0
    %1386 = vmatpush1.msra.mxu0 0.0
    %1387 = vmatprep.subr.mxu0 0.0
    %1388 = vmatpush1.msra.mxu0 0.0
    %1389 = vmatprep.subr.mxu0 0.0
    %1390 = vmatpush1.msra.mxu0 0.0
    %1391 = vmatprep.subr.mxu0 0.0
    %1392 = vmatpush1.msra.mxu0 0.0
    %1393 = vmatprep.subr.mxu0 0.0
    %1394 = vmatpush1.msra.mxu0 0.0
    %1395 = vmatprep.subr.mxu0 0.0
    %1396 = vmatpush1.msra.mxu0 0.0
    %1397 = vmatprep.subr.mxu0 0.0
    %1398 = vmatpush1.msra.mxu0 0.0
    %1399 = vmatprep.subr.mxu0 0.0
    %1400 = vmatpush1.msra.mxu0 0.0
    %1401 = vmatprep.subr.mxu0 0.0
    %1402 = vmatpush1.msra.mxu0 0.0
    %1403 = vmatprep.subr.mxu0 0.0
    %1404 = vmatpush1.msra.mxu0 0.0
    %1405 = vmatprep.subr.mxu0 0.0
    %1406 = vmatpush1.msra.mxu0 0.0
    %1407 = vmatprep.subr.mxu0 0.0
    %1408 = vmatpush1.msra.mxu0 0.0
    %1409 = vmatprep.subr.mxu0 0.0
    %1410 = vmatpush1.msra.mxu0 0.0
    %1411 = vmatprep.subr.mxu0 0.0
    %1412 = vmatpush1.msra.mxu0 0.0
    %1413 = vmatprep.subr.mxu0 0.0
    %1414 = vmatpush1.msra.mxu0 0.0
    %1415 = vmatprep.subr.mxu0 0.0
    %1416 = vmatpush1.msra.mxu0 0.0
    %1417 = vmatprep.subr.mxu0 0.0
    %1418 = vmatpush1.msra.mxu0 0.0
    %1419 = vmatprep.subr.mxu0 0.0
    %1420 = vmatpush1.msra.mxu0 0.0
    %1421 = vmatprep.subr.mxu0 0.0
    %1422 = vmatpush1.msra.mxu0 0.0
    %1423 = vmatprep.subr.mxu0 0.0
    %1424 = vmatpush1.msra.mxu0 0.0
    %1425 = vmatprep.subr.mxu0 0.0
    %1426 = vmatpush1.msra.mxu0 0.0
    %1427 = vmatprep.subr.mxu0 0.0
    %1428 = vmatpush1.msra.mxu0 0.0
    %1429 = vmatprep.subr.mxu0 0.0
    %1430 = vmatpush1.msra.mxu0 0.0
    %1431 = vmatprep.subr.mxu0 0.0
    %1432 = vmatpush1.msra.mxu0 0.0
    %1433 = vmatprep.subr.mxu0 0.0
    %1434 = vmatpush1.msra.mxu0 0.0
    %1435 = vmatprep.subr.mxu0 0.0
    %1436 = vmatpush1.msra.mxu0 0.0
    %1437 = vmatprep.subr.mxu0 0.0
    %1438 = vmatpush1.msra.mxu0 0.0
    %1439 = vmatprep.subr.mxu0 0.0
    %1440 = vmatpush1.msra.mxu0 0.0
    %1441 = vmatprep.mubr.f32.mxu0 0.0
    %1442 = vmatmul.mubr.f32.gmra.mrb[0].mxu0 %v902
    %v1443 = vpop.f32.mrb[0].mxu0
    %v1444 = vadd.f32 %v776, %v1443
    %v1445 = vpop.f32.mrb[0].mxu0
    %v1446 = vadd.f32 %v780, %v1445
    %1447 = vmatprep.mubr.f32.mxu0 0.0
    %1448 = vmatmul.mubr.f32.gmra.mrb[0].mxu0 %v905
    %v1449 = vpop.f32.mrb[0].mxu0
    %v1450 = vadd.f32 %v776, %v1449
    %v1451 = vpop.f32.mrb[0].mxu0
    %v1452 = vadd.f32 %v780, %v1451
    %1453 = vmatprep.mubr.f32.mxu0 0.0
    %1454 = vmatmul.mubr.f32.gmra.mrb[0].mxu0 %v908
    %v1455 = vpop.f32.mrb[0].mxu0
    %v1456 = vadd.f32 %v776, %v1455
    %v1457 = vpop.f32.mrb[0].mxu0
    %v1458 = vadd.f32 %v780, %v1457
    %1459 = vmatprep.mubr.f32.mxu0 0.0
    %1460 = vmatmul.mubr.f32.gmra.mrb[0].mxu0 %v911
    %v1461 = vpop.f32.mrb[0].mxu0
    %v1462 = vadd.f32 %v776, %v1461
    %v1463 = vpop.f32.mrb[0].mxu0
    %v1464 = vadd.f32 %v780, %v1463
    %1465 = vmatprep.mubr.f32.mxu0 0.0
    %1466 = vmatmul.mubr.f32.gmra.mrb[0].mxu0 %v914
    %v1467 = vpop.f32.mrb[0].mxu0
    %v1468 = vadd.f32 %v776, %v1467
    %v1469 = vpop.f32.mrb[0].mxu0
    %v1470 = vadd.f32 %v780, %v1469
    %1471 = vmatprep.mubr.f32.mxu0 0.0
    %1472 = vmatmul.mubr.f32.gmra.mrb[0].mxu0 %v917
    %v1473 = vpop.f32.mrb[0].mxu0
    %v1474 = vadd.f32 %v776, %v1473
    %v1475 = vpop.f32.mrb[0].mxu0
    %v1476 = vadd.f32 %v780, %v1475
    %1477 = vmatprep.mubr.f32.mxu0 0.0
    %1478 = vmatmul.mubr.f32.gmra.mrb[0].mxu0 %v920
    %v1479 = vpop.f32.mrb[0].mxu0
    %v1480 = vadd.f32 %v776, %v1479
    %v1481 = vpop.f32.mrb[0].mxu0
    %v1482 = vadd.f32 %v780, %v1481
    %1483 = vmatprep.mubr.f32.mxu0 0.0
    %1484 = vmatmul.mubr.f32.gmra.mrb[0].mxu0 %v923
    %v1485 = vpop.f32.mrb[0].mxu0
    %v1486 = vadd.f32 %v776, %v1485
    %v1487 = vpop.f32.mrb[0].mxu0
    %v1488 = vadd.f32 %v780, %v1487
    %1489 = vdwg.mxu0
    %1490 = vmatprep.subr.mxu0 %v712
    %1491 = vmatpush1.msra.mxu0 %v711
    %1492 = vmatprep.subr.mxu0 0.0
    %1493 = vmatpush1.msra.mxu0 0.0
    %1494 = vmatprep.subr.mxu0 0.0
    %1495 = vmatpush1.msra.mxu0 0.0
    %1496 = vmatprep.subr.mxu0 0.0
    %1497 = vmatpush1.msra.mxu0 0.0
    %1498 = vmatprep.subr.mxu0 0.0
    %1499 = vmatpush1.msra.mxu0 0.0
    %1500 = vmatprep.subr.mxu0 0.0
    %1501 = vmatpush1.msra.mxu0 0.0
    %1502 = vmatprep.subr.mxu0 0.0
    %1503 = vmatpush1.msra.mxu0 0.0
    %1504 = vmatprep.subr.mxu0 0.0
    %1505 = vmatpush1.msra.mxu0 0.0
    %1506 = vmatprep.subr.mxu0 0.0
    %1507 = vmatpush1.msra.mxu0 0.0
    %1508 = vmatprep.subr.mxu0 0.0
    %1509 = vmatpush1.msra.mxu0 0.0
    %1510 = vmatprep.subr.mxu0 0.0
    %1511 = vmatpush1.msra.mxu0 0.0
    %1512 = vmatprep.subr.mxu0 0.0
    %1513 = vmatpush1.msra.mxu0 0.0
    %1514 = vmatprep.subr.mxu0 0.0
    %1515 = vmatpush1.msra.mxu0 0.0
    %1516 = vmatprep.subr.mxu0 0.0
    %1517 = vmatpush1.msra.mxu0 0.0
    %1518 = vmatprep.subr.mxu0 0.0
    %1519 = vmatpush1.msra.mxu0 0.0
    %1520 = vmatprep.subr.mxu0 0.0
    %1521 = vmatpush1.msra.mxu0 0.0
    %1522 = vmatprep.subr.mxu0 0.0
    %1523 = vmatpush1.msra.mxu0 0.0
    %1524 = vmatprep.subr.mxu0 0.0
    %1525 = vmatpush1.msra.mxu0 0.0
    %1526 = vmatprep.subr.mxu0 0.0
    %1527 = vmatpush1.msra.mxu0 0.0
    %1528 = vmatprep.subr.mxu0 0.0
    %1529 = vmatpush1.msra.mxu0 0.0
    %1530 = vmatprep.subr.mxu0 0.0
    %1531 = vmatpush1.msra.mxu0 0.0
    %1532 = vmatprep.subr.mxu0 0.0
    %1533 = vmatpush1.msra.mxu0 0.0
    %1534 = vmatprep.subr.mxu0 0.0
    %1535 = vmatpush1.msra.mxu0 0.0
    %1536 = vmatprep.subr.mxu0 0.0
    %1537 = vmatpush1.msra.mxu0 0.0
    %1538 = vmatprep.subr.mxu0 0.0
    %1539 = vmatpush1.msra.mxu0 0.0
    %1540 = vmatprep.subr.mxu0 0.0
    %1541 = vmatpush1.msra.mxu0 0.0
    %1542 = vmatprep.subr.mxu0 0.0
    %1543 = vmatpush1.msra.mxu0 0.0
    %1544 = vmatprep.subr.mxu0 0.0
    %1545 = vmatpush1.msra.mxu0 0.0
    %1546 = vmatprep.subr.mxu0 0.0
    %1547 = vmatpush1.msra.mxu0 0.0
    %1548 = vmatprep.subr.mxu0 0.0
    %1549 = vmatpush1.msra.mxu0 0.0
    %1550 = vmatprep.subr.mxu0 0.0
    %1551 = vmatpush1.msra.mxu0 0.0
    %1552 = vmatprep.subr.mxu0 0.0
    %1553 = vmatpush1.msra.mxu0 0.0
    %1554 = vmatprep.mubr.f32.mxu0 0.0
    %1555 = vmatmul.mubr.f32.gmra.mrb[0].mxu0 %v902
    %v1556 = vpop.f32.mrb[0].mxu0
    %v1557 = vadd.f32 %v784, %v1556
    %v1558 = vpop.f32.mrb[0].mxu0
    %v1559 = vadd.f32 %v788, %v1558
    %1560 = vmatprep.mubr.f32.mxu0 0.0
    %1561 = vmatmul.mubr.f32.gmra.mrb[0].mxu0 %v905
    %v1562 = vpop.f32.mrb[0].mxu0
    %v1563 = vadd.f32 %v784, %v1562
    %v1564 = vpop.f32.mrb[0].mxu0
    %v1565 = vadd.f32 %v788, %v1564
    %1566 = vmatprep.mubr.f32.mxu0 0.0
    %1567 = vmatmul.mubr.f32.gmra.mrb[0].mxu0 %v908
    %v1568 = vpop.f32.mrb[0].mxu0
    %v1569 = vadd.f32 %v784, %v1568
    %v1570 = vpop.f32.mrb[0].mxu0
    %v1571 = vadd.f32 %v788, %v1570
    %1572 = vmatprep.mubr.f32.mxu0 0.0
    %1573 = vmatmul.mubr.f32.gmra.mrb[0].mxu0 %v911
    %v1574 = vpop.f32.mrb[0].mxu0
    %v1575 = vadd.f32 %v784, %v1574
    %v1576 = vpop.f32.mrb[0].mxu0
    %v1577 = vadd.f32 %v788, %v1576
    %1578 = vmatprep.mubr.f32.mxu0 0.0
    %1579 = vmatmul.mubr.f32.gmra.mrb[0].mxu0 %v914
    %v1580 = vpop.f32.mrb[0].mxu0
    %v1581 = vadd.f32 %v784, %v1580
    %v1582 = vpop.f32.mrb[0].mxu0
    %v1583 = vadd.f32 %v788, %v1582
    %1584 = vmatprep.mubr.f32.mxu0 0.0
    %1585 = vmatmul.mubr.f32.gmra.mrb[0].mxu0 %v917
    %v1586 = vpop.f32.mrb[0].mxu0
    %v1587 = vadd.f32 %v784, %v1586
    %v1588 = vpop.f32.mrb[0].mxu0
    %v1589 = vadd.f32 %v788, %v1588
    %1590 = vmatprep.mubr.f32.mxu0 0.0
    %1591 = vmatmul.mubr.f32.gmra.mrb[0].mxu0 %v920
    %v1592 = vpop.f32.mrb[0].mxu0
    %v1593 = vadd.f32 %v784, %v1592
    %v1594 = vpop.f32.mrb[0].mxu0
    %v1595 = vadd.f32 %v788, %v1594
    %1596 = vmatprep.mubr.f32.mxu0 0.0
    %1597 = vmatmul.mubr.f32.gmra.mrb[0].mxu0 %v923
    %v1598 = vpop.f32.mrb[0].mxu0
    %v1599 = vadd.f32 %v784, %v1598
    %v1600 = vpop.f32.mrb[0].mxu0
    %v1601 = vadd.f32 %v788, %v1600
    %1602 = vdwg.mxu0
    %1603 = vmatprep.subr.mxu0 %v714
    %1604 = vmatpush1.msra.mxu0 %v713
    %1605 = vmatprep.subr.mxu0 0.0
    %1606 = vmatpush1.msra.mxu0 0.0
    %1607 = vmatprep.subr.mxu0 0.0
    %1608 = vmatpush1.msra.mxu0 0.0
    %1609 = vmatprep.subr.mxu0 0.0
    %1610 = vmatpush1.msra.mxu0 0.0
    %1611 = vmatprep.subr.mxu0 0.0
    %1612 = vmatpush1.msra.mxu0 0.0
    %1613 = vmatprep.subr.mxu0 0.0
    %1614 = vmatpush1.msra.mxu0 0.0
    %1615 = vmatprep.subr.mxu0 0.0
    %1616 = vmatpush1.msra.mxu0 0.0
    %1617 = vmatprep.subr.mxu0 0.0
    %1618 = vmatpush1.msra.mxu0 0.0
    %1619 = vmatprep.subr.mxu0 0.0
    %1620 = vmatpush1.msra.mxu0 0.0
    %1621 = vmatprep.subr.mxu0 0.0
    %1622 = vmatpush1.msra.mxu0 0.0
    %1623 = vmatprep.subr.mxu0 0.0
    %1624 = vmatpush1.msra.mxu0 0.0
    %1625 = vmatprep.subr.mxu0 0.0
    %1626 = vmatpush1.msra.mxu0 0.0
    %1627 = vmatprep.subr.mxu0 0.0
    %1628 = vmatpush1.msra.mxu0 0.0
    %1629 = vmatprep.subr.mxu0 0.0
    %1630 = vmatpush1.msra.mxu0 0.0
    %1631 = vmatprep.subr.mxu0 0.0
    %1632 = vmatpush1.msra.mxu0 0.0
    %1633 = vmatprep.subr.mxu0 0.0
    %1634 = vmatpush1.msra.mxu0 0.0
    %1635 = vmatprep.subr.mxu0 0.0
    %1636 = vmatpush1.msra.mxu0 0.0
    %1637 = vmatprep.subr.mxu0 0.0
    %1638 = vmatpush1.msra.mxu0 0.0
    %1639 = vmatprep.subr.mxu0 0.0
    %1640 = vmatpush1.msra.mxu0 0.0
    %1641 = vmatprep.subr.mxu0 0.0
    %1642 = vmatpush1.msra.mxu0 0.0
    %1643 = vmatprep.subr.mxu0 0.0
    %1644 = vmatpush1.msra.mxu0 0.0
    %1645 = vmatprep.subr.mxu0 0.0
    %1646 = vmatpush1.msra.mxu0 0.0
    %1647 = vmatprep.subr.mxu0 0.0
    %1648 = vmatpush1.msra.mxu0 0.0
    %1649 = vmatprep.subr.mxu0 0.0
    %1650 = vmatpush1.msra.mxu0 0.0
    %1651 = vmatprep.subr.mxu0 0.0
    %1652 = vmatpush1.msra.mxu0 0.0
    %1653 = vmatprep.subr.mxu0 0.0
    %1654 = vmatpush1.msra.mxu0 0.0
    %1655 = vmatprep.subr.mxu0 0.0
    %1656 = vmatpush1.msra.mxu0 0.0
    %1657 = vmatprep.subr.mxu0 0.0
    %1658 = vmatpush1.msra.mxu0 0.0
    %1659 = vmatprep.subr.mxu0 0.0
    %1660 = vmatpush1.msra.mxu0 0.0
    %1661 = vmatprep.subr.mxu0 0.0
    %1662 = vmatpush1.msra.mxu0 0.0
    %1663 = vmatprep.subr.mxu0 0.0
    %1664 = vmatpush1.msra.mxu0 0.0
    %1665 = vmatprep.subr.mxu0 0.0
    %1666 = vmatpush1.msra.mxu0 0.0
    %1667 = vmatprep.mubr.f32.mxu0 0.0
    %1668 = vmatmul.mubr.f32.gmra.mrb[0].mxu0 %v902
    %v1669 = vpop.f32.mrb[0].mxu0
    %v1670 = vadd.f32 %v792, %v1669
    %v1671 = vpop.f32.mrb[0].mxu0
    %v1672 = vadd.f32 %v796, %v1671
    %1673 = vmatprep.mubr.f32.mxu0 0.0
    %1674 = vmatmul.mubr.f32.gmra.mrb[0].mxu0 %v905
    %v1675 = vpop.f32.mrb[0].mxu0
    %v1676 = vadd.f32 %v792, %v1675
    %v1677 = vpop.f32.mrb[0].mxu0
    %v1678 = vadd.f32 %v796, %v1677
    %1679 = vmatprep.mubr.f32.mxu0 0.0
    %1680 = vmatmul.mubr.f32.gmra.mrb[0].mxu0 %v908
    %v1681 = vpop.f32.mrb[0].mxu0
    %v1682 = vadd.f32 %v792, %v1681
    %v1683 = vpop.f32.mrb[0].mxu0
    %v1684 = vadd.f32 %v796, %v1683
    %1685 = vmatprep.mubr.f32.mxu0 0.0
    %1686 = vmatmul.mubr.f32.gmra.mrb[0].mxu0 %v911
    %v1687 = vpop.f32.mrb[0].mxu0
    %v1688 = vadd.f32 %v792, %v1687
    %v1689 = vpop.f32.mrb[0].mxu0
    %v1690 = vadd.f32 %v796, %v1689
    %1691 = vmatprep.mubr.f32.mxu0 0.0
    %1692 = vmatmul.mubr.f32.gmra.mrb[0].mxu0 %v914
    %v1693 = vpop.f32.mrb[0].mxu0
    %v1694 = vadd.f32 %v792, %v1693
    %v1695 = vpop.f32.mrb[0].mxu0
    %v1696 = vadd.f32 %v796, %v1695
    %1697 = vmatprep.mubr.f32.mxu0 0.0
    %1698 = vmatmul.mubr.f32.gmra.mrb[0].mxu0 %v917
    %v1699 = vpop.f32.mrb[0].mxu0
    %v1700 = vadd.f32 %v792, %v1699
    %v1701 = vpop.f32.mrb[0].mxu0
    %v1702 = vadd.f32 %v796, %v1701
    %1703 = vmatprep.mubr.f32.mxu0 0.0
    %1704 = vmatmul.mubr.f32.gmra.mrb[0].mxu0 %v920
    %v1705 = vpop.f32.mrb[0].mxu0
    %v1706 = vadd.f32 %v792, %v1705
    %v1707 = vpop.f32.mrb[0].mxu0
    %v1708 = vadd.f32 %v796, %v1707
    %1709 = vmatprep.mubr.f32.mxu0 0.0
    %1710 = vmatmul.mubr.f32.gmra.mrb[0].mxu0 %v923
    %v1711 = vpop.f32.mrb[0].mxu0
    %v1712 = vadd.f32 %v792, %v1711
    %v1713 = vpop.f32.mrb[0].mxu0
    %v1714 = vadd.f32 %v796, %v1713
    %1715 = vdwg.mxu0
    %1716 = vmatprep.subr.mxu0 %v716
    %1717 = vmatpush1.msra.mxu0 %v715
    %1718 = vmatprep.subr.mxu0 0.0
    %1719 = vmatpush1.msra.mxu0 0.0
    %1720 = vmatprep.subr.mxu0 0.0
    %1721 = vmatpush1.msra.mxu0 0.0
    %1722 = vmatprep.subr.mxu0 0.0
    %1723 = vmatpush1.msra.mxu0 0.0
    %1724 = vmatprep.subr.mxu0 0.0
    %1725 = vmatpush1.msra.mxu0 0.0
    %1726 = vmatprep.subr.mxu0 0.0
    %1727 = vmatpush1.msra.mxu0 0.0
    %1728 = vmatprep.subr.mxu0 0.0
    %1729 = vmatpush1.msra.mxu0 0.0
    %1730 = vmatprep.subr.mxu0 0.0
    %1731 = vmatpush1.msra.mxu0 0.0
    %1732 = vmatprep.subr.mxu0 0.0
    %1733 = vmatpush1.msra.mxu0 0.0
    %1734 = vmatprep.subr.mxu0 0.0
    %1735 = vmatpush1.msra.mxu0 0.0
    %1736 = vmatprep.subr.mxu0 0.0
    %1737 = vmatpush1.msra.mxu0 0.0
    %1738 = vmatprep.subr.mxu0 0.0
    %1739 = vmatpush1.msra.mxu0 0.0
    %1740 = vmatprep.subr.mxu0 0.0
    %1741 = vmatpush1.msra.mxu0 0.0
    %1742 = vmatprep.subr.mxu0 0.0
    %1743 = vmatpush1.msra.mxu0 0.0
    %1744 = vmatprep.subr.mxu0 0.0
    %1745 = vmatpush1.msra.mxu0 0.0
    %1746 = vmatprep.subr.mxu0 0.0
    %1747 = vmatpush1.msra.mxu0 0.0
    %1748 = vmatprep.subr.mxu0 0.0
    %1749 = vmatpush1.msra.mxu0 0.0
    %1750 = vmatprep.subr.mxu0 0.0
    %1751 = vmatpush1.msra.mxu0 0.0
    %1752 = vmatprep.subr.mxu0 0.0
    %1753 = vmatpush1.msra.mxu0 0.0
    %1754 = vmatprep.subr.mxu0 0.0
    %1755 = vmatpush1.msra.mxu0 0.0
    %1756 = vmatprep.subr.mxu0 0.0
    %1757 = vmatpush1.msra.mxu0 0.0
    %1758 = vmatprep.subr.mxu0 0.0
    %1759 = vmatpush1.msra.mxu0 0.0
    %1760 = vmatprep.subr.mxu0 0.0
    %1761 = vmatpush1.msra.mxu0 0.0
    %1762 = vmatprep.subr.mxu0 0.0
    %1763 = vmatpush1.msra.mxu0 0.0
    %1764 = vmatprep.subr.mxu0 0.0
    %1765 = vmatpush1.msra.mxu0 0.0
    %1766 = vmatprep.subr.mxu0 0.0
    %1767 = vmatpush1.msra.mxu0 0.0
    %1768 = vmatprep.subr.mxu0 0.0
    %1769 = vmatpush1.msra.mxu0 0.0
    %1770 = vmatprep.subr.mxu0 0.0
    %1771 = vmatpush1.msra.mxu0 0.0
    %1772 = vmatprep.subr.mxu0 0.0
    %1773 = vmatpush1.msra.mxu0 0.0
    %1774 = vmatprep.subr.mxu0 0.0
    %1775 = vmatpush1.msra.mxu0 0.0
    %1776 = vmatprep.subr.mxu0 0.0
    %1777 = vmatpush1.msra.mxu0 0.0
    %1778 = vmatprep.subr.mxu0 0.0
    %1779 = vmatpush1.msra.mxu0 0.0
    %1780 = vmatprep.mubr.f32.mxu0 0.0
    %1781 = vmatmul.mubr.f32.gmra.mrb[0].mxu0 %v902
    %v1782 = vpop.f32.mrb[0].mxu0
    %v1783 = vadd.f32 %v800, %v1782
    %v1784 = vpop.f32.mrb[0].mxu0
    %v1785 = vadd.f32 %v804, %v1784
    %1786 = vmatprep.mubr.f32.mxu0 0.0
    %1787 = vmatmul.mubr.f32.gmra.mrb[0].mxu0 %v905
    %v1788 = vpop.f32.mrb[0].mxu0
    %v1789 = vadd.f32 %v800, %v1788
    %v1790 = vpop.f32.mrb[0].mxu0
    %v1791 = vadd.f32 %v804, %v1790
    %1792 = vmatprep.mubr.f32.mxu0 0.0
    %1793 = vmatmul.mubr.f32.gmra.mrb[0].mxu0 %v908
    %v1794 = vpop.f32.mrb[0].mxu0
    %v1795 = vadd.f32 %v800, %v1794
    %v1796 = vpop.f32.mrb[0].mxu0
    %v1797 = vadd.f32 %v804, %v1796
    %1798 = vmatprep.mubr.f32.mxu0 0.0
    %1799 = vmatmul.mubr.f32.gmra.mrb[0].mxu0 %v911
    %v1800 = vpop.f32.mrb[0].mxu0
    %v1801 = vadd.f32 %v800, %v1800
    %v1802 = vpop.f32.mrb[0].mxu0
    %v1803 = vadd.f32 %v804, %v1802
    %1804 = vmatprep.mubr.f32.mxu0 0.0
    %1805 = vmatmul.mubr.f32.gmra.mrb[0].mxu0 %v914
    %v1806 = vpop.f32.mrb[0].mxu0
    %v1807 = vadd.f32 %v800, %v1806
    %v1808 = vpop.f32.mrb[0].mxu0
    %v1809 = vadd.f32 %v804, %v1808
    %1810 = vmatprep.mubr.f32.mxu0 0.0
    %1811 = vmatmul.mubr.f32.gmra.mrb[0].mxu0 %v917
    %v1812 = vpop.f32.mrb[0].mxu0
    %v1813 = vadd.f32 %v800, %v1812
    %v1814 = vpop.f32.mrb[0].mxu0
    %v1815 = vadd.f32 %v804, %v1814
    %1816 = vmatprep.mubr.f32.mxu0 0.0
    %1817 = vmatmul.mubr.f32.gmra.mrb[0].mxu0 %v920
    %v1818 = vpop.f32.mrb[0].mxu0
    %v1819 = vadd.f32 %v800, %v1818
    %v1820 = vpop.f32.mrb[0].mxu0
    %v1821 = vadd.f32 %v804, %v1820
    %1822 = vmatprep.mubr.f32.mxu0 0.0
    %1823 = vmatmul.mubr.f32.gmra.mrb[0].mxu0 %v923
    %v1824 = vpop.f32.mrb[0].mxu0
    %v1825 = vadd.f32 %v800, %v1824
    %v1826 = vpop.f32.mrb[0].mxu0
    %v1827 = vadd.f32 %v804, %v1826
    %1828 = vdwg.mxu0
    %1829 = vmatprep.subr.mxu0 %v718
    %1830 = vmatpush1.msra.mxu0 %v717
    %1831 = vmatprep.subr.mxu0 0.0
    %1832 = vmatpush1.msra.mxu0 0.0
    %1833 = vmatprep.subr.mxu0 0.0
    %1834 = vmatpush1.msra.mxu0 0.0
    %1835 = vmatprep.subr.mxu0 0.0
    %1836 = vmatpush1.msra.mxu0 0.0
    %1837 = vmatprep.subr.mxu0 0.0
    %1838 = vmatpush1.msra.mxu0 0.0
    %1839 = vmatprep.subr.mxu0 0.0
    %1840 = vmatpush1.msra.mxu0 0.0
    %1841 = vmatprep.subr.mxu0 0.0
    %1842 = vmatpush1.msra.mxu0 0.0
    %1843 = vmatprep.subr.mxu0 0.0
    %1844 = vmatpush1.msra.mxu0 0.0
    %1845 = vmatprep.subr.mxu0 0.0
    %1846 = vmatpush1.msra.mxu0 0.0
    %1847 = vmatprep.subr.mxu0 0.0
    %1848 = vmatpush1.msra.mxu0 0.0
    %1849 = vmatprep.subr.mxu0 0.0
    %1850 = vmatpush1.msra.mxu0 0.0
    %1851 = vmatprep.subr.mxu0 0.0
    %1852 = vmatpush1.msra.mxu0 0.0
    %1853 = vmatprep.subr.mxu0 0.0
    %1854 = vmatpush1.msra.mxu0 0.0
    %1855 = vmatprep.subr.mxu0 0.0
    %1856 = vmatpush1.msra.mxu0 0.0
    %1857 = vmatprep.subr.mxu0 0.0
    %1858 = vmatpush1.msra.mxu0 0.0
    %1859 = vmatprep.subr.mxu0 0.0
    %1860 = vmatpush1.msra.mxu0 0.0
    %1861 = vmatprep.subr.mxu0 0.0
    %1862 = vmatpush1.msra.mxu0 0.0
    %1863 = vmatprep.subr.mxu0 0.0
    %1864 = vmatpush1.msra.mxu0 0.0
    %1865 = vmatprep.subr.mxu0 0.0
    %1866 = vmatpush1.msra.mxu0 0.0
    %1867 = vmatprep.subr.mxu0 0.0
    %1868 = vmatpush1.msra.mxu0 0.0
    %1869 = vmatprep.subr.mxu0 0.0
    %1870 = vmatpush1.msra.mxu0 0.0
    %1871 = vmatprep.subr.mxu0 0.0
    %1872 = vmatpush1.msra.mxu0 0.0
    %1873 = vmatprep.subr.mxu0 0.0
    %1874 = vmatpush1.msra.mxu0 0.0
    %1875 = vmatprep.subr.mxu0 0.0
    %1876 = vmatpush1.msra.mxu0 0.0
    %1877 = vmatprep.subr.mxu0 0.0
    %1878 = vmatpush1.msra.mxu0 0.0
    %1879 = vmatprep.subr.mxu0 0.0
    %1880 = vmatpush1.msra.mxu0 0.0
    %1881 = vmatprep.subr.mxu0 0.0
    %1882 = vmatpush1.msra.mxu0 0.0
    %1883 = vmatprep.subr.mxu0 0.0
    %1884 = vmatpush1.msra.mxu0 0.0
    %1885 = vmatprep.subr.mxu0 0.0
    %1886 = vmatpush1.msra.mxu0 0.0
    %1887 = vmatprep.subr.mxu0 0.0
    %1888 = vmatpush1.msra.mxu0 0.0
    %1889 = vmatprep.subr.mxu0 0.0
    %1890 = vmatpush1.msra.mxu0 0.0
    %1891 = vmatprep.subr.mxu0 0.0
    %1892 = vmatpush1.msra.mxu0 0.0
    %1893 = vmatprep.mubr.f32.mxu0 0.0
    %1894 = vmatmul.mubr.f32.gmra.mrb[0].mxu0 %v902
    %v1895 = vpop.f32.mrb[0].mxu0
    %v1896 = vadd.f32 %v808, %v1895
    %v1897 = vpop.f32.mrb[0].mxu0
    %v1898 = vadd.f32 %v812, %v1897
    %1899 = vmatprep.mubr.f32.mxu0 0.0
    %1900 = vmatmul.mubr.f32.gmra.mrb[0].mxu0 %v905
    %v1901 = vpop.f32.mrb[0].mxu0
    %v1902 = vadd.f32 %v808, %v1901
    %v1903 = vpop.f32.mrb[0].mxu0
    %v1904 = vadd.f32 %v812, %v1903
    %1905 = vmatprep.mubr.f32.mxu0 0.0
    %1906 = vmatmul.mubr.f32.gmra.mrb[0].mxu0 %v908
    %v1907 = vpop.f32.mrb[0].mxu0
    %v1908 = vadd.f32 %v808, %v1907
    %v1909 = vpop.f32.mrb[0].mxu0
    %v1910 = vadd.f32 %v812, %v1909
    %1911 = vmatprep.mubr.f32.mxu0 0.0
    %1912 = vmatmul.mubr.f32.gmra.mrb[0].mxu0 %v911
    %v1913 = vpop.f32.mrb[0].mxu0
    %v1914 = vadd.f32 %v808, %v1913
    %v1915 = vpop.f32.mrb[0].mxu0
    %v1916 = vadd.f32 %v812, %v1915
    %1917 = vmatprep.mubr.f32.mxu0 0.0
    %1918 = vmatmul.mubr.f32.gmra.mrb[0].mxu0 %v914
    %v1919 = vpop.f32.mrb[0].mxu0
    %v1920 = vadd.f32 %v808, %v1919
    %v1921 = vpop.f32.mrb[0].mxu0
    %v1922 = vadd.f32 %v812, %v1921
    %1923 = vmatprep.mubr.f32.mxu0 0.0
    %1924 = vmatmul.mubr.f32.gmra.mrb[0].mxu0 %v917
    %v1925 = vpop.f32.mrb[0].mxu0
    %v1926 = vadd.f32 %v808, %v1925
    %v1927 = vpop.f32.mrb[0].mxu0
    %v1928 = vadd.f32 %v812, %v1927
    %1929 = vmatprep.mubr.f32.mxu0 0.0
    %1930 = vmatmul.mubr.f32.gmra.mrb[0].mxu0 %v920
    %v1931 = vpop.f32.mrb[0].mxu0
    %v1932 = vadd.f32 %v808, %v1931
    %v1933 = vpop.f32.mrb[0].mxu0
    %v1934 = vadd.f32 %v812, %v1933
    %1935 = vmatprep.mubr.f32.mxu0 0.0
    %1936 = vmatmul.mubr.f32.gmra.mrb[0].mxu0 %v923
    %v1937 = vpop.f32.mrb[0].mxu0
    %v1938 = vadd.f32 %v808, %v1937
    %v1939 = vpop.f32.mrb[0].mxu0
    %v1940 = vadd.f32 %v812, %v1939
    %1941 = vdwg.mxu0
    %1942 = vmatprep.subr.mxu0 %v720
    %1943 = vmatpush1.msra.mxu0 %v719
    %1944 = vmatprep.subr.mxu0 0.0
    %1945 = vmatpush1.msra.mxu0 0.0
    %1946 = vmatprep.subr.mxu0 0.0
    %1947 = vmatpush1.msra.mxu0 0.0
    %1948 = vmatprep.subr.mxu0 0.0
    %1949 = vmatpush1.msra.mxu0 0.0
    %1950 = vmatprep.subr.mxu0 0.0
    %1951 = vmatpush1.msra.mxu0 0.0
    %1952 = vmatprep.subr.mxu0 0.0
    %1953 = vmatpush1.msra.mxu0 0.0
    %1954 = vmatprep.subr.mxu0 0.0
    %1955 = vmatpush1.msra.mxu0 0.0
    %1956 = vmatprep.subr.mxu0 0.0
    %1957 = vmatpush1.msra.mxu0 0.0
    %1958 = vmatprep.subr.mxu0 0.0
    %1959 = vmatpush1.msra.mxu0 0.0
    %1960 = vmatprep.subr.mxu0 0.0
    %1961 = vmatpush1.msra.mxu0 0.0
    %1962 = vmatprep.subr.mxu0 0.0
    %1963 = vmatpush1.msra.mxu0 0.0
    %1964 = vmatprep.subr.mxu0 0.0
    %1965 = vmatpush1.msra.mxu0 0.0
    %1966 = vmatprep.subr.mxu0 0.0
    %1967 = vmatpush1.msra.mxu0 0.0
    %1968 = vmatprep.subr.mxu0 0.0
    %1969 = vmatpush1.msra.mxu0 0.0
    %1970 = vmatprep.subr.mxu0 0.0
    %1971 = vmatpush1.msra.mxu0 0.0
    %1972 = vmatprep.subr.mxu0 0.0
    %1973 = vmatpush1.msra.mxu0 0.0
    %1974 = vmatprep.subr.mxu0 0.0
    %1975 = vmatpush1.msra.mxu0 0.0
    %1976 = vmatprep.subr.mxu0 0.0
    %1977 = vmatpush1.msra.mxu0 0.0
    %1978 = vmatprep.subr.mxu0 0.0
    %1979 = vmatpush1.msra.mxu0 0.0
    %1980 = vmatprep.subr.mxu0 0.0
    %1981 = vmatpush1.msra.mxu0 0.0
    %1982 = vmatprep.subr.mxu0 0.0
    %1983 = vmatpush1.msra.mxu0 0.0
    %1984 = vmatprep.subr.mxu0 0.0
    %1985 = vmatpush1.msra.mxu0 0.0
    %1986 = vmatprep.subr.mxu0 0.0
    %1987 = vmatpush1.msra.mxu0 0.0
    %1988 = vmatprep.subr.mxu0 0.0
    %1989 = vmatpush1.msra.mxu0 0.0
    %1990 = vmatprep.subr.mxu0 0.0
    %1991 = vmatpush1.msra.mxu0 0.0
    %1992 = vmatprep.subr.mxu0 0.0
    %1993 = vmatpush1.msra.mxu0 0.0
    %1994 = vmatprep.subr.mxu0 0.0
    %1995 = vmatpush1.msra.mxu0 0.0
    %1996 = vmatprep.subr.mxu0 0.0
    %1997 = vmatpush1.msra.mxu0 0.0
    %1998 = vmatprep.subr.mxu0 0.0
    %1999 = vmatpush1.msra.mxu0 0.0
    %2000 = vmatprep.subr.mxu0 0.0
    %2001 = vmatpush1.msra.mxu0 0.0
    %2002 = vmatprep.subr.mxu0 0.0
    %2003 = vmatpush1.msra.mxu0 0.0
    %2004 = vmatprep.subr.mxu0 0.0
    %2005 = vmatpush1.msra.mxu0 0.0
    %2006 = vmatprep.mubr.f32.mxu0 0.0
    %2007 = vmatmul.mubr.f32.gmra.mrb[0].mxu0 %v902
    %v2008 = vpop.f32.mrb[0].mxu0
    %v2009 = vadd.f32 %v816, %v2008
    %v2010 = vpop.f32.mrb[0].mxu0
    %v2011 = vadd.f32 %v820, %v2010
    %2012 = vmatprep.mubr.f32.mxu0 0.0
    %2013 = vmatmul.mubr.f32.gmra.mrb[0].mxu0 %v905
    %v2014 = vpop.f32.mrb[0].mxu0
    %v2015 = vadd.f32 %v816, %v2014
    %v2016 = vpop.f32.mrb[0].mxu0
    %v2017 = vadd.f32 %v820, %v2016
    %2018 = vmatprep.mubr.f32.mxu0 0.0
    %2019 = vmatmul.mubr.f32.gmra.mrb[0].mxu0 %v908
    %v2020 = vpop.f32.mrb[0].mxu0
    %v2021 = vadd.f32 %v816, %v2020
    %v2022 = vpop.f32.mrb[0].mxu0
    %v2023 = vadd.f32 %v820, %v2022
    %2024 = vmatprep.mubr.f32.mxu0 0.0
    %2025 = vmatmul.mubr.f32.gmra.mrb[0].mxu0 %v911
    %v2026 = vpop.f32.mrb[0].mxu0
    %v2027 = vadd.f32 %v816, %v2026
    %v2028 = vpop.f32.mrb[0].mxu0
    %v2029 = vadd.f32 %v820, %v2028
    %2030 = vmatprep.mubr.f32.mxu0 0.0
    %2031 = vmatmul.mubr.f32.gmra.mrb[0].mxu0 %v914
    %v2032 = vpop.f32.mrb[0].mxu0
    %v2033 = vadd.f32 %v816, %v2032
    %v2034 = vpop.f32.mrb[0].mxu0
    %v2035 = vadd.f32 %v820, %v2034
    %2036 = vmatprep.mubr.f32.mxu0 0.0
    %2037 = vmatmul.mubr.f32.gmra.mrb[0].mxu0 %v917
    %v2038 = vpop.f32.mrb[0].mxu0
    %v2039 = vadd.f32 %v816, %v2038
    %v2040 = vpop.f32.mrb[0].mxu0
    %v2041 = vadd.f32 %v820, %v2040
    %2042 = vmatprep.mubr.f32.mxu0 0.0
    %2043 = vmatmul.mubr.f32.gmra.mrb[0].mxu0 %v920
    %v2044 = vpop.f32.mrb[0].mxu0
    %v2045 = vadd.f32 %v816, %v2044
    %v2046 = vpop.f32.mrb[0].mxu0
    %v2047 = vadd.f32 %v820, %v2046
    %2048 = vmatprep.mubr.f32.mxu0 0.0
    %2049 = vmatmul.mubr.f32.gmra.mrb[0].mxu0 %v923
    %v2050 = vpop.f32.mrb[0].mxu0
    %v2051 = vadd.f32 %v816, %v2050
    %v2052 = vpop.f32.mrb[0].mxu0
    %v2053 = vadd.f32 %v820, %v2052
    %2054 = vdwg.mxu0
    %2055 = vmatprep.subr.mxu0 %v722
    %2056 = vmatpush1.msra.mxu0 %v721
    %2057 = vmatprep.subr.mxu0 0.0
    %2058 = vmatpush1.msra.mxu0 0.0
    %2059 = vmatprep.subr.mxu0 0.0
    %2060 = vmatpush1.msra.mxu0 0.0
    %2061 = vmatprep.subr.mxu0 0.0
    %2062 = vmatpush1.msra.mxu0 0.0
    %2063 = vmatprep.subr.mxu0 0.0
    %2064 = vmatpush1.msra.mxu0 0.0
    %2065 = vmatprep.subr.mxu0 0.0
    %2066 = vmatpush1.msra.mxu0 0.0
    %2067 = vmatprep.subr.mxu0 0.0
    %2068 = vmatpush1.msra.mxu0 0.0
    %2069 = vmatprep.subr.mxu0 0.0
    %2070 = vmatpush1.msra.mxu0 0.0
    %2071 = vmatprep.subr.mxu0 0.0
    %2072 = vmatpush1.msra.mxu0 0.0
    %2073 = vmatprep.subr.mxu0 0.0
    %2074 = vmatpush1.msra.mxu0 0.0
    %2075 = vmatprep.subr.mxu0 0.0
    %2076 = vmatpush1.msra.mxu0 0.0
    %2077 = vmatprep.subr.mxu0 0.0
    %2078 = vmatpush1.msra.mxu0 0.0
    %2079 = vmatprep.subr.mxu0 0.0
    %2080 = vmatpush1.msra.mxu0 0.0
    %2081 = vmatprep.subr.mxu0 0.0
    %2082 = vmatpush1.msra.mxu0 0.0
    %2083 = vmatprep.subr.mxu0 0.0
    %2084 = vmatpush1.msra.mxu0 0.0
    %2085 = vmatprep.subr.mxu0 0.0
    %2086 = vmatpush1.msra.mxu0 0.0
    %2087 = vmatprep.subr.mxu0 0.0
    %2088 = vmatpush1.msra.mxu0 0.0
    %2089 = vmatprep.subr.mxu0 0.0
    %2090 = vmatpush1.msra.mxu0 0.0
    %2091 = vmatprep.subr.mxu0 0.0
    %2092 = vmatpush1.msra.mxu0 0.0
    %2093 = vmatprep.subr.mxu0 0.0
    %2094 = vmatpush1.msra.mxu0 0.0
    %2095 = vmatprep.subr.mxu0 0.0
    %2096 = vmatpush1.msra.mxu0 0.0
    %2097 = vmatprep.subr.mxu0 0.0
    %2098 = vmatpush1.msra.mxu0 0.0
    %2099 = vmatprep.subr.mxu0 0.0
    %2100 = vmatpush1.msra.mxu0 0.0
    %2101 = vmatprep.subr.mxu0 0.0
    %2102 = vmatpush1.msra.mxu0 0.0
    %2103 = vmatprep.subr.mxu0 0.0
    %2104 = vmatpush1.msra.mxu0 0.0
    %2105 = vmatprep.subr.mxu0 0.0
    %2106 = vmatpush1.msra.mxu0 0.0
    %2107 = vmatprep.subr.mxu0 0.0
    %2108 = vmatpush1.msra.mxu0 0.0
    %2109 = vmatprep.subr.mxu0 0.0
    %2110 = vmatpush1.msra.mxu0 0.0
    %2111 = vmatprep.subr.mxu0 0.0
    %2112 = vmatpush1.msra.mxu0 0.0
    %2113 = vmatprep.subr.mxu0 0.0
    %2114 = vmatpush1.msra.mxu0 0.0
    %2115 = vmatprep.subr.mxu0 0.0
    %2116 = vmatpush1.msra.mxu0 0.0
    %2117 = vmatprep.subr.mxu0 0.0
    %2118 = vmatpush1.msra.mxu0 0.0
    %2119 = vmatprep.mubr.f32.mxu0 0.0
    %2120 = vmatmul.mubr.f32.gmra.mrb[0].mxu0 %v902
    %v2121 = vpop.f32.mrb[0].mxu0
    %v2122 = vadd.f32 %v824, %v2121
    %v2123 = vpop.f32.mrb[0].mxu0
    %v2124 = vadd.f32 %v828, %v2123
    %2125 = vmatprep.mubr.f32.mxu0 0.0
    %2126 = vmatmul.mubr.f32.gmra.mrb[0].mxu0 %v905
    %v2127 = vpop.f32.mrb[0].mxu0
    %v2128 = vadd.f32 %v824, %v2127
    %v2129 = vpop.f32.mrb[0].mxu0
    %v2130 = vadd.f32 %v828, %v2129
    %2131 = vmatprep.mubr.f32.mxu0 0.0
    %2132 = vmatmul.mubr.f32.gmra.mrb[0].mxu0 %v908
    %v2133 = vpop.f32.mrb[0].mxu0
    %v2134 = vadd.f32 %v824, %v2133
    %v2135 = vpop.f32.mrb[0].mxu0
    %v2136 = vadd.f32 %v828, %v2135
    %2137 = vmatprep.mubr.f32.mxu0 0.0
    %2138 = vmatmul.mubr.f32.gmra.mrb[0].mxu0 %v911
    %v2139 = vpop.f32.mrb[0].mxu0
    %v2140 = vadd.f32 %v824, %v2139
    %v2141 = vpop.f32.mrb[0].mxu0
    %v2142 = vadd.f32 %v828, %v2141
    %2143 = vmatprep.mubr.f32.mxu0 0.0
    %2144 = vmatmul.mubr.f32.gmra.mrb[0].mxu0 %v914
    %v2145 = vpop.f32.mrb[0].mxu0
    %v2146 = vadd.f32 %v824, %v2145
    %v2147 = vpop.f32.mrb[0].mxu0
    %v2148 = vadd.f32 %v828, %v2147
    %2149 = vmatprep.mubr.f32.mxu0 0.0
    %2150 = vmatmul.mubr.f32.gmra.mrb[0].mxu0 %v917
    %v2151 = vpop.f32.mrb[0].mxu0
    %v2152 = vadd.f32 %v824, %v2151
    %v2153 = vpop.f32.mrb[0].mxu0
    %v2154 = vadd.f32 %v828, %v2153
    %2155 = vmatprep.mubr.f32.mxu0 0.0
    %2156 = vmatmul.mubr.f32.gmra.mrb[0].mxu0 %v920
    %v2157 = vpop.f32.mrb[0].mxu0
    %v2158 = vadd.f32 %v824, %v2157
    %v2159 = vpop.f32.mrb[0].mxu0
    %v2160 = vadd.f32 %v828, %v2159
    %2161 = vmatprep.mubr.f32.mxu0 0.0
    %2162 = vmatmul.mubr.f32.gmra.mrb[0].mxu0 %v923
    %v2163 = vpop.f32.mrb[0].mxu0
    %v2164 = vadd.f32 %v824, %v2163
    %v2165 = vpop.f32.mrb[0].mxu0
    %v2166 = vadd.f32 %v828, %v2165
    %2167 = vdwg.mxu0
    %2168 = vmatprep.subr.mxu0 %v724
    %2169 = vmatpush1.msra.mxu0 %v723
    %2170 = vmatprep.subr.mxu0 0.0
    %2171 = vmatpush1.msra.mxu0 0.0
    %2172 = vmatprep.subr.mxu0 0.0
    %2173 = vmatpush1.msra.mxu0 0.0
    %2174 = vmatprep.subr.mxu0 0.0
    %2175 = vmatpush1.msra.mxu0 0.0
    %2176 = vmatprep.subr.mxu0 0.0
    %2177 = vmatpush1.msra.mxu0 0.0
    %2178 = vmatprep.subr.mxu0 0.0
    %2179 = vmatpush1.msra.mxu0 0.0
    %2180 = vmatprep.subr.mxu0 0.0
    %2181 = vmatpush1.msra.mxu0 0.0
    %2182 = vmatprep.subr.mxu0 0.0
    %2183 = vmatpush1.msra.mxu0 0.0
    %2184 = vmatprep.subr.mxu0 0.0
    %2185 = vmatpush1.msra.mxu0 0.0
    %2186 = vmatprep.subr.mxu0 0.0
    %2187 = vmatpush1.msra.mxu0 0.0
    %2188 = vmatprep.subr.mxu0 0.0
    %2189 = vmatpush1.msra.mxu0 0.0
    %2190 = vmatprep.subr.mxu0 0.0
    %2191 = vmatpush1.msra.mxu0 0.0
    %2192 = vmatprep.subr.mxu0 0.0
    %2193 = vmatpush1.msra.mxu0 0.0
    %2194 = vmatprep.subr.mxu0 0.0
    %2195 = vmatpush1.msra.mxu0 0.0
    %2196 = vmatprep.subr.mxu0 0.0
    %2197 = vmatpush1.msra.mxu0 0.0
    %2198 = vmatprep.subr.mxu0 0.0
    %2199 = vmatpush1.msra.mxu0 0.0
    %2200 = vmatprep.subr.mxu0 0.0
    %2201 = vmatpush1.msra.mxu0 0.0
    %2202 = vmatprep.subr.mxu0 0.0
    %2203 = vmatpush1.msra.mxu0 0.0
    %2204 = vmatprep.subr.mxu0 0.0
    %2205 = vmatpush1.msra.mxu0 0.0
    %2206 = vmatprep.subr.mxu0 0.0
    %2207 = vmatpush1.msra.mxu0 0.0
    %2208 = vmatprep.subr.mxu0 0.0
    %2209 = vmatpush1.msra.mxu0 0.0
    %2210 = vmatprep.subr.mxu0 0.0
    %2211 = vmatpush1.msra.mxu0 0.0
    %2212 = vmatprep.subr.mxu0 0.0
    %2213 = vmatpush1.msra.mxu0 0.0
    %2214 = vmatprep.subr.mxu0 0.0
    %2215 = vmatpush1.msra.mxu0 0.0
    %2216 = vmatprep.subr.mxu0 0.0
    %2217 = vmatpush1.msra.mxu0 0.0
    %2218 = vmatprep.subr.mxu0 0.0
    %2219 = vmatpush1.msra.mxu0 0.0
    %2220 = vmatprep.subr.mxu0 0.0
    %2221 = vmatpush1.msra.mxu0 0.0
    %2222 = vmatprep.subr.mxu0 0.0
    %2223 = vmatpush1.msra.mxu0 0.0
    %2224 = vmatprep.subr.mxu0 0.0
    %2225 = vmatpush1.msra.mxu0 0.0
    %2226 = vmatprep.subr.mxu0 0.0
    %2227 = vmatpush1.msra.mxu0 0.0
    %2228 = vmatprep.subr.mxu0 0.0
    %2229 = vmatpush1.msra.mxu0 0.0
    %2230 = vmatprep.subr.mxu0 0.0
    %2231 = vmatpush1.msra.mxu0 0.0
    %2232 = vmatprep.mubr.f32.mxu0 0.0
    %2233 = vmatmul.mubr.f32.gmra.mrb[0].mxu0 %v902
    %v2234 = vpop.f32.mrb[0].mxu0
    %v2235 = vadd.f32 %v832, %v2234
    %v2236 = vpop.f32.mrb[0].mxu0
    %v2237 = vadd.f32 %v836, %v2236
    %2238 = vmatprep.mubr.f32.mxu0 0.0
    %2239 = vmatmul.mubr.f32.gmra.mrb[0].mxu0 %v905
    %v2240 = vpop.f32.mrb[0].mxu0
    %v2241 = vadd.f32 %v832, %v2240
    %v2242 = vpop.f32.mrb[0].mxu0
    %v2243 = vadd.f32 %v836, %v2242
    %2244 = vmatprep.mubr.f32.mxu0 0.0
    %2245 = vmatmul.mubr.f32.gmra.mrb[0].mxu0 %v908
    %v2246 = vpop.f32.mrb[0].mxu0
    %v2247 = vadd.f32 %v832, %v2246
    %v2248 = vpop.f32.mrb[0].mxu0
    %v2249 = vadd.f32 %v836, %v2248
    %2250 = vmatprep.mubr.f32.mxu0 0.0
    %2251 = vmatmul.mubr.f32.gmra.mrb[0].mxu0 %v911
    %v2252 = vpop.f32.mrb[0].mxu0
    %v2253 = vadd.f32 %v832, %v2252
    %v2254 = vpop.f32.mrb[0].mxu0
    %v2255 = vadd.f32 %v836, %v2254
    %2256 = vmatprep.mubr.f32.mxu0 0.0
    %2257 = vmatmul.mubr.f32.gmra.mrb[0].mxu0 %v914
    %v2258 = vpop.f32.mrb[0].mxu0
    %v2259 = vadd.f32 %v832, %v2258
    %v2260 = vpop.f32.mrb[0].mxu0
    %v2261 = vadd.f32 %v836, %v2260
    %2262 = vmatprep.mubr.f32.mxu0 0.0
    %2263 = vmatmul.mubr.f32.gmra.mrb[0].mxu0 %v917
    %v2264 = vpop.f32.mrb[0].mxu0
    %v2265 = vadd.f32 %v832, %v2264
    %v2266 = vpop.f32.mrb[0].mxu0
    %v2267 = vadd.f32 %v836, %v2266
    %2268 = vmatprep.mubr.f32.mxu0 0.0
    %2269 = vmatmul.mubr.f32.gmra.mrb[0].mxu0 %v920
    %v2270 = vpop.f32.mrb[0].mxu0
    %v2271 = vadd.f32 %v832, %v2270
    %v2272 = vpop.f32.mrb[0].mxu0
    %v2273 = vadd.f32 %v836, %v2272
    %2274 = vmatprep.mubr.f32.mxu0 0.0
    %2275 = vmatmul.mubr.f32.gmra.mrb[0].mxu0 %v923
    %v2276 = vpop.f32.mrb[0].mxu0
    %v2277 = vadd.f32 %v832, %v2276
    %v2278 = vpop.f32.mrb[0].mxu0
    %v2279 = vadd.f32 %v836, %v2278
    %2280 = vdwg.mxu0
    %2281 = vmatprep.subr.mxu0 %v726
    %2282 = vmatpush1.msra.mxu0 %v725
    %2283 = vmatprep.subr.mxu0 0.0
    %2284 = vmatpush1.msra.mxu0 0.0
    %2285 = vmatprep.subr.mxu0 0.0
    %2286 = vmatpush1.msra.mxu0 0.0
    %2287 = vmatprep.subr.mxu0 0.0
    %2288 = vmatpush1.msra.mxu0 0.0
    %2289 = vmatprep.subr.mxu0 0.0
    %2290 = vmatpush1.msra.mxu0 0.0
    %2291 = vmatprep.subr.mxu0 0.0
    %2292 = vmatpush1.msra.mxu0 0.0
    %2293 = vmatprep.subr.mxu0 0.0
    %2294 = vmatpush1.msra.mxu0 0.0
    %2295 = vmatprep.subr.mxu0 0.0
    %2296 = vmatpush1.msra.mxu0 0.0
    %2297 = vmatprep.subr.mxu0 0.0
    %2298 = vmatpush1.msra.mxu0 0.0
    %2299 = vmatprep.subr.mxu0 0.0
    %2300 = vmatpush1.msra.mxu0 0.0
    %2301 = vmatprep.subr.mxu0 0.0
    %2302 = vmatpush1.msra.mxu0 0.0
    %2303 = vmatprep.subr.mxu0 0.0
    %2304 = vmatpush1.msra.mxu0 0.0
    %2305 = vmatprep.subr.mxu0 0.0
    %2306 = vmatpush1.msra.mxu0 0.0
    %2307 = vmatprep.subr.mxu0 0.0
    %2308 = vmatpush1.msra.mxu0 0.0
    %2309 = vmatprep.subr.mxu0 0.0
    %2310 = vmatpush1.msra.mxu0 0.0
    %2311 = vmatprep.subr.mxu0 0.0
    %2312 = vmatpush1.msra.mxu0 0.0
    %2313 = vmatprep.subr.mxu0 0.0
    %2314 = vmatpush1.msra.mxu0 0.0
    %2315 = vmatprep.subr.mxu0 0.0
    %2316 = vmatpush1.msra.mxu0 0.0
    %2317 = vmatprep.subr.mxu0 0.0
    %2318 = vmatpush1.msra.mxu0 0.0
    %2319 = vmatprep.subr.mxu0 0.0
    %2320 = vmatpush1.msra.mxu0 0.0
    %2321 = vmatprep.subr.mxu0 0.0
    %2322 = vmatpush1.msra.mxu0 0.0
    %2323 = vmatprep.subr.mxu0 0.0
    %2324 = vmatpush1.msra.mxu0 0.0
    %2325 = vmatprep.subr.mxu0 0.0
    %2326 = vmatpush1.msra.mxu0 0.0
    %2327 = vmatprep.subr.mxu0 0.0
    %2328 = vmatpush1.msra.mxu0 0.0
    %2329 = vmatprep.subr.mxu0 0.0
    %2330 = vmatpush1.msra.mxu0 0.0
    %2331 = vmatprep.subr.mxu0 0.0
    %2332 = vmatpush1.msra.mxu0 0.0
    %2333 = vmatprep.subr.mxu0 0.0
    %2334 = vmatpush1.msra.mxu0 0.0
    %2335 = vmatprep.subr.mxu0 0.0
    %2336 = vmatpush1.msra.mxu0 0.0
    %2337 = vmatprep.subr.mxu0 0.0
    %2338 = vmatpush1.msra.mxu0 0.0
    %2339 = vmatprep.subr.mxu0 0.0
    %2340 = vmatpush1.msra.mxu0 0.0
    %2341 = vmatprep.subr.mxu0 0.0
    %2342 = vmatpush1.msra.mxu0 0.0
    %2343 = vmatprep.subr.mxu0 0.0
    %2344 = vmatpush1.msra.mxu0 0.0
    %2345 = vmatprep.mubr.f32.mxu0 0.0
    %2346 = vmatmul.mubr.f32.gmra.mrb[0].mxu0 %v902
    %v2347 = vpop.f32.mrb[0].mxu0
    %v2348 = vadd.f32 %v840, %v2347
    %v2349 = vpop.f32.mrb[0].mxu0
    %v2350 = vadd.f32 %v844, %v2349
    %2351 = vmatprep.mubr.f32.mxu0 0.0
    %2352 = vmatmul.mubr.f32.gmra.mrb[0].mxu0 %v905
    %v2353 = vpop.f32.mrb[0].mxu0
    %v2354 = vadd.f32 %v840, %v2353
    %v2355 = vpop.f32.mrb[0].mxu0
    %v2356 = vadd.f32 %v844, %v2355
    %2357 = vmatprep.mubr.f32.mxu0 0.0
    %2358 = vmatmul.mubr.f32.gmra.mrb[0].mxu0 %v908
    %v2359 = vpop.f32.mrb[0].mxu0
    %v2360 = vadd.f32 %v840, %v2359
    %v2361 = vpop.f32.mrb[0].mxu0
    %v2362 = vadd.f32 %v844, %v2361
    %2363 = vmatprep.mubr.f32.mxu0 0.0
    %2364 = vmatmul.mubr.f32.gmra.mrb[0].mxu0 %v911
    %v2365 = vpop.f32.mrb[0].mxu0
    %v2366 = vadd.f32 %v840, %v2365
    %v2367 = vpop.f32.mrb[0].mxu0
    %v2368 = vadd.f32 %v844, %v2367
    %2369 = vmatprep.mubr.f32.mxu0 0.0
    %2370 = vmatmul.mubr.f32.gmra.mrb[0].mxu0 %v914
    %v2371 = vpop.f32.mrb[0].mxu0
    %v2372 = vadd.f32 %v840, %v2371
    %v2373 = vpop.f32.mrb[0].mxu0
    %v2374 = vadd.f32 %v844, %v2373
    %2375 = vmatprep.mubr.f32.mxu0 0.0
    %2376 = vmatmul.mubr.f32.gmra.mrb[0].mxu0 %v917
    %v2377 = vpop.f32.mrb[0].mxu0
    %v2378 = vadd.f32 %v840, %v2377
    %v2379 = vpop.f32.mrb[0].mxu0
    %v2380 = vadd.f32 %v844, %v2379
    %2381 = vmatprep.mubr.f32.mxu0 0.0
    %2382 = vmatmul.mubr.f32.gmra.mrb[0].mxu0 %v920
    %v2383 = vpop.f32.mrb[0].mxu0
    %v2384 = vadd.f32 %v840, %v2383
    %v2385 = vpop.f32.mrb[0].mxu0
    %v2386 = vadd.f32 %v844, %v2385
    %2387 = vmatprep.mubr.f32.mxu0 0.0
    %2388 = vmatmul.mubr.f32.gmra.mrb[0].mxu0 %v923
    %v2389 = vpop.f32.mrb[0].mxu0
    %v2390 = vadd.f32 %v840, %v2389
    %v2391 = vpop.f32.mrb[0].mxu0
    %v2392 = vadd.f32 %v844, %v2391
    %2393 = vdwg.mxu0
    %2394 = vmatprep.subr.mxu0 %v728
    %2395 = vmatpush1.msra.mxu0 %v727
    %2396 = vmatprep.subr.mxu0 0.0
    %2397 = vmatpush1.msra.mxu0 0.0
    %2398 = vmatprep.subr.mxu0 0.0
    %2399 = vmatpush1.msra.mxu0 0.0
    %2400 = vmatprep.subr.mxu0 0.0
    %2401 = vmatpush1.msra.mxu0 0.0
    %2402 = vmatprep.subr.mxu0 0.0
    %2403 = vmatpush1.msra.mxu0 0.0
    %2404 = vmatprep.subr.mxu0 0.0
    %2405 = vmatpush1.msra.mxu0 0.0
    %2406 = vmatprep.subr.mxu0 0.0
    %2407 = vmatpush1.msra.mxu0 0.0
    %2408 = vmatprep.subr.mxu0 0.0
    %2409 = vmatpush1.msra.mxu0 0.0
    %2410 = vmatprep.subr.mxu0 0.0
    %2411 = vmatpush1.msra.mxu0 0.0
    %2412 = vmatprep.subr.mxu0 0.0
    %2413 = vmatpush1.msra.mxu0 0.0
    %2414 = vmatprep.subr.mxu0 0.0
    %2415 = vmatpush1.msra.mxu0 0.0
    %2416 = vmatprep.subr.mxu0 0.0
    %2417 = vmatpush1.msra.mxu0 0.0
    %2418 = vmatprep.subr.mxu0 0.0
    %2419 = vmatpush1.msra.mxu0 0.0
    %2420 = vmatprep.subr.mxu0 0.0
    %2421 = vmatpush1.msra.mxu0 0.0
    %2422 = vmatprep.subr.mxu0 0.0
    %2423 = vmatpush1.msra.mxu0 0.0
    %2424 = vmatprep.subr.mxu0 0.0
    %2425 = vmatpush1.msra.mxu0 0.0
    %2426 = vmatprep.subr.mxu0 0.0
    %2427 = vmatpush1.msra.mxu0 0.0
    %2428 = vmatprep.subr.mxu0 0.0
    %2429 = vmatpush1.msra.mxu0 0.0
    %2430 = vmatprep.subr.mxu0 0.0
    %2431 = vmatpush1.msra.mxu0 0.0
    %2432 = vmatprep.subr.mxu0 0.0
    %2433 = vmatpush1.msra.mxu0 0.0
    %2434 = vmatprep.subr.mxu0 0.0
    %2435 = vmatpush1.msra.mxu0 0.0
    %2436 = vmatprep.subr.mxu0 0.0
    %2437 = vmatpush1.msra.mxu0 0.0
    %2438 = vmatprep.subr.mxu0 0.0
    %2439 = vmatpush1.msra.mxu0 0.0
    %2440 = vmatprep.subr.mxu0 0.0
    %2441 = vmatpush1.msra.mxu0 0.0
    %2442 = vmatprep.subr.mxu0 0.0
    %2443 = vmatpush1.msra.mxu0 0.0
    %2444 = vmatprep.subr.mxu0 0.0
    %2445 = vmatpush1.msra.mxu0 0.0
    %2446 = vmatprep.subr.mxu0 0.0
    %2447 = vmatpush1.msra.mxu0 0.0
    %2448 = vmatprep.subr.mxu0 0.0
    %2449 = vmatpush1.msra.mxu0 0.0
    %2450 = vmatprep.subr.mxu0 0.0
    %2451 = vmatpush1.msra.mxu0 0.0
    %2452 = vmatprep.subr.mxu0 0.0
    %2453 = vmatpush1.msra.mxu0 0.0
    %2454 = vmatprep.subr.mxu0 0.0
    %2455 = vmatpush1.msra.mxu0 0.0
    %2456 = vmatprep.subr.mxu0 0.0
    %2457 = vmatpush1.msra.mxu0 0.0
    %2458 = vmatprep.mubr.f32.mxu0 0.0
    %2459 = vmatmul.mubr.f32.gmra.mrb[0].mxu0 %v902
    %v2460 = vpop.f32.mrb[0].mxu0
    %v2461 = vadd.f32 %v848, %v2460
    %v2462 = vpop.f32.mrb[0].mxu0
    %v2463 = vadd.f32 %v852, %v2462
    %2464 = vmatprep.mubr.f32.mxu0 0.0
    %2465 = vmatmul.mubr.f32.gmra.mrb[0].mxu0 %v905
    %v2466 = vpop.f32.mrb[0].mxu0
    %v2467 = vadd.f32 %v848, %v2466
    %v2468 = vpop.f32.mrb[0].mxu0
    %v2469 = vadd.f32 %v852, %v2468
    %2470 = vmatprep.mubr.f32.mxu0 0.0
    %2471 = vmatmul.mubr.f32.gmra.mrb[0].mxu0 %v908
    %v2472 = vpop.f32.mrb[0].mxu0
    %v2473 = vadd.f32 %v848, %v2472
    %v2474 = vpop.f32.mrb[0].mxu0
    %v2475 = vadd.f32 %v852, %v2474
    %2476 = vmatprep.mubr.f32.mxu0 0.0
    %2477 = vmatmul.mubr.f32.gmra.mrb[0].mxu0 %v911
    %v2478 = vpop.f32.mrb[0].mxu0
    %v2479 = vadd.f32 %v848, %v2478
    %v2480 = vpop.f32.mrb[0].mxu0
    %v2481 = vadd.f32 %v852, %v2480
    %2482 = vmatprep.mubr.f32.mxu0 0.0
    %2483 = vmatmul.mubr.f32.gmra.mrb[0].mxu0 %v914
    %v2484 = vpop.f32.mrb[0].mxu0
    %v2485 = vadd.f32 %v848, %v2484
    %v2486 = vpop.f32.mrb[0].mxu0
    %v2487 = vadd.f32 %v852, %v2486
    %2488 = vmatprep.mubr.f32.mxu0 0.0
    %2489 = vmatmul.mubr.f32.gmra.mrb[0].mxu0 %v917
    %v2490 = vpop.f32.mrb[0].mxu0
    %v2491 = vadd.f32 %v848, %v2490
    %v2492 = vpop.f32.mrb[0].mxu0
    %v2493 = vadd.f32 %v852, %v2492
    %2494 = vmatprep.mubr.f32.mxu0 0.0
    %2495 = vmatmul.mubr.f32.gmra.mrb[0].mxu0 %v920
    %v2496 = vpop.f32.mrb[0].mxu0
    %v2497 = vadd.f32 %v848, %v2496
    %v2498 = vpop.f32.mrb[0].mxu0
    %v2499 = vadd.f32 %v852, %v2498
    %2500 = vmatprep.mubr.f32.mxu0 0.0
    %2501 = vmatmul.mubr.f32.gmra.mrb[0].mxu0 %v923
    %v2502 = vpop.f32.mrb[0].mxu0
    %v2503 = vadd.f32 %v848, %v2502
    %v2504 = vpop.f32.mrb[0].mxu0
    %v2505 = vadd.f32 %v852, %v2504
    %2506 = vdwg.mxu0
    %2507 = vmatprep.subr.mxu0 %v730
    %2508 = vmatpush1.msra.mxu0 %v729
    %2509 = vmatprep.subr.mxu0 0.0
    %2510 = vmatpush1.msra.mxu0 0.0
    %2511 = vmatprep.subr.mxu0 0.0
    %2512 = vmatpush1.msra.mxu0 0.0
    %2513 = vmatprep.subr.mxu0 0.0
    %2514 = vmatpush1.msra.mxu0 0.0
    %2515 = vmatprep.subr.mxu0 0.0
    %2516 = vmatpush1.msra.mxu0 0.0
    %2517 = vmatprep.subr.mxu0 0.0
    %2518 = vmatpush1.msra.mxu0 0.0
    %2519 = vmatprep.subr.mxu0 0.0
    %2520 = vmatpush1.msra.mxu0 0.0
    %2521 = vmatprep.subr.mxu0 0.0
    %2522 = vmatpush1.msra.mxu0 0.0
    %2523 = vmatprep.subr.mxu0 0.0
    %2524 = vmatpush1.msra.mxu0 0.0
    %2525 = vmatprep.subr.mxu0 0.0
    %2526 = vmatpush1.msra.mxu0 0.0
    %2527 = vmatprep.subr.mxu0 0.0
    %2528 = vmatpush1.msra.mxu0 0.0
    %2529 = vmatprep.subr.mxu0 0.0
    %2530 = vmatpush1.msra.mxu0 0.0
    %2531 = vmatprep.subr.mxu0 0.0
    %2532 = vmatpush1.msra.mxu0 0.0
    %2533 = vmatprep.subr.mxu0 0.0
    %2534 = vmatpush1.msra.mxu0 0.0
    %2535 = vmatprep.subr.mxu0 0.0
    %2536 = vmatpush1.msra.mxu0 0.0
    %2537 = vmatprep.subr.mxu0 0.0
    %2538 = vmatpush1.msra.mxu0 0.0
    %2539 = vmatprep.subr.mxu0 0.0
    %2540 = vmatpush1.msra.mxu0 0.0
    %2541 = vmatprep.subr.mxu0 0.0
    %2542 = vmatpush1.msra.mxu0 0.0
    %2543 = vmatprep.subr.mxu0 0.0
    %2544 = vmatpush1.msra.mxu0 0.0
    %2545 = vmatprep.subr.mxu0 0.0
    %2546 = vmatpush1.msra.mxu0 0.0
    %2547 = vmatprep.subr.mxu0 0.0
    %2548 = vmatpush1.msra.mxu0 0.0
    %2549 = vmatprep.subr.mxu0 0.0
    %2550 = vmatpush1.msra.mxu0 0.0
    %2551 = vmatprep.subr.mxu0 0.0
    %2552 = vmatpush1.msra.mxu0 0.0
    %2553 = vmatprep.subr.mxu0 0.0
    %2554 = vmatpush1.msra.mxu0 0.0
    %2555 = vmatprep.subr.mxu0 0.0
    %2556 = vmatpush1.msra.mxu0 0.0
    %2557 = vmatprep.subr.mxu0 0.0
    %2558 = vmatpush1.msra.mxu0 0.0
    %2559 = vmatprep.subr.mxu0 0.0
    %2560 = vmatpush1.msra.mxu0 0.0
    %2561 = vmatprep.subr.mxu0 0.0
    %2562 = vmatpush1.msra.mxu0 0.0
    %2563 = vmatprep.subr.mxu0 0.0
    %2564 = vmatpush1.msra.mxu0 0.0
    %2565 = vmatprep.subr.mxu0 0.0
    %2566 = vmatpush1.msra.mxu0 0.0
    %2567 = vmatprep.subr.mxu0 0.0
    %2568 = vmatpush1.msra.mxu0 0.0
    %2569 = vmatprep.subr.mxu0 0.0
    %2570 = vmatpush1.msra.mxu0 0.0
    %2571 = vmatprep.mubr.f32.mxu0 0.0
    %2572 = vmatmul.mubr.f32.gmra.mrb[0].mxu0 %v902
    %v2573 = vpop.f32.mrb[0].mxu0
    %v2574 = vadd.f32 %v856, %v2573
    %v2575 = vpop.f32.mrb[0].mxu0
    %v2576 = vadd.f32 %v860, %v2575
    %2577 = vmatprep.mubr.f32.mxu0 0.0
    %2578 = vmatmul.mubr.f32.gmra.mrb[0].mxu0 %v905
    %v2579 = vpop.f32.mrb[0].mxu0
    %v2580 = vadd.f32 %v856, %v2579
    %v2581 = vpop.f32.mrb[0].mxu0
    %v2582 = vadd.f32 %v860, %v2581
    %2583 = vmatprep.mubr.f32.mxu0 0.0
    %2584 = vmatmul.mubr.f32.gmra.mrb[0].mxu0 %v908
    %v2585 = vpop.f32.mrb[0].mxu0
    %v2586 = vadd.f32 %v856, %v2585
    %v2587 = vpop.f32.mrb[0].mxu0
    %v2588 = vadd.f32 %v860, %v2587
    %2589 = vmatprep.mubr.f32.mxu0 0.0
    %2590 = vmatmul.mubr.f32.gmra.mrb[0].mxu0 %v911
    %v2591 = vpop.f32.mrb[0].mxu0
    %v2592 = vadd.f32 %v856, %v2591
    %v2593 = vpop.f32.mrb[0].mxu0
    %v2594 = vadd.f32 %v860, %v2593
    %2595 = vmatprep.mubr.f32.mxu0 0.0
    %2596 = vmatmul.mubr.f32.gmra.mrb[0].mxu0 %v914
    %v2597 = vpop.f32.mrb[0].mxu0
    %v2598 = vadd.f32 %v856, %v2597
    %v2599 = vpop.f32.mrb[0].mxu0
    %v2600 = vadd.f32 %v860, %v2599
    %2601 = vmatprep.mubr.f32.mxu0 0.0
    %2602 = vmatmul.mubr.f32.gmra.mrb[0].mxu0 %v917
    %v2603 = vpop.f32.mrb[0].mxu0
    %v2604 = vadd.f32 %v856, %v2603
    %v2605 = vpop.f32.mrb[0].mxu0
    %v2606 = vadd.f32 %v860, %v2605
    %2607 = vmatprep.mubr.f32.mxu0 0.0
    %2608 = vmatmul.mubr.f32.gmra.mrb[0].mxu0 %v920
    %v2609 = vpop.f32.mrb[0].mxu0
    %v2610 = vadd.f32 %v856, %v2609
    %v2611 = vpop.f32.mrb[0].mxu0
    %v2612 = vadd.f32 %v860, %v2611
    %2613 = vmatprep.mubr.f32.mxu0 0.0
    %2614 = vmatmul.mubr.f32.gmra.mrb[0].mxu0 %v923
    %v2615 = vpop.f32.mrb[0].mxu0
    %v2616 = vadd.f32 %v856, %v2615
    %v2617 = vpop.f32.mrb[0].mxu0
    %v2618 = vadd.f32 %v860, %v2617
    %2619 = vdwg.mxu0
    %2620 = vmatprep.subr.mxu0 %v732
    %2621 = vmatpush1.msra.mxu0 %v731
    %2622 = vmatprep.subr.mxu0 0.0
    %2623 = vmatpush1.msra.mxu0 0.0
    %2624 = vmatprep.subr.mxu0 0.0
    %2625 = vmatpush1.msra.mxu0 0.0
    %2626 = vmatprep.subr.mxu0 0.0
    %2627 = vmatpush1.msra.mxu0 0.0
    %2628 = vmatprep.subr.mxu0 0.0
    %2629 = vmatpush1.msra.mxu0 0.0
    %2630 = vmatprep.subr.mxu0 0.0
    %2631 = vmatpush1.msra.mxu0 0.0
    %2632 = vmatprep.subr.mxu0 0.0
    %2633 = vmatpush1.msra.mxu0 0.0
    %2634 = vmatprep.subr.mxu0 0.0
    %2635 = vmatpush1.msra.mxu0 0.0
    %2636 = vmatprep.subr.mxu0 0.0
    %2637 = vmatpush1.msra.mxu0 0.0
    %2638 = vmatprep.subr.mxu0 0.0
    %2639 = vmatpush1.msra.mxu0 0.0
    %2640 = vmatprep.subr.mxu0 0.0
    %2641 = vmatpush1.msra.mxu0 0.0
    %2642 = vmatprep.subr.mxu0 0.0
    %2643 = vmatpush1.msra.mxu0 0.0
    %2644 = vmatprep.subr.mxu0 0.0
    %2645 = vmatpush1.msra.mxu0 0.0
    %2646 = vmatprep.subr.mxu0 0.0
    %2647 = vmatpush1.msra.mxu0 0.0
    %2648 = vmatprep.subr.mxu0 0.0
    %2649 = vmatpush1.msra.mxu0 0.0
    %2650 = vmatprep.subr.mxu0 0.0
    %2651 = vmatpush1.msra.mxu0 0.0
    %2652 = vmatprep.subr.mxu0 0.0
    %2653 = vmatpush1.msra.mxu0 0.0
    %2654 = vmatprep.subr.mxu0 0.0
    %2655 = vmatpush1.msra.mxu0 0.0
    %2656 = vmatprep.subr.mxu0 0.0
    %2657 = vmatpush1.msra.mxu0 0.0
    %2658 = vmatprep.subr.mxu0 0.0
    %2659 = vmatpush1.msra.mxu0 0.0
    %2660 = vmatprep.subr.mxu0 0.0
    %2661 = vmatpush1.msra.mxu0 0.0
    %2662 = vmatprep.subr.mxu0 0.0
    %2663 = vmatpush1.msra.mxu0 0.0
    %2664 = vmatprep.subr.mxu0 0.0
    %2665 = vmatpush1.msra.mxu0 0.0
    %2666 = vmatprep.subr.mxu0 0.0
    %2667 = vmatpush1.msra.mxu0 0.0
    %2668 = vmatprep.subr.mxu0 0.0
    %2669 = vmatpush1.msra.mxu0 0.0
    %2670 = vmatprep.subr.mxu0 0.0
    %2671 = vmatpush1.msra.mxu0 0.0
    %2672 = vmatprep.subr.mxu0 0.0
    %2673 = vmatpush1.msra.mxu0 0.0
    %2674 = vmatprep.subr.mxu0 0.0
    %2675 = vmatpush1.msra.mxu0 0.0
    %2676 = vmatprep.subr.mxu0 0.0
    %2677 = vmatpush1.msra.mxu0 0.0
    %2678 = vmatprep.subr.mxu0 0.0
    %2679 = vmatpush1.msra.mxu0 0.0
    %2680 = vmatprep.subr.mxu0 0.0
    %2681 = vmatpush1.msra.mxu0 0.0
    %2682 = vmatprep.subr.mxu0 0.0
    %2683 = vmatpush1.msra.mxu0 0.0
    %2684 = vmatprep.mubr.f32.mxu0 0.0
    %2685 = vmatmul.mubr.f32.gmra.mrb[0].mxu0 %v902
    %v2686 = vpop.f32.mrb[0].mxu0
    %v2687 = vadd.f32 %v864, %v2686
    %v2688 = vpop.f32.mrb[0].mxu0
    %v2689 = vadd.f32 %v868, %v2688
    %2690 = vmatprep.mubr.f32.mxu0 0.0
    %2691 = vmatmul.mubr.f32.gmra.mrb[0].mxu0 %v905
    %v2692 = vpop.f32.mrb[0].mxu0
    %v2693 = vadd.f32 %v864, %v2692
    %v2694 = vpop.f32.mrb[0].mxu0
    %v2695 = vadd.f32 %v868, %v2694
    %2696 = vmatprep.mubr.f32.mxu0 0.0
    %2697 = vmatmul.mubr.f32.gmra.mrb[0].mxu0 %v908
    %v2698 = vpop.f32.mrb[0].mxu0
    %v2699 = vadd.f32 %v864, %v2698
    %v2700 = vpop.f32.mrb[0].mxu0
    %v2701 = vadd.f32 %v868, %v2700
    %2702 = vmatprep.mubr.f32.mxu0 0.0
    %2703 = vmatmul.mubr.f32.gmra.mrb[0].mxu0 %v911
    %v2704 = vpop.f32.mrb[0].mxu0
    %v2705 = vadd.f32 %v864, %v2704
    %v2706 = vpop.f32.mrb[0].mxu0
    %v2707 = vadd.f32 %v868, %v2706
    %2708 = vmatprep.mubr.f32.mxu0 0.0
    %2709 = vmatmul.mubr.f32.gmra.mrb[0].mxu0 %v914
    %v2710 = vpop.f32.mrb[0].mxu0
    %v2711 = vadd.f32 %v864, %v2710
    %v2712 = vpop.f32.mrb[0].mxu0
    %v2713 = vadd.f32 %v868, %v2712
    %2714 = vmatprep.mubr.f32.mxu0 0.0
    %2715 = vmatmul.mubr.f32.gmra.mrb[0].mxu0 %v917
    %v2716 = vpop.f32.mrb[0].mxu0
    %v2717 = vadd.f32 %v864, %v2716
    %v2718 = vpop.f32.mrb[0].mxu0
    %v2719 = vadd.f32 %v868, %v2718
    %2720 = vmatprep.mubr.f32.mxu0 0.0
    %2721 = vmatmul.mubr.f32.gmra.mrb[0].mxu0 %v920
    %v2722 = vpop.f32.mrb[0].mxu0
    %v2723 = vadd.f32 %v864, %v2722
    %v2724 = vpop.f32.mrb[0].mxu0
    %v2725 = vadd.f32 %v868, %v2724
    %2726 = vmatprep.mubr.f32.mxu0 0.0
    %2727 = vmatmul.mubr.f32.gmra.mrb[0].mxu0 %v923
    %v2728 = vpop.f32.mrb[0].mxu0
    %v2729 = vadd.f32 %v864, %v2728
    %v2730 = vpop.f32.mrb[0].mxu0
    %v2731 = vadd.f32 %v868, %v2730
    %2732 = vdwg.mxu0
    %v2733 = vmul.f32 %v992, 0.5
    %v2734 = vmul.f32 %v994, 0.5
    %v2735 = vmul.f32 %v1105, 0.5
    %v2736 = vmul.f32 %v1107, 0.5
    %v2737 = vmul.f32 %v1218, 0.5
    %v2738 = vmul.f32 %v1220, 0.5
    %v2739 = vmul.f32 %v1331, 0.5
    %v2740 = vmul.f32 %v1333, 0.5
    %v2741 = vmul.f32 %v1444, 0.5
    %v2742 = vmul.f32 %v1446, 0.5
    %v2743 = vmul.f32 %v1557, 0.5
    %v2744 = vmul.f32 %v1559, 0.5
    %v2745 = vmul.f32 %v1670, 0.5
    %v2746 = vmul.f32 %v1672, 0.5
    %v2747 = vmul.f32 %v1783, 0.5
    %v2748 = vmul.f32 %v1785, 0.5
    %v2749 = vmul.f32 %v1896, 0.5
    %v2750 = vmul.f32 %v1898, 0.5
    %v2751 = vmul.f32 %v2009, 0.5
    %v2752 = vmul.f32 %v2011, 0.5
    %v2753 = vmul.f32 %v2122, 0.5
    %v2754 = vmul.f32 %v2124, 0.5
    %v2755 = vmul.f32 %v2235, 0.5
    %v2756 = vmul.f32 %v2237, 0.5
    %v2757 = vmul.f32 %v2348, 0.5
    %v2758 = vmul.f32 %v2350, 0.5
    %v2759 = vmul.f32 %v2461, 0.5
    %v2760 = vmul.f32 %v2463, 0.5
    %v2761 = vmul.f32 %v2574, 0.5
    %v2762 = vmul.f32 %v2576, 0.5
    %v2763 = vmul.f32 %v2687, 0.5
    %v2764 = vmul.f32 %v2689, 0.5
    %v2765 = vmul.f32 %v998, 0.5
    %v2766 = vmul.f32 %v1000, 0.5
    %v2767 = vmul.f32 %v1111, 0.5
    %v2768 = vmul.f32 %v1113, 0.5
    %v2769 = vmul.f32 %v1224, 0.5
    %v2770 = vmul.f32 %v1226, 0.5
    %v2771 = vmul.f32 %v1337, 0.5
    %v2772 = vmul.f32 %v1339, 0.5
    %v2773 = vmul.f32 %v1450, 0.5
    %v2774 = vmul.f32 %v1452, 0.5
    %v2775 = vmul.f32 %v1563, 0.5
    %v2776 = vmul.f32 %v1565, 0.5
    %v2777 = vmul.f32 %v1676, 0.5
    %v2778 = vmul.f32 %v1678, 0.5
    %v2779 = vmul.f32 %v1789, 0.5
    %v2780 = vmul.f32 %v1791, 0.5
    %v2781 = vmul.f32 %v1902, 0.5
    %v2782 = vmul.f32 %v1904, 0.5
    %v2783 = vmul.f32 %v2015, 0.5
    %v2784 = vmul.f32 %v2017, 0.5
    %v2785 = vmul.f32 %v2128, 0.5
    %v2786 = vmul.f32 %v2130, 0.5
    %v2787 = vmul.f32 %v2241, 0.5
    %v2788 = vmul.f32 %v2243, 0.5
    %v2789 = vmul.f32 %v2354, 0.5
    %v2790 = vmul.f32 %v2356, 0.5
    %v2791 = vmul.f32 %v2467, 0.5
    %v2792 = vmul.f32 %v2469, 0.5
    %v2793 = vmul.f32 %v2580, 0.5
    %v2794 = vmul.f32 %v2582, 0.5
    %v2795 = vmul.f32 %v2693, 0.5
    %v2796 = vmul.f32 %v2695, 0.5
    %v2797 = vmul.f32 %v1004, 0.5
    %v2798 = vmul.f32 %v1006, 0.5
    %v2799 = vmul.f32 %v1117, 0.5
    %v2800 = vmul.f32 %v1119, 0.5
    %v2801 = vmul.f32 %v1230, 0.5
    %v2802 = vmul.f32 %v1232, 0.5
    %v2803 = vmul.f32 %v1343, 0.5
    %v2804 = vmul.f32 %v1345, 0.5
    %v2805 = vmul.f32 %v1456, 0.5
    %v2806 = vmul.f32 %v1458, 0.5
    %v2807 = vmul.f32 %v1569, 0.5
    %v2808 = vmul.f32 %v1571, 0.5
    %v2809 = vmul.f32 %v1682, 0.5
    %v2810 = vmul.f32 %v1684, 0.5
    %v2811 = vmul.f32 %v1795, 0.5
    %v2812 = vmul.f32 %v1797, 0.5
    %v2813 = vmul.f32 %v1908, 0.5
    %v2814 = vmul.f32 %v1910, 0.5
    %v2815 = vmul.f32 %v2021, 0.5
    %v2816 = vmul.f32 %v2023, 0.5
    %v2817 = vmul.f32 %v2134, 0.5
    %v2818 = vmul.f32 %v2136, 0.5
    %v2819 = vmul.f32 %v2247, 0.5
    %v2820 = vmul.f32 %v2249, 0.5
    %v2821 = vmul.f32 %v2360, 0.5
    %v2822 = vmul.f32 %v2362, 0.5
    %v2823 = vmul.f32 %v2473, 0.5
    %v2824 = vmul.f32 %v2475, 0.5
    %v2825 = vmul.f32 %v2586, 0.5
    %v2826 = vmul.f32 %v2588, 0.5
    %v2827 = vmul.f32 %v2699, 0.5
    %v2828 = vmul.f32 %v2701, 0.5
    %v2829 = vmul.f32 %v1010, 0.5
    %v2830 = vmul.f32 %v1012, 0.5
    %v2831 = vmul.f32 %v1123, 0.5
    %v2832 = vmul.f32 %v1125, 0.5
    %v2833 = vmul.f32 %v1236, 0.5
    %v2834 = vmul.f32 %v1238, 0.5
    %v2835 = vmul.f32 %v1349, 0.5
    %v2836 = vmul.f32 %v1351, 0.5
    %v2837 = vmul.f32 %v1462, 0.5
    %v2838 = vmul.f32 %v1464, 0.5
    %v2839 = vmul.f32 %v1575, 0.5
    %v2840 = vmul.f32 %v1577, 0.5
    %v2841 = vmul.f32 %v1688, 0.5
    %v2842 = vmul.f32 %v1690, 0.5
    %v2843 = vmul.f32 %v1801, 0.5
    %v2844 = vmul.f32 %v1803, 0.5
    %v2845 = vmul.f32 %v1914, 0.5
    %v2846 = vmul.f32 %v1916, 0.5
    %v2847 = vmul.f32 %v2027, 0.5
    %v2848 = vmul.f32 %v2029, 0.5
    %v2849 = vmul.f32 %v2140, 0.5
    %v2850 = vmul.f32 %v2142, 0.5
    %v2851 = vmul.f32 %v2253, 0.5
    %v2852 = vmul.f32 %v2255, 0.5
    %v2853 = vmul.f32 %v2366, 0.5
    %v2854 = vmul.f32 %v2368, 0.5
    %v2855 = vmul.f32 %v2479, 0.5
    %v2856 = vmul.f32 %v2481, 0.5
    %v2857 = vmul.f32 %v2592, 0.5
    %v2858 = vmul.f32 %v2594, 0.5
    %v2859 = vmul.f32 %v2705, 0.5
    %v2860 = vmul.f32 %v2707, 0.5
    %v2861 = vmul.f32 %v1016, 0.5
    %v2862 = vmul.f32 %v1018, 0.5
    %v2863 = vmul.f32 %v1129, 0.5
    %v2864 = vmul.f32 %v1131, 0.5
    %v2865 = vmul.f32 %v1242, 0.5
    %v2866 = vmul.f32 %v1244, 0.5
    %v2867 = vmul.f32 %v1355, 0.5
    %v2868 = vmul.f32 %v1357, 0.5
    %v2869 = vmul.f32 %v1468, 0.5
    %v2870 = vmul.f32 %v1470, 0.5
    %v2871 = vmul.f32 %v1581, 0.5
    %v2872 = vmul.f32 %v1583, 0.5
    %v2873 = vmul.f32 %v1694, 0.5
    %v2874 = vmul.f32 %v1696, 0.5
    %v2875 = vmul.f32 %v1807, 0.5
    %v2876 = vmul.f32 %v1809, 0.5
    %v2877 = vmul.f32 %v1920, 0.5
    %v2878 = vmul.f32 %v1922, 0.5
    %v2879 = vmul.f32 %v2033, 0.5
    %v2880 = vmul.f32 %v2035, 0.5
    %v2881 = vmul.f32 %v2146, 0.5
    %v2882 = vmul.f32 %v2148, 0.5
    %v2883 = vmul.f32 %v2259, 0.5
    %v2884 = vmul.f32 %v2261, 0.5
    %v2885 = vmul.f32 %v2372, 0.5
    %v2886 = vmul.f32 %v2374, 0.5
    %v2887 = vmul.f32 %v2485, 0.5
    %v2888 = vmul.f32 %v2487, 0.5
    %v2889 = vmul.f32 %v2598, 0.5
    %v2890 = vmul.f32 %v2600, 0.5
    %v2891 = vmul.f32 %v2711, 0.5
    %v2892 = vmul.f32 %v2713, 0.5
    %v2893 = vmul.f32 %v1022, 0.5
    %v2894 = vmul.f32 %v1024, 0.5
    %v2895 = vmul.f32 %v1135, 0.5
    %v2896 = vmul.f32 %v1137, 0.5
    %v2897 = vmul.f32 %v1248, 0.5
    %v2898 = vmul.f32 %v1250, 0.5
    %v2899 = vmul.f32 %v1361, 0.5
    %v2900 = vmul.f32 %v1363, 0.5
    %v2901 = vmul.f32 %v1474, 0.5
    %v2902 = vmul.f32 %v1476, 0.5
    %v2903 = vmul.f32 %v1587, 0.5
    %v2904 = vmul.f32 %v1589, 0.5
    %v2905 = vmul.f32 %v1700, 0.5
    %v2906 = vmul.f32 %v1702, 0.5
    %v2907 = vmul.f32 %v1813, 0.5
    %v2908 = vmul.f32 %v1815, 0.5
    %v2909 = vmul.f32 %v1926, 0.5
    %v2910 = vmul.f32 %v1928, 0.5
    %v2911 = vmul.f32 %v2039, 0.5
    %v2912 = vmul.f32 %v2041, 0.5
    %v2913 = vmul.f32 %v2152, 0.5
    %v2914 = vmul.f32 %v2154, 0.5
    %v2915 = vmul.f32 %v2265, 0.5
    %v2916 = vmul.f32 %v2267, 0.5
    %v2917 = vmul.f32 %v2378, 0.5
    %v2918 = vmul.f32 %v2380, 0.5
    %v2919 = vmul.f32 %v2491, 0.5
    %v2920 = vmul.f32 %v2493, 0.5
    %v2921 = vmul.f32 %v2604, 0.5
    %v2922 = vmul.f32 %v2606, 0.5
    %v2923 = vmul.f32 %v2717, 0.5
    %v2924 = vmul.f32 %v2719, 0.5
    %v2925 = vmul.f32 %v1028, 0.5
    %v2926 = vmul.f32 %v1030, 0.5
    %v2927 = vmul.f32 %v1141, 0.5
    %v2928 = vmul.f32 %v1143, 0.5
    %v2929 = vmul.f32 %v1254, 0.5
    %v2930 = vmul.f32 %v1256, 0.5
    %v2931 = vmul.f32 %v1367, 0.5
    %v2932 = vmul.f32 %v1369, 0.5
    %v2933 = vmul.f32 %v1480, 0.5
    %v2934 = vmul.f32 %v1482, 0.5
    %v2935 = vmul.f32 %v1593, 0.5
    %v2936 = vmul.f32 %v1595, 0.5
    %v2937 = vmul.f32 %v1706, 0.5
    %v2938 = vmul.f32 %v1708, 0.5
    %v2939 = vmul.f32 %v1819, 0.5
    %v2940 = vmul.f32 %v1821, 0.5
    %v2941 = vmul.f32 %v1932, 0.5
    %v2942 = vmul.f32 %v1934, 0.5
    %v2943 = vmul.f32 %v2045, 0.5
    %v2944 = vmul.f32 %v2047, 0.5
    %v2945 = vmul.f32 %v2158, 0.5
    %v2946 = vmul.f32 %v2160, 0.5
    %v2947 = vmul.f32 %v2271, 0.5
    %v2948 = vmul.f32 %v2273, 0.5
    %v2949 = vmul.f32 %v2384, 0.5
    %v2950 = vmul.f32 %v2386, 0.5
    %v2951 = vmul.f32 %v2497, 0.5
    %v2952 = vmul.f32 %v2499, 0.5
    %v2953 = vmul.f32 %v2610, 0.5
    %v2954 = vmul.f32 %v2612, 0.5
    %v2955 = vmul.f32 %v2723, 0.5
    %v2956 = vmul.f32 %v2725, 0.5
    %v2957 = vmul.f32 %v1034, 0.5
    %v2958 = vmul.f32 %v1036, 0.5
    %v2959 = vmul.f32 %v1147, 0.5
    %v2960 = vmul.f32 %v1149, 0.5
    %v2961 = vmul.f32 %v1260, 0.5
    %v2962 = vmul.f32 %v1262, 0.5
    %v2963 = vmul.f32 %v1373, 0.5
    %v2964 = vmul.f32 %v1375, 0.5
    %v2965 = vmul.f32 %v1486, 0.5
    %v2966 = vmul.f32 %v1488, 0.5
    %v2967 = vmul.f32 %v1599, 0.5
    %v2968 = vmul.f32 %v1601, 0.5
    %v2969 = vmul.f32 %v1712, 0.5
    %v2970 = vmul.f32 %v1714, 0.5
    %v2971 = vmul.f32 %v1825, 0.5
    %v2972 = vmul.f32 %v1827, 0.5
    %v2973 = vmul.f32 %v1938, 0.5
    %v2974 = vmul.f32 %v1940, 0.5
    %v2975 = vmul.f32 %v2051, 0.5
    %v2976 = vmul.f32 %v2053, 0.5
    %v2977 = vmul.f32 %v2164, 0.5
    %v2978 = vmul.f32 %v2166, 0.5
    %v2979 = vmul.f32 %v2277, 0.5
    %v2980 = vmul.f32 %v2279, 0.5
    %v2981 = vmul.f32 %v2390, 0.5
    %v2982 = vmul.f32 %v2392, 0.5
    %v2983 = vmul.f32 %v2503, 0.5
    %v2984 = vmul.f32 %v2505, 0.5
    %v2985 = vmul.f32 %v2616, 0.5
    %v2986 = vmul.f32 %v2618, 0.5
    %v2987 = vmul.f32 %v2729, 0.5
    %v2988 = vmul.f32 %v2731, 0.5
    %v2989 = vmul.f32 %v992, 0.70710677
    %v2990 = vmul.f32 %v994, 0.70710677
    %v2991 = vmul.f32 %v1105, 0.70710677
    %v2992 = vmul.f32 %v1107, 0.70710677
    %v2993 = vmul.f32 %v1218, 0.70710677
    %v2994 = vmul.f32 %v1220, 0.70710677
    %v2995 = vmul.f32 %v1331, 0.70710677
    %v2996 = vmul.f32 %v1333, 0.70710677
    %v2997 = vmul.f32 %v1444, 0.70710677
    %v2998 = vmul.f32 %v1446, 0.70710677
    %v2999 = vmul.f32 %v1557, 0.70710677
    %v3000 = vmul.f32 %v1559, 0.70710677
    %v3001 = vmul.f32 %v1670, 0.70710677
    %v3002 = vmul.f32 %v1672, 0.70710677
    %v3003 = vmul.f32 %v1783, 0.70710677
    %v3004 = vmul.f32 %v1785, 0.70710677
    %v3005 = vmul.f32 %v1896, 0.70710677
    %v3006 = vmul.f32 %v1898, 0.70710677
    %v3007 = vmul.f32 %v2009, 0.70710677
    %v3008 = vmul.f32 %v2011, 0.70710677
    %v3009 = vmul.f32 %v2122, 0.70710677
    %v3010 = vmul.f32 %v2124, 0.70710677
    %v3011 = vmul.f32 %v2235, 0.70710677
    %v3012 = vmul.f32 %v2237, 0.70710677
    %v3013 = vmul.f32 %v2348, 0.70710677
    %v3014 = vmul.f32 %v2350, 0.70710677
    %v3015 = vmul.f32 %v2461, 0.70710677
    %v3016 = vmul.f32 %v2463, 0.70710677
    %v3017 = vmul.f32 %v2574, 0.70710677
    %v3018 = vmul.f32 %v2576, 0.70710677
    %v3019 = vmul.f32 %v2687, 0.70710677
    %v3020 = vmul.f32 %v2689, 0.70710677
    %v3021 = vmul.f32 %v998, 0.70710677
    %v3022 = vmul.f32 %v1000, 0.70710677
    %v3023 = vmul.f32 %v1111, 0.70710677
    %v3024 = vmul.f32 %v1113, 0.70710677
    %v3025 = vmul.f32 %v1224, 0.70710677
    %v3026 = vmul.f32 %v1226, 0.70710677
    %v3027 = vmul.f32 %v1337, 0.70710677
    %v3028 = vmul.f32 %v1339, 0.70710677
    %v3029 = vmul.f32 %v1450, 0.70710677
    %v3030 = vmul.f32 %v1452, 0.70710677
    %v3031 = vmul.f32 %v1563, 0.70710677
    %v3032 = vmul.f32 %v1565, 0.70710677
    %v3033 = vmul.f32 %v1676, 0.70710677
    %v3034 = vmul.f32 %v1678, 0.70710677
    %v3035 = vmul.f32 %v1789, 0.70710677
    %v3036 = vmul.f32 %v1791, 0.70710677
    %v3037 = vmul.f32 %v1902, 0.70710677
    %v3038 = vmul.f32 %v1904, 0.70710677
    %v3039 = vmul.f32 %v2015, 0.70710677
    %v3040 = vmul.f32 %v2017, 0.70710677
    %v3041 = vmul.f32 %v2128, 0.70710677
    %v3042 = vmul.f32 %v2130, 0.70710677
    %v3043 = vmul.f32 %v2241, 0.70710677
    %v3044 = vmul.f32 %v2243, 0.70710677
    %v3045 = vmul.f32 %v2354, 0.70710677
    %v3046 = vmul.f32 %v2356, 0.70710677
    %v3047 = vmul.f32 %v2467, 0.70710677
    %v3048 = vmul.f32 %v2469, 0.70710677
    %v3049 = vmul.f32 %v2580, 0.70710677
    %v3050 = vmul.f32 %v2582, 0.70710677
    %v3051 = vmul.f32 %v2693, 0.70710677
    %v3052 = vmul.f32 %v2695, 0.70710677
    %v3053 = vmul.f32 %v1004, 0.70710677
    %v3054 = vmul.f32 %v1006, 0.70710677
    %v3055 = vmul.f32 %v1117, 0.70710677
    %v3056 = vmul.f32 %v1119, 0.70710677
    %v3057 = vmul.f32 %v1230, 0.70710677
    %v3058 = vmul.f32 %v1232, 0.70710677
    %v3059 = vmul.f32 %v1343, 0.70710677
    %v3060 = vmul.f32 %v1345, 0.70710677
    %v3061 = vmul.f32 %v1456, 0.70710677
    %v3062 = vmul.f32 %v1458, 0.70710677
    %v3063 = vmul.f32 %v1569, 0.70710677
    %v3064 = vmul.f32 %v1571, 0.70710677
    %v3065 = vmul.f32 %v1682, 0.70710677
    %v3066 = vmul.f32 %v1684, 0.70710677
    %v3067 = vmul.f32 %v1795, 0.70710677
    %v3068 = vmul.f32 %v1797, 0.70710677
    %v3069 = vmul.f32 %v1908, 0.70710677
    %v3070 = vmul.f32 %v1910, 0.70710677
    %v3071 = vmul.f32 %v2021, 0.70710677
    %v3072 = vmul.f32 %v2023, 0.70710677
    %v3073 = vmul.f32 %v2134, 0.70710677
    %v3074 = vmul.f32 %v2136, 0.70710677
    %v3075 = vmul.f32 %v2247, 0.70710677
    %v3076 = vmul.f32 %v2249, 0.70710677
    %v3077 = vmul.f32 %v2360, 0.70710677
    %v3078 = vmul.f32 %v2362, 0.70710677
    %v3079 = vmul.f32 %v2473, 0.70710677
    %v3080 = vmul.f32 %v2475, 0.70710677
    %v3081 = vmul.f32 %v2586, 0.70710677
    %v3082 = vmul.f32 %v2588, 0.70710677
    %v3083 = vmul.f32 %v2699, 0.70710677
    %v3084 = vmul.f32 %v2701, 0.70710677
    %v3085 = vmul.f32 %v1010, 0.70710677
    %v3086 = vmul.f32 %v1012, 0.70710677
    %v3087 = vmul.f32 %v1123, 0.70710677
    %v3088 = vmul.f32 %v1125, 0.70710677
    %v3089 = vmul.f32 %v1236, 0.70710677
    %v3090 = vmul.f32 %v1238, 0.70710677
    %v3091 = vmul.f32 %v1349, 0.70710677
    %v3092 = vmul.f32 %v1351, 0.70710677
    %v3093 = vmul.f32 %v1462, 0.70710677
    %v3094 = vmul.f32 %v1464, 0.70710677
    %v3095 = vmul.f32 %v1575, 0.70710677
    %v3096 = vmul.f32 %v1577, 0.70710677
    %v3097 = vmul.f32 %v1688, 0.70710677
    %v3098 = vmul.f32 %v1690, 0.70710677
    %v3099 = vmul.f32 %v1801, 0.70710677
    %v3100 = vmul.f32 %v1803, 0.70710677
    %v3101 = vmul.f32 %v1914, 0.70710677
    %v3102 = vmul.f32 %v1916, 0.70710677
    %v3103 = vmul.f32 %v2027, 0.70710677
    %v3104 = vmul.f32 %v2029, 0.70710677
    %v3105 = vmul.f32 %v2140, 0.70710677
    %v3106 = vmul.f32 %v2142, 0.70710677
    %v3107 = vmul.f32 %v2253, 0.70710677
    %v3108 = vmul.f32 %v2255, 0.70710677
    %v3109 = vmul.f32 %v2366, 0.70710677
    %v3110 = vmul.f32 %v2368, 0.70710677
    %v3111 = vmul.f32 %v2479, 0.70710677
    %v3112 = vmul.f32 %v2481, 0.70710677
    %v3113 = vmul.f32 %v2592, 0.70710677
    %v3114 = vmul.f32 %v2594, 0.70710677
    %v3115 = vmul.f32 %v2705, 0.70710677
    %v3116 = vmul.f32 %v2707, 0.70710677
    %v3117 = vmul.f32 %v1016, 0.70710677
    %v3118 = vmul.f32 %v1018, 0.70710677
    %v3119 = vmul.f32 %v1129, 0.70710677
    %v3120 = vmul.f32 %v1131, 0.70710677
    %v3121 = vmul.f32 %v1242, 0.70710677
    %v3122 = vmul.f32 %v1244, 0.70710677
    %v3123 = vmul.f32 %v1355, 0.70710677
    %v3124 = vmul.f32 %v1357, 0.70710677
    %v3125 = vmul.f32 %v1468, 0.70710677
    %v3126 = vmul.f32 %v1470, 0.70710677
    %v3127 = vmul.f32 %v1581, 0.70710677
    %v3128 = vmul.f32 %v1583, 0.70710677
    %v3129 = vmul.f32 %v1694, 0.70710677
    %v3130 = vmul.f32 %v1696, 0.70710677
    %v3131 = vmul.f32 %v1807, 0.70710677
    %v3132 = vmul.f32 %v1809, 0.70710677
    %v3133 = vmul.f32 %v1920, 0.70710677
    %v3134 = vmul.f32 %v1922, 0.70710677
    %v3135 = vmul.f32 %v2033, 0.70710677
    %v3136 = vmul.f32 %v2035, 0.70710677
    %v3137 = vmul.f32 %v2146, 0.70710677
    %v3138 = vmul.f32 %v2148, 0.70710677
    %v3139 = vmul.f32 %v2259, 0.70710677
    %v3140 = vmul.f32 %v2261, 0.70710677
    %v3141 = vmul.f32 %v2372, 0.70710677
    %v3142 = vmul.f32 %v2374, 0.70710677
    %v3143 = vmul.f32 %v2485, 0.70710677
    %v3144 = vmul.f32 %v2487, 0.70710677
    %v3145 = vmul.f32 %v2598, 0.70710677
    %v3146 = vmul.f32 %v2600, 0.70710677
    %v3147 = vmul.f32 %v2711, 0.70710677
    %v3148 = vmul.f32 %v2713, 0.70710677
    %v3149 = vmul.f32 %v1022, 0.70710677
    %v3150 = vmul.f32 %v1024, 0.70710677
    %v3151 = vmul.f32 %v1135, 0.70710677
    %v3152 = vmul.f32 %v1137, 0.70710677
    %v3153 = vmul.f32 %v1248, 0.70710677
    %v3154 = vmul.f32 %v1250, 0.70710677
    %v3155 = vmul.f32 %v1361, 0.70710677
    %v3156 = vmul.f32 %v1363, 0.70710677
    %v3157 = vmul.f32 %v1474, 0.70710677
    %v3158 = vmul.f32 %v1476, 0.70710677
    %v3159 = vmul.f32 %v1587, 0.70710677
    %v3160 = vmul.f32 %v1589, 0.70710677
    %v3161 = vmul.f32 %v1700, 0.70710677
    %v3162 = vmul.f32 %v1702, 0.70710677
    %v3163 = vmul.f32 %v1813, 0.70710677
    %v3164 = vmul.f32 %v1815, 0.70710677
    %v3165 = vmul.f32 %v1926, 0.70710677
    %v3166 = vmul.f32 %v1928, 0.70710677
    %v3167 = vmul.f32 %v2039, 0.70710677
    %v3168 = vmul.f32 %v2041, 0.70710677
    %v3169 = vmul.f32 %v2152, 0.70710677
    %v3170 = vmul.f32 %v2154, 0.70710677
    %v3171 = vmul.f32 %v2265, 0.70710677
    %v3172 = vmul.f32 %v2267, 0.70710677
    %v3173 = vmul.f32 %v2378, 0.70710677
    %v3174 = vmul.f32 %v2380, 0.70710677
    %v3175 = vmul.f32 %v2491, 0.70710677
    %v3176 = vmul.f32 %v2493, 0.70710677
    %v3177 = vmul.f32 %v2604, 0.70710677
    %v3178 = vmul.f32 %v2606, 0.70710677
    %v3179 = vmul.f32 %v2717, 0.70710677
    %v3180 = vmul.f32 %v2719, 0.70710677
    %v3181 = vmul.f32 %v1028, 0.70710677
    %v3182 = vmul.f32 %v1030, 0.70710677
    %v3183 = vmul.f32 %v1141, 0.70710677
    %v3184 = vmul.f32 %v1143, 0.70710677
    %v3185 = vmul.f32 %v1254, 0.70710677
    %v3186 = vmul.f32 %v1256, 0.70710677
    %v3187 = vmul.f32 %v1367, 0.70710677
    %v3188 = vmul.f32 %v1369, 0.70710677
    %v3189 = vmul.f32 %v1480, 0.70710677
    %v3190 = vmul.f32 %v1482, 0.70710677
    %v3191 = vmul.f32 %v1593, 0.70710677
    %v3192 = vmul.f32 %v1595, 0.70710677
    %v3193 = vmul.f32 %v1706, 0.70710677
    %v3194 = vmul.f32 %v1708, 0.70710677
    %v3195 = vmul.f32 %v1819, 0.70710677
    %v3196 = vmul.f32 %v1821, 0.70710677
    %v3197 = vmul.f32 %v1932, 0.70710677
    %v3198 = vmul.f32 %v1934, 0.70710677
    %v3199 = vmul.f32 %v2045, 0.70710677
    %v3200 = vmul.f32 %v2047, 0.70710677
    %v3201 = vmul.f32 %v2158, 0.70710677
    %v3202 = vmul.f32 %v2160, 0.70710677
    %v3203 = vmul.f32 %v2271, 0.70710677
    %v3204 = vmul.f32 %v2273, 0.70710677
    %v3205 = vmul.f32 %v2384, 0.70710677
    %v3206 = vmul.f32 %v2386, 0.70710677
    %v3207 = vmul.f32 %v2497, 0.70710677
    %v3208 = vmul.f32 %v2499, 0.70710677
    %v3209 = vmul.f32 %v2610, 0.70710677
    %v3210 = vmul.f32 %v2612, 0.70710677
    %v3211 = vmul.f32 %v2723, 0.70710677
    %v3212 = vmul.f32 %v2725, 0.70710677
    %v3213 = vmul.f32 %v1034, 0.70710677
    %v3214 = vmul.f32 %v1036, 0.70710677
    %v3215 = vmul.f32 %v1147, 0.70710677
    %v3216 = vmul.f32 %v1149, 0.70710677
    %v3217 = vmul.f32 %v1260, 0.70710677
    %v3218 = vmul.f32 %v1262, 0.70710677
    %v3219 = vmul.f32 %v1373, 0.70710677
    %v3220 = vmul.f32 %v1375, 0.70710677
    %v3221 = vmul.f32 %v1486, 0.70710677
    %v3222 = vmul.f32 %v1488, 0.70710677
    %v3223 = vmul.f32 %v1599, 0.70710677
    %v3224 = vmul.f32 %v1601, 0.70710677
    %v3225 = vmul.f32 %v1712, 0.70710677
    %v3226 = vmul.f32 %v1714, 0.70710677
    %v3227 = vmul.f32 %v1825, 0.70710677
    %v3228 = vmul.f32 %v1827, 0.70710677
    %v3229 = vmul.f32 %v1938, 0.70710677
    %v3230 = vmul.f32 %v1940, 0.70710677
    %v3231 = vmul.f32 %v2051, 0.70710677
    %v3232 = vmul.f32 %v2053, 0.70710677
    %v3233 = vmul.f32 %v2164, 0.70710677
    %v3234 = vmul.f32 %v2166, 0.70710677
    %v3235 = vmul.f32 %v2277, 0.70710677
    %v3236 = vmul.f32 %v2279, 0.70710677
    %v3237 = vmul.f32 %v2390, 0.70710677
    %v3238 = vmul.f32 %v2392, 0.70710677
    %v3239 = vmul.f32 %v2503, 0.70710677
    %v3240 = vmul.f32 %v2505, 0.70710677
    %v3241 = vmul.f32 %v2616, 0.70710677
    %v3242 = vmul.f32 %v2618, 0.70710677
    %v3243 = vmul.f32 %v2729, 0.70710677
    %v3244 = vmul.f32 %v2731, 0.70710677
    %vm3245 = vcmp.lt.f32.partialorder %v2989, 0.0
    %vm3246 = vcmp.lt.f32.partialorder %v2990, 0.0
    %vm3247 = vcmp.lt.f32.partialorder %v2991, 0.0
    %vm3248 = vcmp.lt.f32.partialorder %v2992, 0.0
    %vm3249 = vcmp.lt.f32.partialorder %v2993, 0.0
    %vm3250 = vcmp.lt.f32.partialorder %v2994, 0.0
    %vm3251 = vcmp.lt.f32.partialorder %v2995, 0.0
    %vm3252 = vcmp.lt.f32.partialorder %v2996, 0.0
    %vm3253 = vcmp.lt.f32.partialorder %v2997, 0.0
    %vm3254 = vcmp.lt.f32.partialorder %v2998, 0.0
    %vm3255 = vcmp.lt.f32.partialorder %v2999, 0.0
    %vm3256 = vcmp.lt.f32.partialorder %v3000, 0.0
    %vm3257 = vcmp.lt.f32.partialorder %v3001, 0.0
    %vm3258 = vcmp.lt.f32.partialorder %v3002, 0.0
    %vm3259 = vcmp.lt.f32.partialorder %v3003, 0.0
    %vm3260 = vcmp.lt.f32.partialorder %v3004, 0.0
    %vm3261 = vcmp.lt.f32.partialorder %v3005, 0.0
    %vm3262 = vcmp.lt.f32.partialorder %v3006, 0.0
    %vm3263 = vcmp.lt.f32.partialorder %v3007, 0.0
    %vm3264 = vcmp.lt.f32.partialorder %v3008, 0.0
    %vm3265 = vcmp.lt.f32.partialorder %v3009, 0.0
    %vm3266 = vcmp.lt.f32.partialorder %v3010, 0.0
    %vm3267 = vcmp.lt.f32.partialorder %v3011, 0.0
    %vm3268 = vcmp.lt.f32.partialorder %v3012, 0.0
    %vm3269 = vcmp.lt.f32.partialorder %v3013, 0.0
    %vm3270 = vcmp.lt.f32.partialorder %v3014, 0.0
    %vm3271 = vcmp.lt.f32.partialorder %v3015, 0.0
    %vm3272 = vcmp.lt.f32.partialorder %v3016, 0.0
    %vm3273 = vcmp.lt.f32.partialorder %v3017, 0.0
    %vm3274 = vcmp.lt.f32.partialorder %v3018, 0.0
    %vm3275 = vcmp.lt.f32.partialorder %v3019, 0.0
    %vm3276 = vcmp.lt.f32.partialorder %v3020, 0.0
    %vm3277 = vcmp.lt.f32.partialorder %v3021, 0.0
    %vm3278 = vcmp.lt.f32.partialorder %v3022, 0.0
    %vm3279 = vcmp.lt.f32.partialorder %v3023, 0.0
    %vm3280 = vcmp.lt.f32.partialorder %v3024, 0.0
    %vm3281 = vcmp.lt.f32.partialorder %v3025, 0.0
    %vm3282 = vcmp.lt.f32.partialorder %v3026, 0.0
    %vm3283 = vcmp.lt.f32.partialorder %v3027, 0.0
    %vm3284 = vcmp.lt.f32.partialorder %v3028, 0.0
    %vm3285 = vcmp.lt.f32.partialorder %v3029, 0.0
    %vm3286 = vcmp.lt.f32.partialorder %v3030, 0.0
    %vm3287 = vcmp.lt.f32.partialorder %v3031, 0.0
    %vm3288 = vcmp.lt.f32.partialorder %v3032, 0.0
    %vm3289 = vcmp.lt.f32.partialorder %v3033, 0.0
    %vm3290 = vcmp.lt.f32.partialorder %v3034, 0.0
    %vm3291 = vcmp.lt.f32.partialorder %v3035, 0.0
    %vm3292 = vcmp.lt.f32.partialorder %v3036, 0.0
    %vm3293 = vcmp.lt.f32.partialorder %v3037, 0.0
    %vm3294 = vcmp.lt.f32.partialorder %v3038, 0.0
    %vm3295 = vcmp.lt.f32.partialorder %v3039, 0.0
    %vm3296 = vcmp.lt.f32.partialorder %v3040, 0.0
    %vm3297 = vcmp.lt.f32.partialorder %v3041, 0.0
    %vm3298 = vcmp.lt.f32.partialorder %v3042, 0.0
    %vm3299 = vcmp.lt.f32.partialorder %v3043, 0.0
    %vm3300 = vcmp.lt.f32.partialorder %v3044, 0.0
    %vm3301 = vcmp.lt.f32.partialorder %v3045, 0.0
    %vm3302 = vcmp.lt.f32.partialorder %v3046, 0.0
    %vm3303 = vcmp.lt.f32.partialorder %v3047, 0.0
    %vm3304 = vcmp.lt.f32.partialorder %v3048, 0.0
    %vm3305 = vcmp.lt.f32.partialorder %v3049, 0.0
    %vm3306 = vcmp.lt.f32.partialorder %v3050, 0.0
    %vm3307 = vcmp.lt.f32.partialorder %v3051, 0.0
    %vm3308 = vcmp.lt.f32.partialorder %v3052, 0.0
    %vm3309 = vcmp.lt.f32.partialorder %v3053, 0.0
    %vm3310 = vcmp.lt.f32.partialorder %v3054, 0.0
    %vm3311 = vcmp.lt.f32.partialorder %v3055, 0.0
    %vm3312 = vcmp.lt.f32.partialorder %v3056, 0.0
    %vm3313 = vcmp.lt.f32.partialorder %v3057, 0.0
    %vm3314 = vcmp.lt.f32.partialorder %v3058, 0.0
    %vm3315 = vcmp.lt.f32.partialorder %v3059, 0.0
    %vm3316 = vcmp.lt.f32.partialorder %v3060, 0.0
    %vm3317 = vcmp.lt.f32.partialorder %v3061, 0.0
    %vm3318 = vcmp.lt.f32.partialorder %v3062, 0.0
    %vm3319 = vcmp.lt.f32.partialorder %v3063, 0.0
    %vm3320 = vcmp.lt.f32.partialorder %v3064, 0.0
    %vm3321 = vcmp.lt.f32.partialorder %v3065, 0.0
    %vm3322 = vcmp.lt.f32.partialorder %v3066, 0.0
    %vm3323 = vcmp.lt.f32.partialorder %v3067, 0.0
    %vm3324 = vcmp.lt.f32.partialorder %v3068, 0.0
    %vm3325 = vcmp.lt.f32.partialorder %v3069, 0.0
    %vm3326 = vcmp.lt.f32.partialorder %v3070, 0.0
    %vm3327 = vcmp.lt.f32.partialorder %v3071, 0.0
    %vm3328 = vcmp.lt.f32.partialorder %v3072, 0.0
    %vm3329 = vcmp.lt.f32.partialorder %v3073, 0.0
    %vm3330 = vcmp.lt.f32.partialorder %v3074, 0.0
    %vm3331 = vcmp.lt.f32.partialorder %v3075, 0.0
    %vm3332 = vcmp.lt.f32.partialorder %v3076, 0.0
    %vm3333 = vcmp.lt.f32.partialorder %v3077, 0.0
    %vm3334 = vcmp.lt.f32.partialorder %v3078, 0.0
    %vm3335 = vcmp.lt.f32.partialorder %v3079, 0.0
    %vm3336 = vcmp.lt.f32.partialorder %v3080, 0.0
    %vm3337 = vcmp.lt.f32.partialorder %v3081, 0.0
    %vm3338 = vcmp.lt.f32.partialorder %v3082, 0.0
    %vm3339 = vcmp.lt.f32.partialorder %v3083, 0.0
    %vm3340 = vcmp.lt.f32.partialorder %v3084, 0.0
    %vm3341 = vcmp.lt.f32.partialorder %v3085, 0.0
    %vm3342 = vcmp.lt.f32.partialorder %v3086, 0.0
    %vm3343 = vcmp.lt.f32.partialorder %v3087, 0.0
    %vm3344 = vcmp.lt.f32.partialorder %v3088, 0.0
    %vm3345 = vcmp.lt.f32.partialorder %v3089, 0.0
    %vm3346 = vcmp.lt.f32.partialorder %v3090, 0.0
    %vm3347 = vcmp.lt.f32.partialorder %v3091, 0.0
    %vm3348 = vcmp.lt.f32.partialorder %v3092, 0.0
    %vm3349 = vcmp.lt.f32.partialorder %v3093, 0.0
    %vm3350 = vcmp.lt.f32.partialorder %v3094, 0.0
    %vm3351 = vcmp.lt.f32.partialorder %v3095, 0.0
    %vm3352 = vcmp.lt.f32.partialorder %v3096, 0.0
    %vm3353 = vcmp.lt.f32.partialorder %v3097, 0.0
    %vm3354 = vcmp.lt.f32.partialorder %v3098, 0.0
    %vm3355 = vcmp.lt.f32.partialorder %v3099, 0.0
    %vm3356 = vcmp.lt.f32.partialorder %v3100, 0.0
    %vm3357 = vcmp.lt.f32.partialorder %v3101, 0.0
    %vm3358 = vcmp.lt.f32.partialorder %v3102, 0.0
    %vm3359 = vcmp.lt.f32.partialorder %v3103, 0.0
    %vm3360 = vcmp.lt.f32.partialorder %v3104, 0.0
    %vm3361 = vcmp.lt.f32.partialorder %v3105, 0.0
    %vm3362 = vcmp.lt.f32.partialorder %v3106, 0.0
    %vm3363 = vcmp.lt.f32.partialorder %v3107, 0.0
    %vm3364 = vcmp.lt.f32.partialorder %v3108, 0.0
    %vm3365 = vcmp.lt.f32.partialorder %v3109, 0.0
    %vm3366 = vcmp.lt.f32.partialorder %v3110, 0.0
    %vm3367 = vcmp.lt.f32.partialorder %v3111, 0.0
    %vm3368 = vcmp.lt.f32.partialorder %v3112, 0.0
    %vm3369 = vcmp.lt.f32.partialorder %v3113, 0.0
    %vm3370 = vcmp.lt.f32.partialorder %v3114, 0.0
    %vm3371 = vcmp.lt.f32.partialorder %v3115, 0.0
    %vm3372 = vcmp.lt.f32.partialorder %v3116, 0.0
    %vm3373 = vcmp.lt.f32.partialorder %v3117, 0.0
    %vm3374 = vcmp.lt.f32.partialorder %v3118, 0.0
    %vm3375 = vcmp.lt.f32.partialorder %v3119, 0.0
    %vm3376 = vcmp.lt.f32.partialorder %v3120, 0.0
    %vm3377 = vcmp.lt.f32.partialorder %v3121, 0.0
    %vm3378 = vcmp.lt.f32.partialorder %v3122, 0.0
    %vm3379 = vcmp.lt.f32.partialorder %v3123, 0.0
    %vm3380 = vcmp.lt.f32.partialorder %v3124, 0.0
    %vm3381 = vcmp.lt.f32.partialorder %v3125, 0.0
    %vm3382 = vcmp.lt.f32.partialorder %v3126, 0.0
    %vm3383 = vcmp.lt.f32.partialorder %v3127, 0.0
    %vm3384 = vcmp.lt.f32.partialorder %v3128, 0.0
    %vm3385 = vcmp.lt.f32.partialorder %v3129, 0.0
    %vm3386 = vcmp.lt.f32.partialorder %v3130, 0.0
    %vm3387 = vcmp.lt.f32.partialorder %v3131, 0.0
    %vm3388 = vcmp.lt.f32.partialorder %v3132, 0.0
    %vm3389 = vcmp.lt.f32.partialorder %v3133, 0.0
    %vm3390 = vcmp.lt.f32.partialorder %v3134, 0.0
    %vm3391 = vcmp.lt.f32.partialorder %v3135, 0.0
    %vm3392 = vcmp.lt.f32.partialorder %v3136, 0.0
    %vm3393 = vcmp.lt.f32.partialorder %v3137, 0.0
    %vm3394 = vcmp.lt.f32.partialorder %v3138, 0.0
    %vm3395 = vcmp.lt.f32.partialorder %v3139, 0.0
    %vm3396 = vcmp.lt.f32.partialorder %v3140, 0.0
    %vm3397 = vcmp.lt.f32.partialorder %v3141, 0.0
    %vm3398 = vcmp.lt.f32.partialorder %v3142, 0.0
    %vm3399 = vcmp.lt.f32.partialorder %v3143, 0.0
    %vm3400 = vcmp.lt.f32.partialorder %v3144, 0.0
    %vm3401 = vcmp.lt.f32.partialorder %v3145, 0.0
    %vm3402 = vcmp.lt.f32.partialorder %v3146, 0.0
    %vm3403 = vcmp.lt.f32.partialorder %v3147, 0.0
    %vm3404 = vcmp.lt.f32.partialorder %v3148, 0.0
    %vm3405 = vcmp.lt.f32.partialorder %v3149, 0.0
    %vm3406 = vcmp.lt.f32.partialorder %v3150, 0.0
    %vm3407 = vcmp.lt.f32.partialorder %v3151, 0.0
    %vm3408 = vcmp.lt.f32.partialorder %v3152, 0.0
    %vm3409 = vcmp.lt.f32.partialorder %v3153, 0.0
    %vm3410 = vcmp.lt.f32.partialorder %v3154, 0.0
    %vm3411 = vcmp.lt.f32.partialorder %v3155, 0.0
    %vm3412 = vcmp.lt.f32.partialorder %v3156, 0.0
    %vm3413 = vcmp.lt.f32.partialorder %v3157, 0.0
    %vm3414 = vcmp.lt.f32.partialorder %v3158, 0.0
    %vm3415 = vcmp.lt.f32.partialorder %v3159, 0.0
    %vm3416 = vcmp.lt.f32.partialorder %v3160, 0.0
    %vm3417 = vcmp.lt.f32.partialorder %v3161, 0.0
    %vm3418 = vcmp.lt.f32.partialorder %v3162, 0.0
    %vm3419 = vcmp.lt.f32.partialorder %v3163, 0.0
    %vm3420 = vcmp.lt.f32.partialorder %v3164, 0.0
    %vm3421 = vcmp.lt.f32.partialorder %v3165, 0.0
    %vm3422 = vcmp.lt.f32.partialorder %v3166, 0.0
    %vm3423 = vcmp.lt.f32.partialorder %v3167, 0.0
    %vm3424 = vcmp.lt.f32.partialorder %v3168, 0.0
    %vm3425 = vcmp.lt.f32.partialorder %v3169, 0.0
    %vm3426 = vcmp.lt.f32.partialorder %v3170, 0.0
    %vm3427 = vcmp.lt.f32.partialorder %v3171, 0.0
    %vm3428 = vcmp.lt.f32.partialorder %v3172, 0.0
    %vm3429 = vcmp.lt.f32.partialorder %v3173, 0.0
    %vm3430 = vcmp.lt.f32.partialorder %v3174, 0.0
    %vm3431 = vcmp.lt.f32.partialorder %v3175, 0.0
    %vm3432 = vcmp.lt.f32.partialorder %v3176, 0.0
    %vm3433 = vcmp.lt.f32.partialorder %v3177, 0.0
    %vm3434 = vcmp.lt.f32.partialorder %v3178, 0.0
    %vm3435 = vcmp.lt.f32.partialorder %v3179, 0.0
    %vm3436 = vcmp.lt.f32.partialorder %v3180, 0.0
    %vm3437 = vcmp.lt.f32.partialorder %v3181, 0.0
    %vm3438 = vcmp.lt.f32.partialorder %v3182, 0.0
    %vm3439 = vcmp.lt.f32.partialorder %v3183, 0.0
    %vm3440 = vcmp.lt.f32.partialorder %v3184, 0.0
    %vm3441 = vcmp.lt.f32.partialorder %v3185, 0.0
    %vm3442 = vcmp.lt.f32.partialorder %v3186, 0.0
    %vm3443 = vcmp.lt.f32.partialorder %v3187, 0.0
    %vm3444 = vcmp.lt.f32.partialorder %v3188, 0.0
    %vm3445 = vcmp.lt.f32.partialorder %v3189, 0.0
    %vm3446 = vcmp.lt.f32.partialorder %v3190, 0.0
    %vm3447 = vcmp.lt.f32.partialorder %v3191, 0.0
    %vm3448 = vcmp.lt.f32.partialorder %v3192, 0.0
    %vm3449 = vcmp.lt.f32.partialorder %v3193, 0.0
    %vm3450 = vcmp.lt.f32.partialorder %v3194, 0.0
    %vm3451 = vcmp.lt.f32.partialorder %v3195, 0.0
    %vm3452 = vcmp.lt.f32.partialorder %v3196, 0.0
    %vm3453 = vcmp.lt.f32.partialorder %v3197, 0.0
    %vm3454 = vcmp.lt.f32.partialorder %v3198, 0.0
    %vm3455 = vcmp.lt.f32.partialorder %v3199, 0.0
    %vm3456 = vcmp.lt.f32.partialorder %v3200, 0.0
    %vm3457 = vcmp.lt.f32.partialorder %v3201, 0.0
    %vm3458 = vcmp.lt.f32.partialorder %v3202, 0.0
    %vm3459 = vcmp.lt.f32.partialorder %v3203, 0.0
    %vm3460 = vcmp.lt.f32.partialorder %v3204, 0.0
    %vm3461 = vcmp.lt.f32.partialorder %v3205, 0.0
    %vm3462 = vcmp.lt.f32.partialorder %v3206, 0.0
    %vm3463 = vcmp.lt.f32.partialorder %v3207, 0.0
    %vm3464 = vcmp.lt.f32.partialorder %v3208, 0.0
    %vm3465 = vcmp.lt.f32.partialorder %v3209, 0.0
    %vm3466 = vcmp.lt.f32.partialorder %v3210, 0.0
    %vm3467 = vcmp.lt.f32.partialorder %v3211, 0.0
    %vm3468 = vcmp.lt.f32.partialorder %v3212, 0.0
    %vm3469 = vcmp.lt.f32.partialorder %v3213, 0.0
    %vm3470 = vcmp.lt.f32.partialorder %v3214, 0.0
    %vm3471 = vcmp.lt.f32.partialorder %v3215, 0.0
    %vm3472 = vcmp.lt.f32.partialorder %v3216, 0.0
    %vm3473 = vcmp.lt.f32.partialorder %v3217, 0.0
    %vm3474 = vcmp.lt.f32.partialorder %v3218, 0.0
    %vm3475 = vcmp.lt.f32.partialorder %v3219, 0.0
    %vm3476 = vcmp.lt.f32.partialorder %v3220, 0.0
    %vm3477 = vcmp.lt.f32.partialorder %v3221, 0.0
    %vm3478 = vcmp.lt.f32.partialorder %v3222, 0.0
    %vm3479 = vcmp.lt.f32.partialorder %v3223, 0.0
    %vm3480 = vcmp.lt.f32.partialorder %v3224, 0.0
    %vm3481 = vcmp.lt.f32.partialorder %v3225, 0.0
    %vm3482 = vcmp.lt.f32.partialorder %v3226, 0.0
    %vm3483 = vcmp.lt.f32.partialorder %v3227, 0.0
    %vm3484 = vcmp.lt.f32.partialorder %v3228, 0.0
    %vm3485 = vcmp.lt.f32.partialorder %v3229, 0.0
    %vm3486 = vcmp.lt.f32.partialorder %v3230, 0.0
    %vm3487 = vcmp.lt.f32.partialorder %v3231, 0.0
    %vm3488 = vcmp.lt.f32.partialorder %v3232, 0.0
    %vm3489 = vcmp.lt.f32.partialorder %v3233, 0.0
    %vm3490 = vcmp.lt.f32.partialorder %v3234, 0.0
    %vm3491 = vcmp.lt.f32.partialorder %v3235, 0.0
    %vm3492 = vcmp.lt.f32.partialorder %v3236, 0.0
    %vm3493 = vcmp.lt.f32.partialorder %v3237, 0.0
    %vm3494 = vcmp.lt.f32.partialorder %v3238, 0.0
    %vm3495 = vcmp.lt.f32.partialorder %v3239, 0.0
    %vm3496 = vcmp.lt.f32.partialorder %v3240, 0.0
    %vm3497 = vcmp.lt.f32.partialorder %v3241, 0.0
    %vm3498 = vcmp.lt.f32.partialorder %v3242, 0.0
    %vm3499 = vcmp.lt.f32.partialorder %v3243, 0.0
    %vm3500 = vcmp.lt.f32.partialorder %v3244, 0.0
    %v3501 = vsel %vm3245, -1.0, 1.0
    %v3502 = vsel %vm3246, -1.0, 1.0
    %v3503 = vsel %vm3247, -1.0, 1.0
    %v3504 = vsel %vm3248, -1.0, 1.0
    %v3505 = vsel %vm3249, -1.0, 1.0
    %v3506 = vsel %vm3250, -1.0, 1.0
    %v3507 = vsel %vm3251, -1.0, 1.0
    %v3508 = vsel %vm3252, -1.0, 1.0
    %v3509 = vsel %vm3253, -1.0, 1.0
    %v3510 = vsel %vm3254, -1.0, 1.0
    %v3511 = vsel %vm3255, -1.0, 1.0
    %v3512 = vsel %vm3256, -1.0, 1.0
    %v3513 = vsel %vm3257, -1.0, 1.0
    %v3514 = vsel %vm3258, -1.0, 1.0
    %v3515 = vsel %vm3259, -1.0, 1.0
    %v3516 = vsel %vm3260, -1.0, 1.0
    %v3517 = vsel %vm3261, -1.0, 1.0
    %v3518 = vsel %vm3262, -1.0, 1.0
    %v3519 = vsel %vm3263, -1.0, 1.0
    %v3520 = vsel %vm3264, -1.0, 1.0
    %v3521 = vsel %vm3265, -1.0, 1.0
    %v3522 = vsel %vm3266, -1.0, 1.0
    %v3523 = vsel %vm3267, -1.0, 1.0
    %v3524 = vsel %vm3268, -1.0, 1.0
    %v3525 = vsel %vm3269, -1.0, 1.0
    %v3526 = vsel %vm3270, -1.0, 1.0
    %v3527 = vsel %vm3271, -1.0, 1.0
    %v3528 = vsel %vm3272, -1.0, 1.0
    %v3529 = vsel %vm3273, -1.0, 1.0
    %v3530 = vsel %vm3274, -1.0, 1.0
    %v3531 = vsel %vm3275, -1.0, 1.0
    %v3532 = vsel %vm3276, -1.0, 1.0
    %v3533 = vsel %vm3277, -1.0, 1.0
    %v3534 = vsel %vm3278, -1.0, 1.0
    %v3535 = vsel %vm3279, -1.0, 1.0
    %v3536 = vsel %vm3280, -1.0, 1.0
    %v3537 = vsel %vm3281, -1.0, 1.0
    %v3538 = vsel %vm3282, -1.0, 1.0
    %v3539 = vsel %vm3283, -1.0, 1.0
    %v3540 = vsel %vm3284, -1.0, 1.0
    %v3541 = vsel %vm3285, -1.0, 1.0
    %v3542 = vsel %vm3286, -1.0, 1.0
    %v3543 = vsel %vm3287, -1.0, 1.0
    %v3544 = vsel %vm3288, -1.0, 1.0
    %v3545 = vsel %vm3289, -1.0, 1.0
    %v3546 = vsel %vm3290, -1.0, 1.0
    %v3547 = vsel %vm3291, -1.0, 1.0
    %v3548 = vsel %vm3292, -1.0, 1.0
    %v3549 = vsel %vm3293, -1.0, 1.0
    %v3550 = vsel %vm3294, -1.0, 1.0
    %v3551 = vsel %vm3295, -1.0, 1.0
    %v3552 = vsel %vm3296, -1.0, 1.0
    %v3553 = vsel %vm3297, -1.0, 1.0
    %v3554 = vsel %vm3298, -1.0, 1.0
    %v3555 = vsel %vm3299, -1.0, 1.0
    %v3556 = vsel %vm3300, -1.0, 1.0
    %v3557 = vsel %vm3301, -1.0, 1.0
    %v3558 = vsel %vm3302, -1.0, 1.0
    %v3559 = vsel %vm3303, -1.0, 1.0
    %v3560 = vsel %vm3304, -1.0, 1.0
    %v3561 = vsel %vm3305, -1.0, 1.0
    %v3562 = vsel %vm3306, -1.0, 1.0
    %v3563 = vsel %vm3307, -1.0, 1.0
    %v3564 = vsel %vm3308, -1.0, 1.0
    %v3565 = vsel %vm3309, -1.0, 1.0
    %v3566 = vsel %vm3310, -1.0, 1.0
    %v3567 = vsel %vm3311, -1.0, 1.0
    %v3568 = vsel %vm3312, -1.0, 1.0
    %v3569 = vsel %vm3313, -1.0, 1.0
    %v3570 = vsel %vm3314, -1.0, 1.0
    %v3571 = vsel %vm3315, -1.0, 1.0
    %v3572 = vsel %vm3316, -1.0, 1.0
    %v3573 = vsel %vm3317, -1.0, 1.0
    %v3574 = vsel %vm3318, -1.0, 1.0
    %v3575 = vsel %vm3319, -1.0, 1.0
    %v3576 = vsel %vm3320, -1.0, 1.0
    %v3577 = vsel %vm3321, -1.0, 1.0
    %v3578 = vsel %vm3322, -1.0, 1.0
    %v3579 = vsel %vm3323, -1.0, 1.0
    %v3580 = vsel %vm3324, -1.0, 1.0
    %v3581 = vsel %vm3325, -1.0, 1.0
    %v3582 = vsel %vm3326, -1.0, 1.0
    %v3583 = vsel %vm3327, -1.0, 1.0
    %v3584 = vsel %vm3328, -1.0, 1.0
    %v3585 = vsel %vm3329, -1.0, 1.0
    %v3586 = vsel %vm3330, -1.0, 1.0
    %v3587 = vsel %vm3331, -1.0, 1.0
    %v3588 = vsel %vm3332, -1.0, 1.0
    %v3589 = vsel %vm3333, -1.0, 1.0
    %v3590 = vsel %vm3334, -1.0, 1.0
    %v3591 = vsel %vm3335, -1.0, 1.0
    %v3592 = vsel %vm3336, -1.0, 1.0
    %v3593 = vsel %vm3337, -1.0, 1.0
    %v3594 = vsel %vm3338, -1.0, 1.0
    %v3595 = vsel %vm3339, -1.0, 1.0
    %v3596 = vsel %vm3340, -1.0, 1.0
    %v3597 = vsel %vm3341, -1.0, 1.0
    %v3598 = vsel %vm3342, -1.0, 1.0
    %v3599 = vsel %vm3343, -1.0, 1.0
    %v3600 = vsel %vm3344, -1.0, 1.0
    %v3601 = vsel %vm3345, -1.0, 1.0
    %v3602 = vsel %vm3346, -1.0, 1.0
    %v3603 = vsel %vm3347, -1.0, 1.0
    %v3604 = vsel %vm3348, -1.0, 1.0
    %v3605 = vsel %vm3349, -1.0, 1.0
    %v3606 = vsel %vm3350, -1.0, 1.0
    %v3607 = vsel %vm3351, -1.0, 1.0
    %v3608 = vsel %vm3352, -1.0, 1.0
    %v3609 = vsel %vm3353, -1.0, 1.0
    %v3610 = vsel %vm3354, -1.0, 1.0
    %v3611 = vsel %vm3355, -1.0, 1.0
    %v3612 = vsel %vm3356, -1.0, 1.0
    %v3613 = vsel %vm3357, -1.0, 1.0
    %v3614 = vsel %vm3358, -1.0, 1.0
    %v3615 = vsel %vm3359, -1.0, 1.0
    %v3616 = vsel %vm3360, -1.0, 1.0
    %v3617 = vsel %vm3361, -1.0, 1.0
    %v3618 = vsel %vm3362, -1.0, 1.0
    %v3619 = vsel %vm3363, -1.0, 1.0
    %v3620 = vsel %vm3364, -1.0, 1.0
    %v3621 = vsel %vm3365, -1.0, 1.0
    %v3622 = vsel %vm3366, -1.0, 1.0
    %v3623 = vsel %vm3367, -1.0, 1.0
    %v3624 = vsel %vm3368, -1.0, 1.0
    %v3625 = vsel %vm3369, -1.0, 1.0
    %v3626 = vsel %vm3370, -1.0, 1.0
    %v3627 = vsel %vm3371, -1.0, 1.0
    %v3628 = vsel %vm3372, -1.0, 1.0
    %v3629 = vsel %vm3373, -1.0, 1.0
    %v3630 = vsel %vm3374, -1.0, 1.0
    %v3631 = vsel %vm3375, -1.0, 1.0
    %v3632 = vsel %vm3376, -1.0, 1.0
    %v3633 = vsel %vm3377, -1.0, 1.0
    %v3634 = vsel %vm3378, -1.0, 1.0
    %v3635 = vsel %vm3379, -1.0, 1.0
    %v3636 = vsel %vm3380, -1.0, 1.0
    %v3637 = vsel %vm3381, -1.0, 1.0
    %v3638 = vsel %vm3382, -1.0, 1.0
    %v3639 = vsel %vm3383, -1.0, 1.0
    %v3640 = vsel %vm3384, -1.0, 1.0
    %v3641 = vsel %vm3385, -1.0, 1.0
    %v3642 = vsel %vm3386, -1.0, 1.0
    %v3643 = vsel %vm3387, -1.0, 1.0
    %v3644 = vsel %vm3388, -1.0, 1.0
    %v3645 = vsel %vm3389, -1.0, 1.0
    %v3646 = vsel %vm3390, -1.0, 1.0
    %v3647 = vsel %vm3391, -1.0, 1.0
    %v3648 = vsel %vm3392, -1.0, 1.0
    %v3649 = vsel %vm3393, -1.0, 1.0
    %v3650 = vsel %vm3394, -1.0, 1.0
    %v3651 = vsel %vm3395, -1.0, 1.0
    %v3652 = vsel %vm3396, -1.0, 1.0
    %v3653 = vsel %vm3397, -1.0, 1.0
    %v3654 = vsel %vm3398, -1.0, 1.0
    %v3655 = vsel %vm3399, -1.0, 1.0
    %v3656 = vsel %vm3400, -1.0, 1.0
    %v3657 = vsel %vm3401, -1.0, 1.0
    %v3658 = vsel %vm3402, -1.0, 1.0
    %v3659 = vsel %vm3403, -1.0, 1.0
    %v3660 = vsel %vm3404, -1.0, 1.0
    %v3661 = vsel %vm3405, -1.0, 1.0
    %v3662 = vsel %vm3406, -1.0, 1.0
    %v3663 = vsel %vm3407, -1.0, 1.0
    %v3664 = vsel %vm3408, -1.0, 1.0
    %v3665 = vsel %vm3409, -1.0, 1.0
    %v3666 = vsel %vm3410, -1.0, 1.0
    %v3667 = vsel %vm3411, -1.0, 1.0
    %v3668 = vsel %vm3412, -1.0, 1.0
    %v3669 = vsel %vm3413, -1.0, 1.0
    %v3670 = vsel %vm3414, -1.0, 1.0
    %v3671 = vsel %vm3415, -1.0, 1.0
    %v3672 = vsel %vm3416, -1.0, 1.0
    %v3673 = vsel %vm3417, -1.0, 1.0
    %v3674 = vsel %vm3418, -1.0, 1.0
    %v3675 = vsel %vm3419, -1.0, 1.0
    %v3676 = vsel %vm3420, -1.0, 1.0
    %v3677 = vsel %vm3421, -1.0, 1.0
    %v3678 = vsel %vm3422, -1.0, 1.0
    %v3679 = vsel %vm3423, -1.0, 1.0
    %v3680 = vsel %vm3424, -1.0, 1.0
    %v3681 = vsel %vm3425, -1.0, 1.0
    %v3682 = vsel %vm3426, -1.0, 1.0
    %v3683 = vsel %vm3427, -1.0, 1.0
    %v3684 = vsel %vm3428, -1.0, 1.0
    %v3685 = vsel %vm3429, -1.0, 1.0
    %v3686 = vsel %vm3430, -1.0, 1.0
    %v3687 = vsel %vm3431, -1.0, 1.0
    %v3688 = vsel %vm3432, -1.0, 1.0
    %v3689 = vsel %vm3433, -1.0, 1.0
    %v3690 = vsel %vm3434, -1.0, 1.0
    %v3691 = vsel %vm3435, -1.0, 1.0
    %v3692 = vsel %vm3436, -1.0, 1.0
    %v3693 = vsel %vm3437, -1.0, 1.0
    %v3694 = vsel %vm3438, -1.0, 1.0
    %v3695 = vsel %vm3439, -1.0, 1.0
    %v3696 = vsel %vm3440, -1.0, 1.0
    %v3697 = vsel %vm3441, -1.0, 1.0
    %v3698 = vsel %vm3442, -1.0, 1.0
    %v3699 = vsel %vm3443, -1.0, 1.0
    %v3700 = vsel %vm3444, -1.0, 1.0
    %v3701 = vsel %vm3445, -1.0, 1.0
    %v3702 = vsel %vm3446, -1.0, 1.0
    %v3703 = vsel %vm3447, -1.0, 1.0
    %v3704 = vsel %vm3448, -1.0, 1.0
    %v3705 = vsel %vm3449, -1.0, 1.0
    %v3706 = vsel %vm3450, -1.0, 1.0
    %v3707 = vsel %vm3451, -1.0, 1.0
    %v3708 = vsel %vm3452, -1.0, 1.0
    %v3709 = vsel %vm3453, -1.0, 1.0
    %v3710 = vsel %vm3454, -1.0, 1.0
    %v3711 = vsel %vm3455, -1.0, 1.0
    %v3712 = vsel %vm3456, -1.0, 1.0
    %v3713 = vsel %vm3457, -1.0, 1.0
    %v3714 = vsel %vm3458, -1.0, 1.0
    %v3715 = vsel %vm3459, -1.0, 1.0
    %v3716 = vsel %vm3460, -1.0, 1.0
    %v3717 = vsel %vm3461, -1.0, 1.0
    %v3718 = vsel %vm3462, -1.0, 1.0
    %v3719 = vsel %vm3463, -1.0, 1.0
    %v3720 = vsel %vm3464, -1.0, 1.0
    %v3721 = vsel %vm3465, -1.0, 1.0
    %v3722 = vsel %vm3466, -1.0, 1.0
    %v3723 = vsel %vm3467, -1.0, 1.0
    %v3724 = vsel %vm3468, -1.0, 1.0
    %v3725 = vsel %vm3469, -1.0, 1.0
    %v3726 = vsel %vm3470, -1.0, 1.0
    %v3727 = vsel %vm3471, -1.0, 1.0
    %v3728 = vsel %vm3472, -1.0, 1.0
    %v3729 = vsel %vm3473, -1.0, 1.0
    %v3730 = vsel %vm3474, -1.0, 1.0
    %v3731 = vsel %vm3475, -1.0, 1.0
    %v3732 = vsel %vm3476, -1.0, 1.0
    %v3733 = vsel %vm3477, -1.0, 1.0
    %v3734 = vsel %vm3478, -1.0, 1.0
    %v3735 = vsel %vm3479, -1.0, 1.0
    %v3736 = vsel %vm3480, -1.0, 1.0
    %v3737 = vsel %vm3481, -1.0, 1.0
    %v3738 = vsel %vm3482, -1.0, 1.0
    %v3739 = vsel %vm3483, -1.0, 1.0
    %v3740 = vsel %vm3484, -1.0, 1.0
    %v3741 = vsel %vm3485, -1.0, 1.0
    %v3742 = vsel %vm3486, -1.0, 1.0
    %v3743 = vsel %vm3487, -1.0, 1.0
    %v3744 = vsel %vm3488, -1.0, 1.0
    %v3745 = vsel %vm3489, -1.0, 1.0
    %v3746 = vsel %vm3490, -1.0, 1.0
    %v3747 = vsel %vm3491, -1.0, 1.0
    %v3748 = vsel %vm3492, -1.0, 1.0
    %v3749 = vsel %vm3493, -1.0, 1.0
    %v3750 = vsel %vm3494, -1.0, 1.0
    %v3751 = vsel %vm3495, -1.0, 1.0
    %v3752 = vsel %vm3496, -1.0, 1.0
    %v3753 = vsel %vm3497, -1.0, 1.0
    %v3754 = vsel %vm3498, -1.0, 1.0
    %v3755 = vsel %vm3499, -1.0, 1.0
    %v3756 = vsel %vm3500, -1.0, 1.0
    %v3757 = vand.u32 2147483647, %v2989
    %v3758 = vand.u32 2147483647, %v2990
    %v3759 = vand.u32 2147483647, %v2991
    %v3760 = vand.u32 2147483647, %v2992
    %v3761 = vand.u32 2147483647, %v2993
    %v3762 = vand.u32 2147483647, %v2994
    %v3763 = vand.u32 2147483647, %v2995
    %v3764 = vand.u32 2147483647, %v2996
    %v3765 = vand.u32 2147483647, %v2997
    %v3766 = vand.u32 2147483647, %v2998
    %v3767 = vand.u32 2147483647, %v2999
    %v3768 = vand.u32 2147483647, %v3000
    %v3769 = vand.u32 2147483647, %v3001
    %v3770 = vand.u32 2147483647, %v3002
    %v3771 = vand.u32 2147483647, %v3003
    %v3772 = vand.u32 2147483647, %v3004
    %v3773 = vand.u32 2147483647, %v3005
    %v3774 = vand.u32 2147483647, %v3006
    %v3775 = vand.u32 2147483647, %v3007
    %v3776 = vand.u32 2147483647, %v3008
    %v3777 = vand.u32 2147483647, %v3009
    %v3778 = vand.u32 2147483647, %v3010
    %v3779 = vand.u32 2147483647, %v3011
    %v3780 = vand.u32 2147483647, %v3012
    %v3781 = vand.u32 2147483647, %v3013
    %v3782 = vand.u32 2147483647, %v3014
    %v3783 = vand.u32 2147483647, %v3015
    %v3784 = vand.u32 2147483647, %v3016
    %v3785 = vand.u32 2147483647, %v3017
    %v3786 = vand.u32 2147483647, %v3018
    %v3787 = vand.u32 2147483647, %v3019
    %v3788 = vand.u32 2147483647, %v3020
    %v3789 = vand.u32 2147483647, %v3021
    %v3790 = vand.u32 2147483647, %v3022
    %v3791 = vand.u32 2147483647, %v3023
    %v3792 = vand.u32 2147483647, %v3024
    %v3793 = vand.u32 2147483647, %v3025
    %v3794 = vand.u32 2147483647, %v3026
    %v3795 = vand.u32 2147483647, %v3027
    %v3796 = vand.u32 2147483647, %v3028
    %v3797 = vand.u32 2147483647, %v3029
    %v3798 = vand.u32 2147483647, %v3030
    %v3799 = vand.u32 2147483647, %v3031
    %v3800 = vand.u32 2147483647, %v3032
    %v3801 = vand.u32 2147483647, %v3033
    %v3802 = vand.u32 2147483647, %v3034
    %v3803 = vand.u32 2147483647, %v3035
    %v3804 = vand.u32 2147483647, %v3036
    %v3805 = vand.u32 2147483647, %v3037
    %v3806 = vand.u32 2147483647, %v3038
    %v3807 = vand.u32 2147483647, %v3039
    %v3808 = vand.u32 2147483647, %v3040
    %v3809 = vand.u32 2147483647, %v3041
    %v3810 = vand.u32 2147483647, %v3042
    %v3811 = vand.u32 2147483647, %v3043
    %v3812 = vand.u32 2147483647, %v3044
    %v3813 = vand.u32 2147483647, %v3045
    %v3814 = vand.u32 2147483647, %v3046
    %v3815 = vand.u32 2147483647, %v3047
    %v3816 = vand.u32 2147483647, %v3048
    %v3817 = vand.u32 2147483647, %v3049
    %v3818 = vand.u32 2147483647, %v3050
    %v3819 = vand.u32 2147483647, %v3051
    %v3820 = vand.u32 2147483647, %v3052
    %v3821 = vand.u32 2147483647, %v3053
    %v3822 = vand.u32 2147483647, %v3054
    %v3823 = vand.u32 2147483647, %v3055
    %v3824 = vand.u32 2147483647, %v3056
    %v3825 = vand.u32 2147483647, %v3057
    %v3826 = vand.u32 2147483647, %v3058
    %v3827 = vand.u32 2147483647, %v3059
    %v3828 = vand.u32 2147483647, %v3060
    %v3829 = vand.u32 2147483647, %v3061
    %v3830 = vand.u32 2147483647, %v3062
    %v3831 = vand.u32 2147483647, %v3063
    %v3832 = vand.u32 2147483647, %v3064
    %v3833 = vand.u32 2147483647, %v3065
    %v3834 = vand.u32 2147483647, %v3066
    %v3835 = vand.u32 2147483647, %v3067
    %v3836 = vand.u32 2147483647, %v3068
    %v3837 = vand.u32 2147483647, %v3069
    %v3838 = vand.u32 2147483647, %v3070
    %v3839 = vand.u32 2147483647, %v3071
    %v3840 = vand.u32 2147483647, %v3072
    %v3841 = vand.u32 2147483647, %v3073
    %v3842 = vand.u32 2147483647, %v3074
    %v3843 = vand.u32 2147483647, %v3075
    %v3844 = vand.u32 2147483647, %v3076
    %v3845 = vand.u32 2147483647, %v3077
    %v3846 = vand.u32 2147483647, %v3078
    %v3847 = vand.u32 2147483647, %v3079
    %v3848 = vand.u32 2147483647, %v3080
    %v3849 = vand.u32 2147483647, %v3081
    %v3850 = vand.u32 2147483647, %v3082
    %v3851 = vand.u32 2147483647, %v3083
    %v3852 = vand.u32 2147483647, %v3084
    %v3853 = vand.u32 2147483647, %v3085
    %v3854 = vand.u32 2147483647, %v3086
    %v3855 = vand.u32 2147483647, %v3087
    %v3856 = vand.u32 2147483647, %v3088
    %v3857 = vand.u32 2147483647, %v3089
    %v3858 = vand.u32 2147483647, %v3090
    %v3859 = vand.u32 2147483647, %v3091
    %v3860 = vand.u32 2147483647, %v3092
    %v3861 = vand.u32 2147483647, %v3093
    %v3862 = vand.u32 2147483647, %v3094
    %v3863 = vand.u32 2147483647, %v3095
    %v3864 = vand.u32 2147483647, %v3096
    %v3865 = vand.u32 2147483647, %v3097
    %v3866 = vand.u32 2147483647, %v3098
    %v3867 = vand.u32 2147483647, %v3099
    %v3868 = vand.u32 2147483647, %v3100
    %v3869 = vand.u32 2147483647, %v3101
    %v3870 = vand.u32 2147483647, %v3102
    %v3871 = vand.u32 2147483647, %v3103
    %v3872 = vand.u32 2147483647, %v3104
    %v3873 = vand.u32 2147483647, %v3105
    %v3874 = vand.u32 2147483647, %v3106
    %v3875 = vand.u32 2147483647, %v3107
    %v3876 = vand.u32 2147483647, %v3108
    %v3877 = vand.u32 2147483647, %v3109
    %v3878 = vand.u32 2147483647, %v3110
    %v3879 = vand.u32 2147483647, %v3111
    %v3880 = vand.u32 2147483647, %v3112
    %v3881 = vand.u32 2147483647, %v3113
    %v3882 = vand.u32 2147483647, %v3114
    %v3883 = vand.u32 2147483647, %v3115
    %v3884 = vand.u32 2147483647, %v3116
    %v3885 = vand.u32 2147483647, %v3117
    %v3886 = vand.u32 2147483647, %v3118
    %v3887 = vand.u32 2147483647, %v3119
    %v3888 = vand.u32 2147483647, %v3120
    %v3889 = vand.u32 2147483647, %v3121
    %v3890 = vand.u32 2147483647, %v3122
    %v3891 = vand.u32 2147483647, %v3123
    %v3892 = vand.u32 2147483647, %v3124
    %v3893 = vand.u32 2147483647, %v3125
    %v3894 = vand.u32 2147483647, %v3126
    %v3895 = vand.u32 2147483647, %v3127
    %v3896 = vand.u32 2147483647, %v3128
    %v3897 = vand.u32 2147483647, %v3129
    %v3898 = vand.u32 2147483647, %v3130
    %v3899 = vand.u32 2147483647, %v3131
    %v3900 = vand.u32 2147483647, %v3132
    %v3901 = vand.u32 2147483647, %v3133
    %v3902 = vand.u32 2147483647, %v3134
    %v3903 = vand.u32 2147483647, %v3135
    %v3904 = vand.u32 2147483647, %v3136
    %v3905 = vand.u32 2147483647, %v3137
    %v3906 = vand.u32 2147483647, %v3138
    %v3907 = vand.u32 2147483647, %v3139
    %v3908 = vand.u32 2147483647, %v3140
    %v3909 = vand.u32 2147483647, %v3141
    %v3910 = vand.u32 2147483647, %v3142
    %v3911 = vand.u32 2147483647, %v3143
    %v3912 = vand.u32 2147483647, %v3144
    %v3913 = vand.u32 2147483647, %v3145
    %v3914 = vand.u32 2147483647, %v3146
    %v3915 = vand.u32 2147483647, %v3147
    %v3916 = vand.u32 2147483647, %v3148
    %v3917 = vand.u32 2147483647, %v3149
    %v3918 = vand.u32 2147483647, %v3150
    %v3919 = vand.u32 2147483647, %v3151
    %v3920 = vand.u32 2147483647, %v3152
    %v3921 = vand.u32 2147483647, %v3153
    %v3922 = vand.u32 2147483647, %v3154
    %v3923 = vand.u32 2147483647, %v3155
    %v3924 = vand.u32 2147483647, %v3156
    %v3925 = vand.u32 2147483647, %v3157
    %v3926 = vand.u32 2147483647, %v3158
    %v3927 = vand.u32 2147483647, %v3159
    %v3928 = vand.u32 2147483647, %v3160
    %v3929 = vand.u32 2147483647, %v3161
    %v3930 = vand.u32 2147483647, %v3162
    %v3931 = vand.u32 2147483647, %v3163
    %v3932 = vand.u32 2147483647, %v3164
    %v3933 = vand.u32 2147483647, %v3165
    %v3934 = vand.u32 2147483647, %v3166
    %v3935 = vand.u32 2147483647, %v3167
    %v3936 = vand.u32 2147483647, %v3168
    %v3937 = vand.u32 2147483647, %v3169
    %v3938 = vand.u32 2147483647, %v3170
    %v3939 = vand.u32 2147483647, %v3171
    %v3940 = vand.u32 2147483647, %v3172
    %v3941 = vand.u32 2147483647, %v3173
    %v3942 = vand.u32 2147483647, %v3174
    %v3943 = vand.u32 2147483647, %v3175
    %v3944 = vand.u32 2147483647, %v3176
    %v3945 = vand.u32 2147483647, %v3177
    %v3946 = vand.u32 2147483647, %v3178
    %v3947 = vand.u32 2147483647, %v3179
    %v3948 = vand.u32 2147483647, %v3180
    %v3949 = vand.u32 2147483647, %v3181
    %v3950 = vand.u32 2147483647, %v3182
    %v3951 = vand.u32 2147483647, %v3183
    %v3952 = vand.u32 2147483647, %v3184
    %v3953 = vand.u32 2147483647, %v3185
    %v3954 = vand.u32 2147483647, %v3186
    %v3955 = vand.u32 2147483647, %v3187
    %v3956 = vand.u32 2147483647, %v3188
    %v3957 = vand.u32 2147483647, %v3189
    %v3958 = vand.u32 2147483647, %v3190
    %v3959 = vand.u32 2147483647, %v3191
    %v3960 = vand.u32 2147483647, %v3192
    %v3961 = vand.u32 2147483647, %v3193
    %v3962 = vand.u32 2147483647, %v3194
    %v3963 = vand.u32 2147483647, %v3195
    %v3964 = vand.u32 2147483647, %v3196
    %v3965 = vand.u32 2147483647, %v3197
    %v3966 = vand.u32 2147483647, %v3198
    %v3967 = vand.u32 2147483647, %v3199
    %v3968 = vand.u32 2147483647, %v3200
    %v3969 = vand.u32 2147483647, %v3201
    %v3970 = vand.u32 2147483647, %v3202
    %v3971 = vand.u32 2147483647, %v3203
    %v3972 = vand.u32 2147483647, %v3204
    %v3973 = vand.u32 2147483647, %v3205
    %v3974 = vand.u32 2147483647, %v3206
    %v3975 = vand.u32 2147483647, %v3207
    %v3976 = vand.u32 2147483647, %v3208
    %v3977 = vand.u32 2147483647, %v3209
    %v3978 = vand.u32 2147483647, %v3210
    %v3979 = vand.u32 2147483647, %v3211
    %v3980 = vand.u32 2147483647, %v3212
    %v3981 = vand.u32 2147483647, %v3213
    %v3982 = vand.u32 2147483647, %v3214
    %v3983 = vand.u32 2147483647, %v3215
    %v3984 = vand.u32 2147483647, %v3216
    %v3985 = vand.u32 2147483647, %v3217
    %v3986 = vand.u32 2147483647, %v3218
    %v3987 = vand.u32 2147483647, %v3219
    %v3988 = vand.u32 2147483647, %v3220
    %v3989 = vand.u32 2147483647, %v3221
    %v3990 = vand.u32 2147483647, %v3222
    %v3991 = vand.u32 2147483647, %v3223
    %v3992 = vand.u32 2147483647, %v3224
    %v3993 = vand.u32 2147483647, %v3225
    %v3994 = vand.u32 2147483647, %v3226
    %v3995 = vand.u32 2147483647, %v3227
    %v3996 = vand.u32 2147483647, %v3228
    %v3997 = vand.u32 2147483647, %v3229
    %v3998 = vand.u32 2147483647, %v3230
    %v3999 = vand.u32 2147483647, %v3231
    %v4000 = vand.u32 2147483647, %v3232
    %v4001 = vand.u32 2147483647, %v3233
    %v4002 = vand.u32 2147483647, %v3234
    %v4003 = vand.u32 2147483647, %v3235
    %v4004 = vand.u32 2147483647, %v3236
    %v4005 = vand.u32 2147483647, %v3237
    %v4006 = vand.u32 2147483647, %v3238
    %v4007 = vand.u32 2147483647, %v3239
    %v4008 = vand.u32 2147483647, %v3240
    %v4009 = vand.u32 2147483647, %v3241
    %v4010 = vand.u32 2147483647, %v3242
    %v4011 = vand.u32 2147483647, %v3243
    %v4012 = vand.u32 2147483647, %v3244
    %v4013 = vmul.f32 %v3757, 0.3275911
    %v4014 = vmul.f32 %v3758, 0.3275911
    %v4015 = vmul.f32 %v3759, 0.3275911
    %v4016 = vmul.f32 %v3760, 0.3275911
    %v4017 = vmul.f32 %v3761, 0.3275911
    %v4018 = vmul.f32 %v3762, 0.3275911
    %v4019 = vmul.f32 %v3763, 0.3275911
    %v4020 = vmul.f32 %v3764, 0.3275911
    %v4021 = vmul.f32 %v3765, 0.3275911
    %v4022 = vmul.f32 %v3766, 0.3275911
    %v4023 = vmul.f32 %v3767, 0.3275911
    %v4024 = vmul.f32 %v3768, 0.3275911
    %v4025 = vmul.f32 %v3769, 0.3275911
    %v4026 = vmul.f32 %v3770, 0.3275911
    %v4027 = vmul.f32 %v3771, 0.3275911
    %v4028 = vmul.f32 %v3772, 0.3275911
    %v4029 = vmul.f32 %v3773, 0.3275911
    %v4030 = vmul.f32 %v3774, 0.3275911
    %v4031 = vmul.f32 %v3775, 0.3275911
    %v4032 = vmul.f32 %v3776, 0.3275911
    %v4033 = vmul.f32 %v3777, 0.3275911
    %v4034 = vmul.f32 %v3778, 0.3275911
    %v4035 = vmul.f32 %v3779, 0.3275911
    %v4036 = vmul.f32 %v3780, 0.3275911
    %v4037 = vmul.f32 %v3781, 0.3275911
    %v4038 = vmul.f32 %v3782, 0.3275911
    %v4039 = vmul.f32 %v3783, 0.3275911
    %v4040 = vmul.f32 %v3784, 0.3275911
    %v4041 = vmul.f32 %v3785, 0.3275911
    %v4042 = vmul.f32 %v3786, 0.3275911
    %v4043 = vmul.f32 %v3787, 0.3275911
    %v4044 = vmul.f32 %v3788, 0.3275911
    %v4045 = vmul.f32 %v3789, 0.3275911
    %v4046 = vmul.f32 %v3790, 0.3275911
    %v4047 = vmul.f32 %v3791, 0.3275911
    %v4048 = vmul.f32 %v3792, 0.3275911
    %v4049 = vmul.f32 %v3793, 0.3275911
    %v4050 = vmul.f32 %v3794, 0.3275911
    %v4051 = vmul.f32 %v3795, 0.3275911
    %v4052 = vmul.f32 %v3796, 0.3275911
    %v4053 = vmul.f32 %v3797, 0.3275911
    %v4054 = vmul.f32 %v3798, 0.3275911
    %v4055 = vmul.f32 %v3799, 0.3275911
    %v4056 = vmul.f32 %v3800, 0.3275911
    %v4057 = vmul.f32 %v3801, 0.3275911
    %v4058 = vmul.f32 %v3802, 0.3275911
    %v4059 = vmul.f32 %v3803, 0.3275911
    %v4060 = vmul.f32 %v3804, 0.3275911
    %v4061 = vmul.f32 %v3805, 0.3275911
    %v4062 = vmul.f32 %v3806, 0.3275911
    %v4063 = vmul.f32 %v3807, 0.3275911
    %v4064 = vmul.f32 %v3808, 0.3275911
    %v4065 = vmul.f32 %v3809, 0.3275911
    %v4066 = vmul.f32 %v3810, 0.3275911
    %v4067 = vmul.f32 %v3811, 0.3275911
    %v4068 = vmul.f32 %v3812, 0.3275911
    %v4069 = vmul.f32 %v3813, 0.3275911
    %v4070 = vmul.f32 %v3814, 0.3275911
    %v4071 = vmul.f32 %v3815, 0.3275911
    %v4072 = vmul.f32 %v3816, 0.3275911
    %v4073 = vmul.f32 %v3817, 0.3275911
    %v4074 = vmul.f32 %v3818, 0.3275911
    %v4075 = vmul.f32 %v3819, 0.3275911
    %v4076 = vmul.f32 %v3820, 0.3275911
    %v4077 = vmul.f32 %v3821, 0.3275911
    %v4078 = vmul.f32 %v3822, 0.3275911
    %v4079 = vmul.f32 %v3823, 0.3275911
    %v4080 = vmul.f32 %v3824, 0.3275911
    %v4081 = vmul.f32 %v3825, 0.3275911
    %v4082 = vmul.f32 %v3826, 0.3275911
    %v4083 = vmul.f32 %v3827, 0.3275911
    %v4084 = vmul.f32 %v3828, 0.3275911
    %v4085 = vmul.f32 %v3829, 0.3275911
    %v4086 = vmul.f32 %v3830, 0.3275911
    %v4087 = vmul.f32 %v3831, 0.3275911
    %v4088 = vmul.f32 %v3832, 0.3275911
    %v4089 = vmul.f32 %v3833, 0.3275911
    %v4090 = vmul.f32 %v3834, 0.3275911
    %v4091 = vmul.f32 %v3835, 0.3275911
    %v4092 = vmul.f32 %v3836, 0.3275911
    %v4093 = vmul.f32 %v3837, 0.3275911
    %v4094 = vmul.f32 %v3838, 0.3275911
    %v4095 = vmul.f32 %v3839, 0.3275911
    %v4096 = vmul.f32 %v3840, 0.3275911
    %v4097 = vmul.f32 %v3841, 0.3275911
    %v4098 = vmul.f32 %v3842, 0.3275911
    %v4099 = vmul.f32 %v3843, 0.3275911
    %v4100 = vmul.f32 %v3844, 0.3275911
    %v4101 = vmul.f32 %v3845, 0.3275911
    %v4102 = vmul.f32 %v3846, 0.3275911
    %v4103 = vmul.f32 %v3847, 0.3275911
    %v4104 = vmul.f32 %v3848, 0.3275911
    %v4105 = vmul.f32 %v3849, 0.3275911
    %v4106 = vmul.f32 %v3850, 0.3275911
    %v4107 = vmul.f32 %v3851, 0.3275911
    %v4108 = vmul.f32 %v3852, 0.3275911
    %v4109 = vmul.f32 %v3853, 0.3275911
    %v4110 = vmul.f32 %v3854, 0.3275911
    %v4111 = vmul.f32 %v3855, 0.3275911
    %v4112 = vmul.f32 %v3856, 0.3275911
    %v4113 = vmul.f32 %v3857, 0.3275911
    %v4114 = vmul.f32 %v3858, 0.3275911
    %v4115 = vmul.f32 %v3859, 0.3275911
    %v4116 = vmul.f32 %v3860, 0.3275911
    %v4117 = vmul.f32 %v3861, 0.3275911
    %v4118 = vmul.f32 %v3862, 0.3275911
    %v4119 = vmul.f32 %v3863, 0.3275911
    %v4120 = vmul.f32 %v3864, 0.3275911
    %v4121 = vmul.f32 %v3865, 0.3275911
    %v4122 = vmul.f32 %v3866, 0.3275911
    %v4123 = vmul.f32 %v3867, 0.3275911
    %v4124 = vmul.f32 %v3868, 0.3275911
    %v4125 = vmul.f32 %v3869, 0.3275911
    %v4126 = vmul.f32 %v3870, 0.3275911
    %v4127 = vmul.f32 %v3871, 0.3275911
    %v4128 = vmul.f32 %v3872, 0.3275911
    %v4129 = vmul.f32 %v3873, 0.3275911
    %v4130 = vmul.f32 %v3874, 0.3275911
    %v4131 = vmul.f32 %v3875, 0.3275911
    %v4132 = vmul.f32 %v3876, 0.3275911
    %v4133 = vmul.f32 %v3877, 0.3275911
    %v4134 = vmul.f32 %v3878, 0.3275911
    %v4135 = vmul.f32 %v3879, 0.3275911
    %v4136 = vmul.f32 %v3880, 0.3275911
    %v4137 = vmul.f32 %v3881, 0.3275911
    %v4138 = vmul.f32 %v3882, 0.3275911
    %v4139 = vmul.f32 %v3883, 0.3275911
    %v4140 = vmul.f32 %v3884, 0.3275911
    %v4141 = vmul.f32 %v3885, 0.3275911
    %v4142 = vmul.f32 %v3886, 0.3275911
    %v4143 = vmul.f32 %v3887, 0.3275911
    %v4144 = vmul.f32 %v3888, 0.3275911
    %v4145 = vmul.f32 %v3889, 0.3275911
    %v4146 = vmul.f32 %v3890, 0.3275911
    %v4147 = vmul.f32 %v3891, 0.3275911
    %v4148 = vmul.f32 %v3892, 0.3275911
    %v4149 = vmul.f32 %v3893, 0.3275911
    %v4150 = vmul.f32 %v3894, 0.3275911
    %v4151 = vmul.f32 %v3895, 0.3275911
    %v4152 = vmul.f32 %v3896, 0.3275911
    %v4153 = vmul.f32 %v3897, 0.3275911
    %v4154 = vmul.f32 %v3898, 0.3275911
    %v4155 = vmul.f32 %v3899, 0.3275911
    %v4156 = vmul.f32 %v3900, 0.3275911
    %v4157 = vmul.f32 %v3901, 0.3275911
    %v4158 = vmul.f32 %v3902, 0.3275911
    %v4159 = vmul.f32 %v3903, 0.3275911
    %v4160 = vmul.f32 %v3904, 0.3275911
    %v4161 = vmul.f32 %v3905, 0.3275911
    %v4162 = vmul.f32 %v3906, 0.3275911
    %v4163 = vmul.f32 %v3907, 0.3275911
    %v4164 = vmul.f32 %v3908, 0.3275911
    %v4165 = vmul.f32 %v3909, 0.3275911
    %v4166 = vmul.f32 %v3910, 0.3275911
    %v4167 = vmul.f32 %v3911, 0.3275911
    %v4168 = vmul.f32 %v3912, 0.3275911
    %v4169 = vmul.f32 %v3913, 0.3275911
    %v4170 = vmul.f32 %v3914, 0.3275911
    %v4171 = vmul.f32 %v3915, 0.3275911
    %v4172 = vmul.f32 %v3916, 0.3275911
    %v4173 = vmul.f32 %v3917, 0.3275911
    %v4174 = vmul.f32 %v3918, 0.3275911
    %v4175 = vmul.f32 %v3919, 0.3275911
    %v4176 = vmul.f32 %v3920, 0.3275911
    %v4177 = vmul.f32 %v3921, 0.3275911
    %v4178 = vmul.f32 %v3922, 0.3275911
    %v4179 = vmul.f32 %v3923, 0.3275911
    %v4180 = vmul.f32 %v3924, 0.3275911
    %v4181 = vmul.f32 %v3925, 0.3275911
    %v4182 = vmul.f32 %v3926, 0.3275911
    %v4183 = vmul.f32 %v3927, 0.3275911
    %v4184 = vmul.f32 %v3928, 0.3275911
    %v4185 = vmul.f32 %v3929, 0.3275911
    %v4186 = vmul.f32 %v3930, 0.3275911
    %v4187 = vmul.f32 %v3931, 0.3275911
    %v4188 = vmul.f32 %v3932, 0.3275911
    %v4189 = vmul.f32 %v3933, 0.3275911
    %v4190 = vmul.f32 %v3934, 0.3275911
    %v4191 = vmul.f32 %v3935, 0.3275911
    %v4192 = vmul.f32 %v3936, 0.3275911
    %v4193 = vmul.f32 %v3937, 0.3275911
    %v4194 = vmul.f32 %v3938, 0.3275911
    %v4195 = vmul.f32 %v3939, 0.3275911
    %v4196 = vmul.f32 %v3940, 0.3275911
    %v4197 = vmul.f32 %v3941, 0.3275911
    %v4198 = vmul.f32 %v3942, 0.3275911
    %v4199 = vmul.f32 %v3943, 0.3275911
    %v4200 = vmul.f32 %v3944, 0.3275911
    %v4201 = vmul.f32 %v3945, 0.3275911
    %v4202 = vmul.f32 %v3946, 0.3275911
    %v4203 = vmul.f32 %v3947, 0.3275911
    %v4204 = vmul.f32 %v3948, 0.3275911
    %v4205 = vmul.f32 %v3949, 0.3275911
    %v4206 = vmul.f32 %v3950, 0.3275911
    %v4207 = vmul.f32 %v3951, 0.3275911
    %v4208 = vmul.f32 %v3952, 0.3275911
    %v4209 = vmul.f32 %v3953, 0.3275911
    %v4210 = vmul.f32 %v3954, 0.3275911
    %v4211 = vmul.f32 %v3955, 0.3275911
    %v4212 = vmul.f32 %v3956, 0.3275911
    %v4213 = vmul.f32 %v3957, 0.3275911
    %v4214 = vmul.f32 %v3958, 0.3275911
    %v4215 = vmul.f32 %v3959, 0.3275911
    %v4216 = vmul.f32 %v3960, 0.3275911
    %v4217 = vmul.f32 %v3961, 0.3275911
    %v4218 = vmul.f32 %v3962, 0.3275911
    %v4219 = vmul.f32 %v3963, 0.3275911
    %v4220 = vmul.f32 %v3964, 0.3275911
    %v4221 = vmul.f32 %v3965, 0.3275911
    %v4222 = vmul.f32 %v3966, 0.3275911
    %v4223 = vmul.f32 %v3967, 0.3275911
    %v4224 = vmul.f32 %v3968, 0.3275911
    %v4225 = vmul.f32 %v3969, 0.3275911
    %v4226 = vmul.f32 %v3970, 0.3275911
    %v4227 = vmul.f32 %v3971, 0.3275911
    %v4228 = vmul.f32 %v3972, 0.3275911
    %v4229 = vmul.f32 %v3973, 0.3275911
    %v4230 = vmul.f32 %v3974, 0.3275911
    %v4231 = vmul.f32 %v3975, 0.3275911
    %v4232 = vmul.f32 %v3976, 0.3275911
    %v4233 = vmul.f32 %v3977, 0.3275911
    %v4234 = vmul.f32 %v3978, 0.3275911
    %v4235 = vmul.f32 %v3979, 0.3275911
    %v4236 = vmul.f32 %v3980, 0.3275911
    %v4237 = vmul.f32 %v3981, 0.3275911
    %v4238 = vmul.f32 %v3982, 0.3275911
    %v4239 = vmul.f32 %v3983, 0.3275911
    %v4240 = vmul.f32 %v3984, 0.3275911
    %v4241 = vmul.f32 %v3985, 0.3275911
    %v4242 = vmul.f32 %v3986, 0.3275911
    %v4243 = vmul.f32 %v3987, 0.3275911
    %v4244 = vmul.f32 %v3988, 0.3275911
    %v4245 = vmul.f32 %v3989, 0.3275911
    %v4246 = vmul.f32 %v3990, 0.3275911
    %v4247 = vmul.f32 %v3991, 0.3275911
    %v4248 = vmul.f32 %v3992, 0.3275911
    %v4249 = vmul.f32 %v3993, 0.3275911
    %v4250 = vmul.f32 %v3994, 0.3275911
    %v4251 = vmul.f32 %v3995, 0.3275911
    %v4252 = vmul.f32 %v3996, 0.3275911
    %v4253 = vmul.f32 %v3997, 0.3275911
    %v4254 = vmul.f32 %v3998, 0.3275911
    %v4255 = vmul.f32 %v3999, 0.3275911
    %v4256 = vmul.f32 %v4000, 0.3275911
    %v4257 = vmul.f32 %v4001, 0.3275911
    %v4258 = vmul.f32 %v4002, 0.3275911
    %v4259 = vmul.f32 %v4003, 0.3275911
    %v4260 = vmul.f32 %v4004, 0.3275911
    %v4261 = vmul.f32 %v4005, 0.3275911
    %v4262 = vmul.f32 %v4006, 0.3275911
    %v4263 = vmul.f32 %v4007, 0.3275911
    %v4264 = vmul.f32 %v4008, 0.3275911
    %v4265 = vmul.f32 %v4009, 0.3275911
    %v4266 = vmul.f32 %v4010, 0.3275911
    %v4267 = vmul.f32 %v4011, 0.3275911
    %v4268 = vmul.f32 %v4012, 0.3275911
    %v4269 = vadd.f32 %v4013, 1.0
    %v4270 = vadd.f32 %v4014, 1.0
    %v4271 = vadd.f32 %v4015, 1.0
    %v4272 = vadd.f32 %v4016, 1.0
    %v4273 = vadd.f32 %v4017, 1.0
    %v4274 = vadd.f32 %v4018, 1.0
    %v4275 = vadd.f32 %v4019, 1.0
    %v4276 = vadd.f32 %v4020, 1.0
    %v4277 = vadd.f32 %v4021, 1.0
    %v4278 = vadd.f32 %v4022, 1.0
    %v4279 = vadd.f32 %v4023, 1.0
    %v4280 = vadd.f32 %v4024, 1.0
    %v4281 = vadd.f32 %v4025, 1.0
    %v4282 = vadd.f32 %v4026, 1.0
    %v4283 = vadd.f32 %v4027, 1.0
    %v4284 = vadd.f32 %v4028, 1.0
    %v4285 = vadd.f32 %v4029, 1.0
    %v4286 = vadd.f32 %v4030, 1.0
    %v4287 = vadd.f32 %v4031, 1.0
    %v4288 = vadd.f32 %v4032, 1.0
    %v4289 = vadd.f32 %v4033, 1.0
    %v4290 = vadd.f32 %v4034, 1.0
    %v4291 = vadd.f32 %v4035, 1.0
    %v4292 = vadd.f32 %v4036, 1.0
    %v4293 = vadd.f32 %v4037, 1.0
    %v4294 = vadd.f32 %v4038, 1.0
    %v4295 = vadd.f32 %v4039, 1.0
    %v4296 = vadd.f32 %v4040, 1.0
    %v4297 = vadd.f32 %v4041, 1.0
    %v4298 = vadd.f32 %v4042, 1.0
    %v4299 = vadd.f32 %v4043, 1.0
    %v4300 = vadd.f32 %v4044, 1.0
    %v4301 = vadd.f32 %v4045, 1.0
    %v4302 = vadd.f32 %v4046, 1.0
    %v4303 = vadd.f32 %v4047, 1.0
    %v4304 = vadd.f32 %v4048, 1.0
    %v4305 = vadd.f32 %v4049, 1.0
    %v4306 = vadd.f32 %v4050, 1.0
    %v4307 = vadd.f32 %v4051, 1.0
    %v4308 = vadd.f32 %v4052, 1.0
    %v4309 = vadd.f32 %v4053, 1.0
    %v4310 = vadd.f32 %v4054, 1.0
    %v4311 = vadd.f32 %v4055, 1.0
    %v4312 = vadd.f32 %v4056, 1.0
    %v4313 = vadd.f32 %v4057, 1.0
    %v4314 = vadd.f32 %v4058, 1.0
    %v4315 = vadd.f32 %v4059, 1.0
    %v4316 = vadd.f32 %v4060, 1.0
    %v4317 = vadd.f32 %v4061, 1.0
    %v4318 = vadd.f32 %v4062, 1.0
    %v4319 = vadd.f32 %v4063, 1.0
    %v4320 = vadd.f32 %v4064, 1.0
    %v4321 = vadd.f32 %v4065, 1.0
    %v4322 = vadd.f32 %v4066, 1.0
    %v4323 = vadd.f32 %v4067, 1.0
    %v4324 = vadd.f32 %v4068, 1.0
    %v4325 = vadd.f32 %v4069, 1.0
    %v4326 = vadd.f32 %v4070, 1.0
    %v4327 = vadd.f32 %v4071, 1.0
    %v4328 = vadd.f32 %v4072, 1.0
    %v4329 = vadd.f32 %v4073, 1.0
    %v4330 = vadd.f32 %v4074, 1.0
    %v4331 = vadd.f32 %v4075, 1.0
    %v4332 = vadd.f32 %v4076, 1.0
    %v4333 = vadd.f32 %v4077, 1.0
    %v4334 = vadd.f32 %v4078, 1.0
    %v4335 = vadd.f32 %v4079, 1.0
    %v4336 = vadd.f32 %v4080, 1.0
    %v4337 = vadd.f32 %v4081, 1.0
    %v4338 = vadd.f32 %v4082, 1.0
    %v4339 = vadd.f32 %v4083, 1.0
    %v4340 = vadd.f32 %v4084, 1.0
    %v4341 = vadd.f32 %v4085, 1.0
    %v4342 = vadd.f32 %v4086, 1.0
    %v4343 = vadd.f32 %v4087, 1.0
    %v4344 = vadd.f32 %v4088, 1.0
    %v4345 = vadd.f32 %v4089, 1.0
    %v4346 = vadd.f32 %v4090, 1.0
    %v4347 = vadd.f32 %v4091, 1.0
    %v4348 = vadd.f32 %v4092, 1.0
    %v4349 = vadd.f32 %v4093, 1.0
    %v4350 = vadd.f32 %v4094, 1.0
    %v4351 = vadd.f32 %v4095, 1.0
    %v4352 = vadd.f32 %v4096, 1.0
    %v4353 = vadd.f32 %v4097, 1.0
    %v4354 = vadd.f32 %v4098, 1.0
    %v4355 = vadd.f32 %v4099, 1.0
    %v4356 = vadd.f32 %v4100, 1.0
    %v4357 = vadd.f32 %v4101, 1.0
    %v4358 = vadd.f32 %v4102, 1.0
    %v4359 = vadd.f32 %v4103, 1.0
    %v4360 = vadd.f32 %v4104, 1.0
    %v4361 = vadd.f32 %v4105, 1.0
    %v4362 = vadd.f32 %v4106, 1.0
    %v4363 = vadd.f32 %v4107, 1.0
    %v4364 = vadd.f32 %v4108, 1.0
    %v4365 = vadd.f32 %v4109, 1.0
    %v4366 = vadd.f32 %v4110, 1.0
    %v4367 = vadd.f32 %v4111, 1.0
    %v4368 = vadd.f32 %v4112, 1.0
    %v4369 = vadd.f32 %v4113, 1.0
    %v4370 = vadd.f32 %v4114, 1.0
    %v4371 = vadd.f32 %v4115, 1.0
    %v4372 = vadd.f32 %v4116, 1.0
    %v4373 = vadd.f32 %v4117, 1.0
    %v4374 = vadd.f32 %v4118, 1.0
    %v4375 = vadd.f32 %v4119, 1.0
    %v4376 = vadd.f32 %v4120, 1.0
    %v4377 = vadd.f32 %v4121, 1.0
    %v4378 = vadd.f32 %v4122, 1.0
    %v4379 = vadd.f32 %v4123, 1.0
    %v4380 = vadd.f32 %v4124, 1.0
    %v4381 = vadd.f32 %v4125, 1.0
    %v4382 = vadd.f32 %v4126, 1.0
    %v4383 = vadd.f32 %v4127, 1.0
    %v4384 = vadd.f32 %v4128, 1.0
    %v4385 = vadd.f32 %v4129, 1.0
    %v4386 = vadd.f32 %v4130, 1.0
    %v4387 = vadd.f32 %v4131, 1.0
    %v4388 = vadd.f32 %v4132, 1.0
    %v4389 = vadd.f32 %v4133, 1.0
    %v4390 = vadd.f32 %v4134, 1.0
    %v4391 = vadd.f32 %v4135, 1.0
    %v4392 = vadd.f32 %v4136, 1.0
    %v4393 = vadd.f32 %v4137, 1.0
    %v4394 = vadd.f32 %v4138, 1.0
    %v4395 = vadd.f32 %v4139, 1.0
    %v4396 = vadd.f32 %v4140, 1.0
    %v4397 = vadd.f32 %v4141, 1.0
    %v4398 = vadd.f32 %v4142, 1.0
    %v4399 = vadd.f32 %v4143, 1.0
    %v4400 = vadd.f32 %v4144, 1.0
    %v4401 = vadd.f32 %v4145, 1.0
    %v4402 = vadd.f32 %v4146, 1.0
    %v4403 = vadd.f32 %v4147, 1.0
    %v4404 = vadd.f32 %v4148, 1.0
    %v4405 = vadd.f32 %v4149, 1.0
    %v4406 = vadd.f32 %v4150, 1.0
    %v4407 = vadd.f32 %v4151, 1.0
    %v4408 = vadd.f32 %v4152, 1.0
    %v4409 = vadd.f32 %v4153, 1.0
    %v4410 = vadd.f32 %v4154, 1.0
    %v4411 = vadd.f32 %v4155, 1.0
    %v4412 = vadd.f32 %v4156, 1.0
    %v4413 = vadd.f32 %v4157, 1.0
    %v4414 = vadd.f32 %v4158, 1.0
    %v4415 = vadd.f32 %v4159, 1.0
    %v4416 = vadd.f32 %v4160, 1.0
    %v4417 = vadd.f32 %v4161, 1.0
    %v4418 = vadd.f32 %v4162, 1.0
    %v4419 = vadd.f32 %v4163, 1.0
    %v4420 = vadd.f32 %v4164, 1.0
    %v4421 = vadd.f32 %v4165, 1.0
    %v4422 = vadd.f32 %v4166, 1.0
    %v4423 = vadd.f32 %v4167, 1.0
    %v4424 = vadd.f32 %v4168, 1.0
    %v4425 = vadd.f32 %v4169, 1.0
    %v4426 = vadd.f32 %v4170, 1.0
    %v4427 = vadd.f32 %v4171, 1.0
    %v4428 = vadd.f32 %v4172, 1.0
    %v4429 = vadd.f32 %v4173, 1.0
    %v4430 = vadd.f32 %v4174, 1.0
    %v4431 = vadd.f32 %v4175, 1.0
    %v4432 = vadd.f32 %v4176, 1.0
    %v4433 = vadd.f32 %v4177, 1.0
    %v4434 = vadd.f32 %v4178, 1.0
    %v4435 = vadd.f32 %v4179, 1.0
    %v4436 = vadd.f32 %v4180, 1.0
    %v4437 = vadd.f32 %v4181, 1.0
    %v4438 = vadd.f32 %v4182, 1.0
    %v4439 = vadd.f32 %v4183, 1.0
    %v4440 = vadd.f32 %v4184, 1.0
    %v4441 = vadd.f32 %v4185, 1.0
    %v4442 = vadd.f32 %v4186, 1.0
    %v4443 = vadd.f32 %v4187, 1.0
    %v4444 = vadd.f32 %v4188, 1.0
    %v4445 = vadd.f32 %v4189, 1.0
    %v4446 = vadd.f32 %v4190, 1.0
    %v4447 = vadd.f32 %v4191, 1.0
    %v4448 = vadd.f32 %v4192, 1.0
    %v4449 = vadd.f32 %v4193, 1.0
    %v4450 = vadd.f32 %v4194, 1.0
    %v4451 = vadd.f32 %v4195, 1.0
    %v4452 = vadd.f32 %v4196, 1.0
    %v4453 = vadd.f32 %v4197, 1.0
    %v4454 = vadd.f32 %v4198, 1.0
    %v4455 = vadd.f32 %v4199, 1.0
    %v4456 = vadd.f32 %v4200, 1.0
    %v4457 = vadd.f32 %v4201, 1.0
    %v4458 = vadd.f32 %v4202, 1.0
    %v4459 = vadd.f32 %v4203, 1.0
    %v4460 = vadd.f32 %v4204, 1.0
    %v4461 = vadd.f32 %v4205, 1.0
    %v4462 = vadd.f32 %v4206, 1.0
    %v4463 = vadd.f32 %v4207, 1.0
    %v4464 = vadd.f32 %v4208, 1.0
    %v4465 = vadd.f32 %v4209, 1.0
    %v4466 = vadd.f32 %v4210, 1.0
    %v4467 = vadd.f32 %v4211, 1.0
    %v4468 = vadd.f32 %v4212, 1.0
    %v4469 = vadd.f32 %v4213, 1.0
    %v4470 = vadd.f32 %v4214, 1.0
    %v4471 = vadd.f32 %v4215, 1.0
    %v4472 = vadd.f32 %v4216, 1.0
    %v4473 = vadd.f32 %v4217, 1.0
    %v4474 = vadd.f32 %v4218, 1.0
    %v4475 = vadd.f32 %v4219, 1.0
    %v4476 = vadd.f32 %v4220, 1.0
    %v4477 = vadd.f32 %v4221, 1.0
    %v4478 = vadd.f32 %v4222, 1.0
    %v4479 = vadd.f32 %v4223, 1.0
    %v4480 = vadd.f32 %v4224, 1.0
    %v4481 = vadd.f32 %v4225, 1.0
    %v4482 = vadd.f32 %v4226, 1.0
    %v4483 = vadd.f32 %v4227, 1.0
    %v4484 = vadd.f32 %v4228, 1.0
    %v4485 = vadd.f32 %v4229, 1.0
    %v4486 = vadd.f32 %v4230, 1.0
    %v4487 = vadd.f32 %v4231, 1.0
    %v4488 = vadd.f32 %v4232, 1.0
    %v4489 = vadd.f32 %v4233, 1.0
    %v4490 = vadd.f32 %v4234, 1.0
    %v4491 = vadd.f32 %v4235, 1.0
    %v4492 = vadd.f32 %v4236, 1.0
    %v4493 = vadd.f32 %v4237, 1.0
    %v4494 = vadd.f32 %v4238, 1.0
    %v4495 = vadd.f32 %v4239, 1.0
    %v4496 = vadd.f32 %v4240, 1.0
    %v4497 = vadd.f32 %v4241, 1.0
    %v4498 = vadd.f32 %v4242, 1.0
    %v4499 = vadd.f32 %v4243, 1.0
    %v4500 = vadd.f32 %v4244, 1.0
    %v4501 = vadd.f32 %v4245, 1.0
    %v4502 = vadd.f32 %v4246, 1.0
    %v4503 = vadd.f32 %v4247, 1.0
    %v4504 = vadd.f32 %v4248, 1.0
    %v4505 = vadd.f32 %v4249, 1.0
    %v4506 = vadd.f32 %v4250, 1.0
    %v4507 = vadd.f32 %v4251, 1.0
    %v4508 = vadd.f32 %v4252, 1.0
    %v4509 = vadd.f32 %v4253, 1.0
    %v4510 = vadd.f32 %v4254, 1.0
    %v4511 = vadd.f32 %v4255, 1.0
    %v4512 = vadd.f32 %v4256, 1.0
    %v4513 = vadd.f32 %v4257, 1.0
    %v4514 = vadd.f32 %v4258, 1.0
    %v4515 = vadd.f32 %v4259, 1.0
    %v4516 = vadd.f32 %v4260, 1.0
    %v4517 = vadd.f32 %v4261, 1.0
    %v4518 = vadd.f32 %v4262, 1.0
    %v4519 = vadd.f32 %v4263, 1.0
    %v4520 = vadd.f32 %v4264, 1.0
    %v4521 = vadd.f32 %v4265, 1.0
    %v4522 = vadd.f32 %v4266, 1.0
    %v4523 = vadd.f32 %v4267, 1.0
    %v4524 = vadd.f32 %v4268, 1.0
    %v4525 = vrcp.pop %v4269
    %v4526 = vmul.f32 1.0, %v4525
    %v4527 = vrcp.pop %v4270
    %v4528 = vmul.f32 1.0, %v4527
    %v4529 = vrcp.pop %v4271
    %v4530 = vmul.f32 1.0, %v4529
    %v4531 = vrcp.pop %v4272
    %v4532 = vmul.f32 1.0, %v4531
    %v4533 = vrcp.pop %v4273
    %v4534 = vmul.f32 1.0, %v4533
    %v4535 = vrcp.pop %v4274
    %v4536 = vmul.f32 1.0, %v4535
    %v4537 = vrcp.pop %v4275
    %v4538 = vmul.f32 1.0, %v4537
    %v4539 = vrcp.pop %v4276
    %v4540 = vmul.f32 1.0, %v4539
    %v4541 = vrcp.pop %v4277
    %v4542 = vmul.f32 1.0, %v4541
    %v4543 = vrcp.pop %v4278
    %v4544 = vmul.f32 1.0, %v4543
    %v4545 = vrcp.pop %v4279
    %v4546 = vmul.f32 1.0, %v4545
    %v4547 = vrcp.pop %v4280
    %v4548 = vmul.f32 1.0, %v4547
    %v4549 = vrcp.pop %v4281
    %v4550 = vmul.f32 1.0, %v4549
    %v4551 = vrcp.pop %v4282
    %v4552 = vmul.f32 1.0, %v4551
    %v4553 = vrcp.pop %v4283
    %v4554 = vmul.f32 1.0, %v4553
    %v4555 = vrcp.pop %v4284
    %v4556 = vmul.f32 1.0, %v4555
    %v4557 = vrcp.pop %v4285
    %v4558 = vmul.f32 1.0, %v4557
    %v4559 = vrcp.pop %v4286
    %v4560 = vmul.f32 1.0, %v4559
    %v4561 = vrcp.pop %v4287
    %v4562 = vmul.f32 1.0, %v4561
    %v4563 = vrcp.pop %v4288
    %v4564 = vmul.f32 1.0, %v4563
    %v4565 = vrcp.pop %v4289
    %v4566 = vmul.f32 1.0, %v4565
    %v4567 = vrcp.pop %v4290
    %v4568 = vmul.f32 1.0, %v4567
    %v4569 = vrcp.pop %v4291
    %v4570 = vmul.f32 1.0, %v4569
    %v4571 = vrcp.pop %v4292
    %v4572 = vmul.f32 1.0, %v4571
    %v4573 = vrcp.pop %v4293
    %v4574 = vmul.f32 1.0, %v4573
    %v4575 = vrcp.pop %v4294
    %v4576 = vmul.f32 1.0, %v4575
    %v4577 = vrcp.pop %v4295
    %v4578 = vmul.f32 1.0, %v4577
    %v4579 = vrcp.pop %v4296
    %v4580 = vmul.f32 1.0, %v4579
    %v4581 = vrcp.pop %v4297
    %v4582 = vmul.f32 1.0, %v4581
    %v4583 = vrcp.pop %v4298
    %v4584 = vmul.f32 1.0, %v4583
    %v4585 = vrcp.pop %v4299
    %v4586 = vmul.f32 1.0, %v4585
    %v4587 = vrcp.pop %v4300
    %v4588 = vmul.f32 1.0, %v4587
    %v4589 = vrcp.pop %v4301
    %v4590 = vmul.f32 1.0, %v4589
    %v4591 = vrcp.pop %v4302
    %v4592 = vmul.f32 1.0, %v4591
    %v4593 = vrcp.pop %v4303
    %v4594 = vmul.f32 1.0, %v4593
    %v4595 = vrcp.pop %v4304
    %v4596 = vmul.f32 1.0, %v4595
    %v4597 = vrcp.pop %v4305
    %v4598 = vmul.f32 1.0, %v4597
    %v4599 = vrcp.pop %v4306
    %v4600 = vmul.f32 1.0, %v4599
    %v4601 = vrcp.pop %v4307
    %v4602 = vmul.f32 1.0, %v4601
    %v4603 = vrcp.pop %v4308
    %v4604 = vmul.f32 1.0, %v4603
    %v4605 = vrcp.pop %v4309
    %v4606 = vmul.f32 1.0, %v4605
    %v4607 = vrcp.pop %v4310
    %v4608 = vmul.f32 1.0, %v4607
    %v4609 = vrcp.pop %v4311
    %v4610 = vmul.f32 1.0, %v4609
    %v4611 = vrcp.pop %v4312
    %v4612 = vmul.f32 1.0, %v4611
    %v4613 = vrcp.pop %v4313
    %v4614 = vmul.f32 1.0, %v4613
    %v4615 = vrcp.pop %v4314
    %v4616 = vmul.f32 1.0, %v4615
    %v4617 = vrcp.pop %v4315
    %v4618 = vmul.f32 1.0, %v4617
    %v4619 = vrcp.pop %v4316
    %v4620 = vmul.f32 1.0, %v4619
    %v4621 = vrcp.pop %v4317
    %v4622 = vmul.f32 1.0, %v4621
    %v4623 = vrcp.pop %v4318
    %v4624 = vmul.f32 1.0, %v4623
    %v4625 = vrcp.pop %v4319
    %v4626 = vmul.f32 1.0, %v4625
    %v4627 = vrcp.pop %v4320
    %v4628 = vmul.f32 1.0, %v4627
    %v4629 = vrcp.pop %v4321
    %v4630 = vmul.f32 1.0, %v4629
    %v4631 = vrcp.pop %v4322
    %v4632 = vmul.f32 1.0, %v4631
    %v4633 = vrcp.pop %v4323
    %v4634 = vmul.f32 1.0, %v4633
    %v4635 = vrcp.pop %v4324
    %v4636 = vmul.f32 1.0, %v4635
    %v4637 = vrcp.pop %v4325
    %v4638 = vmul.f32 1.0, %v4637
    %v4639 = vrcp.pop %v4326
    %v4640 = vmul.f32 1.0, %v4639
    %v4641 = vrcp.pop %v4327
    %v4642 = vmul.f32 1.0, %v4641
    %v4643 = vrcp.pop %v4328
    %v4644 = vmul.f32 1.0, %v4643
    %v4645 = vrcp.pop %v4329
    %v4646 = vmul.f32 1.0, %v4645
    %v4647 = vrcp.pop %v4330
    %v4648 = vmul.f32 1.0, %v4647
    %v4649 = vrcp.pop %v4331
    %v4650 = vmul.f32 1.0, %v4649
    %v4651 = vrcp.pop %v4332
    %v4652 = vmul.f32 1.0, %v4651
    %v4653 = vrcp.pop %v4333
    %v4654 = vmul.f32 1.0, %v4653
    %v4655 = vrcp.pop %v4334
    %v4656 = vmul.f32 1.0, %v4655
    %v4657 = vrcp.pop %v4335
    %v4658 = vmul.f32 1.0, %v4657
    %v4659 = vrcp.pop %v4336
    %v4660 = vmul.f32 1.0, %v4659
    %v4661 = vrcp.pop %v4337
    %v4662 = vmul.f32 1.0, %v4661
    %v4663 = vrcp.pop %v4338
    %v4664 = vmul.f32 1.0, %v4663
    %v4665 = vrcp.pop %v4339
    %v4666 = vmul.f32 1.0, %v4665
    %v4667 = vrcp.pop %v4340
    %v4668 = vmul.f32 1.0, %v4667
    %v4669 = vrcp.pop %v4341
    %v4670 = vmul.f32 1.0, %v4669
    %v4671 = vrcp.pop %v4342
    %v4672 = vmul.f32 1.0, %v4671
    %v4673 = vrcp.pop %v4343
    %v4674 = vmul.f32 1.0, %v4673
    %v4675 = vrcp.pop %v4344
    %v4676 = vmul.f32 1.0, %v4675
    %v4677 = vrcp.pop %v4345
    %v4678 = vmul.f32 1.0, %v4677
    %v4679 = vrcp.pop %v4346
    %v4680 = vmul.f32 1.0, %v4679
    %v4681 = vrcp.pop %v4347
    %v4682 = vmul.f32 1.0, %v4681
    %v4683 = vrcp.pop %v4348
    %v4684 = vmul.f32 1.0, %v4683
    %v4685 = vrcp.pop %v4349
    %v4686 = vmul.f32 1.0, %v4685
    %v4687 = vrcp.pop %v4350
    %v4688 = vmul.f32 1.0, %v4687
    %v4689 = vrcp.pop %v4351
    %v4690 = vmul.f32 1.0, %v4689
    %v4691 = vrcp.pop %v4352
    %v4692 = vmul.f32 1.0, %v4691
    %v4693 = vrcp.pop %v4353
    %v4694 = vmul.f32 1.0, %v4693
    %v4695 = vrcp.pop %v4354
    %v4696 = vmul.f32 1.0, %v4695
    %v4697 = vrcp.pop %v4355
    %v4698 = vmul.f32 1.0, %v4697
    %v4699 = vrcp.pop %v4356
    %v4700 = vmul.f32 1.0, %v4699
    %v4701 = vrcp.pop %v4357
    %v4702 = vmul.f32 1.0, %v4701
    %v4703 = vrcp.pop %v4358
    %v4704 = vmul.f32 1.0, %v4703
    %v4705 = vrcp.pop %v4359
    %v4706 = vmul.f32 1.0, %v4705
    %v4707 = vrcp.pop %v4360
    %v4708 = vmul.f32 1.0, %v4707
    %v4709 = vrcp.pop %v4361
    %v4710 = vmul.f32 1.0, %v4709
    %v4711 = vrcp.pop %v4362
    %v4712 = vmul.f32 1.0, %v4711
    %v4713 = vrcp.pop %v4363
    %v4714 = vmul.f32 1.0, %v4713
    %v4715 = vrcp.pop %v4364
    %v4716 = vmul.f32 1.0, %v4715
    %v4717 = vrcp.pop %v4365
    %v4718 = vmul.f32 1.0, %v4717
    %v4719 = vrcp.pop %v4366
    %v4720 = vmul.f32 1.0, %v4719
    %v4721 = vrcp.pop %v4367
    %v4722 = vmul.f32 1.0, %v4721
    %v4723 = vrcp.pop %v4368
    %v4724 = vmul.f32 1.0, %v4723
    %v4725 = vrcp.pop %v4369
    %v4726 = vmul.f32 1.0, %v4725
    %v4727 = vrcp.pop %v4370
    %v4728 = vmul.f32 1.0, %v4727
    %v4729 = vrcp.pop %v4371
    %v4730 = vmul.f32 1.0, %v4729
    %v4731 = vrcp.pop %v4372
    %v4732 = vmul.f32 1.0, %v4731
    %v4733 = vrcp.pop %v4373
    %v4734 = vmul.f32 1.0, %v4733
    %v4735 = vrcp.pop %v4374
    %v4736 = vmul.f32 1.0, %v4735
    %v4737 = vrcp.pop %v4375
    %v4738 = vmul.f32 1.0, %v4737
    %v4739 = vrcp.pop %v4376
    %v4740 = vmul.f32 1.0, %v4739
    %v4741 = vrcp.pop %v4377
    %v4742 = vmul.f32 1.0, %v4741
    %v4743 = vrcp.pop %v4378
    %v4744 = vmul.f32 1.0, %v4743
    %v4745 = vrcp.pop %v4379
    %v4746 = vmul.f32 1.0, %v4745
    %v4747 = vrcp.pop %v4380
    %v4748 = vmul.f32 1.0, %v4747
    %v4749 = vrcp.pop %v4381
    %v4750 = vmul.f32 1.0, %v4749
    %v4751 = vrcp.pop %v4382
    %v4752 = vmul.f32 1.0, %v4751
    %v4753 = vrcp.pop %v4383
    %v4754 = vmul.f32 1.0, %v4753
    %v4755 = vrcp.pop %v4384
    %v4756 = vmul.f32 1.0, %v4755
    %v4757 = vrcp.pop %v4385
    %v4758 = vmul.f32 1.0, %v4757
    %v4759 = vrcp.pop %v4386
    %v4760 = vmul.f32 1.0, %v4759
    %v4761 = vrcp.pop %v4387
    %v4762 = vmul.f32 1.0, %v4761
    %v4763 = vrcp.pop %v4388
    %v4764 = vmul.f32 1.0, %v4763
    %v4765 = vrcp.pop %v4389
    %v4766 = vmul.f32 1.0, %v4765
    %v4767 = vrcp.pop %v4390
    %v4768 = vmul.f32 1.0, %v4767
    %v4769 = vrcp.pop %v4391
    %v4770 = vmul.f32 1.0, %v4769
    %v4771 = vrcp.pop %v4392
    %v4772 = vmul.f32 1.0, %v4771
    %v4773 = vrcp.pop %v4393
    %v4774 = vmul.f32 1.0, %v4773
    %v4775 = vrcp.pop %v4394
    %v4776 = vmul.f32 1.0, %v4775
    %v4777 = vrcp.pop %v4395
    %v4778 = vmul.f32 1.0, %v4777
    %v4779 = vrcp.pop %v4396
    %v4780 = vmul.f32 1.0, %v4779
    %v4781 = vrcp.pop %v4397
    %v4782 = vmul.f32 1.0, %v4781
    %v4783 = vrcp.pop %v4398
    %v4784 = vmul.f32 1.0, %v4783
    %v4785 = vrcp.pop %v4399
    %v4786 = vmul.f32 1.0, %v4785
    %v4787 = vrcp.pop %v4400
    %v4788 = vmul.f32 1.0, %v4787
    %v4789 = vrcp.pop %v4401
    %v4790 = vmul.f32 1.0, %v4789
    %v4791 = vrcp.pop %v4402
    %v4792 = vmul.f32 1.0, %v4791
    %v4793 = vrcp.pop %v4403
    %v4794 = vmul.f32 1.0, %v4793
    %v4795 = vrcp.pop %v4404
    %v4796 = vmul.f32 1.0, %v4795
    %v4797 = vrcp.pop %v4405
    %v4798 = vmul.f32 1.0, %v4797
    %v4799 = vrcp.pop %v4406
    %v4800 = vmul.f32 1.0, %v4799
    %v4801 = vrcp.pop %v4407
    %v4802 = vmul.f32 1.0, %v4801
    %v4803 = vrcp.pop %v4408
    %v4804 = vmul.f32 1.0, %v4803
    %v4805 = vrcp.pop %v4409
    %v4806 = vmul.f32 1.0, %v4805
    %v4807 = vrcp.pop %v4410
    %v4808 = vmul.f32 1.0, %v4807
    %v4809 = vrcp.pop %v4411
    %v4810 = vmul.f32 1.0, %v4809
    %v4811 = vrcp.pop %v4412
    %v4812 = vmul.f32 1.0, %v4811
    %v4813 = vrcp.pop %v4413
    %v4814 = vmul.f32 1.0, %v4813
    %v4815 = vrcp.pop %v4414
    %v4816 = vmul.f32 1.0, %v4815
    %v4817 = vrcp.pop %v4415
    %v4818 = vmul.f32 1.0, %v4817
    %v4819 = vrcp.pop %v4416
    %v4820 = vmul.f32 1.0, %v4819
    %v4821 = vrcp.pop %v4417
    %v4822 = vmul.f32 1.0, %v4821
    %v4823 = vrcp.pop %v4418
    %v4824 = vmul.f32 1.0, %v4823
    %v4825 = vrcp.pop %v4419
    %v4826 = vmul.f32 1.0, %v4825
    %v4827 = vrcp.pop %v4420
    %v4828 = vmul.f32 1.0, %v4827
    %v4829 = vrcp.pop %v4421
    %v4830 = vmul.f32 1.0, %v4829
    %v4831 = vrcp.pop %v4422
    %v4832 = vmul.f32 1.0, %v4831
    %v4833 = vrcp.pop %v4423
    %v4834 = vmul.f32 1.0, %v4833
    %v4835 = vrcp.pop %v4424
    %v4836 = vmul.f32 1.0, %v4835
    %v4837 = vrcp.pop %v4425
    %v4838 = vmul.f32 1.0, %v4837
    %v4839 = vrcp.pop %v4426
    %v4840 = vmul.f32 1.0, %v4839
    %v4841 = vrcp.pop %v4427
    %v4842 = vmul.f32 1.0, %v4841
    %v4843 = vrcp.pop %v4428
    %v4844 = vmul.f32 1.0, %v4843
    %v4845 = vrcp.pop %v4429
    %v4846 = vmul.f32 1.0, %v4845
    %v4847 = vrcp.pop %v4430
    %v4848 = vmul.f32 1.0, %v4847
    %v4849 = vrcp.pop %v4431
    %v4850 = vmul.f32 1.0, %v4849
    %v4851 = vrcp.pop %v4432
    %v4852 = vmul.f32 1.0, %v4851
    %v4853 = vrcp.pop %v4433
    %v4854 = vmul.f32 1.0, %v4853
    %v4855 = vrcp.pop %v4434
    %v4856 = vmul.f32 1.0, %v4855
    %v4857 = vrcp.pop %v4435
    %v4858 = vmul.f32 1.0, %v4857
    %v4859 = vrcp.pop %v4436
    %v4860 = vmul.f32 1.0, %v4859
    %v4861 = vrcp.pop %v4437
    %v4862 = vmul.f32 1.0, %v4861
    %v4863 = vrcp.pop %v4438
    %v4864 = vmul.f32 1.0, %v4863
    %v4865 = vrcp.pop %v4439
    %v4866 = vmul.f32 1.0, %v4865
    %v4867 = vrcp.pop %v4440
    %v4868 = vmul.f32 1.0, %v4867
    %v4869 = vrcp.pop %v4441
    %v4870 = vmul.f32 1.0, %v4869
    %v4871 = vrcp.pop %v4442
    %v4872 = vmul.f32 1.0, %v4871
    %v4873 = vrcp.pop %v4443
    %v4874 = vmul.f32 1.0, %v4873
    %v4875 = vrcp.pop %v4444
    %v4876 = vmul.f32 1.0, %v4875
    %v4877 = vrcp.pop %v4445
    %v4878 = vmul.f32 1.0, %v4877
    %v4879 = vrcp.pop %v4446
    %v4880 = vmul.f32 1.0, %v4879
    %v4881 = vrcp.pop %v4447
    %v4882 = vmul.f32 1.0, %v4881
    %v4883 = vrcp.pop %v4448
    %v4884 = vmul.f32 1.0, %v4883
    %v4885 = vrcp.pop %v4449
    %v4886 = vmul.f32 1.0, %v4885
    %v4887 = vrcp.pop %v4450
    %v4888 = vmul.f32 1.0, %v4887
    %v4889 = vrcp.pop %v4451
    %v4890 = vmul.f32 1.0, %v4889
    %v4891 = vrcp.pop %v4452
    %v4892 = vmul.f32 1.0, %v4891
    %v4893 = vrcp.pop %v4453
    %v4894 = vmul.f32 1.0, %v4893
    %v4895 = vrcp.pop %v4454
    %v4896 = vmul.f32 1.0, %v4895
    %v4897 = vrcp.pop %v4455
    %v4898 = vmul.f32 1.0, %v4897
    %v4899 = vrcp.pop %v4456
    %v4900 = vmul.f32 1.0, %v4899
    %v4901 = vrcp.pop %v4457
    %v4902 = vmul.f32 1.0, %v4901
    %v4903 = vrcp.pop %v4458
    %v4904 = vmul.f32 1.0, %v4903
    %v4905 = vrcp.pop %v4459
    %v4906 = vmul.f32 1.0, %v4905
    %v4907 = vrcp.pop %v4460
    %v4908 = vmul.f32 1.0, %v4907
    %v4909 = vrcp.pop %v4461
    %v4910 = vmul.f32 1.0, %v4909
    %v4911 = vrcp.pop %v4462
    %v4912 = vmul.f32 1.0, %v4911
    %v4913 = vrcp.pop %v4463
    %v4914 = vmul.f32 1.0, %v4913
    %v4915 = vrcp.pop %v4464
    %v4916 = vmul.f32 1.0, %v4915
    %v4917 = vrcp.pop %v4465
    %v4918 = vmul.f32 1.0, %v4917
    %v4919 = vrcp.pop %v4466
    %v4920 = vmul.f32 1.0, %v4919
    %v4921 = vrcp.pop %v4467
    %v4922 = vmul.f32 1.0, %v4921
    %v4923 = vrcp.pop %v4468
    %v4924 = vmul.f32 1.0, %v4923
    %v4925 = vrcp.pop %v4469
    %v4926 = vmul.f32 1.0, %v4925
    %v4927 = vrcp.pop %v4470
    %v4928 = vmul.f32 1.0, %v4927
    %v4929 = vrcp.pop %v4471
    %v4930 = vmul.f32 1.0, %v4929
    %v4931 = vrcp.pop %v4472
    %v4932 = vmul.f32 1.0, %v4931
    %v4933 = vrcp.pop %v4473
    %v4934 = vmul.f32 1.0, %v4933
    %v4935 = vrcp.pop %v4474
    %v4936 = vmul.f32 1.0, %v4935
    %v4937 = vrcp.pop %v4475
    %v4938 = vmul.f32 1.0, %v4937
    %v4939 = vrcp.pop %v4476
    %v4940 = vmul.f32 1.0, %v4939
    %v4941 = vrcp.pop %v4477
    %v4942 = vmul.f32 1.0, %v4941
    %v4943 = vrcp.pop %v4478
    %v4944 = vmul.f32 1.0, %v4943
    %v4945 = vrcp.pop %v4479
    %v4946 = vmul.f32 1.0, %v4945
    %v4947 = vrcp.pop %v4480
    %v4948 = vmul.f32 1.0, %v4947
    %v4949 = vrcp.pop %v4481
    %v4950 = vmul.f32 1.0, %v4949
    %v4951 = vrcp.pop %v4482
    %v4952 = vmul.f32 1.0, %v4951
    %v4953 = vrcp.pop %v4483
    %v4954 = vmul.f32 1.0, %v4953
    %v4955 = vrcp.pop %v4484
    %v4956 = vmul.f32 1.0, %v4955
    %v4957 = vrcp.pop %v4485
    %v4958 = vmul.f32 1.0, %v4957
    %v4959 = vrcp.pop %v4486
    %v4960 = vmul.f32 1.0, %v4959
    %v4961 = vrcp.pop %v4487
    %v4962 = vmul.f32 1.0, %v4961
    %v4963 = vrcp.pop %v4488
    %v4964 = vmul.f32 1.0, %v4963
    %v4965 = vrcp.pop %v4489
    %v4966 = vmul.f32 1.0, %v4965
    %v4967 = vrcp.pop %v4490
    %v4968 = vmul.f32 1.0, %v4967
    %v4969 = vrcp.pop %v4491
    %v4970 = vmul.f32 1.0, %v4969
    %v4971 = vrcp.pop %v4492
    %v4972 = vmul.f32 1.0, %v4971
    %v4973 = vrcp.pop %v4493
    %v4974 = vmul.f32 1.0, %v4973
    %v4975 = vrcp.pop %v4494
    %v4976 = vmul.f32 1.0, %v4975
    %v4977 = vrcp.pop %v4495
    %v4978 = vmul.f32 1.0, %v4977
    %v4979 = vrcp.pop %v4496
    %v4980 = vmul.f32 1.0, %v4979
    %v4981 = vrcp.pop %v4497
    %v4982 = vmul.f32 1.0, %v4981
    %v4983 = vrcp.pop %v4498
    %v4984 = vmul.f32 1.0, %v4983
    %v4985 = vrcp.pop %v4499
    %v4986 = vmul.f32 1.0, %v4985
    %v4987 = vrcp.pop %v4500
    %v4988 = vmul.f32 1.0, %v4987
    %v4989 = vrcp.pop %v4501
    %v4990 = vmul.f32 1.0, %v4989
    %v4991 = vrcp.pop %v4502
    %v4992 = vmul.f32 1.0, %v4991
    %v4993 = vrcp.pop %v4503
    %v4994 = vmul.f32 1.0, %v4993
    %v4995 = vrcp.pop %v4504
    %v4996 = vmul.f32 1.0, %v4995
    %v4997 = vrcp.pop %v4505
    %v4998 = vmul.f32 1.0, %v4997
    %v4999 = vrcp.pop %v4506
    %v5000 = vmul.f32 1.0, %v4999
    %v5001 = vrcp.pop %v4507
    %v5002 = vmul.f32 1.0, %v5001
    %v5003 = vrcp.pop %v4508
    %v5004 = vmul.f32 1.0, %v5003
    %v5005 = vrcp.pop %v4509
    %v5006 = vmul.f32 1.0, %v5005
    %v5007 = vrcp.pop %v4510
    %v5008 = vmul.f32 1.0, %v5007
    %v5009 = vrcp.pop %v4511
    %v5010 = vmul.f32 1.0, %v5009
    %v5011 = vrcp.pop %v4512
    %v5012 = vmul.f32 1.0, %v5011
    %v5013 = vrcp.pop %v4513
    %v5014 = vmul.f32 1.0, %v5013
    %v5015 = vrcp.pop %v4514
    %v5016 = vmul.f32 1.0, %v5015
    %v5017 = vrcp.pop %v4515
    %v5018 = vmul.f32 1.0, %v5017
    %v5019 = vrcp.pop %v4516
    %v5020 = vmul.f32 1.0, %v5019
    %v5021 = vrcp.pop %v4517
    %v5022 = vmul.f32 1.0, %v5021
    %v5023 = vrcp.pop %v4518
    %v5024 = vmul.f32 1.0, %v5023
    %v5025 = vrcp.pop %v4519
    %v5026 = vmul.f32 1.0, %v5025
    %v5027 = vrcp.pop %v4520
    %v5028 = vmul.f32 1.0, %v5027
    %v5029 = vrcp.pop %v4521
    %v5030 = vmul.f32 1.0, %v5029
    %v5031 = vrcp.pop %v4522
    %v5032 = vmul.f32 1.0, %v5031
    %v5033 = vrcp.pop %v4523
    %v5034 = vmul.f32 1.0, %v5033
    %v5035 = vrcp.pop %v4524
    %v5036 = vmul.f32 1.0, %v5035
    %v5037 = vmul.f32 %v4526, 1.0614054
    %v5038 = vmul.f32 %v4528, 1.0614054
    %v5039 = vmul.f32 %v4530, 1.0614054
    %v5040 = vmul.f32 %v4532, 1.0614054
    %v5041 = vmul.f32 %v4534, 1.0614054
    %v5042 = vmul.f32 %v4536, 1.0614054
    %v5043 = vmul.f32 %v4538, 1.0614054
    %v5044 = vmul.f32 %v4540, 1.0614054
    %v5045 = vmul.f32 %v4542, 1.0614054
    %v5046 = vmul.f32 %v4544, 1.0614054
    %v5047 = vmul.f32 %v4546, 1.0614054
    %v5048 = vmul.f32 %v4548, 1.0614054
    %v5049 = vmul.f32 %v4550, 1.0614054
    %v5050 = vmul.f32 %v4552, 1.0614054
    %v5051 = vmul.f32 %v4554, 1.0614054
    %v5052 = vmul.f32 %v4556, 1.0614054
    %v5053 = vmul.f32 %v4558, 1.0614054
    %v5054 = vmul.f32 %v4560, 1.0614054
    %v5055 = vmul.f32 %v4562, 1.0614054
    %v5056 = vmul.f32 %v4564, 1.0614054
    %v5057 = vmul.f32 %v4566, 1.0614054
    %v5058 = vmul.f32 %v4568, 1.0614054
    %v5059 = vmul.f32 %v4570, 1.0614054
    %v5060 = vmul.f32 %v4572, 1.0614054
    %v5061 = vmul.f32 %v4574, 1.0614054
    %v5062 = vmul.f32 %v4576, 1.0614054
    %v5063 = vmul.f32 %v4578, 1.0614054
    %v5064 = vmul.f32 %v4580, 1.0614054
    %v5065 = vmul.f32 %v4582, 1.0614054
    %v5066 = vmul.f32 %v4584, 1.0614054
    %v5067 = vmul.f32 %v4586, 1.0614054
    %v5068 = vmul.f32 %v4588, 1.0614054
    %v5069 = vmul.f32 %v4590, 1.0614054
    %v5070 = vmul.f32 %v4592, 1.0614054
    %v5071 = vmul.f32 %v4594, 1.0614054
    %v5072 = vmul.f32 %v4596, 1.0614054
    %v5073 = vmul.f32 %v4598, 1.0614054
    %v5074 = vmul.f32 %v4600, 1.0614054
    %v5075 = vmul.f32 %v4602, 1.0614054
    %v5076 = vmul.f32 %v4604, 1.0614054
    %v5077 = vmul.f32 %v4606, 1.0614054
    %v5078 = vmul.f32 %v4608, 1.0614054
    %v5079 = vmul.f32 %v4610, 1.0614054
    %v5080 = vmul.f32 %v4612, 1.0614054
    %v5081 = vmul.f32 %v4614, 1.0614054
    %v5082 = vmul.f32 %v4616, 1.0614054
    %v5083 = vmul.f32 %v4618, 1.0614054
    %v5084 = vmul.f32 %v4620, 1.0614054
    %v5085 = vmul.f32 %v4622, 1.0614054
    %v5086 = vmul.f32 %v4624, 1.0614054
    %v5087 = vmul.f32 %v4626, 1.0614054
    %v5088 = vmul.f32 %v4628, 1.0614054
    %v5089 = vmul.f32 %v4630, 1.0614054
    %v5090 = vmul.f32 %v4632, 1.0614054
    %v5091 = vmul.f32 %v4634, 1.0614054
    %v5092 = vmul.f32 %v4636, 1.0614054
    %v5093 = vmul.f32 %v4638, 1.0614054
    %v5094 = vmul.f32 %v4640, 1.0614054
    %v5095 = vmul.f32 %v4642, 1.0614054
    %v5096 = vmul.f32 %v4644, 1.0614054
    %v5097 = vmul.f32 %v4646, 1.0614054
    %v5098 = vmul.f32 %v4648, 1.0614054
    %v5099 = vmul.f32 %v4650, 1.0614054
    %v5100 = vmul.f32 %v4652, 1.0614054
    %v5101 = vmul.f32 %v4654, 1.0614054
    %v5102 = vmul.f32 %v4656, 1.0614054
    %v5103 = vmul.f32 %v4658, 1.0614054
    %v5104 = vmul.f32 %v4660, 1.0614054
    %v5105 = vmul.f32 %v4662, 1.0614054
    %v5106 = vmul.f32 %v4664, 1.0614054
    %v5107 = vmul.f32 %v4666, 1.0614054
    %v5108 = vmul.f32 %v4668, 1.0614054
    %v5109 = vmul.f32 %v4670, 1.0614054
    %v5110 = vmul.f32 %v4672, 1.0614054
    %v5111 = vmul.f32 %v4674, 1.0614054
    %v5112 = vmul.f32 %v4676, 1.0614054
    %v5113 = vmul.f32 %v4678, 1.0614054
    %v5114 = vmul.f32 %v4680, 1.0614054
    %v5115 = vmul.f32 %v4682, 1.0614054
    %v5116 = vmul.f32 %v4684, 1.0614054
    %v5117 = vmul.f32 %v4686, 1.0614054
    %v5118 = vmul.f32 %v4688, 1.0614054
    %v5119 = vmul.f32 %v4690, 1.0614054
    %v5120 = vmul.f32 %v4692, 1.0614054
    %v5121 = vmul.f32 %v4694, 1.0614054
    %v5122 = vmul.f32 %v4696, 1.0614054
    %v5123 = vmul.f32 %v4698, 1.0614054
    %v5124 = vmul.f32 %v4700, 1.0614054
    %v5125 = vmul.f32 %v4702, 1.0614054
    %v5126 = vmul.f32 %v4704, 1.0614054
    %v5127 = vmul.f32 %v4706, 1.0614054
    %v5128 = vmul.f32 %v4708, 1.0614054
    %v5129 = vmul.f32 %v4710, 1.0614054
    %v5130 = vmul.f32 %v4712, 1.0614054
    %v5131 = vmul.f32 %v4714, 1.0614054
    %v5132 = vmul.f32 %v4716, 1.0614054
    %v5133 = vmul.f32 %v4718, 1.0614054
    %v5134 = vmul.f32 %v4720, 1.0614054
    %v5135 = vmul.f32 %v4722, 1.0614054
    %v5136 = vmul.f32 %v4724, 1.0614054
    %v5137 = vmul.f32 %v4726, 1.0614054
    %v5138 = vmul.f32 %v4728, 1.0614054
    %v5139 = vmul.f32 %v4730, 1.0614054
    %v5140 = vmul.f32 %v4732, 1.0614054
    %v5141 = vmul.f32 %v4734, 1.0614054
    %v5142 = vmul.f32 %v4736, 1.0614054
    %v5143 = vmul.f32 %v4738, 1.0614054
    %v5144 = vmul.f32 %v4740, 1.0614054
    %v5145 = vmul.f32 %v4742, 1.0614054
    %v5146 = vmul.f32 %v4744, 1.0614054
    %v5147 = vmul.f32 %v4746, 1.0614054
    %v5148 = vmul.f32 %v4748, 1.0614054
    %v5149 = vmul.f32 %v4750, 1.0614054
    %v5150 = vmul.f32 %v4752, 1.0614054
    %v5151 = vmul.f32 %v4754, 1.0614054
    %v5152 = vmul.f32 %v4756, 1.0614054
    %v5153 = vmul.f32 %v4758, 1.0614054
    %v5154 = vmul.f32 %v4760, 1.0614054
    %v5155 = vmul.f32 %v4762, 1.0614054
    %v5156 = vmul.f32 %v4764, 1.0614054
    %v5157 = vmul.f32 %v4766, 1.0614054
    %v5158 = vmul.f32 %v4768, 1.0614054
    %v5159 = vmul.f32 %v4770, 1.0614054
    %v5160 = vmul.f32 %v4772, 1.0614054
    %v5161 = vmul.f32 %v4774, 1.0614054
    %v5162 = vmul.f32 %v4776, 1.0614054
    %v5163 = vmul.f32 %v4778, 1.0614054
    %v5164 = vmul.f32 %v4780, 1.0614054
    %v5165 = vmul.f32 %v4782, 1.0614054
    %v5166 = vmul.f32 %v4784, 1.0614054
    %v5167 = vmul.f32 %v4786, 1.0614054
    %v5168 = vmul.f32 %v4788, 1.0614054
    %v5169 = vmul.f32 %v4790, 1.0614054
    %v5170 = vmul.f32 %v4792, 1.0614054
    %v5171 = vmul.f32 %v4794, 1.0614054
    %v5172 = vmul.f32 %v4796, 1.0614054
    %v5173 = vmul.f32 %v4798, 1.0614054
    %v5174 = vmul.f32 %v4800, 1.0614054
    %v5175 = vmul.f32 %v4802, 1.0614054
    %v5176 = vmul.f32 %v4804, 1.0614054
    %v5177 = vmul.f32 %v4806, 1.0614054
    %v5178 = vmul.f32 %v4808, 1.0614054
    %v5179 = vmul.f32 %v4810, 1.0614054
    %v5180 = vmul.f32 %v4812, 1.0614054
    %v5181 = vmul.f32 %v4814, 1.0614054
    %v5182 = vmul.f32 %v4816, 1.0614054
    %v5183 = vmul.f32 %v4818, 1.0614054
    %v5184 = vmul.f32 %v4820, 1.0614054
    %v5185 = vmul.f32 %v4822, 1.0614054
    %v5186 = vmul.f32 %v4824, 1.0614054
    %v5187 = vmul.f32 %v4826, 1.0614054
    %v5188 = vmul.f32 %v4828, 1.0614054
    %v5189 = vmul.f32 %v4830, 1.0614054
    %v5190 = vmul.f32 %v4832, 1.0614054
    %v5191 = vmul.f32 %v4834, 1.0614054
    %v5192 = vmul.f32 %v4836, 1.0614054
    %v5193 = vmul.f32 %v4838, 1.0614054
    %v5194 = vmul.f32 %v4840, 1.0614054
    %v5195 = vmul.f32 %v4842, 1.0614054
    %v5196 = vmul.f32 %v4844, 1.0614054
    %v5197 = vmul.f32 %v4846, 1.0614054
    %v5198 = vmul.f32 %v4848, 1.0614054
    %v5199 = vmul.f32 %v4850, 1.0614054
    %v5200 = vmul.f32 %v4852, 1.0614054
    %v5201 = vmul.f32 %v4854, 1.0614054
    %v5202 = vmul.f32 %v4856, 1.0614054
    %v5203 = vmul.f32 %v4858, 1.0614054
    %v5204 = vmul.f32 %v4860, 1.0614054
    %v5205 = vmul.f32 %v4862, 1.0614054
    %v5206 = vmul.f32 %v4864, 1.0614054
    %v5207 = vmul.f32 %v4866, 1.0614054
    %v5208 = vmul.f32 %v4868, 1.0614054
    %v5209 = vmul.f32 %v4870, 1.0614054
    %v5210 = vmul.f32 %v4872, 1.0614054
    %v5211 = vmul.f32 %v4874, 1.0614054
    %v5212 = vmul.f32 %v4876, 1.0614054
    %v5213 = vmul.f32 %v4878, 1.0614054
    %v5214 = vmul.f32 %v4880, 1.0614054
    %v5215 = vmul.f32 %v4882, 1.0614054
    %v5216 = vmul.f32 %v4884, 1.0614054
    %v5217 = vmul.f32 %v4886, 1.0614054
    %v5218 = vmul.f32 %v4888, 1.0614054
    %v5219 = vmul.f32 %v4890, 1.0614054
    %v5220 = vmul.f32 %v4892, 1.0614054
    %v5221 = vmul.f32 %v4894, 1.0614054
    %v5222 = vmul.f32 %v4896, 1.0614054
    %v5223 = vmul.f32 %v4898, 1.0614054
    %v5224 = vmul.f32 %v4900, 1.0614054
    %v5225 = vmul.f32 %v4902, 1.0614054
    %v5226 = vmul.f32 %v4904, 1.0614054
    %v5227 = vmul.f32 %v4906, 1.0614054
    %v5228 = vmul.f32 %v4908, 1.0614054
    %v5229 = vmul.f32 %v4910, 1.0614054
    %v5230 = vmul.f32 %v4912, 1.0614054
    %v5231 = vmul.f32 %v4914, 1.0614054
    %v5232 = vmul.f32 %v4916, 1.0614054
    %v5233 = vmul.f32 %v4918, 1.0614054
    %v5234 = vmul.f32 %v4920, 1.0614054
    %v5235 = vmul.f32 %v4922, 1.0614054
    %v5236 = vmul.f32 %v4924, 1.0614054
    %v5237 = vmul.f32 %v4926, 1.0614054
    %v5238 = vmul.f32 %v4928, 1.0614054
    %v5239 = vmul.f32 %v4930, 1.0614054
    %v5240 = vmul.f32 %v4932, 1.0614054
    %v5241 = vmul.f32 %v4934, 1.0614054
    %v5242 = vmul.f32 %v4936, 1.0614054
    %v5243 = vmul.f32 %v4938, 1.0614054
    %v5244 = vmul.f32 %v4940, 1.0614054
    %v5245 = vmul.f32 %v4942, 1.0614054
    %v5246 = vmul.f32 %v4944, 1.0614054
    %v5247 = vmul.f32 %v4946, 1.0614054
    %v5248 = vmul.f32 %v4948, 1.0614054
    %v5249 = vmul.f32 %v4950, 1.0614054
    %v5250 = vmul.f32 %v4952, 1.0614054
    %v5251 = vmul.f32 %v4954, 1.0614054
    %v5252 = vmul.f32 %v4956, 1.0614054
    %v5253 = vmul.f32 %v4958, 1.0614054
    %v5254 = vmul.f32 %v4960, 1.0614054
    %v5255 = vmul.f32 %v4962, 1.0614054
    %v5256 = vmul.f32 %v4964, 1.0614054
    %v5257 = vmul.f32 %v4966, 1.0614054
    %v5258 = vmul.f32 %v4968, 1.0614054
    %v5259 = vmul.f32 %v4970, 1.0614054
    %v5260 = vmul.f32 %v4972, 1.0614054
    %v5261 = vmul.f32 %v4974, 1.0614054
    %v5262 = vmul.f32 %v4976, 1.0614054
    %v5263 = vmul.f32 %v4978, 1.0614054
    %v5264 = vmul.f32 %v4980, 1.0614054
    %v5265 = vmul.f32 %v4982, 1.0614054
    %v5266 = vmul.f32 %v4984, 1.0614054
    %v5267 = vmul.f32 %v4986, 1.0614054
    %v5268 = vmul.f32 %v4988, 1.0614054
    %v5269 = vmul.f32 %v4990, 1.0614054
    %v5270 = vmul.f32 %v4992, 1.0614054
    %v5271 = vmul.f32 %v4994, 1.0614054
    %v5272 = vmul.f32 %v4996, 1.0614054
    %v5273 = vmul.f32 %v4998, 1.0614054
    %v5274 = vmul.f32 %v5000, 1.0614054
    %v5275 = vmul.f32 %v5002, 1.0614054
    %v5276 = vmul.f32 %v5004, 1.0614054
    %v5277 = vmul.f32 %v5006, 1.0614054
    %v5278 = vmul.f32 %v5008, 1.0614054
    %v5279 = vmul.f32 %v5010, 1.0614054
    %v5280 = vmul.f32 %v5012, 1.0614054
    %v5281 = vmul.f32 %v5014, 1.0614054
    %v5282 = vmul.f32 %v5016, 1.0614054
    %v5283 = vmul.f32 %v5018, 1.0614054
    %v5284 = vmul.f32 %v5020, 1.0614054
    %v5285 = vmul.f32 %v5022, 1.0614054
    %v5286 = vmul.f32 %v5024, 1.0614054
    %v5287 = vmul.f32 %v5026, 1.0614054
    %v5288 = vmul.f32 %v5028, 1.0614054
    %v5289 = vmul.f32 %v5030, 1.0614054
    %v5290 = vmul.f32 %v5032, 1.0614054
    %v5291 = vmul.f32 %v5034, 1.0614054
    %v5292 = vmul.f32 %v5036, 1.0614054
    %v5293 = vadd.f32 %v5037, -1.4531521
    %v5294 = vadd.f32 %v5038, -1.4531521
    %v5295 = vadd.f32 %v5039, -1.4531521
    %v5296 = vadd.f32 %v5040, -1.4531521
    %v5297 = vadd.f32 %v5041, -1.4531521
    %v5298 = vadd.f32 %v5042, -1.4531521
    %v5299 = vadd.f32 %v5043, -1.4531521
    %v5300 = vadd.f32 %v5044, -1.4531521
    %v5301 = vadd.f32 %v5045, -1.4531521
    %v5302 = vadd.f32 %v5046, -1.4531521
    %v5303 = vadd.f32 %v5047, -1.4531521
    %v5304 = vadd.f32 %v5048, -1.4531521
    %v5305 = vadd.f32 %v5049, -1.4531521
    %v5306 = vadd.f32 %v5050, -1.4531521
    %v5307 = vadd.f32 %v5051, -1.4531521
    %v5308 = vadd.f32 %v5052, -1.4531521
    %v5309 = vadd.f32 %v5053, -1.4531521
    %v5310 = vadd.f32 %v5054, -1.4531521
    %v5311 = vadd.f32 %v5055, -1.4531521
    %v5312 = vadd.f32 %v5056, -1.4531521
    %v5313 = vadd.f32 %v5057, -1.4531521
    %v5314 = vadd.f32 %v5058, -1.4531521
    %v5315 = vadd.f32 %v5059, -1.4531521
    %v5316 = vadd.f32 %v5060, -1.4531521
    %v5317 = vadd.f32 %v5061, -1.4531521
    %v5318 = vadd.f32 %v5062, -1.4531521
    %v5319 = vadd.f32 %v5063, -1.4531521
    %v5320 = vadd.f32 %v5064, -1.4531521
    %v5321 = vadd.f32 %v5065, -1.4531521
    %v5322 = vadd.f32 %v5066, -1.4531521
    %v5323 = vadd.f32 %v5067, -1.4531521
    %v5324 = vadd.f32 %v5068, -1.4531521
    %v5325 = vadd.f32 %v5069, -1.4531521
    %v5326 = vadd.f32 %v5070, -1.4531521
    %v5327 = vadd.f32 %v5071, -1.4531521
    %v5328 = vadd.f32 %v5072, -1.4531521
    %v5329 = vadd.f32 %v5073, -1.4531521
    %v5330 = vadd.f32 %v5074, -1.4531521
    %v5331 = vadd.f32 %v5075, -1.4531521
    %v5332 = vadd.f32 %v5076, -1.4531521
    %v5333 = vadd.f32 %v5077, -1.4531521
    %v5334 = vadd.f32 %v5078, -1.4531521
    %v5335 = vadd.f32 %v5079, -1.4531521
    %v5336 = vadd.f32 %v5080, -1.4531521
    %v5337 = vadd.f32 %v5081, -1.4531521
    %v5338 = vadd.f32 %v5082, -1.4531521
    %v5339 = vadd.f32 %v5083, -1.4531521
    %v5340 = vadd.f32 %v5084, -1.4531521
    %v5341 = vadd.f32 %v5085, -1.4531521
    %v5342 = vadd.f32 %v5086, -1.4531521
    %v5343 = vadd.f32 %v5087, -1.4531521
    %v5344 = vadd.f32 %v5088, -1.4531521
    %v5345 = vadd.f32 %v5089, -1.4531521
    %v5346 = vadd.f32 %v5090, -1.4531521
    %v5347 = vadd.f32 %v5091, -1.4531521
    %v5348 = vadd.f32 %v5092, -1.4531521
    %v5349 = vadd.f32 %v5093, -1.4531521
    %v5350 = vadd.f32 %v5094, -1.4531521
    %v5351 = vadd.f32 %v5095, -1.4531521
    %v5352 = vadd.f32 %v5096, -1.4531521
    %v5353 = vadd.f32 %v5097, -1.4531521
    %v5354 = vadd.f32 %v5098, -1.4531521
    %v5355 = vadd.f32 %v5099, -1.4531521
    %v5356 = vadd.f32 %v5100, -1.4531521
    %v5357 = vadd.f32 %v5101, -1.4531521
    %v5358 = vadd.f32 %v5102, -1.4531521
    %v5359 = vadd.f32 %v5103, -1.4531521
    %v5360 = vadd.f32 %v5104, -1.4531521
    %v5361 = vadd.f32 %v5105, -1.4531521
    %v5362 = vadd.f32 %v5106, -1.4531521
    %v5363 = vadd.f32 %v5107, -1.4531521
    %v5364 = vadd.f32 %v5108, -1.4531521
    %v5365 = vadd.f32 %v5109, -1.4531521
    %v5366 = vadd.f32 %v5110, -1.4531521
    %v5367 = vadd.f32 %v5111, -1.4531521
    %v5368 = vadd.f32 %v5112, -1.4531521
    %v5369 = vadd.f32 %v5113, -1.4531521
    %v5370 = vadd.f32 %v5114, -1.4531521
    %v5371 = vadd.f32 %v5115, -1.4531521
    %v5372 = vadd.f32 %v5116, -1.4531521
    %v5373 = vadd.f32 %v5117, -1.4531521
    %v5374 = vadd.f32 %v5118, -1.4531521
    %v5375 = vadd.f32 %v5119, -1.4531521
    %v5376 = vadd.f32 %v5120, -1.4531521
    %v5377 = vadd.f32 %v5121, -1.4531521
    %v5378 = vadd.f32 %v5122, -1.4531521
    %v5379 = vadd.f32 %v5123, -1.4531521
    %v5380 = vadd.f32 %v5124, -1.4531521
    %v5381 = vadd.f32 %v5125, -1.4531521
    %v5382 = vadd.f32 %v5126, -1.4531521
    %v5383 = vadd.f32 %v5127, -1.4531521
    %v5384 = vadd.f32 %v5128, -1.4531521
    %v5385 = vadd.f32 %v5129, -1.4531521
    %v5386 = vadd.f32 %v5130, -1.4531521
    %v5387 = vadd.f32 %v5131, -1.4531521
    %v5388 = vadd.f32 %v5132, -1.4531521
    %v5389 = vadd.f32 %v5133, -1.4531521
    %v5390 = vadd.f32 %v5134, -1.4531521
    %v5391 = vadd.f32 %v5135, -1.4531521
    %v5392 = vadd.f32 %v5136, -1.4531521
    %v5393 = vadd.f32 %v5137, -1.4531521
    %v5394 = vadd.f32 %v5138, -1.4531521
    %v5395 = vadd.f32 %v5139, -1.4531521
    %v5396 = vadd.f32 %v5140, -1.4531521
    %v5397 = vadd.f32 %v5141, -1.4531521
    %v5398 = vadd.f32 %v5142, -1.4531521
    %v5399 = vadd.f32 %v5143, -1.4531521
    %v5400 = vadd.f32 %v5144, -1.4531521
    %v5401 = vadd.f32 %v5145, -1.4531521
    %v5402 = vadd.f32 %v5146, -1.4531521
    %v5403 = vadd.f32 %v5147, -1.4531521
    %v5404 = vadd.f32 %v5148, -1.4531521
    %v5405 = vadd.f32 %v5149, -1.4531521
    %v5406 = vadd.f32 %v5150, -1.4531521
    %v5407 = vadd.f32 %v5151, -1.4531521
    %v5408 = vadd.f32 %v5152, -1.4531521
    %v5409 = vadd.f32 %v5153, -1.4531521
    %v5410 = vadd.f32 %v5154, -1.4531521
    %v5411 = vadd.f32 %v5155, -1.4531521
    %v5412 = vadd.f32 %v5156, -1.4531521
    %v5413 = vadd.f32 %v5157, -1.4531521
    %v5414 = vadd.f32 %v5158, -1.4531521
    %v5415 = vadd.f32 %v5159, -1.4531521
    %v5416 = vadd.f32 %v5160, -1.4531521
    %v5417 = vadd.f32 %v5161, -1.4531521
    %v5418 = vadd.f32 %v5162, -1.4531521
    %v5419 = vadd.f32 %v5163, -1.4531521
    %v5420 = vadd.f32 %v5164, -1.4531521
    %v5421 = vadd.f32 %v5165, -1.4531521
    %v5422 = vadd.f32 %v5166, -1.4531521
    %v5423 = vadd.f32 %v5167, -1.4531521
    %v5424 = vadd.f32 %v5168, -1.4531521
    %v5425 = vadd.f32 %v5169, -1.4531521
    %v5426 = vadd.f32 %v5170, -1.4531521
    %v5427 = vadd.f32 %v5171, -1.4531521
    %v5428 = vadd.f32 %v5172, -1.4531521
    %v5429 = vadd.f32 %v5173, -1.4531521
    %v5430 = vadd.f32 %v5174, -1.4531521
    %v5431 = vadd.f32 %v5175, -1.4531521
    %v5432 = vadd.f32 %v5176, -1.4531521
    %v5433 = vadd.f32 %v5177, -1.4531521
    %v5434 = vadd.f32 %v5178, -1.4531521
    %v5435 = vadd.f32 %v5179, -1.4531521
    %v5436 = vadd.f32 %v5180, -1.4531521
    %v5437 = vadd.f32 %v5181, -1.4531521
    %v5438 = vadd.f32 %v5182, -1.4531521
    %v5439 = vadd.f32 %v5183, -1.4531521
    %v5440 = vadd.f32 %v5184, -1.4531521
    %v5441 = vadd.f32 %v5185, -1.4531521
    %v5442 = vadd.f32 %v5186, -1.4531521
    %v5443 = vadd.f32 %v5187, -1.4531521
    %v5444 = vadd.f32 %v5188, -1.4531521
    %v5445 = vadd.f32 %v5189, -1.4531521
    %v5446 = vadd.f32 %v5190, -1.4531521
    %v5447 = vadd.f32 %v5191, -1.4531521
    %v5448 = vadd.f32 %v5192, -1.4531521
    %v5449 = vadd.f32 %v5193, -1.4531521
    %v5450 = vadd.f32 %v5194, -1.4531521
    %v5451 = vadd.f32 %v5195, -1.4531521
    %v5452 = vadd.f32 %v5196, -1.4531521
    %v5453 = vadd.f32 %v5197, -1.4531521
    %v5454 = vadd.f32 %v5198, -1.4531521
    %v5455 = vadd.f32 %v5199, -1.4531521
    %v5456 = vadd.f32 %v5200, -1.4531521
    %v5457 = vadd.f32 %v5201, -1.4531521
    %v5458 = vadd.f32 %v5202, -1.4531521
    %v5459 = vadd.f32 %v5203, -1.4531521
    %v5460 = vadd.f32 %v5204, -1.4531521
    %v5461 = vadd.f32 %v5205, -1.4531521
    %v5462 = vadd.f32 %v5206, -1.4531521
    %v5463 = vadd.f32 %v5207, -1.4531521
    %v5464 = vadd.f32 %v5208, -1.4531521
    %v5465 = vadd.f32 %v5209, -1.4531521
    %v5466 = vadd.f32 %v5210, -1.4531521
    %v5467 = vadd.f32 %v5211, -1.4531521
    %v5468 = vadd.f32 %v5212, -1.4531521
    %v5469 = vadd.f32 %v5213, -1.4531521
    %v5470 = vadd.f32 %v5214, -1.4531521
    %v5471 = vadd.f32 %v5215, -1.4531521
    %v5472 = vadd.f32 %v5216, -1.4531521
    %v5473 = vadd.f32 %v5217, -1.4531521
    %v5474 = vadd.f32 %v5218, -1.4531521
    %v5475 = vadd.f32 %v5219, -1.4531521
    %v5476 = vadd.f32 %v5220, -1.4531521
    %v5477 = vadd.f32 %v5221, -1.4531521
    %v5478 = vadd.f32 %v5222, -1.4531521
    %v5479 = vadd.f32 %v5223, -1.4531521
    %v5480 = vadd.f32 %v5224, -1.4531521
    %v5481 = vadd.f32 %v5225, -1.4531521
    %v5482 = vadd.f32 %v5226, -1.4531521
    %v5483 = vadd.f32 %v5227, -1.4531521
    %v5484 = vadd.f32 %v5228, -1.4531521
    %v5485 = vadd.f32 %v5229, -1.4531521
    %v5486 = vadd.f32 %v5230, -1.4531521
    %v5487 = vadd.f32 %v5231, -1.4531521
    %v5488 = vadd.f32 %v5232, -1.4531521
    %v5489 = vadd.f32 %v5233, -1.4531521
    %v5490 = vadd.f32 %v5234, -1.4531521
    %v5491 = vadd.f32 %v5235, -1.4531521
    %v5492 = vadd.f32 %v5236, -1.4531521
    %v5493 = vadd.f32 %v5237, -1.4531521
    %v5494 = vadd.f32 %v5238, -1.4531521
    %v5495 = vadd.f32 %v5239, -1.4531521
    %v5496 = vadd.f32 %v5240, -1.4531521
    %v5497 = vadd.f32 %v5241, -1.4531521
    %v5498 = vadd.f32 %v5242, -1.4531521
    %v5499 = vadd.f32 %v5243, -1.4531521
    %v5500 = vadd.f32 %v5244, -1.4531521
    %v5501 = vadd.f32 %v5245, -1.4531521
    %v5502 = vadd.f32 %v5246, -1.4531521
    %v5503 = vadd.f32 %v5247, -1.4531521
    %v5504 = vadd.f32 %v5248, -1.4531521
    %v5505 = vadd.f32 %v5249, -1.4531521
    %v5506 = vadd.f32 %v5250, -1.4531521
    %v5507 = vadd.f32 %v5251, -1.4531521
    %v5508 = vadd.f32 %v5252, -1.4531521
    %v5509 = vadd.f32 %v5253, -1.4531521
    %v5510 = vadd.f32 %v5254, -1.4531521
    %v5511 = vadd.f32 %v5255, -1.4531521
    %v5512 = vadd.f32 %v5256, -1.4531521
    %v5513 = vadd.f32 %v5257, -1.4531521
    %v5514 = vadd.f32 %v5258, -1.4531521
    %v5515 = vadd.f32 %v5259, -1.4531521
    %v5516 = vadd.f32 %v5260, -1.4531521
    %v5517 = vadd.f32 %v5261, -1.4531521
    %v5518 = vadd.f32 %v5262, -1.4531521
    %v5519 = vadd.f32 %v5263, -1.4531521
    %v5520 = vadd.f32 %v5264, -1.4531521
    %v5521 = vadd.f32 %v5265, -1.4531521
    %v5522 = vadd.f32 %v5266, -1.4531521
    %v5523 = vadd.f32 %v5267, -1.4531521
    %v5524 = vadd.f32 %v5268, -1.4531521
    %v5525 = vadd.f32 %v5269, -1.4531521
    %v5526 = vadd.f32 %v5270, -1.4531521
    %v5527 = vadd.f32 %v5271, -1.4531521
    %v5528 = vadd.f32 %v5272, -1.4531521
    %v5529 = vadd.f32 %v5273, -1.4531521
    %v5530 = vadd.f32 %v5274, -1.4531521
    %v5531 = vadd.f32 %v5275, -1.4531521
    %v5532 = vadd.f32 %v5276, -1.4531521
    %v5533 = vadd.f32 %v5277, -1.4531521
    %v5534 = vadd.f32 %v5278, -1.4531521
    %v5535 = vadd.f32 %v5279, -1.4531521
    %v5536 = vadd.f32 %v5280, -1.4531521
    %v5537 = vadd.f32 %v5281, -1.4531521
    %v5538 = vadd.f32 %v5282, -1.4531521
    %v5539 = vadd.f32 %v5283, -1.4531521
    %v5540 = vadd.f32 %v5284, -1.4531521
    %v5541 = vadd.f32 %v5285, -1.4531521
    %v5542 = vadd.f32 %v5286, -1.4531521
    %v5543 = vadd.f32 %v5287, -1.4531521
    %v5544 = vadd.f32 %v5288, -1.4531521
    %v5545 = vadd.f32 %v5289, -1.4531521
    %v5546 = vadd.f32 %v5290, -1.4531521
    %v5547 = vadd.f32 %v5291, -1.4531521
    %v5548 = vadd.f32 %v5292, -1.4531521
    %v5549 = vmul.f32 %v5293, %v4526
    %v5550 = vmul.f32 %v5294, %v4528
    %v5551 = vmul.f32 %v5295, %v4530
    %v5552 = vmul.f32 %v5296, %v4532
    %v5553 = vmul.f32 %v5297, %v4534
    %v5554 = vmul.f32 %v5298, %v4536
    %v5555 = vmul.f32 %v5299, %v4538
    %v5556 = vmul.f32 %v5300, %v4540
    %v5557 = vmul.f32 %v5301, %v4542
    %v5558 = vmul.f32 %v5302, %v4544
    %v5559 = vmul.f32 %v5303, %v4546
    %v5560 = vmul.f32 %v5304, %v4548
    %v5561 = vmul.f32 %v5305, %v4550
    %v5562 = vmul.f32 %v5306, %v4552
    %v5563 = vmul.f32 %v5307, %v4554
    %v5564 = vmul.f32 %v5308, %v4556
    %v5565 = vmul.f32 %v5309, %v4558
    %v5566 = vmul.f32 %v5310, %v4560
    %v5567 = vmul.f32 %v5311, %v4562
    %v5568 = vmul.f32 %v5312, %v4564
    %v5569 = vmul.f32 %v5313, %v4566
    %v5570 = vmul.f32 %v5314, %v4568
    %v5571 = vmul.f32 %v5315, %v4570
    %v5572 = vmul.f32 %v5316, %v4572
    %v5573 = vmul.f32 %v5317, %v4574
    %v5574 = vmul.f32 %v5318, %v4576
    %v5575 = vmul.f32 %v5319, %v4578
    %v5576 = vmul.f32 %v5320, %v4580
    %v5577 = vmul.f32 %v5321, %v4582
    %v5578 = vmul.f32 %v5322, %v4584
    %v5579 = vmul.f32 %v5323, %v4586
    %v5580 = vmul.f32 %v5324, %v4588
    %v5581 = vmul.f32 %v5325, %v4590
    %v5582 = vmul.f32 %v5326, %v4592
    %v5583 = vmul.f32 %v5327, %v4594
    %v5584 = vmul.f32 %v5328, %v4596
    %v5585 = vmul.f32 %v5329, %v4598
    %v5586 = vmul.f32 %v5330, %v4600
    %v5587 = vmul.f32 %v5331, %v4602
    %v5588 = vmul.f32 %v5332, %v4604
    %v5589 = vmul.f32 %v5333, %v4606
    %v5590 = vmul.f32 %v5334, %v4608
    %v5591 = vmul.f32 %v5335, %v4610
    %v5592 = vmul.f32 %v5336, %v4612
    %v5593 = vmul.f32 %v5337, %v4614
    %v5594 = vmul.f32 %v5338, %v4616
    %v5595 = vmul.f32 %v5339, %v4618
    %v5596 = vmul.f32 %v5340, %v4620
    %v5597 = vmul.f32 %v5341, %v4622
    %v5598 = vmul.f32 %v5342, %v4624
    %v5599 = vmul.f32 %v5343, %v4626
    %v5600 = vmul.f32 %v5344, %v4628
    %v5601 = vmul.f32 %v5345, %v4630
    %v5602 = vmul.f32 %v5346, %v4632
    %v5603 = vmul.f32 %v5347, %v4634
    %v5604 = vmul.f32 %v5348, %v4636
    %v5605 = vmul.f32 %v5349, %v4638
    %v5606 = vmul.f32 %v5350, %v4640
    %v5607 = vmul.f32 %v5351, %v4642
    %v5608 = vmul.f32 %v5352, %v4644
    %v5609 = vmul.f32 %v5353, %v4646
    %v5610 = vmul.f32 %v5354, %v4648
    %v5611 = vmul.f32 %v5355, %v4650
    %v5612 = vmul.f32 %v5356, %v4652
    %v5613 = vmul.f32 %v5357, %v4654
    %v5614 = vmul.f32 %v5358, %v4656
    %v5615 = vmul.f32 %v5359, %v4658
    %v5616 = vmul.f32 %v5360, %v4660
    %v5617 = vmul.f32 %v5361, %v4662
    %v5618 = vmul.f32 %v5362, %v4664
    %v5619 = vmul.f32 %v5363, %v4666
    %v5620 = vmul.f32 %v5364, %v4668
    %v5621 = vmul.f32 %v5365, %v4670
    %v5622 = vmul.f32 %v5366, %v4672
    %v5623 = vmul.f32 %v5367, %v4674
    %v5624 = vmul.f32 %v5368, %v4676
    %v5625 = vmul.f32 %v5369, %v4678
    %v5626 = vmul.f32 %v5370, %v4680
    %v5627 = vmul.f32 %v5371, %v4682
    %v5628 = vmul.f32 %v5372, %v4684
    %v5629 = vmul.f32 %v5373, %v4686
    %v5630 = vmul.f32 %v5374, %v4688
    %v5631 = vmul.f32 %v5375, %v4690
    %v5632 = vmul.f32 %v5376, %v4692
    %v5633 = vmul.f32 %v5377, %v4694
    %v5634 = vmul.f32 %v5378, %v4696
    %v5635 = vmul.f32 %v5379, %v4698
    %v5636 = vmul.f32 %v5380, %v4700
    %v5637 = vmul.f32 %v5381, %v4702
    %v5638 = vmul.f32 %v5382, %v4704
    %v5639 = vmul.f32 %v5383, %v4706
    %v5640 = vmul.f32 %v5384, %v4708
    %v5641 = vmul.f32 %v5385, %v4710
    %v5642 = vmul.f32 %v5386, %v4712
    %v5643 = vmul.f32 %v5387, %v4714
    %v5644 = vmul.f32 %v5388, %v4716
    %v5645 = vmul.f32 %v5389, %v4718
    %v5646 = vmul.f32 %v5390, %v4720
    %v5647 = vmul.f32 %v5391, %v4722
    %v5648 = vmul.f32 %v5392, %v4724
    %v5649 = vmul.f32 %v5393, %v4726
    %v5650 = vmul.f32 %v5394, %v4728
    %v5651 = vmul.f32 %v5395, %v4730
    %v5652 = vmul.f32 %v5396, %v4732
    %v5653 = vmul.f32 %v5397, %v4734
    %v5654 = vmul.f32 %v5398, %v4736
    %v5655 = vmul.f32 %v5399, %v4738
    %v5656 = vmul.f32 %v5400, %v4740
    %v5657 = vmul.f32 %v5401, %v4742
    %v5658 = vmul.f32 %v5402, %v4744
    %v5659 = vmul.f32 %v5403, %v4746
    %v5660 = vmul.f32 %v5404, %v4748
    %v5661 = vmul.f32 %v5405, %v4750
    %v5662 = vmul.f32 %v5406, %v4752
    %v5663 = vmul.f32 %v5407, %v4754
    %v5664 = vmul.f32 %v5408, %v4756
    %v5665 = vmul.f32 %v5409, %v4758
    %v5666 = vmul.f32 %v5410, %v4760
    %v5667 = vmul.f32 %v5411, %v4762
    %v5668 = vmul.f32 %v5412, %v4764
    %v5669 = vmul.f32 %v5413, %v4766
    %v5670 = vmul.f32 %v5414, %v4768
    %v5671 = vmul.f32 %v5415, %v4770
    %v5672 = vmul.f32 %v5416, %v4772
    %v5673 = vmul.f32 %v5417, %v4774
    %v5674 = vmul.f32 %v5418, %v4776
    %v5675 = vmul.f32 %v5419, %v4778
    %v5676 = vmul.f32 %v5420, %v4780
    %v5677 = vmul.f32 %v5421, %v4782
    %v5678 = vmul.f32 %v5422, %v4784
    %v5679 = vmul.f32 %v5423, %v4786
    %v5680 = vmul.f32 %v5424, %v4788
    %v5681 = vmul.f32 %v5425, %v4790
    %v5682 = vmul.f32 %v5426, %v4792
    %v5683 = vmul.f32 %v5427, %v4794
    %v5684 = vmul.f32 %v5428, %v4796
    %v5685 = vmul.f32 %v5429, %v4798
    %v5686 = vmul.f32 %v5430, %v4800
    %v5687 = vmul.f32 %v5431, %v4802
    %v5688 = vmul.f32 %v5432, %v4804
    %v5689 = vmul.f32 %v5433, %v4806
    %v5690 = vmul.f32 %v5434, %v4808
    %v5691 = vmul.f32 %v5435, %v4810
    %v5692 = vmul.f32 %v5436, %v4812
    %v5693 = vmul.f32 %v5437, %v4814
    %v5694 = vmul.f32 %v5438, %v4816
    %v5695 = vmul.f32 %v5439, %v4818
    %v5696 = vmul.f32 %v5440, %v4820
    %v5697 = vmul.f32 %v5441, %v4822
    %v5698 = vmul.f32 %v5442, %v4824
    %v5699 = vmul.f32 %v5443, %v4826
    %v5700 = vmul.f32 %v5444, %v4828
    %v5701 = vmul.f32 %v5445, %v4830
    %v5702 = vmul.f32 %v5446, %v4832
    %v5703 = vmul.f32 %v5447, %v4834
    %v5704 = vmul.f32 %v5448, %v4836
    %v5705 = vmul.f32 %v5449, %v4838
    %v5706 = vmul.f32 %v5450, %v4840
    %v5707 = vmul.f32 %v5451, %v4842
    %v5708 = vmul.f32 %v5452, %v4844
    %v5709 = vmul.f32 %v5453, %v4846
    %v5710 = vmul.f32 %v5454, %v4848
    %v5711 = vmul.f32 %v5455, %v4850
    %v5712 = vmul.f32 %v5456, %v4852
    %v5713 = vmul.f32 %v5457, %v4854
    %v5714 = vmul.f32 %v5458, %v4856
    %v5715 = vmul.f32 %v5459, %v4858
    %v5716 = vmul.f32 %v5460, %v4860
    %v5717 = vmul.f32 %v5461, %v4862
    %v5718 = vmul.f32 %v5462, %v4864
    %v5719 = vmul.f32 %v5463, %v4866
    %v5720 = vmul.f32 %v5464, %v4868
    %v5721 = vmul.f32 %v5465, %v4870
    %v5722 = vmul.f32 %v5466, %v4872
    %v5723 = vmul.f32 %v5467, %v4874
    %v5724 = vmul.f32 %v5468, %v4876
    %v5725 = vmul.f32 %v5469, %v4878
    %v5726 = vmul.f32 %v5470, %v4880
    %v5727 = vmul.f32 %v5471, %v4882
    %v5728 = vmul.f32 %v5472, %v4884
    %v5729 = vmul.f32 %v5473, %v4886
    %v5730 = vmul.f32 %v5474, %v4888
    %v5731 = vmul.f32 %v5475, %v4890
    %v5732 = vmul.f32 %v5476, %v4892
    %v5733 = vmul.f32 %v5477, %v4894
    %v5734 = vmul.f32 %v5478, %v4896
    %v5735 = vmul.f32 %v5479, %v4898
    %v5736 = vmul.f32 %v5480, %v4900
    %v5737 = vmul.f32 %v5481, %v4902
    %v5738 = vmul.f32 %v5482, %v4904
    %v5739 = vmul.f32 %v5483, %v4906
    %v5740 = vmul.f32 %v5484, %v4908
    %v5741 = vmul.f32 %v5485, %v4910
    %v5742 = vmul.f32 %v5486, %v4912
    %v5743 = vmul.f32 %v5487, %v4914
    %v5744 = vmul.f32 %v5488, %v4916
    %v5745 = vmul.f32 %v5489, %v4918
    %v5746 = vmul.f32 %v5490, %v4920
    %v5747 = vmul.f32 %v5491, %v4922
    %v5748 = vmul.f32 %v5492, %v4924
    %v5749 = vmul.f32 %v5493, %v4926
    %v5750 = vmul.f32 %v5494, %v4928
    %v5751 = vmul.f32 %v5495, %v4930
    %v5752 = vmul.f32 %v5496, %v4932
    %v5753 = vmul.f32 %v5497, %v4934
    %v5754 = vmul.f32 %v5498, %v4936
    %v5755 = vmul.f32 %v5499, %v4938
    %v5756 = vmul.f32 %v5500, %v4940
    %v5757 = vmul.f32 %v5501, %v4942
    %v5758 = vmul.f32 %v5502, %v4944
    %v5759 = vmul.f32 %v5503, %v4946
    %v5760 = vmul.f32 %v5504, %v4948
    %v5761 = vmul.f32 %v5505, %v4950
    %v5762 = vmul.f32 %v5506, %v4952
    %v5763 = vmul.f32 %v5507, %v4954
    %v5764 = vmul.f32 %v5508, %v4956
    %v5765 = vmul.f32 %v5509, %v4958
    %v5766 = vmul.f32 %v5510, %v4960
    %v5767 = vmul.f32 %v5511, %v4962
    %v5768 = vmul.f32 %v5512, %v4964
    %v5769 = vmul.f32 %v5513, %v4966
    %v5770 = vmul.f32 %v5514, %v4968
    %v5771 = vmul.f32 %v5515, %v4970
    %v5772 = vmul.f32 %v5516, %v4972
    %v5773 = vmul.f32 %v5517, %v4974
    %v5774 = vmul.f32 %v5518, %v4976
    %v5775 = vmul.f32 %v5519, %v4978
    %v5776 = vmul.f32 %v5520, %v4980
    %v5777 = vmul.f32 %v5521, %v4982
    %v5778 = vmul.f32 %v5522, %v4984
    %v5779 = vmul.f32 %v5523, %v4986
    %v5780 = vmul.f32 %v5524, %v4988
    %v5781 = vmul.f32 %v5525, %v4990
    %v5782 = vmul.f32 %v5526, %v4992
    %v5783 = vmul.f32 %v5527, %v4994
    %v5784 = vmul.f32 %v5528, %v4996
    %v5785 = vmul.f32 %v5529, %v4998
    %v5786 = vmul.f32 %v5530, %v5000
    %v5787 = vmul.f32 %v5531, %v5002
    %v5788 = vmul.f32 %v5532, %v5004
    %v5789 = vmul.f32 %v5533, %v5006
    %v5790 = vmul.f32 %v5534, %v5008
    %v5791 = vmul.f32 %v5535, %v5010
    %v5792 = vmul.f32 %v5536, %v5012
    %v5793 = vmul.f32 %v5537, %v5014
    %v5794 = vmul.f32 %v5538, %v5016
    %v5795 = vmul.f32 %v5539, %v5018
    %v5796 = vmul.f32 %v5540, %v5020
    %v5797 = vmul.f32 %v5541, %v5022
    %v5798 = vmul.f32 %v5542, %v5024
    %v5799 = vmul.f32 %v5543, %v5026
    %v5800 = vmul.f32 %v5544, %v5028
    %v5801 = vmul.f32 %v5545, %v5030
    %v5802 = vmul.f32 %v5546, %v5032
    %v5803 = vmul.f32 %v5547, %v5034
    %v5804 = vmul.f32 %v5548, %v5036
    %v5805 = vadd.f32 %v5549, 1.4214138
    %v5806 = vadd.f32 %v5550, 1.4214138
    %v5807 = vadd.f32 %v5551, 1.4214138
    %v5808 = vadd.f32 %v5552, 1.4214138
    %v5809 = vadd.f32 %v5553, 1.4214138
    %v5810 = vadd.f32 %v5554, 1.4214138
    %v5811 = vadd.f32 %v5555, 1.4214138
    %v5812 = vadd.f32 %v5556, 1.4214138
    %v5813 = vadd.f32 %v5557, 1.4214138
    %v5814 = vadd.f32 %v5558, 1.4214138
    %v5815 = vadd.f32 %v5559, 1.4214138
    %v5816 = vadd.f32 %v5560, 1.4214138
    %v5817 = vadd.f32 %v5561, 1.4214138
    %v5818 = vadd.f32 %v5562, 1.4214138
    %v5819 = vadd.f32 %v5563, 1.4214138
    %v5820 = vadd.f32 %v5564, 1.4214138
    %v5821 = vadd.f32 %v5565, 1.4214138
    %v5822 = vadd.f32 %v5566, 1.4214138
    %v5823 = vadd.f32 %v5567, 1.4214138
    %v5824 = vadd.f32 %v5568, 1.4214138
    %v5825 = vadd.f32 %v5569, 1.4214138
    %v5826 = vadd.f32 %v5570, 1.4214138
    %v5827 = vadd.f32 %v5571, 1.4214138
    %v5828 = vadd.f32 %v5572, 1.4214138
    %v5829 = vadd.f32 %v5573, 1.4214138
    %v5830 = vadd.f32 %v5574, 1.4214138
    %v5831 = vadd.f32 %v5575, 1.4214138
    %v5832 = vadd.f32 %v5576, 1.4214138
    %v5833 = vadd.f32 %v5577, 1.4214138
    %v5834 = vadd.f32 %v5578, 1.4214138
    %v5835 = vadd.f32 %v5579, 1.4214138
    %v5836 = vadd.f32 %v5580, 1.4214138
    %v5837 = vadd.f32 %v5581, 1.4214138
    %v5838 = vadd.f32 %v5582, 1.4214138
    %v5839 = vadd.f32 %v5583, 1.4214138
    %v5840 = vadd.f32 %v5584, 1.4214138
    %v5841 = vadd.f32 %v5585, 1.4214138
    %v5842 = vadd.f32 %v5586, 1.4214138
    %v5843 = vadd.f32 %v5587, 1.4214138
    %v5844 = vadd.f32 %v5588, 1.4214138
    %v5845 = vadd.f32 %v5589, 1.4214138
    %v5846 = vadd.f32 %v5590, 1.4214138
    %v5847 = vadd.f32 %v5591, 1.4214138
    %v5848 = vadd.f32 %v5592, 1.4214138
    %v5849 = vadd.f32 %v5593, 1.4214138
    %v5850 = vadd.f32 %v5594, 1.4214138
    %v5851 = vadd.f32 %v5595, 1.4214138
    %v5852 = vadd.f32 %v5596, 1.4214138
    %v5853 = vadd.f32 %v5597, 1.4214138
    %v5854 = vadd.f32 %v5598, 1.4214138
    %v5855 = vadd.f32 %v5599, 1.4214138
    %v5856 = vadd.f32 %v5600, 1.4214138
    %v5857 = vadd.f32 %v5601, 1.4214138
    %v5858 = vadd.f32 %v5602, 1.4214138
    %v5859 = vadd.f32 %v5603, 1.4214138
    %v5860 = vadd.f32 %v5604, 1.4214138
    %v5861 = vadd.f32 %v5605, 1.4214138
    %v5862 = vadd.f32 %v5606, 1.4214138
    %v5863 = vadd.f32 %v5607, 1.4214138
    %v5864 = vadd.f32 %v5608, 1.4214138
    %v5865 = vadd.f32 %v5609, 1.4214138
    %v5866 = vadd.f32 %v5610, 1.4214138
    %v5867 = vadd.f32 %v5611, 1.4214138
    %v5868 = vadd.f32 %v5612, 1.4214138
    %v5869 = vadd.f32 %v5613, 1.4214138
    %v5870 = vadd.f32 %v5614, 1.4214138
    %v5871 = vadd.f32 %v5615, 1.4214138
    %v5872 = vadd.f32 %v5616, 1.4214138
    %v5873 = vadd.f32 %v5617, 1.4214138
    %v5874 = vadd.f32 %v5618, 1.4214138
    %v5875 = vadd.f32 %v5619, 1.4214138
    %v5876 = vadd.f32 %v5620, 1.4214138
    %v5877 = vadd.f32 %v5621, 1.4214138
    %v5878 = vadd.f32 %v5622, 1.4214138
    %v5879 = vadd.f32 %v5623, 1.4214138
    %v5880 = vadd.f32 %v5624, 1.4214138
    %v5881 = vadd.f32 %v5625, 1.4214138
    %v5882 = vadd.f32 %v5626, 1.4214138
    %v5883 = vadd.f32 %v5627, 1.4214138
    %v5884 = vadd.f32 %v5628, 1.4214138
    %v5885 = vadd.f32 %v5629, 1.4214138
    %v5886 = vadd.f32 %v5630, 1.4214138
    %v5887 = vadd.f32 %v5631, 1.4214138
    %v5888 = vadd.f32 %v5632, 1.4214138
    %v5889 = vadd.f32 %v5633, 1.4214138
    %v5890 = vadd.f32 %v5634, 1.4214138
    %v5891 = vadd.f32 %v5635, 1.4214138
    %v5892 = vadd.f32 %v5636, 1.4214138
    %v5893 = vadd.f32 %v5637, 1.4214138
    %v5894 = vadd.f32 %v5638, 1.4214138
    %v5895 = vadd.f32 %v5639, 1.4214138
    %v5896 = vadd.f32 %v5640, 1.4214138
    %v5897 = vadd.f32 %v5641, 1.4214138
    %v5898 = vadd.f32 %v5642, 1.4214138
    %v5899 = vadd.f32 %v5643, 1.4214138
    %v5900 = vadd.f32 %v5644, 1.4214138
    %v5901 = vadd.f32 %v5645, 1.4214138
    %v5902 = vadd.f32 %v5646, 1.4214138
    %v5903 = vadd.f32 %v5647, 1.4214138
    %v5904 = vadd.f32 %v5648, 1.4214138
    %v5905 = vadd.f32 %v5649, 1.4214138
    %v5906 = vadd.f32 %v5650, 1.4214138
    %v5907 = vadd.f32 %v5651, 1.4214138
    %v5908 = vadd.f32 %v5652, 1.4214138
    %v5909 = vadd.f32 %v5653, 1.4214138
    %v5910 = vadd.f32 %v5654, 1.4214138
    %v5911 = vadd.f32 %v5655, 1.4214138
    %v5912 = vadd.f32 %v5656, 1.4214138
    %v5913 = vadd.f32 %v5657, 1.4214138
    %v5914 = vadd.f32 %v5658, 1.4214138
    %v5915 = vadd.f32 %v5659, 1.4214138
    %v5916 = vadd.f32 %v5660, 1.4214138
    %v5917 = vadd.f32 %v5661, 1.4214138
    %v5918 = vadd.f32 %v5662, 1.4214138
    %v5919 = vadd.f32 %v5663, 1.4214138
    %v5920 = vadd.f32 %v5664, 1.4214138
    %v5921 = vadd.f32 %v5665, 1.4214138
    %v5922 = vadd.f32 %v5666, 1.4214138
    %v5923 = vadd.f32 %v5667, 1.4214138
    %v5924 = vadd.f32 %v5668, 1.4214138
    %v5925 = vadd.f32 %v5669, 1.4214138
    %v5926 = vadd.f32 %v5670, 1.4214138
    %v5927 = vadd.f32 %v5671, 1.4214138
    %v5928 = vadd.f32 %v5672, 1.4214138
    %v5929 = vadd.f32 %v5673, 1.4214138
    %v5930 = vadd.f32 %v5674, 1.4214138
    %v5931 = vadd.f32 %v5675, 1.4214138
    %v5932 = vadd.f32 %v5676, 1.4214138
    %v5933 = vadd.f32 %v5677, 1.4214138
    %v5934 = vadd.f32 %v5678, 1.4214138
    %v5935 = vadd.f32 %v5679, 1.4214138
    %v5936 = vadd.f32 %v5680, 1.4214138
    %v5937 = vadd.f32 %v5681, 1.4214138
    %v5938 = vadd.f32 %v5682, 1.4214138
    %v5939 = vadd.f32 %v5683, 1.4214138
    %v5940 = vadd.f32 %v5684, 1.4214138
    %v5941 = vadd.f32 %v5685, 1.4214138
    %v5942 = vadd.f32 %v5686, 1.4214138
    %v5943 = vadd.f32 %v5687, 1.4214138
    %v5944 = vadd.f32 %v5688, 1.4214138
    %v5945 = vadd.f32 %v5689, 1.4214138
    %v5946 = vadd.f32 %v5690, 1.4214138
    %v5947 = vadd.f32 %v5691, 1.4214138
    %v5948 = vadd.f32 %v5692, 1.4214138
    %v5949 = vadd.f32 %v5693, 1.4214138
    %v5950 = vadd.f32 %v5694, 1.4214138
    %v5951 = vadd.f32 %v5695, 1.4214138
    %v5952 = vadd.f32 %v5696, 1.4214138
    %v5953 = vadd.f32 %v5697, 1.4214138
    %v5954 = vadd.f32 %v5698, 1.4214138
    %v5955 = vadd.f32 %v5699, 1.4214138
    %v5956 = vadd.f32 %v5700, 1.4214138
    %v5957 = vadd.f32 %v5701, 1.4214138
    %v5958 = vadd.f32 %v5702, 1.4214138
    %v5959 = vadd.f32 %v5703, 1.4214138
    %v5960 = vadd.f32 %v5704, 1.4214138
    %v5961 = vadd.f32 %v5705, 1.4214138
    %v5962 = vadd.f32 %v5706, 1.4214138
    %v5963 = vadd.f32 %v5707, 1.4214138
    %v5964 = vadd.f32 %v5708, 1.4214138
    %v5965 = vadd.f32 %v5709, 1.4214138
    %v5966 = vadd.f32 %v5710, 1.4214138
    %v5967 = vadd.f32 %v5711, 1.4214138
    %v5968 = vadd.f32 %v5712, 1.4214138
    %v5969 = vadd.f32 %v5713, 1.4214138
    %v5970 = vadd.f32 %v5714, 1.4214138
    %v5971 = vadd.f32 %v5715, 1.4214138
    %v5972 = vadd.f32 %v5716, 1.4214138
    %v5973 = vadd.f32 %v5717, 1.4214138
    %v5974 = vadd.f32 %v5718, 1.4214138
    %v5975 = vadd.f32 %v5719, 1.4214138
    %v5976 = vadd.f32 %v5720, 1.4214138
    %v5977 = vadd.f32 %v5721, 1.4214138
    %v5978 = vadd.f32 %v5722, 1.4214138
    %v5979 = vadd.f32 %v5723, 1.4214138
    %v5980 = vadd.f32 %v5724, 1.4214138
    %v5981 = vadd.f32 %v5725, 1.4214138
    %v5982 = vadd.f32 %v5726, 1.4214138
    %v5983 = vadd.f32 %v5727, 1.4214138
    %v5984 = vadd.f32 %v5728, 1.4214138
    %v5985 = vadd.f32 %v5729, 1.4214138
    %v5986 = vadd.f32 %v5730, 1.4214138
    %v5987 = vadd.f32 %v5731, 1.4214138
    %v5988 = vadd.f32 %v5732, 1.4214138
    %v5989 = vadd.f32 %v5733, 1.4214138
    %v5990 = vadd.f32 %v5734, 1.4214138
    %v5991 = vadd.f32 %v5735, 1.4214138
    %v5992 = vadd.f32 %v5736, 1.4214138
    %v5993 = vadd.f32 %v5737, 1.4214138
    %v5994 = vadd.f32 %v5738, 1.4214138
    %v5995 = vadd.f32 %v5739, 1.4214138
    %v5996 = vadd.f32 %v5740, 1.4214138
    %v5997 = vadd.f32 %v5741, 1.4214138
    %v5998 = vadd.f32 %v5742, 1.4214138
    %v5999 = vadd.f32 %v5743, 1.4214138
    %v6000 = vadd.f32 %v5744, 1.4214138
    %v6001 = vadd.f32 %v5745, 1.4214138
    %v6002 = vadd.f32 %v5746, 1.4214138
    %v6003 = vadd.f32 %v5747, 1.4214138
    %v6004 = vadd.f32 %v5748, 1.4214138
    %v6005 = vadd.f32 %v5749, 1.4214138
    %v6006 = vadd.f32 %v5750, 1.4214138
    %v6007 = vadd.f32 %v5751, 1.4214138
    %v6008 = vadd.f32 %v5752, 1.4214138
    %v6009 = vadd.f32 %v5753, 1.4214138
    %v6010 = vadd.f32 %v5754, 1.4214138
    %v6011 = vadd.f32 %v5755, 1.4214138
    %v6012 = vadd.f32 %v5756, 1.4214138
    %v6013 = vadd.f32 %v5757, 1.4214138
    %v6014 = vadd.f32 %v5758, 1.4214138
    %v6015 = vadd.f32 %v5759, 1.4214138
    %v6016 = vadd.f32 %v5760, 1.4214138
    %v6017 = vadd.f32 %v5761, 1.4214138
    %v6018 = vadd.f32 %v5762, 1.4214138
    %v6019 = vadd.f32 %v5763, 1.4214138
    %v6020 = vadd.f32 %v5764, 1.4214138
    %v6021 = vadd.f32 %v5765, 1.4214138
    %v6022 = vadd.f32 %v5766, 1.4214138
    %v6023 = vadd.f32 %v5767, 1.4214138
    %v6024 = vadd.f32 %v5768, 1.4214138
    %v6025 = vadd.f32 %v5769, 1.4214138
    %v6026 = vadd.f32 %v5770, 1.4214138
    %v6027 = vadd.f32 %v5771, 1.4214138
    %v6028 = vadd.f32 %v5772, 1.4214138
    %v6029 = vadd.f32 %v5773, 1.4214138
    %v6030 = vadd.f32 %v5774, 1.4214138
    %v6031 = vadd.f32 %v5775, 1.4214138
    %v6032 = vadd.f32 %v5776, 1.4214138
    %v6033 = vadd.f32 %v5777, 1.4214138
    %v6034 = vadd.f32 %v5778, 1.4214138
    %v6035 = vadd.f32 %v5779, 1.4214138
    %v6036 = vadd.f32 %v5780, 1.4214138
    %v6037 = vadd.f32 %v5781, 1.4214138
    %v6038 = vadd.f32 %v5782, 1.4214138
    %v6039 = vadd.f32 %v5783, 1.4214138
    %v6040 = vadd.f32 %v5784, 1.4214138
    %v6041 = vadd.f32 %v5785, 1.4214138
    %v6042 = vadd.f32 %v5786, 1.4214138
    %v6043 = vadd.f32 %v5787, 1.4214138
    %v6044 = vadd.f32 %v5788, 1.4214138
    %v6045 = vadd.f32 %v5789, 1.4214138
    %v6046 = vadd.f32 %v5790, 1.4214138
    %v6047 = vadd.f32 %v5791, 1.4214138
    %v6048 = vadd.f32 %v5792, 1.4214138
    %v6049 = vadd.f32 %v5793, 1.4214138
    %v6050 = vadd.f32 %v5794, 1.4214138
    %v6051 = vadd.f32 %v5795, 1.4214138
    %v6052 = vadd.f32 %v5796, 1.4214138
    %v6053 = vadd.f32 %v5797, 1.4214138
    %v6054 = vadd.f32 %v5798, 1.4214138
    %v6055 = vadd.f32 %v5799, 1.4214138
    %v6056 = vadd.f32 %v5800, 1.4214138
    %v6057 = vadd.f32 %v5801, 1.4214138
    %v6058 = vadd.f32 %v5802, 1.4214138
    %v6059 = vadd.f32 %v5803, 1.4214138
    %v6060 = vadd.f32 %v5804, 1.4214138
    %v6061 = vmul.f32 %v5805, %v4526
    %v6062 = vmul.f32 %v5806, %v4528
    %v6063 = vmul.f32 %v5807, %v4530
    %v6064 = vmul.f32 %v5808, %v4532
    %v6065 = vmul.f32 %v5809, %v4534
    %v6066 = vmul.f32 %v5810, %v4536
    %v6067 = vmul.f32 %v5811, %v4538
    %v6068 = vmul.f32 %v5812, %v4540
    %v6069 = vmul.f32 %v5813, %v4542
    %v6070 = vmul.f32 %v5814, %v4544
    %v6071 = vmul.f32 %v5815, %v4546
    %v6072 = vmul.f32 %v5816, %v4548
    %v6073 = vmul.f32 %v5817, %v4550
    %v6074 = vmul.f32 %v5818, %v4552
    %v6075 = vmul.f32 %v5819, %v4554
    %v6076 = vmul.f32 %v5820, %v4556
    %v6077 = vmul.f32 %v5821, %v4558
    %v6078 = vmul.f32 %v5822, %v4560
    %v6079 = vmul.f32 %v5823, %v4562
    %v6080 = vmul.f32 %v5824, %v4564
    %v6081 = vmul.f32 %v5825, %v4566
    %v6082 = vmul.f32 %v5826, %v4568
    %v6083 = vmul.f32 %v5827, %v4570
    %v6084 = vmul.f32 %v5828, %v4572
    %v6085 = vmul.f32 %v5829, %v4574
    %v6086 = vmul.f32 %v5830, %v4576
    %v6087 = vmul.f32 %v5831, %v4578
    %v6088 = vmul.f32 %v5832, %v4580
    %v6089 = vmul.f32 %v5833, %v4582
    %v6090 = vmul.f32 %v5834, %v4584
    %v6091 = vmul.f32 %v5835, %v4586
    %v6092 = vmul.f32 %v5836, %v4588
    %v6093 = vmul.f32 %v5837, %v4590
    %v6094 = vmul.f32 %v5838, %v4592
    %v6095 = vmul.f32 %v5839, %v4594
    %v6096 = vmul.f32 %v5840, %v4596
    %v6097 = vmul.f32 %v5841, %v4598
    %v6098 = vmul.f32 %v5842, %v4600
    %v6099 = vmul.f32 %v5843, %v4602
    %v6100 = vmul.f32 %v5844, %v4604
    %v6101 = vmul.f32 %v5845, %v4606
    %v6102 = vmul.f32 %v5846, %v4608
    %v6103 = vmul.f32 %v5847, %v4610
    %v6104 = vmul.f32 %v5848, %v4612
    %v6105 = vmul.f32 %v5849, %v4614
    %v6106 = vmul.f32 %v5850, %v4616
    %v6107 = vmul.f32 %v5851, %v4618
    %v6108 = vmul.f32 %v5852, %v4620
    %v6109 = vmul.f32 %v5853, %v4622
    %v6110 = vmul.f32 %v5854, %v4624
    %v6111 = vmul.f32 %v5855, %v4626
    %v6112 = vmul.f32 %v5856, %v4628
    %v6113 = vmul.f32 %v5857, %v4630
    %v6114 = vmul.f32 %v5858, %v4632
    %v6115 = vmul.f32 %v5859, %v4634
    %v6116 = vmul.f32 %v5860, %v4636
    %v6117 = vmul.f32 %v5861, %v4638
    %v6118 = vmul.f32 %v5862, %v4640
    %v6119 = vmul.f32 %v5863, %v4642
    %v6120 = vmul.f32 %v5864, %v4644
    %v6121 = vmul.f32 %v5865, %v4646
    %v6122 = vmul.f32 %v5866, %v4648
    %v6123 = vmul.f32 %v5867, %v4650
    %v6124 = vmul.f32 %v5868, %v4652
    %v6125 = vmul.f32 %v5869, %v4654
    %v6126 = vmul.f32 %v5870, %v4656
    %v6127 = vmul.f32 %v5871, %v4658
    %v6128 = vmul.f32 %v5872, %v4660
    %v6129 = vmul.f32 %v5873, %v4662
    %v6130 = vmul.f32 %v5874, %v4664
    %v6131 = vmul.f32 %v5875, %v4666
    %v6132 = vmul.f32 %v5876, %v4668
    %v6133 = vmul.f32 %v5877, %v4670
    %v6134 = vmul.f32 %v5878, %v4672
    %v6135 = vmul.f32 %v5879, %v4674
    %v6136 = vmul.f32 %v5880, %v4676
    %v6137 = vmul.f32 %v5881, %v4678
    %v6138 = vmul.f32 %v5882, %v4680
    %v6139 = vmul.f32 %v5883, %v4682
    %v6140 = vmul.f32 %v5884, %v4684
    %v6141 = vmul.f32 %v5885, %v4686
    %v6142 = vmul.f32 %v5886, %v4688
    %v6143 = vmul.f32 %v5887, %v4690
    %v6144 = vmul.f32 %v5888, %v4692
    %v6145 = vmul.f32 %v5889, %v4694
    %v6146 = vmul.f32 %v5890, %v4696
    %v6147 = vmul.f32 %v5891, %v4698
    %v6148 = vmul.f32 %v5892, %v4700
    %v6149 = vmul.f32 %v5893, %v4702
    %v6150 = vmul.f32 %v5894, %v4704
    %v6151 = vmul.f32 %v5895, %v4706
    %v6152 = vmul.f32 %v5896, %v4708
    %v6153 = vmul.f32 %v5897, %v4710
    %v6154 = vmul.f32 %v5898, %v4712
    %v6155 = vmul.f32 %v5899, %v4714
    %v6156 = vmul.f32 %v5900, %v4716
    %v6157 = vmul.f32 %v5901, %v4718
    %v6158 = vmul.f32 %v5902, %v4720
    %v6159 = vmul.f32 %v5903, %v4722
    %v6160 = vmul.f32 %v5904, %v4724
    %v6161 = vmul.f32 %v5905, %v4726
    %v6162 = vmul.f32 %v5906, %v4728
    %v6163 = vmul.f32 %v5907, %v4730
    %v6164 = vmul.f32 %v5908, %v4732
    %v6165 = vmul.f32 %v5909, %v4734
    %v6166 = vmul.f32 %v5910, %v4736
    %v6167 = vmul.f32 %v5911, %v4738
    %v6168 = vmul.f32 %v5912, %v4740
    %v6169 = vmul.f32 %v5913, %v4742
    %v6170 = vmul.f32 %v5914, %v4744
    %v6171 = vmul.f32 %v5915, %v4746
    %v6172 = vmul.f32 %v5916, %v4748
    %v6173 = vmul.f32 %v5917, %v4750
    %v6174 = vmul.f32 %v5918, %v4752
    %v6175 = vmul.f32 %v5919, %v4754
    %v6176 = vmul.f32 %v5920, %v4756
    %v6177 = vmul.f32 %v5921, %v4758
    %v6178 = vmul.f32 %v5922, %v4760
    %v6179 = vmul.f32 %v5923, %v4762
    %v6180 = vmul.f32 %v5924, %v4764
    %v6181 = vmul.f32 %v5925, %v4766
    %v6182 = vmul.f32 %v5926, %v4768
    %v6183 = vmul.f32 %v5927, %v4770
    %v6184 = vmul.f32 %v5928, %v4772
    %v6185 = vmul.f32 %v5929, %v4774
    %v6186 = vmul.f32 %v5930, %v4776
    %v6187 = vmul.f32 %v5931, %v4778
    %v6188 = vmul.f32 %v5932, %v4780
    %v6189 = vmul.f32 %v5933, %v4782
    %v6190 = vmul.f32 %v5934, %v4784
    %v6191 = vmul.f32 %v5935, %v4786
    %v6192 = vmul.f32 %v5936, %v4788
    %v6193 = vmul.f32 %v5937, %v4790
    %v6194 = vmul.f32 %v5938, %v4792
    %v6195 = vmul.f32 %v5939, %v4794
    %v6196 = vmul.f32 %v5940, %v4796
    %v6197 = vmul.f32 %v5941, %v4798
    %v6198 = vmul.f32 %v5942, %v4800
    %v6199 = vmul.f32 %v5943, %v4802
    %v6200 = vmul.f32 %v5944, %v4804
    %v6201 = vmul.f32 %v5945, %v4806
    %v6202 = vmul.f32 %v5946, %v4808
    %v6203 = vmul.f32 %v5947, %v4810
    %v6204 = vmul.f32 %v5948, %v4812
    %v6205 = vmul.f32 %v5949, %v4814
    %v6206 = vmul.f32 %v5950, %v4816
    %v6207 = vmul.f32 %v5951, %v4818
    %v6208 = vmul.f32 %v5952, %v4820
    %v6209 = vmul.f32 %v5953, %v4822
    %v6210 = vmul.f32 %v5954, %v4824
    %v6211 = vmul.f32 %v5955, %v4826
    %v6212 = vmul.f32 %v5956, %v4828
    %v6213 = vmul.f32 %v5957, %v4830
    %v6214 = vmul.f32 %v5958, %v4832
    %v6215 = vmul.f32 %v5959, %v4834
    %v6216 = vmul.f32 %v5960, %v4836
    %v6217 = vmul.f32 %v5961, %v4838
    %v6218 = vmul.f32 %v5962, %v4840
    %v6219 = vmul.f32 %v5963, %v4842
    %v6220 = vmul.f32 %v5964, %v4844
    %v6221 = vmul.f32 %v5965, %v4846
    %v6222 = vmul.f32 %v5966, %v4848
    %v6223 = vmul.f32 %v5967, %v4850
    %v6224 = vmul.f32 %v5968, %v4852
    %v6225 = vmul.f32 %v5969, %v4854
    %v6226 = vmul.f32 %v5970, %v4856
    %v6227 = vmul.f32 %v5971, %v4858
    %v6228 = vmul.f32 %v5972, %v4860
    %v6229 = vmul.f32 %v5973, %v4862
    %v6230 = vmul.f32 %v5974, %v4864
    %v6231 = vmul.f32 %v5975, %v4866
    %v6232 = vmul.f32 %v5976, %v4868
    %v6233 = vmul.f32 %v5977, %v4870
    %v6234 = vmul.f32 %v5978, %v4872
    %v6235 = vmul.f32 %v5979, %v4874
    %v6236 = vmul.f32 %v5980, %v4876
    %v6237 = vmul.f32 %v5981, %v4878
    %v6238 = vmul.f32 %v5982, %v4880
    %v6239 = vmul.f32 %v5983, %v4882
    %v6240 = vmul.f32 %v5984, %v4884
    %v6241 = vmul.f32 %v5985, %v4886
    %v6242 = vmul.f32 %v5986, %v4888
    %v6243 = vmul.f32 %v5987, %v4890
    %v6244 = vmul.f32 %v5988, %v4892
    %v6245 = vmul.f32 %v5989, %v4894
    %v6246 = vmul.f32 %v5990, %v4896
    %v6247 = vmul.f32 %v5991, %v4898
    %v6248 = vmul.f32 %v5992, %v4900
    %v6249 = vmul.f32 %v5993, %v4902
    %v6250 = vmul.f32 %v5994, %v4904
    %v6251 = vmul.f32 %v5995, %v4906
    %v6252 = vmul.f32 %v5996, %v4908
    %v6253 = vmul.f32 %v5997, %v4910
    %v6254 = vmul.f32 %v5998, %v4912
    %v6255 = vmul.f32 %v5999, %v4914
    %v6256 = vmul.f32 %v6000, %v4916
    %v6257 = vmul.f32 %v6001, %v4918
    %v6258 = vmul.f32 %v6002, %v4920
    %v6259 = vmul.f32 %v6003, %v4922
    %v6260 = vmul.f32 %v6004, %v4924
    %v6261 = vmul.f32 %v6005, %v4926
    %v6262 = vmul.f32 %v6006, %v4928
    %v6263 = vmul.f32 %v6007, %v4930
    %v6264 = vmul.f32 %v6008, %v4932
    %v6265 = vmul.f32 %v6009, %v4934
    %v6266 = vmul.f32 %v6010, %v4936
    %v6267 = vmul.f32 %v6011, %v4938
    %v6268 = vmul.f32 %v6012, %v4940
    %v6269 = vmul.f32 %v6013, %v4942
    %v6270 = vmul.f32 %v6014, %v4944
    %v6271 = vmul.f32 %v6015, %v4946
    %v6272 = vmul.f32 %v6016, %v4948
    %v6273 = vmul.f32 %v6017, %v4950
    %v6274 = vmul.f32 %v6018, %v4952
    %v6275 = vmul.f32 %v6019, %v4954
    %v6276 = vmul.f32 %v6020, %v4956
    %v6277 = vmul.f32 %v6021, %v4958
    %v6278 = vmul.f32 %v6022, %v4960
    %v6279 = vmul.f32 %v6023, %v4962
    %v6280 = vmul.f32 %v6024, %v4964
    %v6281 = vmul.f32 %v6025, %v4966
    %v6282 = vmul.f32 %v6026, %v4968
    %v6283 = vmul.f32 %v6027, %v4970
    %v6284 = vmul.f32 %v6028, %v4972
    %v6285 = vmul.f32 %v6029, %v4974
    %v6286 = vmul.f32 %v6030, %v4976
    %v6287 = vmul.f32 %v6031, %v4978
    %v6288 = vmul.f32 %v6032, %v4980
    %v6289 = vmul.f32 %v6033, %v4982
    %v6290 = vmul.f32 %v6034, %v4984
    %v6291 = vmul.f32 %v6035, %v4986
    %v6292 = vmul.f32 %v6036, %v4988
    %v6293 = vmul.f32 %v6037, %v4990
    %v6294 = vmul.f32 %v6038, %v4992
    %v6295 = vmul.f32 %v6039, %v4994
    %v6296 = vmul.f32 %v6040, %v4996
    %v6297 = vmul.f32 %v6041, %v4998
    %v6298 = vmul.f32 %v6042, %v5000
    %v6299 = vmul.f32 %v6043, %v5002
    %v6300 = vmul.f32 %v6044, %v5004
    %v6301 = vmul.f32 %v6045, %v5006
    %v6302 = vmul.f32 %v6046, %v5008
    %v6303 = vmul.f32 %v6047, %v5010
    %v6304 = vmul.f32 %v6048, %v5012
    %v6305 = vmul.f32 %v6049, %v5014
    %v6306 = vmul.f32 %v6050, %v5016
    %v6307 = vmul.f32 %v6051, %v5018
    %v6308 = vmul.f32 %v6052, %v5020
    %v6309 = vmul.f32 %v6053, %v5022
    %v6310 = vmul.f32 %v6054, %v5024
    %v6311 = vmul.f32 %v6055, %v5026
    %v6312 = vmul.f32 %v6056, %v5028
    %v6313 = vmul.f32 %v6057, %v5030
    %v6314 = vmul.f32 %v6058, %v5032
    %v6315 = vmul.f32 %v6059, %v5034
    %v6316 = vmul.f32 %v6060, %v5036
    %v6317 = vadd.f32 %v6061, -0.28449672
    %v6318 = vadd.f32 %v6062, -0.28449672
    %v6319 = vadd.f32 %v6063, -0.28449672
    %v6320 = vadd.f32 %v6064, -0.28449672
    %v6321 = vadd.f32 %v6065, -0.28449672
    %v6322 = vadd.f32 %v6066, -0.28449672
    %v6323 = vadd.f32 %v6067, -0.28449672
    %v6324 = vadd.f32 %v6068, -0.28449672
    %v6325 = vadd.f32 %v6069, -0.28449672
    %v6326 = vadd.f32 %v6070, -0.28449672
    %v6327 = vadd.f32 %v6071, -0.28449672
    %v6328 = vadd.f32 %v6072, -0.28449672
    %v6329 = vadd.f32 %v6073, -0.28449672
    %v6330 = vadd.f32 %v6074, -0.28449672
    %v6331 = vadd.f32 %v6075, -0.28449672
    %v6332 = vadd.f32 %v6076, -0.28449672
    %v6333 = vadd.f32 %v6077, -0.28449672
    %v6334 = vadd.f32 %v6078, -0.28449672
    %v6335 = vadd.f32 %v6079, -0.28449672
    %v6336 = vadd.f32 %v6080, -0.28449672
    %v6337 = vadd.f32 %v6081, -0.28449672
    %v6338 = vadd.f32 %v6082, -0.28449672
    %v6339 = vadd.f32 %v6083, -0.28449672
    %v6340 = vadd.f32 %v6084, -0.28449672
    %v6341 = vadd.f32 %v6085, -0.28449672
    %v6342 = vadd.f32 %v6086, -0.28449672
    %v6343 = vadd.f32 %v6087, -0.28449672
    %v6344 = vadd.f32 %v6088, -0.28449672
    %v6345 = vadd.f32 %v6089, -0.28449672
    %v6346 = vadd.f32 %v6090, -0.28449672
    %v6347 = vadd.f32 %v6091, -0.28449672
    %v6348 = vadd.f32 %v6092, -0.28449672
    %v6349 = vadd.f32 %v6093, -0.28449672
    %v6350 = vadd.f32 %v6094, -0.28449672
    %v6351 = vadd.f32 %v6095, -0.28449672
    %v6352 = vadd.f32 %v6096, -0.28449672
    %v6353 = vadd.f32 %v6097, -0.28449672
    %v6354 = vadd.f32 %v6098, -0.28449672
    %v6355 = vadd.f32 %v6099, -0.28449672
    %v6356 = vadd.f32 %v6100, -0.28449672
    %v6357 = vadd.f32 %v6101, -0.28449672
    %v6358 = vadd.f32 %v6102, -0.28449672
    %v6359 = vadd.f32 %v6103, -0.28449672
    %v6360 = vadd.f32 %v6104, -0.28449672
    %v6361 = vadd.f32 %v6105, -0.28449672
    %v6362 = vadd.f32 %v6106, -0.28449672
    %v6363 = vadd.f32 %v6107, -0.28449672
    %v6364 = vadd.f32 %v6108, -0.28449672
    %v6365 = vadd.f32 %v6109, -0.28449672
    %v6366 = vadd.f32 %v6110, -0.28449672
    %v6367 = vadd.f32 %v6111, -0.28449672
    %v6368 = vadd.f32 %v6112, -0.28449672
    %v6369 = vadd.f32 %v6113, -0.28449672
    %v6370 = vadd.f32 %v6114, -0.28449672
    %v6371 = vadd.f32 %v6115, -0.28449672
    %v6372 = vadd.f32 %v6116, -0.28449672
    %v6373 = vadd.f32 %v6117, -0.28449672
    %v6374 = vadd.f32 %v6118, -0.28449672
    %v6375 = vadd.f32 %v6119, -0.28449672
    %v6376 = vadd.f32 %v6120, -0.28449672
    %v6377 = vadd.f32 %v6121, -0.28449672
    %v6378 = vadd.f32 %v6122, -0.28449672
    %v6379 = vadd.f32 %v6123, -0.28449672
    %v6380 = vadd.f32 %v6124, -0.28449672
    %v6381 = vadd.f32 %v6125, -0.28449672
    %v6382 = vadd.f32 %v6126, -0.28449672
    %v6383 = vadd.f32 %v6127, -0.28449672
    %v6384 = vadd.f32 %v6128, -0.28449672
    %v6385 = vadd.f32 %v6129, -0.28449672
    %v6386 = vadd.f32 %v6130, -0.28449672
    %v6387 = vadd.f32 %v6131, -0.28449672
    %v6388 = vadd.f32 %v6132, -0.28449672
    %v6389 = vadd.f32 %v6133, -0.28449672
    %v6390 = vadd.f32 %v6134, -0.28449672
    %v6391 = vadd.f32 %v6135, -0.28449672
    %v6392 = vadd.f32 %v6136, -0.28449672
    %v6393 = vadd.f32 %v6137, -0.28449672
    %v6394 = vadd.f32 %v6138, -0.28449672
    %v6395 = vadd.f32 %v6139, -0.28449672
    %v6396 = vadd.f32 %v6140, -0.28449672
    %v6397 = vadd.f32 %v6141, -0.28449672
    %v6398 = vadd.f32 %v6142, -0.28449672
    %v6399 = vadd.f32 %v6143, -0.28449672
    %v6400 = vadd.f32 %v6144, -0.28449672
    %v6401 = vadd.f32 %v6145, -0.28449672
    %v6402 = vadd.f32 %v6146, -0.28449672
    %v6403 = vadd.f32 %v6147, -0.28449672
    %v6404 = vadd.f32 %v6148, -0.28449672
    %v6405 = vadd.f32 %v6149, -0.28449672
    %v6406 = vadd.f32 %v6150, -0.28449672
    %v6407 = vadd.f32 %v6151, -0.28449672
    %v6408 = vadd.f32 %v6152, -0.28449672
    %v6409 = vadd.f32 %v6153, -0.28449672
    %v6410 = vadd.f32 %v6154, -0.28449672
    %v6411 = vadd.f32 %v6155, -0.28449672
    %v6412 = vadd.f32 %v6156, -0.28449672
    %v6413 = vadd.f32 %v6157, -0.28449672
    %v6414 = vadd.f32 %v6158, -0.28449672
    %v6415 = vadd.f32 %v6159, -0.28449672
    %v6416 = vadd.f32 %v6160, -0.28449672
    %v6417 = vadd.f32 %v6161, -0.28449672
    %v6418 = vadd.f32 %v6162, -0.28449672
    %v6419 = vadd.f32 %v6163, -0.28449672
    %v6420 = vadd.f32 %v6164, -0.28449672
    %v6421 = vadd.f32 %v6165, -0.28449672
    %v6422 = vadd.f32 %v6166, -0.28449672
    %v6423 = vadd.f32 %v6167, -0.28449672
    %v6424 = vadd.f32 %v6168, -0.28449672
    %v6425 = vadd.f32 %v6169, -0.28449672
    %v6426 = vadd.f32 %v6170, -0.28449672
    %v6427 = vadd.f32 %v6171, -0.28449672
    %v6428 = vadd.f32 %v6172, -0.28449672
    %v6429 = vadd.f32 %v6173, -0.28449672
    %v6430 = vadd.f32 %v6174, -0.28449672
    %v6431 = vadd.f32 %v6175, -0.28449672
    %v6432 = vadd.f32 %v6176, -0.28449672
    %v6433 = vadd.f32 %v6177, -0.28449672
    %v6434 = vadd.f32 %v6178, -0.28449672
    %v6435 = vadd.f32 %v6179, -0.28449672
    %v6436 = vadd.f32 %v6180, -0.28449672
    %v6437 = vadd.f32 %v6181, -0.28449672
    %v6438 = vadd.f32 %v6182, -0.28449672
    %v6439 = vadd.f32 %v6183, -0.28449672
    %v6440 = vadd.f32 %v6184, -0.28449672
    %v6441 = vadd.f32 %v6185, -0.28449672
    %v6442 = vadd.f32 %v6186, -0.28449672
    %v6443 = vadd.f32 %v6187, -0.28449672
    %v6444 = vadd.f32 %v6188, -0.28449672
    %v6445 = vadd.f32 %v6189, -0.28449672
    %v6446 = vadd.f32 %v6190, -0.28449672
    %v6447 = vadd.f32 %v6191, -0.28449672
    %v6448 = vadd.f32 %v6192, -0.28449672
    %v6449 = vadd.f32 %v6193, -0.28449672
    %v6450 = vadd.f32 %v6194, -0.28449672
    %v6451 = vadd.f32 %v6195, -0.28449672
    %v6452 = vadd.f32 %v6196, -0.28449672
    %v6453 = vadd.f32 %v6197, -0.28449672
    %v6454 = vadd.f32 %v6198, -0.28449672
    %v6455 = vadd.f32 %v6199, -0.28449672
    %v6456 = vadd.f32 %v6200, -0.28449672
    %v6457 = vadd.f32 %v6201, -0.28449672
    %v6458 = vadd.f32 %v6202, -0.28449672
    %v6459 = vadd.f32 %v6203, -0.28449672
    %v6460 = vadd.f32 %v6204, -0.28449672
    %v6461 = vadd.f32 %v6205, -0.28449672
    %v6462 = vadd.f32 %v6206, -0.28449672
    %v6463 = vadd.f32 %v6207, -0.28449672
    %v6464 = vadd.f32 %v6208, -0.28449672
    %v6465 = vadd.f32 %v6209, -0.28449672
    %v6466 = vadd.f32 %v6210, -0.28449672
    %v6467 = vadd.f32 %v6211, -0.28449672
    %v6468 = vadd.f32 %v6212, -0.28449672
    %v6469 = vadd.f32 %v6213, -0.28449672
    %v6470 = vadd.f32 %v6214, -0.28449672
    %v6471 = vadd.f32 %v6215, -0.28449672
    %v6472 = vadd.f32 %v6216, -0.28449672
    %v6473 = vadd.f32 %v6217, -0.28449672
    %v6474 = vadd.f32 %v6218, -0.28449672
    %v6475 = vadd.f32 %v6219, -0.28449672
    %v6476 = vadd.f32 %v6220, -0.28449672
    %v6477 = vadd.f32 %v6221, -0.28449672
    %v6478 = vadd.f32 %v6222, -0.28449672
    %v6479 = vadd.f32 %v6223, -0.28449672
    %v6480 = vadd.f32 %v6224, -0.28449672
    %v6481 = vadd.f32 %v6225, -0.28449672
    %v6482 = vadd.f32 %v6226, -0.28449672
    %v6483 = vadd.f32 %v6227, -0.28449672
    %v6484 = vadd.f32 %v6228, -0.28449672
    %v6485 = vadd.f32 %v6229, -0.28449672
    %v6486 = vadd.f32 %v6230, -0.28449672
    %v6487 = vadd.f32 %v6231, -0.28449672
    %v6488 = vadd.f32 %v6232, -0.28449672
    %v6489 = vadd.f32 %v6233, -0.28449672
    %v6490 = vadd.f32 %v6234, -0.28449672
    %v6491 = vadd.f32 %v6235, -0.28449672
    %v6492 = vadd.f32 %v6236, -0.28449672
    %v6493 = vadd.f32 %v6237, -0.28449672
    %v6494 = vadd.f32 %v6238, -0.28449672
    %v6495 = vadd.f32 %v6239, -0.28449672
    %v6496 = vadd.f32 %v6240, -0.28449672
    %v6497 = vadd.f32 %v6241, -0.28449672
    %v6498 = vadd.f32 %v6242, -0.28449672
    %v6499 = vadd.f32 %v6243, -0.28449672
    %v6500 = vadd.f32 %v6244, -0.28449672
    %v6501 = vadd.f32 %v6245, -0.28449672
    %v6502 = vadd.f32 %v6246, -0.28449672
    %v6503 = vadd.f32 %v6247, -0.28449672
    %v6504 = vadd.f32 %v6248, -0.28449672
    %v6505 = vadd.f32 %v6249, -0.28449672
    %v6506 = vadd.f32 %v6250, -0.28449672
    %v6507 = vadd.f32 %v6251, -0.28449672
    %v6508 = vadd.f32 %v6252, -0.28449672
    %v6509 = vadd.f32 %v6253, -0.28449672
    %v6510 = vadd.f32 %v6254, -0.28449672
    %v6511 = vadd.f32 %v6255, -0.28449672
    %v6512 = vadd.f32 %v6256, -0.28449672
    %v6513 = vadd.f32 %v6257, -0.28449672
    %v6514 = vadd.f32 %v6258, -0.28449672
    %v6515 = vadd.f32 %v6259, -0.28449672
    %v6516 = vadd.f32 %v6260, -0.28449672
    %v6517 = vadd.f32 %v6261, -0.28449672
    %v6518 = vadd.f32 %v6262, -0.28449672
    %v6519 = vadd.f32 %v6263, -0.28449672
    %v6520 = vadd.f32 %v6264, -0.28449672
    %v6521 = vadd.f32 %v6265, -0.28449672
    %v6522 = vadd.f32 %v6266, -0.28449672
    %v6523 = vadd.f32 %v6267, -0.28449672
    %v6524 = vadd.f32 %v6268, -0.28449672
    %v6525 = vadd.f32 %v6269, -0.28449672
    %v6526 = vadd.f32 %v6270, -0.28449672
    %v6527 = vadd.f32 %v6271, -0.28449672
    %v6528 = vadd.f32 %v6272, -0.28449672
    %v6529 = vadd.f32 %v6273, -0.28449672
    %v6530 = vadd.f32 %v6274, -0.28449672
    %v6531 = vadd.f32 %v6275, -0.28449672
    %v6532 = vadd.f32 %v6276, -0.28449672
    %v6533 = vadd.f32 %v6277, -0.28449672
    %v6534 = vadd.f32 %v6278, -0.28449672
    %v6535 = vadd.f32 %v6279, -0.28449672
    %v6536 = vadd.f32 %v6280, -0.28449672
    %v6537 = vadd.f32 %v6281, -0.28449672
    %v6538 = vadd.f32 %v6282, -0.28449672
    %v6539 = vadd.f32 %v6283, -0.28449672
    %v6540 = vadd.f32 %v6284, -0.28449672
    %v6541 = vadd.f32 %v6285, -0.28449672
    %v6542 = vadd.f32 %v6286, -0.28449672
    %v6543 = vadd.f32 %v6287, -0.28449672
    %v6544 = vadd.f32 %v6288, -0.28449672
    %v6545 = vadd.f32 %v6289, -0.28449672
    %v6546 = vadd.f32 %v6290, -0.28449672
    %v6547 = vadd.f32 %v6291, -0.28449672
    %v6548 = vadd.f32 %v6292, -0.28449672
    %v6549 = vadd.f32 %v6293, -0.28449672
    %v6550 = vadd.f32 %v6294, -0.28449672
    %v6551 = vadd.f32 %v6295, -0.28449672
    %v6552 = vadd.f32 %v6296, -0.28449672
    %v6553 = vadd.f32 %v6297, -0.28449672
    %v6554 = vadd.f32 %v6298, -0.28449672
    %v6555 = vadd.f32 %v6299, -0.28449672
    %v6556 = vadd.f32 %v6300, -0.28449672
    %v6557 = vadd.f32 %v6301, -0.28449672
    %v6558 = vadd.f32 %v6302, -0.28449672
    %v6559 = vadd.f32 %v6303, -0.28449672
    %v6560 = vadd.f32 %v6304, -0.28449672
    %v6561 = vadd.f32 %v6305, -0.28449672
    %v6562 = vadd.f32 %v6306, -0.28449672
    %v6563 = vadd.f32 %v6307, -0.28449672
    %v6564 = vadd.f32 %v6308, -0.28449672
    %v6565 = vadd.f32 %v6309, -0.28449672
    %v6566 = vadd.f32 %v6310, -0.28449672
    %v6567 = vadd.f32 %v6311, -0.28449672
    %v6568 = vadd.f32 %v6312, -0.28449672
    %v6569 = vadd.f32 %v6313, -0.28449672
    %v6570 = vadd.f32 %v6314, -0.28449672
    %v6571 = vadd.f32 %v6315, -0.28449672
    %v6572 = vadd.f32 %v6316, -0.28449672
    %v6573 = vmul.f32 %v6317, %v4526
    %v6574 = vmul.f32 %v6318, %v4528
    %v6575 = vmul.f32 %v6319, %v4530
    %v6576 = vmul.f32 %v6320, %v4532
    %v6577 = vmul.f32 %v6321, %v4534
    %v6578 = vmul.f32 %v6322, %v4536
    %v6579 = vmul.f32 %v6323, %v4538
    %v6580 = vmul.f32 %v6324, %v4540
    %v6581 = vmul.f32 %v6325, %v4542
    %v6582 = vmul.f32 %v6326, %v4544
    %v6583 = vmul.f32 %v6327, %v4546
    %v6584 = vmul.f32 %v6328, %v4548
    %v6585 = vmul.f32 %v6329, %v4550
    %v6586 = vmul.f32 %v6330, %v4552
    %v6587 = vmul.f32 %v6331, %v4554
    %v6588 = vmul.f32 %v6332, %v4556
    %v6589 = vmul.f32 %v6333, %v4558
    %v6590 = vmul.f32 %v6334, %v4560
    %v6591 = vmul.f32 %v6335, %v4562
    %v6592 = vmul.f32 %v6336, %v4564
    %v6593 = vmul.f32 %v6337, %v4566
    %v6594 = vmul.f32 %v6338, %v4568
    %v6595 = vmul.f32 %v6339, %v4570
    %v6596 = vmul.f32 %v6340, %v4572
    %v6597 = vmul.f32 %v6341, %v4574
    %v6598 = vmul.f32 %v6342, %v4576
    %v6599 = vmul.f32 %v6343, %v4578
    %v6600 = vmul.f32 %v6344, %v4580
    %v6601 = vmul.f32 %v6345, %v4582
    %v6602 = vmul.f32 %v6346, %v4584
    %v6603 = vmul.f32 %v6347, %v4586
    %v6604 = vmul.f32 %v6348, %v4588
    %v6605 = vmul.f32 %v6349, %v4590
    %v6606 = vmul.f32 %v6350, %v4592
    %v6607 = vmul.f32 %v6351, %v4594
    %v6608 = vmul.f32 %v6352, %v4596
    %v6609 = vmul.f32 %v6353, %v4598
    %v6610 = vmul.f32 %v6354, %v4600
    %v6611 = vmul.f32 %v6355, %v4602
    %v6612 = vmul.f32 %v6356, %v4604
    %v6613 = vmul.f32 %v6357, %v4606
    %v6614 = vmul.f32 %v6358, %v4608
    %v6615 = vmul.f32 %v6359, %v4610
    %v6616 = vmul.f32 %v6360, %v4612
    %v6617 = vmul.f32 %v6361, %v4614
    %v6618 = vmul.f32 %v6362, %v4616
    %v6619 = vmul.f32 %v6363, %v4618
    %v6620 = vmul.f32 %v6364, %v4620
    %v6621 = vmul.f32 %v6365, %v4622
    %v6622 = vmul.f32 %v6366, %v4624
    %v6623 = vmul.f32 %v6367, %v4626
    %v6624 = vmul.f32 %v6368, %v4628
    %v6625 = vmul.f32 %v6369, %v4630
    %v6626 = vmul.f32 %v6370, %v4632
    %v6627 = vmul.f32 %v6371, %v4634
    %v6628 = vmul.f32 %v6372, %v4636
    %v6629 = vmul.f32 %v6373, %v4638
    %v6630 = vmul.f32 %v6374, %v4640
    %v6631 = vmul.f32 %v6375, %v4642
    %v6632 = vmul.f32 %v6376, %v4644
    %v6633 = vmul.f32 %v6377, %v4646
    %v6634 = vmul.f32 %v6378, %v4648
    %v6635 = vmul.f32 %v6379, %v4650
    %v6636 = vmul.f32 %v6380, %v4652
    %v6637 = vmul.f32 %v6381, %v4654
    %v6638 = vmul.f32 %v6382, %v4656
    %v6639 = vmul.f32 %v6383, %v4658
    %v6640 = vmul.f32 %v6384, %v4660
    %v6641 = vmul.f32 %v6385, %v4662
    %v6642 = vmul.f32 %v6386, %v4664
    %v6643 = vmul.f32 %v6387, %v4666
    %v6644 = vmul.f32 %v6388, %v4668
    %v6645 = vmul.f32 %v6389, %v4670
    %v6646 = vmul.f32 %v6390, %v4672
    %v6647 = vmul.f32 %v6391, %v4674
    %v6648 = vmul.f32 %v6392, %v4676
    %v6649 = vmul.f32 %v6393, %v4678
    %v6650 = vmul.f32 %v6394, %v4680
    %v6651 = vmul.f32 %v6395, %v4682
    %v6652 = vmul.f32 %v6396, %v4684
    %v6653 = vmul.f32 %v6397, %v4686
    %v6654 = vmul.f32 %v6398, %v4688
    %v6655 = vmul.f32 %v6399, %v4690
    %v6656 = vmul.f32 %v6400, %v4692
    %v6657 = vmul.f32 %v6401, %v4694
    %v6658 = vmul.f32 %v6402, %v4696
    %v6659 = vmul.f32 %v6403, %v4698
    %v6660 = vmul.f32 %v6404, %v4700
    %v6661 = vmul.f32 %v6405, %v4702
    %v6662 = vmul.f32 %v6406, %v4704
    %v6663 = vmul.f32 %v6407, %v4706
    %v6664 = vmul.f32 %v6408, %v4708
    %v6665 = vmul.f32 %v6409, %v4710
    %v6666 = vmul.f32 %v6410, %v4712
    %v6667 = vmul.f32 %v6411, %v4714
    %v6668 = vmul.f32 %v6412, %v4716
    %v6669 = vmul.f32 %v6413, %v4718
    %v6670 = vmul.f32 %v6414, %v4720
    %v6671 = vmul.f32 %v6415, %v4722
    %v6672 = vmul.f32 %v6416, %v4724
    %v6673 = vmul.f32 %v6417, %v4726
    %v6674 = vmul.f32 %v6418, %v4728
    %v6675 = vmul.f32 %v6419, %v4730
    %v6676 = vmul.f32 %v6420, %v4732
    %v6677 = vmul.f32 %v6421, %v4734
    %v6678 = vmul.f32 %v6422, %v4736
    %v6679 = vmul.f32 %v6423, %v4738
    %v6680 = vmul.f32 %v6424, %v4740
    %v6681 = vmul.f32 %v6425, %v4742
    %v6682 = vmul.f32 %v6426, %v4744
    %v6683 = vmul.f32 %v6427, %v4746
    %v6684 = vmul.f32 %v6428, %v4748
    %v6685 = vmul.f32 %v6429, %v4750
    %v6686 = vmul.f32 %v6430, %v4752
    %v6687 = vmul.f32 %v6431, %v4754
    %v6688 = vmul.f32 %v6432, %v4756
    %v6689 = vmul.f32 %v6433, %v4758
    %v6690 = vmul.f32 %v6434, %v4760
    %v6691 = vmul.f32 %v6435, %v4762
    %v6692 = vmul.f32 %v6436, %v4764
    %v6693 = vmul.f32 %v6437, %v4766
    %v6694 = vmul.f32 %v6438, %v4768
    %v6695 = vmul.f32 %v6439, %v4770
    %v6696 = vmul.f32 %v6440, %v4772
    %v6697 = vmul.f32 %v6441, %v4774
    %v6698 = vmul.f32 %v6442, %v4776
    %v6699 = vmul.f32 %v6443, %v4778
    %v6700 = vmul.f32 %v6444, %v4780
    %v6701 = vmul.f32 %v6445, %v4782
    %v6702 = vmul.f32 %v6446, %v4784
    %v6703 = vmul.f32 %v6447, %v4786
    %v6704 = vmul.f32 %v6448, %v4788
    %v6705 = vmul.f32 %v6449, %v4790
    %v6706 = vmul.f32 %v6450, %v4792
    %v6707 = vmul.f32 %v6451, %v4794
    %v6708 = vmul.f32 %v6452, %v4796
    %v6709 = vmul.f32 %v6453, %v4798
    %v6710 = vmul.f32 %v6454, %v4800
    %v6711 = vmul.f32 %v6455, %v4802
    %v6712 = vmul.f32 %v6456, %v4804
    %v6713 = vmul.f32 %v6457, %v4806
    %v6714 = vmul.f32 %v6458, %v4808
    %v6715 = vmul.f32 %v6459, %v4810
    %v6716 = vmul.f32 %v6460, %v4812
    %v6717 = vmul.f32 %v6461, %v4814
    %v6718 = vmul.f32 %v6462, %v4816
    %v6719 = vmul.f32 %v6463, %v4818
    %v6720 = vmul.f32 %v6464, %v4820
    %v6721 = vmul.f32 %v6465, %v4822
    %v6722 = vmul.f32 %v6466, %v4824
    %v6723 = vmul.f32 %v6467, %v4826
    %v6724 = vmul.f32 %v6468, %v4828
    %v6725 = vmul.f32 %v6469, %v4830
    %v6726 = vmul.f32 %v6470, %v4832
    %v6727 = vmul.f32 %v6471, %v4834
    %v6728 = vmul.f32 %v6472, %v4836
    %v6729 = vmul.f32 %v6473, %v4838
    %v6730 = vmul.f32 %v6474, %v4840
    %v6731 = vmul.f32 %v6475, %v4842
    %v6732 = vmul.f32 %v6476, %v4844
    %v6733 = vmul.f32 %v6477, %v4846
    %v6734 = vmul.f32 %v6478, %v4848
    %v6735 = vmul.f32 %v6479, %v4850
    %v6736 = vmul.f32 %v6480, %v4852
    %v6737 = vmul.f32 %v6481, %v4854
    %v6738 = vmul.f32 %v6482, %v4856
    %v6739 = vmul.f32 %v6483, %v4858
    %v6740 = vmul.f32 %v6484, %v4860
    %v6741 = vmul.f32 %v6485, %v4862
    %v6742 = vmul.f32 %v6486, %v4864
    %v6743 = vmul.f32 %v6487, %v4866
    %v6744 = vmul.f32 %v6488, %v4868
    %v6745 = vmul.f32 %v6489, %v4870
    %v6746 = vmul.f32 %v6490, %v4872
    %v6747 = vmul.f32 %v6491, %v4874
    %v6748 = vmul.f32 %v6492, %v4876
    %v6749 = vmul.f32 %v6493, %v4878
    %v6750 = vmul.f32 %v6494, %v4880
    %v6751 = vmul.f32 %v6495, %v4882
    %v6752 = vmul.f32 %v6496, %v4884
    %v6753 = vmul.f32 %v6497, %v4886
    %v6754 = vmul.f32 %v6498, %v4888
    %v6755 = vmul.f32 %v6499, %v4890
    %v6756 = vmul.f32 %v6500, %v4892
    %v6757 = vmul.f32 %v6501, %v4894
    %v6758 = vmul.f32 %v6502, %v4896
    %v6759 = vmul.f32 %v6503, %v4898
    %v6760 = vmul.f32 %v6504, %v4900
    %v6761 = vmul.f32 %v6505, %v4902
    %v6762 = vmul.f32 %v6506, %v4904
    %v6763 = vmul.f32 %v6507, %v4906
    %v6764 = vmul.f32 %v6508, %v4908
    %v6765 = vmul.f32 %v6509, %v4910
    %v6766 = vmul.f32 %v6510, %v4912
    %v6767 = vmul.f32 %v6511, %v4914
    %v6768 = vmul.f32 %v6512, %v4916
    %v6769 = vmul.f32 %v6513, %v4918
    %v6770 = vmul.f32 %v6514, %v4920
    %v6771 = vmul.f32 %v6515, %v4922
    %v6772 = vmul.f32 %v6516, %v4924
    %v6773 = vmul.f32 %v6517, %v4926
    %v6774 = vmul.f32 %v6518, %v4928
    %v6775 = vmul.f32 %v6519, %v4930
    %v6776 = vmul.f32 %v6520, %v4932
    %v6777 = vmul.f32 %v6521, %v4934
    %v6778 = vmul.f32 %v6522, %v4936
    %v6779 = vmul.f32 %v6523, %v4938
    %v6780 = vmul.f32 %v6524, %v4940
    %v6781 = vmul.f32 %v6525, %v4942
    %v6782 = vmul.f32 %v6526, %v4944
    %v6783 = vmul.f32 %v6527, %v4946
    %v6784 = vmul.f32 %v6528, %v4948
    %v6785 = vmul.f32 %v6529, %v4950
    %v6786 = vmul.f32 %v6530, %v4952
    %v6787 = vmul.f32 %v6531, %v4954
    %v6788 = vmul.f32 %v6532, %v4956
    %v6789 = vmul.f32 %v6533, %v4958
    %v6790 = vmul.f32 %v6534, %v4960
    %v6791 = vmul.f32 %v6535, %v4962
    %v6792 = vmul.f32 %v6536, %v4964
    %v6793 = vmul.f32 %v6537, %v4966
    %v6794 = vmul.f32 %v6538, %v4968
    %v6795 = vmul.f32 %v6539, %v4970
    %v6796 = vmul.f32 %v6540, %v4972
    %v6797 = vmul.f32 %v6541, %v4974
    %v6798 = vmul.f32 %v6542, %v4976
    %v6799 = vmul.f32 %v6543, %v4978
    %v6800 = vmul.f32 %v6544, %v4980
    %v6801 = vmul.f32 %v6545, %v4982
    %v6802 = vmul.f32 %v6546, %v4984
    %v6803 = vmul.f32 %v6547, %v4986
    %v6804 = vmul.f32 %v6548, %v4988
    %v6805 = vmul.f32 %v6549, %v4990
    %v6806 = vmul.f32 %v6550, %v4992
    %v6807 = vmul.f32 %v6551, %v4994
    %v6808 = vmul.f32 %v6552, %v4996
    %v6809 = vmul.f32 %v6553, %v4998
    %v6810 = vmul.f32 %v6554, %v5000
    %v6811 = vmul.f32 %v6555, %v5002
    %v6812 = vmul.f32 %v6556, %v5004
    %v6813 = vmul.f32 %v6557, %v5006
    %v6814 = vmul.f32 %v6558, %v5008
    %v6815 = vmul.f32 %v6559, %v5010
    %v6816 = vmul.f32 %v6560, %v5012
    %v6817 = vmul.f32 %v6561, %v5014
    %v6818 = vmul.f32 %v6562, %v5016
    %v6819 = vmul.f32 %v6563, %v5018
    %v6820 = vmul.f32 %v6564, %v5020
    %v6821 = vmul.f32 %v6565, %v5022
    %v6822 = vmul.f32 %v6566, %v5024
    %v6823 = vmul.f32 %v6567, %v5026
    %v6824 = vmul.f32 %v6568, %v5028
    %v6825 = vmul.f32 %v6569, %v5030
    %v6826 = vmul.f32 %v6570, %v5032
    %v6827 = vmul.f32 %v6571, %v5034
    %v6828 = vmul.f32 %v6572, %v5036
    %v6829 = vadd.f32 %v6573, 0.2548296
    %v6830 = vadd.f32 %v6574, 0.2548296
    %v6831 = vadd.f32 %v6575, 0.2548296
    %v6832 = vadd.f32 %v6576, 0.2548296
    %v6833 = vadd.f32 %v6577, 0.2548296
    %v6834 = vadd.f32 %v6578, 0.2548296
    %v6835 = vadd.f32 %v6579, 0.2548296
    %v6836 = vadd.f32 %v6580, 0.2548296
    %v6837 = vadd.f32 %v6581, 0.2548296
    %v6838 = vadd.f32 %v6582, 0.2548296
    %v6839 = vadd.f32 %v6583, 0.2548296
    %v6840 = vadd.f32 %v6584, 0.2548296
    %v6841 = vadd.f32 %v6585, 0.2548296
    %v6842 = vadd.f32 %v6586, 0.2548296
    %v6843 = vadd.f32 %v6587, 0.2548296
    %v6844 = vadd.f32 %v6588, 0.2548296
    %v6845 = vadd.f32 %v6589, 0.2548296
    %v6846 = vadd.f32 %v6590, 0.2548296
    %v6847 = vadd.f32 %v6591, 0.2548296
    %v6848 = vadd.f32 %v6592, 0.2548296
    %v6849 = vadd.f32 %v6593, 0.2548296
    %v6850 = vadd.f32 %v6594, 0.2548296
    %v6851 = vadd.f32 %v6595, 0.2548296
    %v6852 = vadd.f32 %v6596, 0.2548296
    %v6853 = vadd.f32 %v6597, 0.2548296
    %v6854 = vadd.f32 %v6598, 0.2548296
    %v6855 = vadd.f32 %v6599, 0.2548296
    %v6856 = vadd.f32 %v6600, 0.2548296
    %v6857 = vadd.f32 %v6601, 0.2548296
    %v6858 = vadd.f32 %v6602, 0.2548296
    %v6859 = vadd.f32 %v6603, 0.2548296
    %v6860 = vadd.f32 %v6604, 0.2548296
    %v6861 = vadd.f32 %v6605, 0.2548296
    %v6862 = vadd.f32 %v6606, 0.2548296
    %v6863 = vadd.f32 %v6607, 0.2548296
    %v6864 = vadd.f32 %v6608, 0.2548296
    %v6865 = vadd.f32 %v6609, 0.2548296
    %v6866 = vadd.f32 %v6610, 0.2548296
    %v6867 = vadd.f32 %v6611, 0.2548296
    %v6868 = vadd.f32 %v6612, 0.2548296
    %v6869 = vadd.f32 %v6613, 0.2548296
    %v6870 = vadd.f32 %v6614, 0.2548296
    %v6871 = vadd.f32 %v6615, 0.2548296
    %v6872 = vadd.f32 %v6616, 0.2548296
    %v6873 = vadd.f32 %v6617, 0.2548296
    %v6874 = vadd.f32 %v6618, 0.2548296
    %v6875 = vadd.f32 %v6619, 0.2548296
    %v6876 = vadd.f32 %v6620, 0.2548296
    %v6877 = vadd.f32 %v6621, 0.2548296
    %v6878 = vadd.f32 %v6622, 0.2548296
    %v6879 = vadd.f32 %v6623, 0.2548296
    %v6880 = vadd.f32 %v6624, 0.2548296
    %v6881 = vadd.f32 %v6625, 0.2548296
    %v6882 = vadd.f32 %v6626, 0.2548296
    %v6883 = vadd.f32 %v6627, 0.2548296
    %v6884 = vadd.f32 %v6628, 0.2548296
    %v6885 = vadd.f32 %v6629, 0.2548296
    %v6886 = vadd.f32 %v6630, 0.2548296
    %v6887 = vadd.f32 %v6631, 0.2548296
    %v6888 = vadd.f32 %v6632, 0.2548296
    %v6889 = vadd.f32 %v6633, 0.2548296
    %v6890 = vadd.f32 %v6634, 0.2548296
    %v6891 = vadd.f32 %v6635, 0.2548296
    %v6892 = vadd.f32 %v6636, 0.2548296
    %v6893 = vadd.f32 %v6637, 0.2548296
    %v6894 = vadd.f32 %v6638, 0.2548296
    %v6895 = vadd.f32 %v6639, 0.2548296
    %v6896 = vadd.f32 %v6640, 0.2548296
    %v6897 = vadd.f32 %v6641, 0.2548296
    %v6898 = vadd.f32 %v6642, 0.2548296
    %v6899 = vadd.f32 %v6643, 0.2548296
    %v6900 = vadd.f32 %v6644, 0.2548296
    %v6901 = vadd.f32 %v6645, 0.2548296
    %v6902 = vadd.f32 %v6646, 0.2548296
    %v6903 = vadd.f32 %v6647, 0.2548296
    %v6904 = vadd.f32 %v6648, 0.2548296
    %v6905 = vadd.f32 %v6649, 0.2548296
    %v6906 = vadd.f32 %v6650, 0.2548296
    %v6907 = vadd.f32 %v6651, 0.2548296
    %v6908 = vadd.f32 %v6652, 0.2548296
    %v6909 = vadd.f32 %v6653, 0.2548296
    %v6910 = vadd.f32 %v6654, 0.2548296
    %v6911 = vadd.f32 %v6655, 0.2548296
    %v6912 = vadd.f32 %v6656, 0.2548296
    %v6913 = vadd.f32 %v6657, 0.2548296
    %v6914 = vadd.f32 %v6658, 0.2548296
    %v6915 = vadd.f32 %v6659, 0.2548296
    %v6916 = vadd.f32 %v6660, 0.2548296
    %v6917 = vadd.f32 %v6661, 0.2548296
    %v6918 = vadd.f32 %v6662, 0.2548296
    %v6919 = vadd.f32 %v6663, 0.2548296
    %v6920 = vadd.f32 %v6664, 0.2548296
    %v6921 = vadd.f32 %v6665, 0.2548296
    %v6922 = vadd.f32 %v6666, 0.2548296
    %v6923 = vadd.f32 %v6667, 0.2548296
    %v6924 = vadd.f32 %v6668, 0.2548296
    %v6925 = vadd.f32 %v6669, 0.2548296
    %v6926 = vadd.f32 %v6670, 0.2548296
    %v6927 = vadd.f32 %v6671, 0.2548296
    %v6928 = vadd.f32 %v6672, 0.2548296
    %v6929 = vadd.f32 %v6673, 0.2548296
    %v6930 = vadd.f32 %v6674, 0.2548296
    %v6931 = vadd.f32 %v6675, 0.2548296
    %v6932 = vadd.f32 %v6676, 0.2548296
    %v6933 = vadd.f32 %v6677, 0.2548296
    %v6934 = vadd.f32 %v6678, 0.2548296
    %v6935 = vadd.f32 %v6679, 0.2548296
    %v6936 = vadd.f32 %v6680, 0.2548296
    %v6937 = vadd.f32 %v6681, 0.2548296
    %v6938 = vadd.f32 %v6682, 0.2548296
    %v6939 = vadd.f32 %v6683, 0.2548296
    %v6940 = vadd.f32 %v6684, 0.2548296
    %v6941 = vadd.f32 %v6685, 0.2548296
    %v6942 = vadd.f32 %v6686, 0.2548296
    %v6943 = vadd.f32 %v6687, 0.2548296
    %v6944 = vadd.f32 %v6688, 0.2548296
    %v6945 = vadd.f32 %v6689, 0.2548296
    %v6946 = vadd.f32 %v6690, 0.2548296
    %v6947 = vadd.f32 %v6691, 0.2548296
    %v6948 = vadd.f32 %v6692, 0.2548296
    %v6949 = vadd.f32 %v6693, 0.2548296
    %v6950 = vadd.f32 %v6694, 0.2548296
    %v6951 = vadd.f32 %v6695, 0.2548296
    %v6952 = vadd.f32 %v6696, 0.2548296
    %v6953 = vadd.f32 %v6697, 0.2548296
    %v6954 = vadd.f32 %v6698, 0.2548296
    %v6955 = vadd.f32 %v6699, 0.2548296
    %v6956 = vadd.f32 %v6700, 0.2548296
    %v6957 = vadd.f32 %v6701, 0.2548296
    %v6958 = vadd.f32 %v6702, 0.2548296
    %v6959 = vadd.f32 %v6703, 0.2548296
    %v6960 = vadd.f32 %v6704, 0.2548296
    %v6961 = vadd.f32 %v6705, 0.2548296
    %v6962 = vadd.f32 %v6706, 0.2548296
    %v6963 = vadd.f32 %v6707, 0.2548296
    %v6964 = vadd.f32 %v6708, 0.2548296
    %v6965 = vadd.f32 %v6709, 0.2548296
    %v6966 = vadd.f32 %v6710, 0.2548296
    %v6967 = vadd.f32 %v6711, 0.2548296
    %v6968 = vadd.f32 %v6712, 0.2548296
    %v6969 = vadd.f32 %v6713, 0.2548296
    %v6970 = vadd.f32 %v6714, 0.2548296
    %v6971 = vadd.f32 %v6715, 0.2548296
    %v6972 = vadd.f32 %v6716, 0.2548296
    %v6973 = vadd.f32 %v6717, 0.2548296
    %v6974 = vadd.f32 %v6718, 0.2548296
    %v6975 = vadd.f32 %v6719, 0.2548296
    %v6976 = vadd.f32 %v6720, 0.2548296
    %v6977 = vadd.f32 %v6721, 0.2548296
    %v6978 = vadd.f32 %v6722, 0.2548296
    %v6979 = vadd.f32 %v6723, 0.2548296
    %v6980 = vadd.f32 %v6724, 0.2548296
    %v6981 = vadd.f32 %v6725, 0.2548296
    %v6982 = vadd.f32 %v6726, 0.2548296
    %v6983 = vadd.f32 %v6727, 0.2548296
    %v6984 = vadd.f32 %v6728, 0.2548296
    %v6985 = vadd.f32 %v6729, 0.2548296
    %v6986 = vadd.f32 %v6730, 0.2548296
    %v6987 = vadd.f32 %v6731, 0.2548296
    %v6988 = vadd.f32 %v6732, 0.2548296
    %v6989 = vadd.f32 %v6733, 0.2548296
    %v6990 = vadd.f32 %v6734, 0.2548296
    %v6991 = vadd.f32 %v6735, 0.2548296
    %v6992 = vadd.f32 %v6736, 0.2548296
    %v6993 = vadd.f32 %v6737, 0.2548296
    %v6994 = vadd.f32 %v6738, 0.2548296
    %v6995 = vadd.f32 %v6739, 0.2548296
    %v6996 = vadd.f32 %v6740, 0.2548296
    %v6997 = vadd.f32 %v6741, 0.2548296
    %v6998 = vadd.f32 %v6742, 0.2548296
    %v6999 = vadd.f32 %v6743, 0.2548296
    %v7000 = vadd.f32 %v6744, 0.2548296
    %v7001 = vadd.f32 %v6745, 0.2548296
    %v7002 = vadd.f32 %v6746, 0.2548296
    %v7003 = vadd.f32 %v6747, 0.2548296
    %v7004 = vadd.f32 %v6748, 0.2548296
    %v7005 = vadd.f32 %v6749, 0.2548296
    %v7006 = vadd.f32 %v6750, 0.2548296
    %v7007 = vadd.f32 %v6751, 0.2548296
    %v7008 = vadd.f32 %v6752, 0.2548296
    %v7009 = vadd.f32 %v6753, 0.2548296
    %v7010 = vadd.f32 %v6754, 0.2548296
    %v7011 = vadd.f32 %v6755, 0.2548296
    %v7012 = vadd.f32 %v6756, 0.2548296
    %v7013 = vadd.f32 %v6757, 0.2548296
    %v7014 = vadd.f32 %v6758, 0.2548296
    %v7015 = vadd.f32 %v6759, 0.2548296
    %v7016 = vadd.f32 %v6760, 0.2548296
    %v7017 = vadd.f32 %v6761, 0.2548296
    %v7018 = vadd.f32 %v6762, 0.2548296
    %v7019 = vadd.f32 %v6763, 0.2548296
    %v7020 = vadd.f32 %v6764, 0.2548296
    %v7021 = vadd.f32 %v6765, 0.2548296
    %v7022 = vadd.f32 %v6766, 0.2548296
    %v7023 = vadd.f32 %v6767, 0.2548296
    %v7024 = vadd.f32 %v6768, 0.2548296
    %v7025 = vadd.f32 %v6769, 0.2548296
    %v7026 = vadd.f32 %v6770, 0.2548296
    %v7027 = vadd.f32 %v6771, 0.2548296
    %v7028 = vadd.f32 %v6772, 0.2548296
    %v7029 = vadd.f32 %v6773, 0.2548296
    %v7030 = vadd.f32 %v6774, 0.2548296
    %v7031 = vadd.f32 %v6775, 0.2548296
    %v7032 = vadd.f32 %v6776, 0.2548296
    %v7033 = vadd.f32 %v6777, 0.2548296
    %v7034 = vadd.f32 %v6778, 0.2548296
    %v7035 = vadd.f32 %v6779, 0.2548296
    %v7036 = vadd.f32 %v6780, 0.2548296
    %v7037 = vadd.f32 %v6781, 0.2548296
    %v7038 = vadd.f32 %v6782, 0.2548296
    %v7039 = vadd.f32 %v6783, 0.2548296
    %v7040 = vadd.f32 %v6784, 0.2548296
    %v7041 = vadd.f32 %v6785, 0.2548296
    %v7042 = vadd.f32 %v6786, 0.2548296
    %v7043 = vadd.f32 %v6787, 0.2548296
    %v7044 = vadd.f32 %v6788, 0.2548296
    %v7045 = vadd.f32 %v6789, 0.2548296
    %v7046 = vadd.f32 %v6790, 0.2548296
    %v7047 = vadd.f32 %v6791, 0.2548296
    %v7048 = vadd.f32 %v6792, 0.2548296
    %v7049 = vadd.f32 %v6793, 0.2548296
    %v7050 = vadd.f32 %v6794, 0.2548296
    %v7051 = vadd.f32 %v6795, 0.2548296
    %v7052 = vadd.f32 %v6796, 0.2548296
    %v7053 = vadd.f32 %v6797, 0.2548296
    %v7054 = vadd.f32 %v6798, 0.2548296
    %v7055 = vadd.f32 %v6799, 0.2548296
    %v7056 = vadd.f32 %v6800, 0.2548296
    %v7057 = vadd.f32 %v6801, 0.2548296
    %v7058 = vadd.f32 %v6802, 0.2548296
    %v7059 = vadd.f32 %v6803, 0.2548296
    %v7060 = vadd.f32 %v6804, 0.2548296
    %v7061 = vadd.f32 %v6805, 0.2548296
    %v7062 = vadd.f32 %v6806, 0.2548296
    %v7063 = vadd.f32 %v6807, 0.2548296
    %v7064 = vadd.f32 %v6808, 0.2548296
    %v7065 = vadd.f32 %v6809, 0.2548296
    %v7066 = vadd.f32 %v6810, 0.2548296
    %v7067 = vadd.f32 %v6811, 0.2548296
    %v7068 = vadd.f32 %v6812, 0.2548296
    %v7069 = vadd.f32 %v6813, 0.2548296
    %v7070 = vadd.f32 %v6814, 0.2548296
    %v7071 = vadd.f32 %v6815, 0.2548296
    %v7072 = vadd.f32 %v6816, 0.2548296
    %v7073 = vadd.f32 %v6817, 0.2548296
    %v7074 = vadd.f32 %v6818, 0.2548296
    %v7075 = vadd.f32 %v6819, 0.2548296
    %v7076 = vadd.f32 %v6820, 0.2548296
    %v7077 = vadd.f32 %v6821, 0.2548296
    %v7078 = vadd.f32 %v6822, 0.2548296
    %v7079 = vadd.f32 %v6823, 0.2548296
    %v7080 = vadd.f32 %v6824, 0.2548296
    %v7081 = vadd.f32 %v6825, 0.2548296
    %v7082 = vadd.f32 %v6826, 0.2548296
    %v7083 = vadd.f32 %v6827, 0.2548296
    %v7084 = vadd.f32 %v6828, 0.2548296
    %v7085 = vmul.f32 %v6829, %v4526
    %v7086 = vmul.f32 %v6830, %v4528
    %v7087 = vmul.f32 %v6831, %v4530
    %v7088 = vmul.f32 %v6832, %v4532
    %v7089 = vmul.f32 %v6833, %v4534
    %v7090 = vmul.f32 %v6834, %v4536
    %v7091 = vmul.f32 %v6835, %v4538
    %v7092 = vmul.f32 %v6836, %v4540
    %v7093 = vmul.f32 %v6837, %v4542
    %v7094 = vmul.f32 %v6838, %v4544
    %v7095 = vmul.f32 %v6839, %v4546
    %v7096 = vmul.f32 %v6840, %v4548
    %v7097 = vmul.f32 %v6841, %v4550
    %v7098 = vmul.f32 %v6842, %v4552
    %v7099 = vmul.f32 %v6843, %v4554
    %v7100 = vmul.f32 %v6844, %v4556
    %v7101 = vmul.f32 %v6845, %v4558
    %v7102 = vmul.f32 %v6846, %v4560
    %v7103 = vmul.f32 %v6847, %v4562
    %v7104 = vmul.f32 %v6848, %v4564
    %v7105 = vmul.f32 %v6849, %v4566
    %v7106 = vmul.f32 %v6850, %v4568
    %v7107 = vmul.f32 %v6851, %v4570
    %v7108 = vmul.f32 %v6852, %v4572
    %v7109 = vmul.f32 %v6853, %v4574
    %v7110 = vmul.f32 %v6854, %v4576
    %v7111 = vmul.f32 %v6855, %v4578
    %v7112 = vmul.f32 %v6856, %v4580
    %v7113 = vmul.f32 %v6857, %v4582
    %v7114 = vmul.f32 %v6858, %v4584
    %v7115 = vmul.f32 %v6859, %v4586
    %v7116 = vmul.f32 %v6860, %v4588
    %v7117 = vmul.f32 %v6861, %v4590
    %v7118 = vmul.f32 %v6862, %v4592
    %v7119 = vmul.f32 %v6863, %v4594
    %v7120 = vmul.f32 %v6864, %v4596
    %v7121 = vmul.f32 %v6865, %v4598
    %v7122 = vmul.f32 %v6866, %v4600
    %v7123 = vmul.f32 %v6867, %v4602
    %v7124 = vmul.f32 %v6868, %v4604
    %v7125 = vmul.f32 %v6869, %v4606
    %v7126 = vmul.f32 %v6870, %v4608
    %v7127 = vmul.f32 %v6871, %v4610
    %v7128 = vmul.f32 %v6872, %v4612
    %v7129 = vmul.f32 %v6873, %v4614
    %v7130 = vmul.f32 %v6874, %v4616
    %v7131 = vmul.f32 %v6875, %v4618
    %v7132 = vmul.f32 %v6876, %v4620
    %v7133 = vmul.f32 %v6877, %v4622
    %v7134 = vmul.f32 %v6878, %v4624
    %v7135 = vmul.f32 %v6879, %v4626
    %v7136 = vmul.f32 %v6880, %v4628
    %v7137 = vmul.f32 %v6881, %v4630
    %v7138 = vmul.f32 %v6882, %v4632
    %v7139 = vmul.f32 %v6883, %v4634
    %v7140 = vmul.f32 %v6884, %v4636
    %v7141 = vmul.f32 %v6885, %v4638
    %v7142 = vmul.f32 %v6886, %v4640
    %v7143 = vmul.f32 %v6887, %v4642
    %v7144 = vmul.f32 %v6888, %v4644
    %v7145 = vmul.f32 %v6889, %v4646
    %v7146 = vmul.f32 %v6890, %v4648
    %v7147 = vmul.f32 %v6891, %v4650
    %v7148 = vmul.f32 %v6892, %v4652
    %v7149 = vmul.f32 %v6893, %v4654
    %v7150 = vmul.f32 %v6894, %v4656
    %v7151 = vmul.f32 %v6895, %v4658
    %v7152 = vmul.f32 %v6896, %v4660
    %v7153 = vmul.f32 %v6897, %v4662
    %v7154 = vmul.f32 %v6898, %v4664
    %v7155 = vmul.f32 %v6899, %v4666
    %v7156 = vmul.f32 %v6900, %v4668
    %v7157 = vmul.f32 %v6901, %v4670
    %v7158 = vmul.f32 %v6902, %v4672
    %v7159 = vmul.f32 %v6903, %v4674
    %v7160 = vmul.f32 %v6904, %v4676
    %v7161 = vmul.f32 %v6905, %v4678
    %v7162 = vmul.f32 %v6906, %v4680
    %v7163 = vmul.f32 %v6907, %v4682
    %v7164 = vmul.f32 %v6908, %v4684
    %v7165 = vmul.f32 %v6909, %v4686
    %v7166 = vmul.f32 %v6910, %v4688
    %v7167 = vmul.f32 %v6911, %v4690
    %v7168 = vmul.f32 %v6912, %v4692
    %v7169 = vmul.f32 %v6913, %v4694
    %v7170 = vmul.f32 %v6914, %v4696
    %v7171 = vmul.f32 %v6915, %v4698
    %v7172 = vmul.f32 %v6916, %v4700
    %v7173 = vmul.f32 %v6917, %v4702
    %v7174 = vmul.f32 %v6918, %v4704
    %v7175 = vmul.f32 %v6919, %v4706
    %v7176 = vmul.f32 %v6920, %v4708
    %v7177 = vmul.f32 %v6921, %v4710
    %v7178 = vmul.f32 %v6922, %v4712
    %v7179 = vmul.f32 %v6923, %v4714
    %v7180 = vmul.f32 %v6924, %v4716
    %v7181 = vmul.f32 %v6925, %v4718
    %v7182 = vmul.f32 %v6926, %v4720
    %v7183 = vmul.f32 %v6927, %v4722
    %v7184 = vmul.f32 %v6928, %v4724
    %v7185 = vmul.f32 %v6929, %v4726
    %v7186 = vmul.f32 %v6930, %v4728
    %v7187 = vmul.f32 %v6931, %v4730
    %v7188 = vmul.f32 %v6932, %v4732
    %v7189 = vmul.f32 %v6933, %v4734
    %v7190 = vmul.f32 %v6934, %v4736
    %v7191 = vmul.f32 %v6935, %v4738
    %v7192 = vmul.f32 %v6936, %v4740
    %v7193 = vmul.f32 %v6937, %v4742
    %v7194 = vmul.f32 %v6938, %v4744
    %v7195 = vmul.f32 %v6939, %v4746
    %v7196 = vmul.f32 %v6940, %v4748
    %v7197 = vmul.f32 %v6941, %v4750
    %v7198 = vmul.f32 %v6942, %v4752
    %v7199 = vmul.f32 %v6943, %v4754
    %v7200 = vmul.f32 %v6944, %v4756
    %v7201 = vmul.f32 %v6945, %v4758
    %v7202 = vmul.f32 %v6946, %v4760
    %v7203 = vmul.f32 %v6947, %v4762
    %v7204 = vmul.f32 %v6948, %v4764
    %v7205 = vmul.f32 %v6949, %v4766
    %v7206 = vmul.f32 %v6950, %v4768
    %v7207 = vmul.f32 %v6951, %v4770
    %v7208 = vmul.f32 %v6952, %v4772
    %v7209 = vmul.f32 %v6953, %v4774
    %v7210 = vmul.f32 %v6954, %v4776
    %v7211 = vmul.f32 %v6955, %v4778
    %v7212 = vmul.f32 %v6956, %v4780
    %v7213 = vmul.f32 %v6957, %v4782
    %v7214 = vmul.f32 %v6958, %v4784
    %v7215 = vmul.f32 %v6959, %v4786
    %v7216 = vmul.f32 %v6960, %v4788
    %v7217 = vmul.f32 %v6961, %v4790
    %v7218 = vmul.f32 %v6962, %v4792
    %v7219 = vmul.f32 %v6963, %v4794
    %v7220 = vmul.f32 %v6964, %v4796
    %v7221 = vmul.f32 %v6965, %v4798
    %v7222 = vmul.f32 %v6966, %v4800
    %v7223 = vmul.f32 %v6967, %v4802
    %v7224 = vmul.f32 %v6968, %v4804
    %v7225 = vmul.f32 %v6969, %v4806
    %v7226 = vmul.f32 %v6970, %v4808
    %v7227 = vmul.f32 %v6971, %v4810
    %v7228 = vmul.f32 %v6972, %v4812
    %v7229 = vmul.f32 %v6973, %v4814
    %v7230 = vmul.f32 %v6974, %v4816
    %v7231 = vmul.f32 %v6975, %v4818
    %v7232 = vmul.f32 %v6976, %v4820
    %v7233 = vmul.f32 %v6977, %v4822
    %v7234 = vmul.f32 %v6978, %v4824
    %v7235 = vmul.f32 %v6979, %v4826
    %v7236 = vmul.f32 %v6980, %v4828
    %v7237 = vmul.f32 %v6981, %v4830
    %v7238 = vmul.f32 %v6982, %v4832
    %v7239 = vmul.f32 %v6983, %v4834
    %v7240 = vmul.f32 %v6984, %v4836
    %v7241 = vmul.f32 %v6985, %v4838
    %v7242 = vmul.f32 %v6986, %v4840
    %v7243 = vmul.f32 %v6987, %v4842
    %v7244 = vmul.f32 %v6988, %v4844
    %v7245 = vmul.f32 %v6989, %v4846
    %v7246 = vmul.f32 %v6990, %v4848
    %v7247 = vmul.f32 %v6991, %v4850
    %v7248 = vmul.f32 %v6992, %v4852
    %v7249 = vmul.f32 %v6993, %v4854
    %v7250 = vmul.f32 %v6994, %v4856
    %v7251 = vmul.f32 %v6995, %v4858
    %v7252 = vmul.f32 %v6996, %v4860
    %v7253 = vmul.f32 %v6997, %v4862
    %v7254 = vmul.f32 %v6998, %v4864
    %v7255 = vmul.f32 %v6999, %v4866
    %v7256 = vmul.f32 %v7000, %v4868
    %v7257 = vmul.f32 %v7001, %v4870
    %v7258 = vmul.f32 %v7002, %v4872
    %v7259 = vmul.f32 %v7003, %v4874
    %v7260 = vmul.f32 %v7004, %v4876
    %v7261 = vmul.f32 %v7005, %v4878
    %v7262 = vmul.f32 %v7006, %v4880
    %v7263 = vmul.f32 %v7007, %v4882
    %v7264 = vmul.f32 %v7008, %v4884
    %v7265 = vmul.f32 %v7009, %v4886
    %v7266 = vmul.f32 %v7010, %v4888
    %v7267 = vmul.f32 %v7011, %v4890
    %v7268 = vmul.f32 %v7012, %v4892
    %v7269 = vmul.f32 %v7013, %v4894
    %v7270 = vmul.f32 %v7014, %v4896
    %v7271 = vmul.f32 %v7015, %v4898
    %v7272 = vmul.f32 %v7016, %v4900
    %v7273 = vmul.f32 %v7017, %v4902
    %v7274 = vmul.f32 %v7018, %v4904
    %v7275 = vmul.f32 %v7019, %v4906
    %v7276 = vmul.f32 %v7020, %v4908
    %v7277 = vmul.f32 %v7021, %v4910
    %v7278 = vmul.f32 %v7022, %v4912
    %v7279 = vmul.f32 %v7023, %v4914
    %v7280 = vmul.f32 %v7024, %v4916
    %v7281 = vmul.f32 %v7025, %v4918
    %v7282 = vmul.f32 %v7026, %v4920
    %v7283 = vmul.f32 %v7027, %v4922
    %v7284 = vmul.f32 %v7028, %v4924
    %v7285 = vmul.f32 %v7029, %v4926
    %v7286 = vmul.f32 %v7030, %v4928
    %v7287 = vmul.f32 %v7031, %v4930
    %v7288 = vmul.f32 %v7032, %v4932
    %v7289 = vmul.f32 %v7033, %v4934
    %v7290 = vmul.f32 %v7034, %v4936
    %v7291 = vmul.f32 %v7035, %v4938
    %v7292 = vmul.f32 %v7036, %v4940
    %v7293 = vmul.f32 %v7037, %v4942
    %v7294 = vmul.f32 %v7038, %v4944
    %v7295 = vmul.f32 %v7039, %v4946
    %v7296 = vmul.f32 %v7040, %v4948
    %v7297 = vmul.f32 %v7041, %v4950
    %v7298 = vmul.f32 %v7042, %v4952
    %v7299 = vmul.f32 %v7043, %v4954
    %v7300 = vmul.f32 %v7044, %v4956
    %v7301 = vmul.f32 %v7045, %v4958
    %v7302 = vmul.f32 %v7046, %v4960
    %v7303 = vmul.f32 %v7047, %v4962
    %v7304 = vmul.f32 %v7048, %v4964
    %v7305 = vmul.f32 %v7049, %v4966
    %v7306 = vmul.f32 %v7050, %v4968
    %v7307 = vmul.f32 %v7051, %v4970
    %v7308 = vmul.f32 %v7052, %v4972
    %v7309 = vmul.f32 %v7053, %v4974
    %v7310 = vmul.f32 %v7054, %v4976
    %v7311 = vmul.f32 %v7055, %v4978
    %v7312 = vmul.f32 %v7056, %v4980
    %v7313 = vmul.f32 %v7057, %v4982
    %v7314 = vmul.f32 %v7058, %v4984
    %v7315 = vmul.f32 %v7059, %v4986
    %v7316 = vmul.f32 %v7060, %v4988
    %v7317 = vmul.f32 %v7061, %v4990
    %v7318 = vmul.f32 %v7062, %v4992
    %v7319 = vmul.f32 %v7063, %v4994
    %v7320 = vmul.f32 %v7064, %v4996
    %v7321 = vmul.f32 %v7065, %v4998
    %v7322 = vmul.f32 %v7066, %v5000
    %v7323 = vmul.f32 %v7067, %v5002
    %v7324 = vmul.f32 %v7068, %v5004
    %v7325 = vmul.f32 %v7069, %v5006
    %v7326 = vmul.f32 %v7070, %v5008
    %v7327 = vmul.f32 %v7071, %v5010
    %v7328 = vmul.f32 %v7072, %v5012
    %v7329 = vmul.f32 %v7073, %v5014
    %v7330 = vmul.f32 %v7074, %v5016
    %v7331 = vmul.f32 %v7075, %v5018
    %v7332 = vmul.f32 %v7076, %v5020
    %v7333 = vmul.f32 %v7077, %v5022
    %v7334 = vmul.f32 %v7078, %v5024
    %v7335 = vmul.f32 %v7079, %v5026
    %v7336 = vmul.f32 %v7080, %v5028
    %v7337 = vmul.f32 %v7081, %v5030
    %v7338 = vmul.f32 %v7082, %v5032
    %v7339 = vmul.f32 %v7083, %v5034
    %v7340 = vmul.f32 %v7084, %v5036
    %v7341 = vsub.f32 0.0, %v3757
    %v7342 = vsub.f32 0.0, %v3758
    %v7343 = vsub.f32 0.0, %v3759
    %v7344 = vsub.f32 0.0, %v3760
    %v7345 = vsub.f32 0.0, %v3761
    %v7346 = vsub.f32 0.0, %v3762
    %v7347 = vsub.f32 0.0, %v3763
    %v7348 = vsub.f32 0.0, %v3764
    %v7349 = vsub.f32 0.0, %v3765
    %v7350 = vsub.f32 0.0, %v3766
    %v7351 = vsub.f32 0.0, %v3767
    %v7352 = vsub.f32 0.0, %v3768
    %v7353 = vsub.f32 0.0, %v3769
    %v7354 = vsub.f32 0.0, %v3770
    %v7355 = vsub.f32 0.0, %v3771
    %v7356 = vsub.f32 0.0, %v3772
    %v7357 = vsub.f32 0.0, %v3773
    %v7358 = vsub.f32 0.0, %v3774
    %v7359 = vsub.f32 0.0, %v3775
    %v7360 = vsub.f32 0.0, %v3776
    %v7361 = vsub.f32 0.0, %v3777
    %v7362 = vsub.f32 0.0, %v3778
    %v7363 = vsub.f32 0.0, %v3779
    %v7364 = vsub.f32 0.0, %v3780
    %v7365 = vsub.f32 0.0, %v3781
    %v7366 = vsub.f32 0.0, %v3782
    %v7367 = vsub.f32 0.0, %v3783
    %v7368 = vsub.f32 0.0, %v3784
    %v7369 = vsub.f32 0.0, %v3785
    %v7370 = vsub.f32 0.0, %v3786
    %v7371 = vsub.f32 0.0, %v3787
    %v7372 = vsub.f32 0.0, %v3788
    %v7373 = vsub.f32 0.0, %v3789
    %v7374 = vsub.f32 0.0, %v3790
    %v7375 = vsub.f32 0.0, %v3791
    %v7376 = vsub.f32 0.0, %v3792
    %v7377 = vsub.f32 0.0, %v3793
    %v7378 = vsub.f32 0.0, %v3794
    %v7379 = vsub.f32 0.0, %v3795
    %v7380 = vsub.f32 0.0, %v3796
    %v7381 = vsub.f32 0.0, %v3797
    %v7382 = vsub.f32 0.0, %v3798
    %v7383 = vsub.f32 0.0, %v3799
    %v7384 = vsub.f32 0.0, %v3800
    %v7385 = vsub.f32 0.0, %v3801
    %v7386 = vsub.f32 0.0, %v3802
    %v7387 = vsub.f32 0.0, %v3803
    %v7388 = vsub.f32 0.0, %v3804
    %v7389 = vsub.f32 0.0, %v3805
    %v7390 = vsub.f32 0.0, %v3806
    %v7391 = vsub.f32 0.0, %v3807
    %v7392 = vsub.f32 0.0, %v3808
    %v7393 = vsub.f32 0.0, %v3809
    %v7394 = vsub.f32 0.0, %v3810
    %v7395 = vsub.f32 0.0, %v3811
    %v7396 = vsub.f32 0.0, %v3812
    %v7397 = vsub.f32 0.0, %v3813
    %v7398 = vsub.f32 0.0, %v3814
    %v7399 = vsub.f32 0.0, %v3815
    %v7400 = vsub.f32 0.0, %v3816
    %v7401 = vsub.f32 0.0, %v3817
    %v7402 = vsub.f32 0.0, %v3818
    %v7403 = vsub.f32 0.0, %v3819
    %v7404 = vsub.f32 0.0, %v3820
    %v7405 = vsub.f32 0.0, %v3821
    %v7406 = vsub.f32 0.0, %v3822
    %v7407 = vsub.f32 0.0, %v3823
    %v7408 = vsub.f32 0.0, %v3824
    %v7409 = vsub.f32 0.0, %v3825
    %v7410 = vsub.f32 0.0, %v3826
    %v7411 = vsub.f32 0.0, %v3827
    %v7412 = vsub.f32 0.0, %v3828
    %v7413 = vsub.f32 0.0, %v3829
    %v7414 = vsub.f32 0.0, %v3830
    %v7415 = vsub.f32 0.0, %v3831
    %v7416 = vsub.f32 0.0, %v3832
    %v7417 = vsub.f32 0.0, %v3833
    %v7418 = vsub.f32 0.0, %v3834
    %v7419 = vsub.f32 0.0, %v3835
    %v7420 = vsub.f32 0.0, %v3836
    %v7421 = vsub.f32 0.0, %v3837
    %v7422 = vsub.f32 0.0, %v3838
    %v7423 = vsub.f32 0.0, %v3839
    %v7424 = vsub.f32 0.0, %v3840
    %v7425 = vsub.f32 0.0, %v3841
    %v7426 = vsub.f32 0.0, %v3842
    %v7427 = vsub.f32 0.0, %v3843
    %v7428 = vsub.f32 0.0, %v3844
    %v7429 = vsub.f32 0.0, %v3845
    %v7430 = vsub.f32 0.0, %v3846
    %v7431 = vsub.f32 0.0, %v3847
    %v7432 = vsub.f32 0.0, %v3848
    %v7433 = vsub.f32 0.0, %v3849
    %v7434 = vsub.f32 0.0, %v3850
    %v7435 = vsub.f32 0.0, %v3851
    %v7436 = vsub.f32 0.0, %v3852
    %v7437 = vsub.f32 0.0, %v3853
    %v7438 = vsub.f32 0.0, %v3854
    %v7439 = vsub.f32 0.0, %v3855
    %v7440 = vsub.f32 0.0, %v3856
    %v7441 = vsub.f32 0.0, %v3857
    %v7442 = vsub.f32 0.0, %v3858
    %v7443 = vsub.f32 0.0, %v3859
    %v7444 = vsub.f32 0.0, %v3860
    %v7445 = vsub.f32 0.0, %v3861
    %v7446 = vsub.f32 0.0, %v3862
    %v7447 = vsub.f32 0.0, %v3863
    %v7448 = vsub.f32 0.0, %v3864
    %v7449 = vsub.f32 0.0, %v3865
    %v7450 = vsub.f32 0.0, %v3866
    %v7451 = vsub.f32 0.0, %v3867
    %v7452 = vsub.f32 0.0, %v3868
    %v7453 = vsub.f32 0.0, %v3869
    %v7454 = vsub.f32 0.0, %v3870
    %v7455 = vsub.f32 0.0, %v3871
    %v7456 = vsub.f32 0.0, %v3872
    %v7457 = vsub.f32 0.0, %v3873
    %v7458 = vsub.f32 0.0, %v3874
    %v7459 = vsub.f32 0.0, %v3875
    %v7460 = vsub.f32 0.0, %v3876
    %v7461 = vsub.f32 0.0, %v3877
    %v7462 = vsub.f32 0.0, %v3878
    %v7463 = vsub.f32 0.0, %v3879
    %v7464 = vsub.f32 0.0, %v3880
    %v7465 = vsub.f32 0.0, %v3881
    %v7466 = vsub.f32 0.0, %v3882
    %v7467 = vsub.f32 0.0, %v3883
    %v7468 = vsub.f32 0.0, %v3884
    %v7469 = vsub.f32 0.0, %v3885
    %v7470 = vsub.f32 0.0, %v3886
    %v7471 = vsub.f32 0.0, %v3887
    %v7472 = vsub.f32 0.0, %v3888
    %v7473 = vsub.f32 0.0, %v3889
    %v7474 = vsub.f32 0.0, %v3890
    %v7475 = vsub.f32 0.0, %v3891
    %v7476 = vsub.f32 0.0, %v3892
    %v7477 = vsub.f32 0.0, %v3893
    %v7478 = vsub.f32 0.0, %v3894
    %v7479 = vsub.f32 0.0, %v3895
    %v7480 = vsub.f32 0.0, %v3896
    %v7481 = vsub.f32 0.0, %v3897
    %v7482 = vsub.f32 0.0, %v3898
    %v7483 = vsub.f32 0.0, %v3899
    %v7484 = vsub.f32 0.0, %v3900
    %v7485 = vsub.f32 0.0, %v3901
    %v7486 = vsub.f32 0.0, %v3902
    %v7487 = vsub.f32 0.0, %v3903
    %v7488 = vsub.f32 0.0, %v3904
    %v7489 = vsub.f32 0.0, %v3905
    %v7490 = vsub.f32 0.0, %v3906
    %v7491 = vsub.f32 0.0, %v3907
    %v7492 = vsub.f32 0.0, %v3908
    %v7493 = vsub.f32 0.0, %v3909
    %v7494 = vsub.f32 0.0, %v3910
    %v7495 = vsub.f32 0.0, %v3911
    %v7496 = vsub.f32 0.0, %v3912
    %v7497 = vsub.f32 0.0, %v3913
    %v7498 = vsub.f32 0.0, %v3914
    %v7499 = vsub.f32 0.0, %v3915
    %v7500 = vsub.f32 0.0, %v3916
    %v7501 = vsub.f32 0.0, %v3917
    %v7502 = vsub.f32 0.0, %v3918
    %v7503 = vsub.f32 0.0, %v3919
    %v7504 = vsub.f32 0.0, %v3920
    %v7505 = vsub.f32 0.0, %v3921
    %v7506 = vsub.f32 0.0, %v3922
    %v7507 = vsub.f32 0.0, %v3923
    %v7508 = vsub.f32 0.0, %v3924
    %v7509 = vsub.f32 0.0, %v3925
    %v7510 = vsub.f32 0.0, %v3926
    %v7511 = vsub.f32 0.0, %v3927
    %v7512 = vsub.f32 0.0, %v3928
    %v7513 = vsub.f32 0.0, %v3929
    %v7514 = vsub.f32 0.0, %v3930
    %v7515 = vsub.f32 0.0, %v3931
    %v7516 = vsub.f32 0.0, %v3932
    %v7517 = vsub.f32 0.0, %v3933
    %v7518 = vsub.f32 0.0, %v3934
    %v7519 = vsub.f32 0.0, %v3935
    %v7520 = vsub.f32 0.0, %v3936
    %v7521 = vsub.f32 0.0, %v3937
    %v7522 = vsub.f32 0.0, %v3938
    %v7523 = vsub.f32 0.0, %v3939
    %v7524 = vsub.f32 0.0, %v3940
    %v7525 = vsub.f32 0.0, %v3941
    %v7526 = vsub.f32 0.0, %v3942
    %v7527 = vsub.f32 0.0, %v3943
    %v7528 = vsub.f32 0.0, %v3944
    %v7529 = vsub.f32 0.0, %v3945
    %v7530 = vsub.f32 0.0, %v3946
    %v7531 = vsub.f32 0.0, %v3947
    %v7532 = vsub.f32 0.0, %v3948
    %v7533 = vsub.f32 0.0, %v3949
    %v7534 = vsub.f32 0.0, %v3950
    %v7535 = vsub.f32 0.0, %v3951
    %v7536 = vsub.f32 0.0, %v3952
    %v7537 = vsub.f32 0.0, %v3953
    %v7538 = vsub.f32 0.0, %v3954
    %v7539 = vsub.f32 0.0, %v3955
    %v7540 = vsub.f32 0.0, %v3956
    %v7541 = vsub.f32 0.0, %v3957
    %v7542 = vsub.f32 0.0, %v3958
    %v7543 = vsub.f32 0.0, %v3959
    %v7544 = vsub.f32 0.0, %v3960
    %v7545 = vsub.f32 0.0, %v3961
    %v7546 = vsub.f32 0.0, %v3962
    %v7547 = vsub.f32 0.0, %v3963
    %v7548 = vsub.f32 0.0, %v3964
    %v7549 = vsub.f32 0.0, %v3965
    %v7550 = vsub.f32 0.0, %v3966
    %v7551 = vsub.f32 0.0, %v3967
    %v7552 = vsub.f32 0.0, %v3968
    %v7553 = vsub.f32 0.0, %v3969
    %v7554 = vsub.f32 0.0, %v3970
    %v7555 = vsub.f32 0.0, %v3971
    %v7556 = vsub.f32 0.0, %v3972
    %v7557 = vsub.f32 0.0, %v3973
    %v7558 = vsub.f32 0.0, %v3974
    %v7559 = vsub.f32 0.0, %v3975
    %v7560 = vsub.f32 0.0, %v3976
    %v7561 = vsub.f32 0.0, %v3977
    %v7562 = vsub.f32 0.0, %v3978
    %v7563 = vsub.f32 0.0, %v3979
    %v7564 = vsub.f32 0.0, %v3980
    %v7565 = vsub.f32 0.0, %v3981
    %v7566 = vsub.f32 0.0, %v3982
    %v7567 = vsub.f32 0.0, %v3983
    %v7568 = vsub.f32 0.0, %v3984
    %v7569 = vsub.f32 0.0, %v3985
    %v7570 = vsub.f32 0.0, %v3986
    %v7571 = vsub.f32 0.0, %v3987
    %v7572 = vsub.f32 0.0, %v3988
    %v7573 = vsub.f32 0.0, %v3989
    %v7574 = vsub.f32 0.0, %v3990
    %v7575 = vsub.f32 0.0, %v3991
    %v7576 = vsub.f32 0.0, %v3992
    %v7577 = vsub.f32 0.0, %v3993
    %v7578 = vsub.f32 0.0, %v3994
    %v7579 = vsub.f32 0.0, %v3995
    %v7580 = vsub.f32 0.0, %v3996
    %v7581 = vsub.f32 0.0, %v3997
    %v7582 = vsub.f32 0.0, %v3998
    %v7583 = vsub.f32 0.0, %v3999
    %v7584 = vsub.f32 0.0, %v4000
    %v7585 = vsub.f32 0.0, %v4001
    %v7586 = vsub.f32 0.0, %v4002
    %v7587 = vsub.f32 0.0, %v4003
    %v7588 = vsub.f32 0.0, %v4004
    %v7589 = vsub.f32 0.0, %v4005
    %v7590 = vsub.f32 0.0, %v4006
    %v7591 = vsub.f32 0.0, %v4007
    %v7592 = vsub.f32 0.0, %v4008
    %v7593 = vsub.f32 0.0, %v4009
    %v7594 = vsub.f32 0.0, %v4010
    %v7595 = vsub.f32 0.0, %v4011
    %v7596 = vsub.f32 0.0, %v4012
    %v7597 = vmul.f32 %v7341, %v3757
    %v7598 = vmul.f32 %v7342, %v3758
    %v7599 = vmul.f32 %v7343, %v3759
    %v7600 = vmul.f32 %v7344, %v3760
    %v7601 = vmul.f32 %v7345, %v3761
    %v7602 = vmul.f32 %v7346, %v3762
    %v7603 = vmul.f32 %v7347, %v3763
    %v7604 = vmul.f32 %v7348, %v3764
    %v7605 = vmul.f32 %v7349, %v3765
    %v7606 = vmul.f32 %v7350, %v3766
    %v7607 = vmul.f32 %v7351, %v3767
    %v7608 = vmul.f32 %v7352, %v3768
    %v7609 = vmul.f32 %v7353, %v3769
    %v7610 = vmul.f32 %v7354, %v3770
    %v7611 = vmul.f32 %v7355, %v3771
    %v7612 = vmul.f32 %v7356, %v3772
    %v7613 = vmul.f32 %v7357, %v3773
    %v7614 = vmul.f32 %v7358, %v3774
    %v7615 = vmul.f32 %v7359, %v3775
    %v7616 = vmul.f32 %v7360, %v3776
    %v7617 = vmul.f32 %v7361, %v3777
    %v7618 = vmul.f32 %v7362, %v3778
    %v7619 = vmul.f32 %v7363, %v3779
    %v7620 = vmul.f32 %v7364, %v3780
    %v7621 = vmul.f32 %v7365, %v3781
    %v7622 = vmul.f32 %v7366, %v3782
    %v7623 = vmul.f32 %v7367, %v3783
    %v7624 = vmul.f32 %v7368, %v3784
    %v7625 = vmul.f32 %v7369, %v3785
    %v7626 = vmul.f32 %v7370, %v3786
    %v7627 = vmul.f32 %v7371, %v3787
    %v7628 = vmul.f32 %v7372, %v3788
    %v7629 = vmul.f32 %v7373, %v3789
    %v7630 = vmul.f32 %v7374, %v3790
    %v7631 = vmul.f32 %v7375, %v3791
    %v7632 = vmul.f32 %v7376, %v3792
    %v7633 = vmul.f32 %v7377, %v3793
    %v7634 = vmul.f32 %v7378, %v3794
    %v7635 = vmul.f32 %v7379, %v3795
    %v7636 = vmul.f32 %v7380, %v3796
    %v7637 = vmul.f32 %v7381, %v3797
    %v7638 = vmul.f32 %v7382, %v3798
    %v7639 = vmul.f32 %v7383, %v3799
    %v7640 = vmul.f32 %v7384, %v3800
    %v7641 = vmul.f32 %v7385, %v3801
    %v7642 = vmul.f32 %v7386, %v3802
    %v7643 = vmul.f32 %v7387, %v3803
    %v7644 = vmul.f32 %v7388, %v3804
    %v7645 = vmul.f32 %v7389, %v3805
    %v7646 = vmul.f32 %v7390, %v3806
    %v7647 = vmul.f32 %v7391, %v3807
    %v7648 = vmul.f32 %v7392, %v3808
    %v7649 = vmul.f32 %v7393, %v3809
    %v7650 = vmul.f32 %v7394, %v3810
    %v7651 = vmul.f32 %v7395, %v3811
    %v7652 = vmul.f32 %v7396, %v3812
    %v7653 = vmul.f32 %v7397, %v3813
    %v7654 = vmul.f32 %v7398, %v3814
    %v7655 = vmul.f32 %v7399, %v3815
    %v7656 = vmul.f32 %v7400, %v3816
    %v7657 = vmul.f32 %v7401, %v3817
    %v7658 = vmul.f32 %v7402, %v3818
    %v7659 = vmul.f32 %v7403, %v3819
    %v7660 = vmul.f32 %v7404, %v3820
    %v7661 = vmul.f32 %v7405, %v3821
    %v7662 = vmul.f32 %v7406, %v3822
    %v7663 = vmul.f32 %v7407, %v3823
    %v7664 = vmul.f32 %v7408, %v3824
    %v7665 = vmul.f32 %v7409, %v3825
    %v7666 = vmul.f32 %v7410, %v3826
    %v7667 = vmul.f32 %v7411, %v3827
    %v7668 = vmul.f32 %v7412, %v3828
    %v7669 = vmul.f32 %v7413, %v3829
    %v7670 = vmul.f32 %v7414, %v3830
    %v7671 = vmul.f32 %v7415, %v3831
    %v7672 = vmul.f32 %v7416, %v3832
    %v7673 = vmul.f32 %v7417, %v3833
    %v7674 = vmul.f32 %v7418, %v3834
    %v7675 = vmul.f32 %v7419, %v3835
    %v7676 = vmul.f32 %v7420, %v3836
    %v7677 = vmul.f32 %v7421, %v3837
    %v7678 = vmul.f32 %v7422, %v3838
    %v7679 = vmul.f32 %v7423, %v3839
    %v7680 = vmul.f32 %v7424, %v3840
    %v7681 = vmul.f32 %v7425, %v3841
    %v7682 = vmul.f32 %v7426, %v3842
    %v7683 = vmul.f32 %v7427, %v3843
    %v7684 = vmul.f32 %v7428, %v3844
    %v7685 = vmul.f32 %v7429, %v3845
    %v7686 = vmul.f32 %v7430, %v3846
    %v7687 = vmul.f32 %v7431, %v3847
    %v7688 = vmul.f32 %v7432, %v3848
    %v7689 = vmul.f32 %v7433, %v3849
    %v7690 = vmul.f32 %v7434, %v3850
    %v7691 = vmul.f32 %v7435, %v3851
    %v7692 = vmul.f32 %v7436, %v3852
    %v7693 = vmul.f32 %v7437, %v3853
    %v7694 = vmul.f32 %v7438, %v3854
    %v7695 = vmul.f32 %v7439, %v3855
    %v7696 = vmul.f32 %v7440, %v3856
    %v7697 = vmul.f32 %v7441, %v3857
    %v7698 = vmul.f32 %v7442, %v3858
    %v7699 = vmul.f32 %v7443, %v3859
    %v7700 = vmul.f32 %v7444, %v3860
    %v7701 = vmul.f32 %v7445, %v3861
    %v7702 = vmul.f32 %v7446, %v3862
    %v7703 = vmul.f32 %v7447, %v3863
    %v7704 = vmul.f32 %v7448, %v3864
    %v7705 = vmul.f32 %v7449, %v3865
    %v7706 = vmul.f32 %v7450, %v3866
    %v7707 = vmul.f32 %v7451, %v3867
    %v7708 = vmul.f32 %v7452, %v3868
    %v7709 = vmul.f32 %v7453, %v3869
    %v7710 = vmul.f32 %v7454, %v3870
    %v7711 = vmul.f32 %v7455, %v3871
    %v7712 = vmul.f32 %v7456, %v3872
    %v7713 = vmul.f32 %v7457, %v3873
    %v7714 = vmul.f32 %v7458, %v3874
    %v7715 = vmul.f32 %v7459, %v3875
    %v7716 = vmul.f32 %v7460, %v3876
    %v7717 = vmul.f32 %v7461, %v3877
    %v7718 = vmul.f32 %v7462, %v3878
    %v7719 = vmul.f32 %v7463, %v3879
    %v7720 = vmul.f32 %v7464, %v3880
    %v7721 = vmul.f32 %v7465, %v3881
    %v7722 = vmul.f32 %v7466, %v3882
    %v7723 = vmul.f32 %v7467, %v3883
    %v7724 = vmul.f32 %v7468, %v3884
    %v7725 = vmul.f32 %v7469, %v3885
    %v7726 = vmul.f32 %v7470, %v3886
    %v7727 = vmul.f32 %v7471, %v3887
    %v7728 = vmul.f32 %v7472, %v3888
    %v7729 = vmul.f32 %v7473, %v3889
    %v7730 = vmul.f32 %v7474, %v3890
    %v7731 = vmul.f32 %v7475, %v3891
    %v7732 = vmul.f32 %v7476, %v3892
    %v7733 = vmul.f32 %v7477, %v3893
    %v7734 = vmul.f32 %v7478, %v3894
    %v7735 = vmul.f32 %v7479, %v3895
    %v7736 = vmul.f32 %v7480, %v3896
    %v7737 = vmul.f32 %v7481, %v3897
    %v7738 = vmul.f32 %v7482, %v3898
    %v7739 = vmul.f32 %v7483, %v3899
    %v7740 = vmul.f32 %v7484, %v3900
    %v7741 = vmul.f32 %v7485, %v3901
    %v7742 = vmul.f32 %v7486, %v3902
    %v7743 = vmul.f32 %v7487, %v3903
    %v7744 = vmul.f32 %v7488, %v3904
    %v7745 = vmul.f32 %v7489, %v3905
    %v7746 = vmul.f32 %v7490, %v3906
    %v7747 = vmul.f32 %v7491, %v3907
    %v7748 = vmul.f32 %v7492, %v3908
    %v7749 = vmul.f32 %v7493, %v3909
    %v7750 = vmul.f32 %v7494, %v3910
    %v7751 = vmul.f32 %v7495, %v3911
    %v7752 = vmul.f32 %v7496, %v3912
    %v7753 = vmul.f32 %v7497, %v3913
    %v7754 = vmul.f32 %v7498, %v3914
    %v7755 = vmul.f32 %v7499, %v3915
    %v7756 = vmul.f32 %v7500, %v3916
    %v7757 = vmul.f32 %v7501, %v3917
    %v7758 = vmul.f32 %v7502, %v3918
    %v7759 = vmul.f32 %v7503, %v3919
    %v7760 = vmul.f32 %v7504, %v3920
    %v7761 = vmul.f32 %v7505, %v3921
    %v7762 = vmul.f32 %v7506, %v3922
    %v7763 = vmul.f32 %v7507, %v3923
    %v7764 = vmul.f32 %v7508, %v3924
    %v7765 = vmul.f32 %v7509, %v3925
    %v7766 = vmul.f32 %v7510, %v3926
    %v7767 = vmul.f32 %v7511, %v3927
    %v7768 = vmul.f32 %v7512, %v3928
    %v7769 = vmul.f32 %v7513, %v3929
    %v7770 = vmul.f32 %v7514, %v3930
    %v7771 = vmul.f32 %v7515, %v3931
    %v7772 = vmul.f32 %v7516, %v3932
    %v7773 = vmul.f32 %v7517, %v3933
    %v7774 = vmul.f32 %v7518, %v3934
    %v7775 = vmul.f32 %v7519, %v3935
    %v7776 = vmul.f32 %v7520, %v3936
    %v7777 = vmul.f32 %v7521, %v3937
    %v7778 = vmul.f32 %v7522, %v3938
    %v7779 = vmul.f32 %v7523, %v3939
    %v7780 = vmul.f32 %v7524, %v3940
    %v7781 = vmul.f32 %v7525, %v3941
    %v7782 = vmul.f32 %v7526, %v3942
    %v7783 = vmul.f32 %v7527, %v3943
    %v7784 = vmul.f32 %v7528, %v3944
    %v7785 = vmul.f32 %v7529, %v3945
    %v7786 = vmul.f32 %v7530, %v3946
    %v7787 = vmul.f32 %v7531, %v3947
    %v7788 = vmul.f32 %v7532, %v3948
    %v7789 = vmul.f32 %v7533, %v3949
    %v7790 = vmul.f32 %v7534, %v3950
    %v7791 = vmul.f32 %v7535, %v3951
    %v7792 = vmul.f32 %v7536, %v3952
    %v7793 = vmul.f32 %v7537, %v3953
    %v7794 = vmul.f32 %v7538, %v3954
    %v7795 = vmul.f32 %v7539, %v3955
    %v7796 = vmul.f32 %v7540, %v3956
    %v7797 = vmul.f32 %v7541, %v3957
    %v7798 = vmul.f32 %v7542, %v3958
    %v7799 = vmul.f32 %v7543, %v3959
    %v7800 = vmul.f32 %v7544, %v3960
    %v7801 = vmul.f32 %v7545, %v3961
    %v7802 = vmul.f32 %v7546, %v3962
    %v7803 = vmul.f32 %v7547, %v3963
    %v7804 = vmul.f32 %v7548, %v3964
    %v7805 = vmul.f32 %v7549, %v3965
    %v7806 = vmul.f32 %v7550, %v3966
    %v7807 = vmul.f32 %v7551, %v3967
    %v7808 = vmul.f32 %v7552, %v3968
    %v7809 = vmul.f32 %v7553, %v3969
    %v7810 = vmul.f32 %v7554, %v3970
    %v7811 = vmul.f32 %v7555, %v3971
    %v7812 = vmul.f32 %v7556, %v3972
    %v7813 = vmul.f32 %v7557, %v3973
    %v7814 = vmul.f32 %v7558, %v3974
    %v7815 = vmul.f32 %v7559, %v3975
    %v7816 = vmul.f32 %v7560, %v3976
    %v7817 = vmul.f32 %v7561, %v3977
    %v7818 = vmul.f32 %v7562, %v3978
    %v7819 = vmul.f32 %v7563, %v3979
    %v7820 = vmul.f32 %v7564, %v3980
    %v7821 = vmul.f32 %v7565, %v3981
    %v7822 = vmul.f32 %v7566, %v3982
    %v7823 = vmul.f32 %v7567, %v3983
    %v7824 = vmul.f32 %v7568, %v3984
    %v7825 = vmul.f32 %v7569, %v3985
    %v7826 = vmul.f32 %v7570, %v3986
    %v7827 = vmul.f32 %v7571, %v3987
    %v7828 = vmul.f32 %v7572, %v3988
    %v7829 = vmul.f32 %v7573, %v3989
    %v7830 = vmul.f32 %v7574, %v3990
    %v7831 = vmul.f32 %v7575, %v3991
    %v7832 = vmul.f32 %v7576, %v3992
    %v7833 = vmul.f32 %v7577, %v3993
    %v7834 = vmul.f32 %v7578, %v3994
    %v7835 = vmul.f32 %v7579, %v3995
    %v7836 = vmul.f32 %v7580, %v3996
    %v7837 = vmul.f32 %v7581, %v3997
    %v7838 = vmul.f32 %v7582, %v3998
    %v7839 = vmul.f32 %v7583, %v3999
    %v7840 = vmul.f32 %v7584, %v4000
    %v7841 = vmul.f32 %v7585, %v4001
    %v7842 = vmul.f32 %v7586, %v4002
    %v7843 = vmul.f32 %v7587, %v4003
    %v7844 = vmul.f32 %v7588, %v4004
    %v7845 = vmul.f32 %v7589, %v4005
    %v7846 = vmul.f32 %v7590, %v4006
    %v7847 = vmul.f32 %v7591, %v4007
    %v7848 = vmul.f32 %v7592, %v4008
    %v7849 = vmul.f32 %v7593, %v4009
    %v7850 = vmul.f32 %v7594, %v4010
    %v7851 = vmul.f32 %v7595, %v4011
    %v7852 = vmul.f32 %v7596, %v4012
    %v7853 = vmul.f32 %v7597, 1.442695
    %v7854 = vpow.pop %v7853
    %v7855 = vmul.f32 %v7598, 1.442695
    %v7856 = vpow.pop %v7855
    %v7857 = vmul.f32 %v7599, 1.442695
    %v7858 = vpow.pop %v7857
    %v7859 = vmul.f32 %v7600, 1.442695
    %v7860 = vpow.pop %v7859
    %v7861 = vmul.f32 %v7601, 1.442695
    %v7862 = vpow.pop %v7861
    %v7863 = vmul.f32 %v7602, 1.442695
    %v7864 = vpow.pop %v7863
    %v7865 = vmul.f32 %v7603, 1.442695
    %v7866 = vpow.pop %v7865
    %v7867 = vmul.f32 %v7604, 1.442695
    %v7868 = vpow.pop %v7867
    %v7869 = vmul.f32 %v7605, 1.442695
    %v7870 = vpow.pop %v7869
    %v7871 = vmul.f32 %v7606, 1.442695
    %v7872 = vpow.pop %v7871
    %v7873 = vmul.f32 %v7607, 1.442695
    %v7874 = vpow.pop %v7873
    %v7875 = vmul.f32 %v7608, 1.442695
    %v7876 = vpow.pop %v7875
    %v7877 = vmul.f32 %v7609, 1.442695
    %v7878 = vpow.pop %v7877
    %v7879 = vmul.f32 %v7610, 1.442695
    %v7880 = vpow.pop %v7879
    %v7881 = vmul.f32 %v7611, 1.442695
    %v7882 = vpow.pop %v7881
    %v7883 = vmul.f32 %v7612, 1.442695
    %v7884 = vpow.pop %v7883
    %v7885 = vmul.f32 %v7613, 1.442695
    %v7886 = vpow.pop %v7885
    %v7887 = vmul.f32 %v7614, 1.442695
    %v7888 = vpow.pop %v7887
    %v7889 = vmul.f32 %v7615, 1.442695
    %v7890 = vpow.pop %v7889
    %v7891 = vmul.f32 %v7616, 1.442695
    %v7892 = vpow.pop %v7891
    %v7893 = vmul.f32 %v7617, 1.442695
    %v7894 = vpow.pop %v7893
    %v7895 = vmul.f32 %v7618, 1.442695
    %v7896 = vpow.pop %v7895
    %v7897 = vmul.f32 %v7619, 1.442695
    %v7898 = vpow.pop %v7897
    %v7899 = vmul.f32 %v7620, 1.442695
    %v7900 = vpow.pop %v7899
    %v7901 = vmul.f32 %v7621, 1.442695
    %v7902 = vpow.pop %v7901
    %v7903 = vmul.f32 %v7622, 1.442695
    %v7904 = vpow.pop %v7903
    %v7905 = vmul.f32 %v7623, 1.442695
    %v7906 = vpow.pop %v7905
    %v7907 = vmul.f32 %v7624, 1.442695
    %v7908 = vpow.pop %v7907
    %v7909 = vmul.f32 %v7625, 1.442695
    %v7910 = vpow.pop %v7909
    %v7911 = vmul.f32 %v7626, 1.442695
    %v7912 = vpow.pop %v7911
    %v7913 = vmul.f32 %v7627, 1.442695
    %v7914 = vpow.pop %v7913
    %v7915 = vmul.f32 %v7628, 1.442695
    %v7916 = vpow.pop %v7915
    %v7917 = vmul.f32 %v7629, 1.442695
    %v7918 = vpow.pop %v7917
    %v7919 = vmul.f32 %v7630, 1.442695
    %v7920 = vpow.pop %v7919
    %v7921 = vmul.f32 %v7631, 1.442695
    %v7922 = vpow.pop %v7921
    %v7923 = vmul.f32 %v7632, 1.442695
    %v7924 = vpow.pop %v7923
    %v7925 = vmul.f32 %v7633, 1.442695
    %v7926 = vpow.pop %v7925
    %v7927 = vmul.f32 %v7634, 1.442695
    %v7928 = vpow.pop %v7927
    %v7929 = vmul.f32 %v7635, 1.442695
    %v7930 = vpow.pop %v7929
    %v7931 = vmul.f32 %v7636, 1.442695
    %v7932 = vpow.pop %v7931
    %v7933 = vmul.f32 %v7637, 1.442695
    %v7934 = vpow.pop %v7933
    %v7935 = vmul.f32 %v7638, 1.442695
    %v7936 = vpow.pop %v7935
    %v7937 = vmul.f32 %v7639, 1.442695
    %v7938 = vpow.pop %v7937
    %v7939 = vmul.f32 %v7640, 1.442695
    %v7940 = vpow.pop %v7939
    %v7941 = vmul.f32 %v7641, 1.442695
    %v7942 = vpow.pop %v7941
    %v7943 = vmul.f32 %v7642, 1.442695
    %v7944 = vpow.pop %v7943
    %v7945 = vmul.f32 %v7643, 1.442695
    %v7946 = vpow.pop %v7945
    %v7947 = vmul.f32 %v7644, 1.442695
    %v7948 = vpow.pop %v7947
    %v7949 = vmul.f32 %v7645, 1.442695
    %v7950 = vpow.pop %v7949
    %v7951 = vmul.f32 %v7646, 1.442695
    %v7952 = vpow.pop %v7951
    %v7953 = vmul.f32 %v7647, 1.442695
    %v7954 = vpow.pop %v7953
    %v7955 = vmul.f32 %v7648, 1.442695
    %v7956 = vpow.pop %v7955
    %v7957 = vmul.f32 %v7649, 1.442695
    %v7958 = vpow.pop %v7957
    %v7959 = vmul.f32 %v7650, 1.442695
    %v7960 = vpow.pop %v7959
    %v7961 = vmul.f32 %v7651, 1.442695
    %v7962 = vpow.pop %v7961
    %v7963 = vmul.f32 %v7652, 1.442695
    %v7964 = vpow.pop %v7963
    %v7965 = vmul.f32 %v7653, 1.442695
    %v7966 = vpow.pop %v7965
    %v7967 = vmul.f32 %v7654, 1.442695
    %v7968 = vpow.pop %v7967
    %v7969 = vmul.f32 %v7655, 1.442695
    %v7970 = vpow.pop %v7969
    %v7971 = vmul.f32 %v7656, 1.442695
    %v7972 = vpow.pop %v7971
    %v7973 = vmul.f32 %v7657, 1.442695
    %v7974 = vpow.pop %v7973
    %v7975 = vmul.f32 %v7658, 1.442695
    %v7976 = vpow.pop %v7975
    %v7977 = vmul.f32 %v7659, 1.442695
    %v7978 = vpow.pop %v7977
    %v7979 = vmul.f32 %v7660, 1.442695
    %v7980 = vpow.pop %v7979
    %v7981 = vmul.f32 %v7661, 1.442695
    %v7982 = vpow.pop %v7981
    %v7983 = vmul.f32 %v7662, 1.442695
    %v7984 = vpow.pop %v7983
    %v7985 = vmul.f32 %v7663, 1.442695
    %v7986 = vpow.pop %v7985
    %v7987 = vmul.f32 %v7664, 1.442695
    %v7988 = vpow.pop %v7987
    %v7989 = vmul.f32 %v7665, 1.442695
    %v7990 = vpow.pop %v7989
    %v7991 = vmul.f32 %v7666, 1.442695
    %v7992 = vpow.pop %v7991
    %v7993 = vmul.f32 %v7667, 1.442695
    %v7994 = vpow.pop %v7993
    %v7995 = vmul.f32 %v7668, 1.442695
    %v7996 = vpow.pop %v7995
    %v7997 = vmul.f32 %v7669, 1.442695
    %v7998 = vpow.pop %v7997
    %v7999 = vmul.f32 %v7670, 1.442695
    %v8000 = vpow.pop %v7999
    %v8001 = vmul.f32 %v7671, 1.442695
    %v8002 = vpow.pop %v8001
    %v8003 = vmul.f32 %v7672, 1.442695
    %v8004 = vpow.pop %v8003
    %v8005 = vmul.f32 %v7673, 1.442695
    %v8006 = vpow.pop %v8005
    %v8007 = vmul.f32 %v7674, 1.442695
    %v8008 = vpow.pop %v8007
    %v8009 = vmul.f32 %v7675, 1.442695
    %v8010 = vpow.pop %v8009
    %v8011 = vmul.f32 %v7676, 1.442695
    %v8012 = vpow.pop %v8011
    %v8013 = vmul.f32 %v7677, 1.442695
    %v8014 = vpow.pop %v8013
    %v8015 = vmul.f32 %v7678, 1.442695
    %v8016 = vpow.pop %v8015
    %v8017 = vmul.f32 %v7679, 1.442695
    %v8018 = vpow.pop %v8017
    %v8019 = vmul.f32 %v7680, 1.442695
    %v8020 = vpow.pop %v8019
    %v8021 = vmul.f32 %v7681, 1.442695
    %v8022 = vpow.pop %v8021
    %v8023 = vmul.f32 %v7682, 1.442695
    %v8024 = vpow.pop %v8023
    %v8025 = vmul.f32 %v7683, 1.442695
    %v8026 = vpow.pop %v8025
    %v8027 = vmul.f32 %v7684, 1.442695
    %v8028 = vpow.pop %v8027
    %v8029 = vmul.f32 %v7685, 1.442695
    %v8030 = vpow.pop %v8029
    %v8031 = vmul.f32 %v7686, 1.442695
    %v8032 = vpow.pop %v8031
    %v8033 = vmul.f32 %v7687, 1.442695
    %v8034 = vpow.pop %v8033
    %v8035 = vmul.f32 %v7688, 1.442695
    %v8036 = vpow.pop %v8035
    %v8037 = vmul.f32 %v7689, 1.442695
    %v8038 = vpow.pop %v8037
    %v8039 = vmul.f32 %v7690, 1.442695
    %v8040 = vpow.pop %v8039
    %v8041 = vmul.f32 %v7691, 1.442695
    %v8042 = vpow.pop %v8041
    %v8043 = vmul.f32 %v7692, 1.442695
    %v8044 = vpow.pop %v8043
    %v8045 = vmul.f32 %v7693, 1.442695
    %v8046 = vpow.pop %v8045
    %v8047 = vmul.f32 %v7694, 1.442695
    %v8048 = vpow.pop %v8047
    %v8049 = vmul.f32 %v7695, 1.442695
    %v8050 = vpow.pop %v8049
    %v8051 = vmul.f32 %v7696, 1.442695
    %v8052 = vpow.pop %v8051
    %v8053 = vmul.f32 %v7697, 1.442695
    %v8054 = vpow.pop %v8053
    %v8055 = vmul.f32 %v7698, 1.442695
    %v8056 = vpow.pop %v8055
    %v8057 = vmul.f32 %v7699, 1.442695
    %v8058 = vpow.pop %v8057
    %v8059 = vmul.f32 %v7700, 1.442695
    %v8060 = vpow.pop %v8059
    %v8061 = vmul.f32 %v7701, 1.442695
    %v8062 = vpow.pop %v8061
    %v8063 = vmul.f32 %v7702, 1.442695
    %v8064 = vpow.pop %v8063
    %v8065 = vmul.f32 %v7703, 1.442695
    %v8066 = vpow.pop %v8065
    %v8067 = vmul.f32 %v7704, 1.442695
    %v8068 = vpow.pop %v8067
    %v8069 = vmul.f32 %v7705, 1.442695
    %v8070 = vpow.pop %v8069
    %v8071 = vmul.f32 %v7706, 1.442695
    %v8072 = vpow.pop %v8071
    %v8073 = vmul.f32 %v7707, 1.442695
    %v8074 = vpow.pop %v8073
    %v8075 = vmul.f32 %v7708, 1.442695
    %v8076 = vpow.pop %v8075
    %v8077 = vmul.f32 %v7709, 1.442695
    %v8078 = vpow.pop %v8077
    %v8079 = vmul.f32 %v7710, 1.442695
    %v8080 = vpow.pop %v8079
    %v8081 = vmul.f32 %v7711, 1.442695
    %v8082 = vpow.pop %v8081
    %v8083 = vmul.f32 %v7712, 1.442695
    %v8084 = vpow.pop %v8083
    %v8085 = vmul.f32 %v7713, 1.442695
    %v8086 = vpow.pop %v8085
    %v8087 = vmul.f32 %v7714, 1.442695
    %v8088 = vpow.pop %v8087
    %v8089 = vmul.f32 %v7715, 1.442695
    %v8090 = vpow.pop %v8089
    %v8091 = vmul.f32 %v7716, 1.442695
    %v8092 = vpow.pop %v8091
    %v8093 = vmul.f32 %v7717, 1.442695
    %v8094 = vpow.pop %v8093
    %v8095 = vmul.f32 %v7718, 1.442695
    %v8096 = vpow.pop %v8095
    %v8097 = vmul.f32 %v7719, 1.442695
    %v8098 = vpow.pop %v8097
    %v8099 = vmul.f32 %v7720, 1.442695
    %v8100 = vpow.pop %v8099
    %v8101 = vmul.f32 %v7721, 1.442695
    %v8102 = vpow.pop %v8101
    %v8103 = vmul.f32 %v7722, 1.442695
    %v8104 = vpow.pop %v8103
    %v8105 = vmul.f32 %v7723, 1.442695
    %v8106 = vpow.pop %v8105
    %v8107 = vmul.f32 %v7724, 1.442695
    %v8108 = vpow.pop %v8107
    %v8109 = vmul.f32 %v7725, 1.442695
    %v8110 = vpow.pop %v8109
    %v8111 = vmul.f32 %v7726, 1.442695
    %v8112 = vpow.pop %v8111
    %v8113 = vmul.f32 %v7727, 1.442695
    %v8114 = vpow.pop %v8113
    %v8115 = vmul.f32 %v7728, 1.442695
    %v8116 = vpow.pop %v8115
    %v8117 = vmul.f32 %v7729, 1.442695
    %v8118 = vpow.pop %v8117
    %v8119 = vmul.f32 %v7730, 1.442695
    %v8120 = vpow.pop %v8119
    %v8121 = vmul.f32 %v7731, 1.442695
    %v8122 = vpow.pop %v8121
    %v8123 = vmul.f32 %v7732, 1.442695
    %v8124 = vpow.pop %v8123
    %v8125 = vmul.f32 %v7733, 1.442695
    %v8126 = vpow.pop %v8125
    %v8127 = vmul.f32 %v7734, 1.442695
    %v8128 = vpow.pop %v8127
    %v8129 = vmul.f32 %v7735, 1.442695
    %v8130 = vpow.pop %v8129
    %v8131 = vmul.f32 %v7736, 1.442695
    %v8132 = vpow.pop %v8131
    %v8133 = vmul.f32 %v7737, 1.442695
    %v8134 = vpow.pop %v8133
    %v8135 = vmul.f32 %v7738, 1.442695
    %v8136 = vpow.pop %v8135
    %v8137 = vmul.f32 %v7739, 1.442695
    %v8138 = vpow.pop %v8137
    %v8139 = vmul.f32 %v7740, 1.442695
    %v8140 = vpow.pop %v8139
    %v8141 = vmul.f32 %v7741, 1.442695
    %v8142 = vpow.pop %v8141
    %v8143 = vmul.f32 %v7742, 1.442695
    %v8144 = vpow.pop %v8143
    %v8145 = vmul.f32 %v7743, 1.442695
    %v8146 = vpow.pop %v8145
    %v8147 = vmul.f32 %v7744, 1.442695
    %v8148 = vpow.pop %v8147
    %v8149 = vmul.f32 %v7745, 1.442695
    %v8150 = vpow.pop %v8149
    %v8151 = vmul.f32 %v7746, 1.442695
    %v8152 = vpow.pop %v8151
    %v8153 = vmul.f32 %v7747, 1.442695
    %v8154 = vpow.pop %v8153
    %v8155 = vmul.f32 %v7748, 1.442695
    %v8156 = vpow.pop %v8155
    %v8157 = vmul.f32 %v7749, 1.442695
    %v8158 = vpow.pop %v8157
    %v8159 = vmul.f32 %v7750, 1.442695
    %v8160 = vpow.pop %v8159
    %v8161 = vmul.f32 %v7751, 1.442695
    %v8162 = vpow.pop %v8161
    %v8163 = vmul.f32 %v7752, 1.442695
    %v8164 = vpow.pop %v8163
    %v8165 = vmul.f32 %v7753, 1.442695
    %v8166 = vpow.pop %v8165
    %v8167 = vmul.f32 %v7754, 1.442695
    %v8168 = vpow.pop %v8167
    %v8169 = vmul.f32 %v7755, 1.442695
    %v8170 = vpow.pop %v8169
    %v8171 = vmul.f32 %v7756, 1.442695
    %v8172 = vpow.pop %v8171
    %v8173 = vmul.f32 %v7757, 1.442695
    %v8174 = vpow.pop %v8173
    %v8175 = vmul.f32 %v7758, 1.442695
    %v8176 = vpow.pop %v8175
    %v8177 = vmul.f32 %v7759, 1.442695
    %v8178 = vpow.pop %v8177
    %v8179 = vmul.f32 %v7760, 1.442695
    %v8180 = vpow.pop %v8179
    %v8181 = vmul.f32 %v7761, 1.442695
    %v8182 = vpow.pop %v8181
    %v8183 = vmul.f32 %v7762, 1.442695
    %v8184 = vpow.pop %v8183
    %v8185 = vmul.f32 %v7763, 1.442695
    %v8186 = vpow.pop %v8185
    %v8187 = vmul.f32 %v7764, 1.442695
    %v8188 = vpow.pop %v8187
    %v8189 = vmul.f32 %v7765, 1.442695
    %v8190 = vpow.pop %v8189
    %v8191 = vmul.f32 %v7766, 1.442695
    %v8192 = vpow.pop %v8191
    %v8193 = vmul.f32 %v7767, 1.442695
    %v8194 = vpow.pop %v8193
    %v8195 = vmul.f32 %v7768, 1.442695
    %v8196 = vpow.pop %v8195
    %v8197 = vmul.f32 %v7769, 1.442695
    %v8198 = vpow.pop %v8197
    %v8199 = vmul.f32 %v7770, 1.442695
    %v8200 = vpow.pop %v8199
    %v8201 = vmul.f32 %v7771, 1.442695
    %v8202 = vpow.pop %v8201
    %v8203 = vmul.f32 %v7772, 1.442695
    %v8204 = vpow.pop %v8203
    %v8205 = vmul.f32 %v7773, 1.442695
    %v8206 = vpow.pop %v8205
    %v8207 = vmul.f32 %v7774, 1.442695
    %v8208 = vpow.pop %v8207
    %v8209 = vmul.f32 %v7775, 1.442695
    %v8210 = vpow.pop %v8209
    %v8211 = vmul.f32 %v7776, 1.442695
    %v8212 = vpow.pop %v8211
    %v8213 = vmul.f32 %v7777, 1.442695
    %v8214 = vpow.pop %v8213
    %v8215 = vmul.f32 %v7778, 1.442695
    %v8216 = vpow.pop %v8215
    %v8217 = vmul.f32 %v7779, 1.442695
    %v8218 = vpow.pop %v8217
    %v8219 = vmul.f32 %v7780, 1.442695
    %v8220 = vpow.pop %v8219
    %v8221 = vmul.f32 %v7781, 1.442695
    %v8222 = vpow.pop %v8221
    %v8223 = vmul.f32 %v7782, 1.442695
    %v8224 = vpow.pop %v8223
    %v8225 = vmul.f32 %v7783, 1.442695
    %v8226 = vpow.pop %v8225
    %v8227 = vmul.f32 %v7784, 1.442695
    %v8228 = vpow.pop %v8227
    %v8229 = vmul.f32 %v7785, 1.442695
    %v8230 = vpow.pop %v8229
    %v8231 = vmul.f32 %v7786, 1.442695
    %v8232 = vpow.pop %v8231
    %v8233 = vmul.f32 %v7787, 1.442695
    %v8234 = vpow.pop %v8233
    %v8235 = vmul.f32 %v7788, 1.442695
    %v8236 = vpow.pop %v8235
    %v8237 = vmul.f32 %v7789, 1.442695
    %v8238 = vpow.pop %v8237
    %v8239 = vmul.f32 %v7790, 1.442695
    %v8240 = vpow.pop %v8239
    %v8241 = vmul.f32 %v7791, 1.442695
    %v8242 = vpow.pop %v8241
    %v8243 = vmul.f32 %v7792, 1.442695
    %v8244 = vpow.pop %v8243
    %v8245 = vmul.f32 %v7793, 1.442695
    %v8246 = vpow.pop %v8245
    %v8247 = vmul.f32 %v7794, 1.442695
    %v8248 = vpow.pop %v8247
    %v8249 = vmul.f32 %v7795, 1.442695
    %v8250 = vpow.pop %v8249
    %v8251 = vmul.f32 %v7796, 1.442695
    %v8252 = vpow.pop %v8251
    %v8253 = vmul.f32 %v7797, 1.442695
    %v8254 = vpow.pop %v8253
    %v8255 = vmul.f32 %v7798, 1.442695
    %v8256 = vpow.pop %v8255
    %v8257 = vmul.f32 %v7799, 1.442695
    %v8258 = vpow.pop %v8257
    %v8259 = vmul.f32 %v7800, 1.442695
    %v8260 = vpow.pop %v8259
    %v8261 = vmul.f32 %v7801, 1.442695
    %v8262 = vpow.pop %v8261
    %v8263 = vmul.f32 %v7802, 1.442695
    %v8264 = vpow.pop %v8263
    %v8265 = vmul.f32 %v7803, 1.442695
    %v8266 = vpow.pop %v8265
    %v8267 = vmul.f32 %v7804, 1.442695
    %v8268 = vpow.pop %v8267
    %v8269 = vmul.f32 %v7805, 1.442695
    %v8270 = vpow.pop %v8269
    %v8271 = vmul.f32 %v7806, 1.442695
    %v8272 = vpow.pop %v8271
    %v8273 = vmul.f32 %v7807, 1.442695
    %v8274 = vpow.pop %v8273
    %v8275 = vmul.f32 %v7808, 1.442695
    %v8276 = vpow.pop %v8275
    %v8277 = vmul.f32 %v7809, 1.442695
    %v8278 = vpow.pop %v8277
    %v8279 = vmul.f32 %v7810, 1.442695
    %v8280 = vpow.pop %v8279
    %v8281 = vmul.f32 %v7811, 1.442695
    %v8282 = vpow.pop %v8281
    %v8283 = vmul.f32 %v7812, 1.442695
    %v8284 = vpow.pop %v8283
    %v8285 = vmul.f32 %v7813, 1.442695
    %v8286 = vpow.pop %v8285
    %v8287 = vmul.f32 %v7814, 1.442695
    %v8288 = vpow.pop %v8287
    %v8289 = vmul.f32 %v7815, 1.442695
    %v8290 = vpow.pop %v8289
    %v8291 = vmul.f32 %v7816, 1.442695
    %v8292 = vpow.pop %v8291
    %v8293 = vmul.f32 %v7817, 1.442695
    %v8294 = vpow.pop %v8293
    %v8295 = vmul.f32 %v7818, 1.442695
    %v8296 = vpow.pop %v8295
    %v8297 = vmul.f32 %v7819, 1.442695
    %v8298 = vpow.pop %v8297
    %v8299 = vmul.f32 %v7820, 1.442695
    %v8300 = vpow.pop %v8299
    %v8301 = vmul.f32 %v7821, 1.442695
    %v8302 = vpow.pop %v8301
    %v8303 = vmul.f32 %v7822, 1.442695
    %v8304 = vpow.pop %v8303
    %v8305 = vmul.f32 %v7823, 1.442695
    %v8306 = vpow.pop %v8305
    %v8307 = vmul.f32 %v7824, 1.442695
    %v8308 = vpow.pop %v8307
    %v8309 = vmul.f32 %v7825, 1.442695
    %v8310 = vpow.pop %v8309
    %v8311 = vmul.f32 %v7826, 1.442695
    %v8312 = vpow.pop %v8311
    %v8313 = vmul.f32 %v7827, 1.442695
    %v8314 = vpow.pop %v8313
    %v8315 = vmul.f32 %v7828, 1.442695
    %v8316 = vpow.pop %v8315
    %v8317 = vmul.f32 %v7829, 1.442695
    %v8318 = vpow.pop %v8317
    %v8319 = vmul.f32 %v7830, 1.442695
    %v8320 = vpow.pop %v8319
    %v8321 = vmul.f32 %v7831, 1.442695
    %v8322 = vpow.pop %v8321
    %v8323 = vmul.f32 %v7832, 1.442695
    %v8324 = vpow.pop %v8323
    %v8325 = vmul.f32 %v7833, 1.442695
    %v8326 = vpow.pop %v8325
    %v8327 = vmul.f32 %v7834, 1.442695
    %v8328 = vpow.pop %v8327
    %v8329 = vmul.f32 %v7835, 1.442695
    %v8330 = vpow.pop %v8329
    %v8331 = vmul.f32 %v7836, 1.442695
    %v8332 = vpow.pop %v8331
    %v8333 = vmul.f32 %v7837, 1.442695
    %v8334 = vpow.pop %v8333
    %v8335 = vmul.f32 %v7838, 1.442695
    %v8336 = vpow.pop %v8335
    %v8337 = vmul.f32 %v7839, 1.442695
    %v8338 = vpow.pop %v8337
    %v8339 = vmul.f32 %v7840, 1.442695
    %v8340 = vpow.pop %v8339
    %v8341 = vmul.f32 %v7841, 1.442695
    %v8342 = vpow.pop %v8341
    %v8343 = vmul.f32 %v7842, 1.442695
    %v8344 = vpow.pop %v8343
    %v8345 = vmul.f32 %v7843, 1.442695
    %v8346 = vpow.pop %v8345
    %v8347 = vmul.f32 %v7844, 1.442695
    %v8348 = vpow.pop %v8347
    %v8349 = vmul.f32 %v7845, 1.442695
    %v8350 = vpow.pop %v8349
    %v8351 = vmul.f32 %v7846, 1.442695
    %v8352 = vpow.pop %v8351
    %v8353 = vmul.f32 %v7847, 1.442695
    %v8354 = vpow.pop %v8353
    %v8355 = vmul.f32 %v7848, 1.442695
    %v8356 = vpow.pop %v8355
    %v8357 = vmul.f32 %v7849, 1.442695
    %v8358 = vpow.pop %v8357
    %v8359 = vmul.f32 %v7850, 1.442695
    %v8360 = vpow.pop %v8359
    %v8361 = vmul.f32 %v7851, 1.442695
    %v8362 = vpow.pop %v8361
    %v8363 = vmul.f32 %v7852, 1.442695
    %v8364 = vpow.pop %v8363
    %v8365 = vmul.f32 %v7085, %v7854
    %v8366 = vmul.f32 %v7086, %v7856
    %v8367 = vmul.f32 %v7087, %v7858
    %v8368 = vmul.f32 %v7088, %v7860
    %v8369 = vmul.f32 %v7089, %v7862
    %v8370 = vmul.f32 %v7090, %v7864
    %v8371 = vmul.f32 %v7091, %v7866
    %v8372 = vmul.f32 %v7092, %v7868
    %v8373 = vmul.f32 %v7093, %v7870
    %v8374 = vmul.f32 %v7094, %v7872
    %v8375 = vmul.f32 %v7095, %v7874
    %v8376 = vmul.f32 %v7096, %v7876
    %v8377 = vmul.f32 %v7097, %v7878
    %v8378 = vmul.f32 %v7098, %v7880
    %v8379 = vmul.f32 %v7099, %v7882
    %v8380 = vmul.f32 %v7100, %v7884
    %v8381 = vmul.f32 %v7101, %v7886
    %v8382 = vmul.f32 %v7102, %v7888
    %v8383 = vmul.f32 %v7103, %v7890
    %v8384 = vmul.f32 %v7104, %v7892
    %v8385 = vmul.f32 %v7105, %v7894
    %v8386 = vmul.f32 %v7106, %v7896
    %v8387 = vmul.f32 %v7107, %v7898
    %v8388 = vmul.f32 %v7108, %v7900
    %v8389 = vmul.f32 %v7109, %v7902
    %v8390 = vmul.f32 %v7110, %v7904
    %v8391 = vmul.f32 %v7111, %v7906
    %v8392 = vmul.f32 %v7112, %v7908
    %v8393 = vmul.f32 %v7113, %v7910
    %v8394 = vmul.f32 %v7114, %v7912
    %v8395 = vmul.f32 %v7115, %v7914
    %v8396 = vmul.f32 %v7116, %v7916
    %v8397 = vmul.f32 %v7117, %v7918
    %v8398 = vmul.f32 %v7118, %v7920
    %v8399 = vmul.f32 %v7119, %v7922
    %v8400 = vmul.f32 %v7120, %v7924
    %v8401 = vmul.f32 %v7121, %v7926
    %v8402 = vmul.f32 %v7122, %v7928
    %v8403 = vmul.f32 %v7123, %v7930
    %v8404 = vmul.f32 %v7124, %v7932
    %v8405 = vmul.f32 %v7125, %v7934
    %v8406 = vmul.f32 %v7126, %v7936
    %v8407 = vmul.f32 %v7127, %v7938
    %v8408 = vmul.f32 %v7128, %v7940
    %v8409 = vmul.f32 %v7129, %v7942
    %v8410 = vmul.f32 %v7130, %v7944
    %v8411 = vmul.f32 %v7131, %v7946
    %v8412 = vmul.f32 %v7132, %v7948
    %v8413 = vmul.f32 %v7133, %v7950
    %v8414 = vmul.f32 %v7134, %v7952
    %v8415 = vmul.f32 %v7135, %v7954
    %v8416 = vmul.f32 %v7136, %v7956
    %v8417 = vmul.f32 %v7137, %v7958
    %v8418 = vmul.f32 %v7138, %v7960
    %v8419 = vmul.f32 %v7139, %v7962
    %v8420 = vmul.f32 %v7140, %v7964
    %v8421 = vmul.f32 %v7141, %v7966
    %v8422 = vmul.f32 %v7142, %v7968
    %v8423 = vmul.f32 %v7143, %v7970
    %v8424 = vmul.f32 %v7144, %v7972
    %v8425 = vmul.f32 %v7145, %v7974
    %v8426 = vmul.f32 %v7146, %v7976
    %v8427 = vmul.f32 %v7147, %v7978
    %v8428 = vmul.f32 %v7148, %v7980
    %v8429 = vmul.f32 %v7149, %v7982
    %v8430 = vmul.f32 %v7150, %v7984
    %v8431 = vmul.f32 %v7151, %v7986
    %v8432 = vmul.f32 %v7152, %v7988
    %v8433 = vmul.f32 %v7153, %v7990
    %v8434 = vmul.f32 %v7154, %v7992
    %v8435 = vmul.f32 %v7155, %v7994
    %v8436 = vmul.f32 %v7156, %v7996
    %v8437 = vmul.f32 %v7157, %v7998
    %v8438 = vmul.f32 %v7158, %v8000
    %v8439 = vmul.f32 %v7159, %v8002
    %v8440 = vmul.f32 %v7160, %v8004
    %v8441 = vmul.f32 %v7161, %v8006
    %v8442 = vmul.f32 %v7162, %v8008
    %v8443 = vmul.f32 %v7163, %v8010
    %v8444 = vmul.f32 %v7164, %v8012
    %v8445 = vmul.f32 %v7165, %v8014
    %v8446 = vmul.f32 %v7166, %v8016
    %v8447 = vmul.f32 %v7167, %v8018
    %v8448 = vmul.f32 %v7168, %v8020
    %v8449 = vmul.f32 %v7169, %v8022
    %v8450 = vmul.f32 %v7170, %v8024
    %v8451 = vmul.f32 %v7171, %v8026
    %v8452 = vmul.f32 %v7172, %v8028
    %v8453 = vmul.f32 %v7173, %v8030
    %v8454 = vmul.f32 %v7174, %v8032
    %v8455 = vmul.f32 %v7175, %v8034
    %v8456 = vmul.f32 %v7176, %v8036
    %v8457 = vmul.f32 %v7177, %v8038
    %v8458 = vmul.f32 %v7178, %v8040
    %v8459 = vmul.f32 %v7179, %v8042
    %v8460 = vmul.f32 %v7180, %v8044
    %v8461 = vmul.f32 %v7181, %v8046
    %v8462 = vmul.f32 %v7182, %v8048
    %v8463 = vmul.f32 %v7183, %v8050
    %v8464 = vmul.f32 %v7184, %v8052
    %v8465 = vmul.f32 %v7185, %v8054
    %v8466 = vmul.f32 %v7186, %v8056
    %v8467 = vmul.f32 %v7187, %v8058
    %v8468 = vmul.f32 %v7188, %v8060
    %v8469 = vmul.f32 %v7189, %v8062
    %v8470 = vmul.f32 %v7190, %v8064
    %v8471 = vmul.f32 %v7191, %v8066
    %v8472 = vmul.f32 %v7192, %v8068
    %v8473 = vmul.f32 %v7193, %v8070
    %v8474 = vmul.f32 %v7194, %v8072
    %v8475 = vmul.f32 %v7195, %v8074
    %v8476 = vmul.f32 %v7196, %v8076
    %v8477 = vmul.f32 %v7197, %v8078
    %v8478 = vmul.f32 %v7198, %v8080
    %v8479 = vmul.f32 %v7199, %v8082
    %v8480 = vmul.f32 %v7200, %v8084
    %v8481 = vmul.f32 %v7201, %v8086
    %v8482 = vmul.f32 %v7202, %v8088
    %v8483 = vmul.f32 %v7203, %v8090
    %v8484 = vmul.f32 %v7204, %v8092
    %v8485 = vmul.f32 %v7205, %v8094
    %v8486 = vmul.f32 %v7206, %v8096
    %v8487 = vmul.f32 %v7207, %v8098
    %v8488 = vmul.f32 %v7208, %v8100
    %v8489 = vmul.f32 %v7209, %v8102
    %v8490 = vmul.f32 %v7210, %v8104
    %v8491 = vmul.f32 %v7211, %v8106
    %v8492 = vmul.f32 %v7212, %v8108
    %v8493 = vmul.f32 %v7213, %v8110
    %v8494 = vmul.f32 %v7214, %v8112
    %v8495 = vmul.f32 %v7215, %v8114
    %v8496 = vmul.f32 %v7216, %v8116
    %v8497 = vmul.f32 %v7217, %v8118
    %v8498 = vmul.f32 %v7218, %v8120
    %v8499 = vmul.f32 %v7219, %v8122
    %v8500 = vmul.f32 %v7220, %v8124
    %v8501 = vmul.f32 %v7221, %v8126
    %v8502 = vmul.f32 %v7222, %v8128
    %v8503 = vmul.f32 %v7223, %v8130
    %v8504 = vmul.f32 %v7224, %v8132
    %v8505 = vmul.f32 %v7225, %v8134
    %v8506 = vmul.f32 %v7226, %v8136
    %v8507 = vmul.f32 %v7227, %v8138
    %v8508 = vmul.f32 %v7228, %v8140
    %v8509 = vmul.f32 %v7229, %v8142
    %v8510 = vmul.f32 %v7230, %v8144
    %v8511 = vmul.f32 %v7231, %v8146
    %v8512 = vmul.f32 %v7232, %v8148
    %v8513 = vmul.f32 %v7233, %v8150
    %v8514 = vmul.f32 %v7234, %v8152
    %v8515 = vmul.f32 %v7235, %v8154
    %v8516 = vmul.f32 %v7236, %v8156
    %v8517 = vmul.f32 %v7237, %v8158
    %v8518 = vmul.f32 %v7238, %v8160
    %v8519 = vmul.f32 %v7239, %v8162
    %v8520 = vmul.f32 %v7240, %v8164
    %v8521 = vmul.f32 %v7241, %v8166
    %v8522 = vmul.f32 %v7242, %v8168
    %v8523 = vmul.f32 %v7243, %v8170
    %v8524 = vmul.f32 %v7244, %v8172
    %v8525 = vmul.f32 %v7245, %v8174
    %v8526 = vmul.f32 %v7246, %v8176
    %v8527 = vmul.f32 %v7247, %v8178
    %v8528 = vmul.f32 %v7248, %v8180
    %v8529 = vmul.f32 %v7249, %v8182
    %v8530 = vmul.f32 %v7250, %v8184
    %v8531 = vmul.f32 %v7251, %v8186
    %v8532 = vmul.f32 %v7252, %v8188
    %v8533 = vmul.f32 %v7253, %v8190
    %v8534 = vmul.f32 %v7254, %v8192
    %v8535 = vmul.f32 %v7255, %v8194
    %v8536 = vmul.f32 %v7256, %v8196
    %v8537 = vmul.f32 %v7257, %v8198
    %v8538 = vmul.f32 %v7258, %v8200
    %v8539 = vmul.f32 %v7259, %v8202
    %v8540 = vmul.f32 %v7260, %v8204
    %v8541 = vmul.f32 %v7261, %v8206
    %v8542 = vmul.f32 %v7262, %v8208
    %v8543 = vmul.f32 %v7263, %v8210
    %v8544 = vmul.f32 %v7264, %v8212
    %v8545 = vmul.f32 %v7265, %v8214
    %v8546 = vmul.f32 %v7266, %v8216
    %v8547 = vmul.f32 %v7267, %v8218
    %v8548 = vmul.f32 %v7268, %v8220
    %v8549 = vmul.f32 %v7269, %v8222
    %v8550 = vmul.f32 %v7270, %v8224
    %v8551 = vmul.f32 %v7271, %v8226
    %v8552 = vmul.f32 %v7272, %v8228
    %v8553 = vmul.f32 %v7273, %v8230
    %v8554 = vmul.f32 %v7274, %v8232
    %v8555 = vmul.f32 %v7275, %v8234
    %v8556 = vmul.f32 %v7276, %v8236
    %v8557 = vmul.f32 %v7277, %v8238
    %v8558 = vmul.f32 %v7278, %v8240
    %v8559 = vmul.f32 %v7279, %v8242
    %v8560 = vmul.f32 %v7280, %v8244
    %v8561 = vmul.f32 %v7281, %v8246
    %v8562 = vmul.f32 %v7282, %v8248
    %v8563 = vmul.f32 %v7283, %v8250
    %v8564 = vmul.f32 %v7284, %v8252
    %v8565 = vmul.f32 %v7285, %v8254
    %v8566 = vmul.f32 %v7286, %v8256
    %v8567 = vmul.f32 %v7287, %v8258
    %v8568 = vmul.f32 %v7288, %v8260
    %v8569 = vmul.f32 %v7289, %v8262
    %v8570 = vmul.f32 %v7290, %v8264
    %v8571 = vmul.f32 %v7291, %v8266
    %v8572 = vmul.f32 %v7292, %v8268
    %v8573 = vmul.f32 %v7293, %v8270
    %v8574 = vmul.f32 %v7294, %v8272
    %v8575 = vmul.f32 %v7295, %v8274
    %v8576 = vmul.f32 %v7296, %v8276
    %v8577 = vmul.f32 %v7297, %v8278
    %v8578 = vmul.f32 %v7298, %v8280
    %v8579 = vmul.f32 %v7299, %v8282
    %v8580 = vmul.f32 %v7300, %v8284
    %v8581 = vmul.f32 %v7301, %v8286
    %v8582 = vmul.f32 %v7302, %v8288
    %v8583 = vmul.f32 %v7303, %v8290
    %v8584 = vmul.f32 %v7304, %v8292
    %v8585 = vmul.f32 %v7305, %v8294
    %v8586 = vmul.f32 %v7306, %v8296
    %v8587 = vmul.f32 %v7307, %v8298
    %v8588 = vmul.f32 %v7308, %v8300
    %v8589 = vmul.f32 %v7309, %v8302
    %v8590 = vmul.f32 %v7310, %v8304
    %v8591 = vmul.f32 %v7311, %v8306
    %v8592 = vmul.f32 %v7312, %v8308
    %v8593 = vmul.f32 %v7313, %v8310
    %v8594 = vmul.f32 %v7314, %v8312
    %v8595 = vmul.f32 %v7315, %v8314
    %v8596 = vmul.f32 %v7316, %v8316
    %v8597 = vmul.f32 %v7317, %v8318
    %v8598 = vmul.f32 %v7318, %v8320
    %v8599 = vmul.f32 %v7319, %v8322
    %v8600 = vmul.f32 %v7320, %v8324
    %v8601 = vmul.f32 %v7321, %v8326
    %v8602 = vmul.f32 %v7322, %v8328
    %v8603 = vmul.f32 %v7323, %v8330
    %v8604 = vmul.f32 %v7324, %v8332
    %v8605 = vmul.f32 %v7325, %v8334
    %v8606 = vmul.f32 %v7326, %v8336
    %v8607 = vmul.f32 %v7327, %v8338
    %v8608 = vmul.f32 %v7328, %v8340
    %v8609 = vmul.f32 %v7329, %v8342
    %v8610 = vmul.f32 %v7330, %v8344
    %v8611 = vmul.f32 %v7331, %v8346
    %v8612 = vmul.f32 %v7332, %v8348
    %v8613 = vmul.f32 %v7333, %v8350
    %v8614 = vmul.f32 %v7334, %v8352
    %v8615 = vmul.f32 %v7335, %v8354
    %v8616 = vmul.f32 %v7336, %v8356
    %v8617 = vmul.f32 %v7337, %v8358
    %v8618 = vmul.f32 %v7338, %v8360
    %v8619 = vmul.f32 %v7339, %v8362
    %v8620 = vmul.f32 %v7340, %v8364
    %v8621 = vsub.f32 1.0, %v8365
    %v8622 = vsub.f32 1.0, %v8366
    %v8623 = vsub.f32 1.0, %v8367
    %v8624 = vsub.f32 1.0, %v8368
    %v8625 = vsub.f32 1.0, %v8369
    %v8626 = vsub.f32 1.0, %v8370
    %v8627 = vsub.f32 1.0, %v8371
    %v8628 = vsub.f32 1.0, %v8372
    %v8629 = vsub.f32 1.0, %v8373
    %v8630 = vsub.f32 1.0, %v8374
    %v8631 = vsub.f32 1.0, %v8375
    %v8632 = vsub.f32 1.0, %v8376
    %v8633 = vsub.f32 1.0, %v8377
    %v8634 = vsub.f32 1.0, %v8378
    %v8635 = vsub.f32 1.0, %v8379
    %v8636 = vsub.f32 1.0, %v8380
    %v8637 = vsub.f32 1.0, %v8381
    %v8638 = vsub.f32 1.0, %v8382
    %v8639 = vsub.f32 1.0, %v8383
    %v8640 = vsub.f32 1.0, %v8384
    %v8641 = vsub.f32 1.0, %v8385
    %v8642 = vsub.f32 1.0, %v8386
    %v8643 = vsub.f32 1.0, %v8387
    %v8644 = vsub.f32 1.0, %v8388
    %v8645 = vsub.f32 1.0, %v8389
    %v8646 = vsub.f32 1.0, %v8390
    %v8647 = vsub.f32 1.0, %v8391
    %v8648 = vsub.f32 1.0, %v8392
    %v8649 = vsub.f32 1.0, %v8393
    %v8650 = vsub.f32 1.0, %v8394
    %v8651 = vsub.f32 1.0, %v8395
    %v8652 = vsub.f32 1.0, %v8396
    %v8653 = vsub.f32 1.0, %v8397
    %v8654 = vsub.f32 1.0, %v8398
    %v8655 = vsub.f32 1.0, %v8399
    %v8656 = vsub.f32 1.0, %v8400
    %v8657 = vsub.f32 1.0, %v8401
    %v8658 = vsub.f32 1.0, %v8402
    %v8659 = vsub.f32 1.0, %v8403
    %v8660 = vsub.f32 1.0, %v8404
    %v8661 = vsub.f32 1.0, %v8405
    %v8662 = vsub.f32 1.0, %v8406
    %v8663 = vsub.f32 1.0, %v8407
    %v8664 = vsub.f32 1.0, %v8408
    %v8665 = vsub.f32 1.0, %v8409
    %v8666 = vsub.f32 1.0, %v8410
    %v8667 = vsub.f32 1.0, %v8411
    %v8668 = vsub.f32 1.0, %v8412
    %v8669 = vsub.f32 1.0, %v8413
    %v8670 = vsub.f32 1.0, %v8414
    %v8671 = vsub.f32 1.0, %v8415
    %v8672 = vsub.f32 1.0, %v8416
    %v8673 = vsub.f32 1.0, %v8417
    %v8674 = vsub.f32 1.0, %v8418
    %v8675 = vsub.f32 1.0, %v8419
    %v8676 = vsub.f32 1.0, %v8420
    %v8677 = vsub.f32 1.0, %v8421
    %v8678 = vsub.f32 1.0, %v8422
    %v8679 = vsub.f32 1.0, %v8423
    %v8680 = vsub.f32 1.0, %v8424
    %v8681 = vsub.f32 1.0, %v8425
    %v8682 = vsub.f32 1.0, %v8426
    %v8683 = vsub.f32 1.0, %v8427
    %v8684 = vsub.f32 1.0, %v8428
    %v8685 = vsub.f32 1.0, %v8429
    %v8686 = vsub.f32 1.0, %v8430
    %v8687 = vsub.f32 1.0, %v8431
    %v8688 = vsub.f32 1.0, %v8432
    %v8689 = vsub.f32 1.0, %v8433
    %v8690 = vsub.f32 1.0, %v8434
    %v8691 = vsub.f32 1.0, %v8435
    %v8692 = vsub.f32 1.0, %v8436
    %v8693 = vsub.f32 1.0, %v8437
    %v8694 = vsub.f32 1.0, %v8438
    %v8695 = vsub.f32 1.0, %v8439
    %v8696 = vsub.f32 1.0, %v8440
    %v8697 = vsub.f32 1.0, %v8441
    %v8698 = vsub.f32 1.0, %v8442
    %v8699 = vsub.f32 1.0, %v8443
    %v8700 = vsub.f32 1.0, %v8444
    %v8701 = vsub.f32 1.0, %v8445
    %v8702 = vsub.f32 1.0, %v8446
    %v8703 = vsub.f32 1.0, %v8447
    %v8704 = vsub.f32 1.0, %v8448
    %v8705 = vsub.f32 1.0, %v8449
    %v8706 = vsub.f32 1.0, %v8450
    %v8707 = vsub.f32 1.0, %v8451
    %v8708 = vsub.f32 1.0, %v8452
    %v8709 = vsub.f32 1.0, %v8453
    %v8710 = vsub.f32 1.0, %v8454
    %v8711 = vsub.f32 1.0, %v8455
    %v8712 = vsub.f32 1.0, %v8456
    %v8713 = vsub.f32 1.0, %v8457
    %v8714 = vsub.f32 1.0, %v8458
    %v8715 = vsub.f32 1.0, %v8459
    %v8716 = vsub.f32 1.0, %v8460
    %v8717 = vsub.f32 1.0, %v8461
    %v8718 = vsub.f32 1.0, %v8462
    %v8719 = vsub.f32 1.0, %v8463
    %v8720 = vsub.f32 1.0, %v8464
    %v8721 = vsub.f32 1.0, %v8465
    %v8722 = vsub.f32 1.0, %v8466
    %v8723 = vsub.f32 1.0, %v8467
    %v8724 = vsub.f32 1.0, %v8468
    %v8725 = vsub.f32 1.0, %v8469
    %v8726 = vsub.f32 1.0, %v8470
    %v8727 = vsub.f32 1.0, %v8471
    %v8728 = vsub.f32 1.0, %v8472
    %v8729 = vsub.f32 1.0, %v8473
    %v8730 = vsub.f32 1.0, %v8474
    %v8731 = vsub.f32 1.0, %v8475
    %v8732 = vsub.f32 1.0, %v8476
    %v8733 = vsub.f32 1.0, %v8477
    %v8734 = vsub.f32 1.0, %v8478
    %v8735 = vsub.f32 1.0, %v8479
    %v8736 = vsub.f32 1.0, %v8480
    %v8737 = vsub.f32 1.0, %v8481
    %v8738 = vsub.f32 1.0, %v8482
    %v8739 = vsub.f32 1.0, %v8483
    %v8740 = vsub.f32 1.0, %v8484
    %v8741 = vsub.f32 1.0, %v8485
    %v8742 = vsub.f32 1.0, %v8486
    %v8743 = vsub.f32 1.0, %v8487
    %v8744 = vsub.f32 1.0, %v8488
    %v8745 = vsub.f32 1.0, %v8489
    %v8746 = vsub.f32 1.0, %v8490
    %v8747 = vsub.f32 1.0, %v8491
    %v8748 = vsub.f32 1.0, %v8492
    %v8749 = vsub.f32 1.0, %v8493
    %v8750 = vsub.f32 1.0, %v8494
    %v8751 = vsub.f32 1.0, %v8495
    %v8752 = vsub.f32 1.0, %v8496
    %v8753 = vsub.f32 1.0, %v8497
    %v8754 = vsub.f32 1.0, %v8498
    %v8755 = vsub.f32 1.0, %v8499
    %v8756 = vsub.f32 1.0, %v8500
    %v8757 = vsub.f32 1.0, %v8501
    %v8758 = vsub.f32 1.0, %v8502
    %v8759 = vsub.f32 1.0, %v8503
    %v8760 = vsub.f32 1.0, %v8504
    %v8761 = vsub.f32 1.0, %v8505
    %v8762 = vsub.f32 1.0, %v8506
    %v8763 = vsub.f32 1.0, %v8507
    %v8764 = vsub.f32 1.0, %v8508
    %v8765 = vsub.f32 1.0, %v8509
    %v8766 = vsub.f32 1.0, %v8510
    %v8767 = vsub.f32 1.0, %v8511
    %v8768 = vsub.f32 1.0, %v8512
    %v8769 = vsub.f32 1.0, %v8513
    %v8770 = vsub.f32 1.0, %v8514
    %v8771 = vsub.f32 1.0, %v8515
    %v8772 = vsub.f32 1.0, %v8516
    %v8773 = vsub.f32 1.0, %v8517
    %v8774 = vsub.f32 1.0, %v8518
    %v8775 = vsub.f32 1.0, %v8519
    %v8776 = vsub.f32 1.0, %v8520
    %v8777 = vsub.f32 1.0, %v8521
    %v8778 = vsub.f32 1.0, %v8522
    %v8779 = vsub.f32 1.0, %v8523
    %v8780 = vsub.f32 1.0, %v8524
    %v8781 = vsub.f32 1.0, %v8525
    %v8782 = vsub.f32 1.0, %v8526
    %v8783 = vsub.f32 1.0, %v8527
    %v8784 = vsub.f32 1.0, %v8528
    %v8785 = vsub.f32 1.0, %v8529
    %v8786 = vsub.f32 1.0, %v8530
    %v8787 = vsub.f32 1.0, %v8531
    %v8788 = vsub.f32 1.0, %v8532
    %v8789 = vsub.f32 1.0, %v8533
    %v8790 = vsub.f32 1.0, %v8534
    %v8791 = vsub.f32 1.0, %v8535
    %v8792 = vsub.f32 1.0, %v8536
    %v8793 = vsub.f32 1.0, %v8537
    %v8794 = vsub.f32 1.0, %v8538
    %v8795 = vsub.f32 1.0, %v8539
    %v8796 = vsub.f32 1.0, %v8540
    %v8797 = vsub.f32 1.0, %v8541
    %v8798 = vsub.f32 1.0, %v8542
    %v8799 = vsub.f32 1.0, %v8543
    %v8800 = vsub.f32 1.0, %v8544
    %v8801 = vsub.f32 1.0, %v8545
    %v8802 = vsub.f32 1.0, %v8546
    %v8803 = vsub.f32 1.0, %v8547
    %v8804 = vsub.f32 1.0, %v8548
    %v8805 = vsub.f32 1.0, %v8549
    %v8806 = vsub.f32 1.0, %v8550
    %v8807 = vsub.f32 1.0, %v8551
    %v8808 = vsub.f32 1.0, %v8552
    %v8809 = vsub.f32 1.0, %v8553
    %v8810 = vsub.f32 1.0, %v8554
    %v8811 = vsub.f32 1.0, %v8555
    %v8812 = vsub.f32 1.0, %v8556
    %v8813 = vsub.f32 1.0, %v8557
    %v8814 = vsub.f32 1.0, %v8558
    %v8815 = vsub.f32 1.0, %v8559
    %v8816 = vsub.f32 1.0, %v8560
    %v8817 = vsub.f32 1.0, %v8561
    %v8818 = vsub.f32 1.0, %v8562
    %v8819 = vsub.f32 1.0, %v8563
    %v8820 = vsub.f32 1.0, %v8564
    %v8821 = vsub.f32 1.0, %v8565
    %v8822 = vsub.f32 1.0, %v8566
    %v8823 = vsub.f32 1.0, %v8567
    %v8824 = vsub.f32 1.0, %v8568
    %v8825 = vsub.f32 1.0, %v8569
    %v8826 = vsub.f32 1.0, %v8570
    %v8827 = vsub.f32 1.0, %v8571
    %v8828 = vsub.f32 1.0, %v8572
    %v8829 = vsub.f32 1.0, %v8573
    %v8830 = vsub.f32 1.0, %v8574
    %v8831 = vsub.f32 1.0, %v8575
    %v8832 = vsub.f32 1.0, %v8576
    %v8833 = vsub.f32 1.0, %v8577
    %v8834 = vsub.f32 1.0, %v8578
    %v8835 = vsub.f32 1.0, %v8579
    %v8836 = vsub.f32 1.0, %v8580
    %v8837 = vsub.f32 1.0, %v8581
    %v8838 = vsub.f32 1.0, %v8582
    %v8839 = vsub.f32 1.0, %v8583
    %v8840 = vsub.f32 1.0, %v8584
    %v8841 = vsub.f32 1.0, %v8585
    %v8842 = vsub.f32 1.0, %v8586
    %v8843 = vsub.f32 1.0, %v8587
    %v8844 = vsub.f32 1.0, %v8588
    %v8845 = vsub.f32 1.0, %v8589
    %v8846 = vsub.f32 1.0, %v8590
    %v8847 = vsub.f32 1.0, %v8591
    %v8848 = vsub.f32 1.0, %v8592
    %v8849 = vsub.f32 1.0, %v8593
    %v8850 = vsub.f32 1.0, %v8594
    %v8851 = vsub.f32 1.0, %v8595
    %v8852 = vsub.f32 1.0, %v8596
    %v8853 = vsub.f32 1.0, %v8597
    %v8854 = vsub.f32 1.0, %v8598
    %v8855 = vsub.f32 1.0, %v8599
    %v8856 = vsub.f32 1.0, %v8600
    %v8857 = vsub.f32 1.0, %v8601
    %v8858 = vsub.f32 1.0, %v8602
    %v8859 = vsub.f32 1.0, %v8603
    %v8860 = vsub.f32 1.0, %v8604
    %v8861 = vsub.f32 1.0, %v8605
    %v8862 = vsub.f32 1.0, %v8606
    %v8863 = vsub.f32 1.0, %v8607
    %v8864 = vsub.f32 1.0, %v8608
    %v8865 = vsub.f32 1.0, %v8609
    %v8866 = vsub.f32 1.0, %v8610
    %v8867 = vsub.f32 1.0, %v8611
    %v8868 = vsub.f32 1.0, %v8612
    %v8869 = vsub.f32 1.0, %v8613
    %v8870 = vsub.f32 1.0, %v8614
    %v8871 = vsub.f32 1.0, %v8615
    %v8872 = vsub.f32 1.0, %v8616
    %v8873 = vsub.f32 1.0, %v8617
    %v8874 = vsub.f32 1.0, %v8618
    %v8875 = vsub.f32 1.0, %v8619
    %v8876 = vsub.f32 1.0, %v8620
    %v8877 = vmul.f32 %v3501, %v8621
    %v8878 = vmul.f32 %v3502, %v8622
    %v8879 = vmul.f32 %v3503, %v8623
    %v8880 = vmul.f32 %v3504, %v8624
    %v8881 = vmul.f32 %v3505, %v8625
    %v8882 = vmul.f32 %v3506, %v8626
    %v8883 = vmul.f32 %v3507, %v8627
    %v8884 = vmul.f32 %v3508, %v8628
    %v8885 = vmul.f32 %v3509, %v8629
    %v8886 = vmul.f32 %v3510, %v8630
    %v8887 = vmul.f32 %v3511, %v8631
    %v8888 = vmul.f32 %v3512, %v8632
    %v8889 = vmul.f32 %v3513, %v8633
    %v8890 = vmul.f32 %v3514, %v8634
    %v8891 = vmul.f32 %v3515, %v8635
    %v8892 = vmul.f32 %v3516, %v8636
    %v8893 = vmul.f32 %v3517, %v8637
    %v8894 = vmul.f32 %v3518, %v8638
    %v8895 = vmul.f32 %v3519, %v8639
    %v8896 = vmul.f32 %v3520, %v8640
    %v8897 = vmul.f32 %v3521, %v8641
    %v8898 = vmul.f32 %v3522, %v8642
    %v8899 = vmul.f32 %v3523, %v8643
    %v8900 = vmul.f32 %v3524, %v8644
    %v8901 = vmul.f32 %v3525, %v8645
    %v8902 = vmul.f32 %v3526, %v8646
    %v8903 = vmul.f32 %v3527, %v8647
    %v8904 = vmul.f32 %v3528, %v8648
    %v8905 = vmul.f32 %v3529, %v8649
    %v8906 = vmul.f32 %v3530, %v8650
    %v8907 = vmul.f32 %v3531, %v8651
    %v8908 = vmul.f32 %v3532, %v8652
    %v8909 = vmul.f32 %v3533, %v8653
    %v8910 = vmul.f32 %v3534, %v8654
    %v8911 = vmul.f32 %v3535, %v8655
    %v8912 = vmul.f32 %v3536, %v8656
    %v8913 = vmul.f32 %v3537, %v8657
    %v8914 = vmul.f32 %v3538, %v8658
    %v8915 = vmul.f32 %v3539, %v8659
    %v8916 = vmul.f32 %v3540, %v8660
    %v8917 = vmul.f32 %v3541, %v8661
    %v8918 = vmul.f32 %v3542, %v8662
    %v8919 = vmul.f32 %v3543, %v8663
    %v8920 = vmul.f32 %v3544, %v8664
    %v8921 = vmul.f32 %v3545, %v8665
    %v8922 = vmul.f32 %v3546, %v8666
    %v8923 = vmul.f32 %v3547, %v8667
    %v8924 = vmul.f32 %v3548, %v8668
    %v8925 = vmul.f32 %v3549, %v8669
    %v8926 = vmul.f32 %v3550, %v8670
    %v8927 = vmul.f32 %v3551, %v8671
    %v8928 = vmul.f32 %v3552, %v8672
    %v8929 = vmul.f32 %v3553, %v8673
    %v8930 = vmul.f32 %v3554, %v8674
    %v8931 = vmul.f32 %v3555, %v8675
    %v8932 = vmul.f32 %v3556, %v8676
    %v8933 = vmul.f32 %v3557, %v8677
    %v8934 = vmul.f32 %v3558, %v8678
    %v8935 = vmul.f32 %v3559, %v8679
    %v8936 = vmul.f32 %v3560, %v8680
    %v8937 = vmul.f32 %v3561, %v8681
    %v8938 = vmul.f32 %v3562, %v8682
    %v8939 = vmul.f32 %v3563, %v8683
    %v8940 = vmul.f32 %v3564, %v8684
    %v8941 = vmul.f32 %v3565, %v8685
    %v8942 = vmul.f32 %v3566, %v8686
    %v8943 = vmul.f32 %v3567, %v8687
    %v8944 = vmul.f32 %v3568, %v8688
    %v8945 = vmul.f32 %v3569, %v8689
    %v8946 = vmul.f32 %v3570, %v8690
    %v8947 = vmul.f32 %v3571, %v8691
    %v8948 = vmul.f32 %v3572, %v8692
    %v8949 = vmul.f32 %v3573, %v8693
    %v8950 = vmul.f32 %v3574, %v8694
    %v8951 = vmul.f32 %v3575, %v8695
    %v8952 = vmul.f32 %v3576, %v8696
    %v8953 = vmul.f32 %v3577, %v8697
    %v8954 = vmul.f32 %v3578, %v8698
    %v8955 = vmul.f32 %v3579, %v8699
    %v8956 = vmul.f32 %v3580, %v8700
    %v8957 = vmul.f32 %v3581, %v8701
    %v8958 = vmul.f32 %v3582, %v8702
    %v8959 = vmul.f32 %v3583, %v8703
    %v8960 = vmul.f32 %v3584, %v8704
    %v8961 = vmul.f32 %v3585, %v8705
    %v8962 = vmul.f32 %v3586, %v8706
    %v8963 = vmul.f32 %v3587, %v8707
    %v8964 = vmul.f32 %v3588, %v8708
    %v8965 = vmul.f32 %v3589, %v8709
    %v8966 = vmul.f32 %v3590, %v8710
    %v8967 = vmul.f32 %v3591, %v8711
    %v8968 = vmul.f32 %v3592, %v8712
    %v8969 = vmul.f32 %v3593, %v8713
    %v8970 = vmul.f32 %v3594, %v8714
    %v8971 = vmul.f32 %v3595, %v8715
    %v8972 = vmul.f32 %v3596, %v8716
    %v8973 = vmul.f32 %v3597, %v8717
    %v8974 = vmul.f32 %v3598, %v8718
    %v8975 = vmul.f32 %v3599, %v8719
    %v8976 = vmul.f32 %v3600, %v8720
    %v8977 = vmul.f32 %v3601, %v8721
    %v8978 = vmul.f32 %v3602, %v8722
    %v8979 = vmul.f32 %v3603, %v8723
    %v8980 = vmul.f32 %v3604, %v8724
    %v8981 = vmul.f32 %v3605, %v8725
    %v8982 = vmul.f32 %v3606, %v8726
    %v8983 = vmul.f32 %v3607, %v8727
    %v8984 = vmul.f32 %v3608, %v8728
    %v8985 = vmul.f32 %v3609, %v8729
    %v8986 = vmul.f32 %v3610, %v8730
    %v8987 = vmul.f32 %v3611, %v8731
    %v8988 = vmul.f32 %v3612, %v8732
    %v8989 = vmul.f32 %v3613, %v8733
    %v8990 = vmul.f32 %v3614, %v8734
    %v8991 = vmul.f32 %v3615, %v8735
    %v8992 = vmul.f32 %v3616, %v8736
    %v8993 = vmul.f32 %v3617, %v8737
    %v8994 = vmul.f32 %v3618, %v8738
    %v8995 = vmul.f32 %v3619, %v8739
    %v8996 = vmul.f32 %v3620, %v8740
    %v8997 = vmul.f32 %v3621, %v8741
    %v8998 = vmul.f32 %v3622, %v8742
    %v8999 = vmul.f32 %v3623, %v8743
    %v9000 = vmul.f32 %v3624, %v8744
    %v9001 = vmul.f32 %v3625, %v8745
    %v9002 = vmul.f32 %v3626, %v8746
    %v9003 = vmul.f32 %v3627, %v8747
    %v9004 = vmul.f32 %v3628, %v8748
    %v9005 = vmul.f32 %v3629, %v8749
    %v9006 = vmul.f32 %v3630, %v8750
    %v9007 = vmul.f32 %v3631, %v8751
    %v9008 = vmul.f32 %v3632, %v8752
    %v9009 = vmul.f32 %v3633, %v8753
    %v9010 = vmul.f32 %v3634, %v8754
    %v9011 = vmul.f32 %v3635, %v8755
    %v9012 = vmul.f32 %v3636, %v8756
    %v9013 = vmul.f32 %v3637, %v8757
    %v9014 = vmul.f32 %v3638, %v8758
    %v9015 = vmul.f32 %v3639, %v8759
    %v9016 = vmul.f32 %v3640, %v8760
    %v9017 = vmul.f32 %v3641, %v8761
    %v9018 = vmul.f32 %v3642, %v8762
    %v9019 = vmul.f32 %v3643, %v8763
    %v9020 = vmul.f32 %v3644, %v8764
    %v9021 = vmul.f32 %v3645, %v8765
    %v9022 = vmul.f32 %v3646, %v8766
    %v9023 = vmul.f32 %v3647, %v8767
    %v9024 = vmul.f32 %v3648, %v8768
    %v9025 = vmul.f32 %v3649, %v8769
    %v9026 = vmul.f32 %v3650, %v8770
    %v9027 = vmul.f32 %v3651, %v8771
    %v9028 = vmul.f32 %v3652, %v8772
    %v9029 = vmul.f32 %v3653, %v8773
    %v9030 = vmul.f32 %v3654, %v8774
    %v9031 = vmul.f32 %v3655, %v8775
    %v9032 = vmul.f32 %v3656, %v8776
    %v9033 = vmul.f32 %v3657, %v8777
    %v9034 = vmul.f32 %v3658, %v8778
    %v9035 = vmul.f32 %v3659, %v8779
    %v9036 = vmul.f32 %v3660, %v8780
    %v9037 = vmul.f32 %v3661, %v8781
    %v9038 = vmul.f32 %v3662, %v8782
    %v9039 = vmul.f32 %v3663, %v8783
    %v9040 = vmul.f32 %v3664, %v8784
    %v9041 = vmul.f32 %v3665, %v8785
    %v9042 = vmul.f32 %v3666, %v8786
    %v9043 = vmul.f32 %v3667, %v8787
    %v9044 = vmul.f32 %v3668, %v8788
    %v9045 = vmul.f32 %v3669, %v8789
    %v9046 = vmul.f32 %v3670, %v8790
    %v9047 = vmul.f32 %v3671, %v8791
    %v9048 = vmul.f32 %v3672, %v8792
    %v9049 = vmul.f32 %v3673, %v8793
    %v9050 = vmul.f32 %v3674, %v8794
    %v9051 = vmul.f32 %v3675, %v8795
    %v9052 = vmul.f32 %v3676, %v8796
    %v9053 = vmul.f32 %v3677, %v8797
    %v9054 = vmul.f32 %v3678, %v8798
    %v9055 = vmul.f32 %v3679, %v8799
    %v9056 = vmul.f32 %v3680, %v8800
    %v9057 = vmul.f32 %v3681, %v8801
    %v9058 = vmul.f32 %v3682, %v8802
    %v9059 = vmul.f32 %v3683, %v8803
    %v9060 = vmul.f32 %v3684, %v8804
    %v9061 = vmul.f32 %v3685, %v8805
    %v9062 = vmul.f32 %v3686, %v8806
    %v9063 = vmul.f32 %v3687, %v8807
    %v9064 = vmul.f32 %v3688, %v8808
    %v9065 = vmul.f32 %v3689, %v8809
    %v9066 = vmul.f32 %v3690, %v8810
    %v9067 = vmul.f32 %v3691, %v8811
    %v9068 = vmul.f32 %v3692, %v8812
    %v9069 = vmul.f32 %v3693, %v8813
    %v9070 = vmul.f32 %v3694, %v8814
    %v9071 = vmul.f32 %v3695, %v8815
    %v9072 = vmul.f32 %v3696, %v8816
    %v9073 = vmul.f32 %v3697, %v8817
    %v9074 = vmul.f32 %v3698, %v8818
    %v9075 = vmul.f32 %v3699, %v8819
    %v9076 = vmul.f32 %v3700, %v8820
    %v9077 = vmul.f32 %v3701, %v8821
    %v9078 = vmul.f32 %v3702, %v8822
    %v9079 = vmul.f32 %v3703, %v8823
    %v9080 = vmul.f32 %v3704, %v8824
    %v9081 = vmul.f32 %v3705, %v8825
    %v9082 = vmul.f32 %v3706, %v8826
    %v9083 = vmul.f32 %v3707, %v8827
    %v9084 = vmul.f32 %v3708, %v8828
    %v9085 = vmul.f32 %v3709, %v8829
    %v9086 = vmul.f32 %v3710, %v8830
    %v9087 = vmul.f32 %v3711, %v8831
    %v9088 = vmul.f32 %v3712, %v8832
    %v9089 = vmul.f32 %v3713, %v8833
    %v9090 = vmul.f32 %v3714, %v8834
    %v9091 = vmul.f32 %v3715, %v8835
    %v9092 = vmul.f32 %v3716, %v8836
    %v9093 = vmul.f32 %v3717, %v8837
    %v9094 = vmul.f32 %v3718, %v8838
    %v9095 = vmul.f32 %v3719, %v8839
    %v9096 = vmul.f32 %v3720, %v8840
    %v9097 = vmul.f32 %v3721, %v8841
    %v9098 = vmul.f32 %v3722, %v8842
    %v9099 = vmul.f32 %v3723, %v8843
    %v9100 = vmul.f32 %v3724, %v8844
    %v9101 = vmul.f32 %v3725, %v8845
    %v9102 = vmul.f32 %v3726, %v8846
    %v9103 = vmul.f32 %v3727, %v8847
    %v9104 = vmul.f32 %v3728, %v8848
    %v9105 = vmul.f32 %v3729, %v8849
    %v9106 = vmul.f32 %v3730, %v8850
    %v9107 = vmul.f32 %v3731, %v8851
    %v9108 = vmul.f32 %v3732, %v8852
    %v9109 = vmul.f32 %v3733, %v8853
    %v9110 = vmul.f32 %v3734, %v8854
    %v9111 = vmul.f32 %v3735, %v8855
    %v9112 = vmul.f32 %v3736, %v8856
    %v9113 = vmul.f32 %v3737, %v8857
    %v9114 = vmul.f32 %v3738, %v8858
    %v9115 = vmul.f32 %v3739, %v8859
    %v9116 = vmul.f32 %v3740, %v8860
    %v9117 = vmul.f32 %v3741, %v8861
    %v9118 = vmul.f32 %v3742, %v8862
    %v9119 = vmul.f32 %v3743, %v8863
    %v9120 = vmul.f32 %v3744, %v8864
    %v9121 = vmul.f32 %v3745, %v8865
    %v9122 = vmul.f32 %v3746, %v8866
    %v9123 = vmul.f32 %v3747, %v8867
    %v9124 = vmul.f32 %v3748, %v8868
    %v9125 = vmul.f32 %v3749, %v8869
    %v9126 = vmul.f32 %v3750, %v8870
    %v9127 = vmul.f32 %v3751, %v8871
    %v9128 = vmul.f32 %v3752, %v8872
    %v9129 = vmul.f32 %v3753, %v8873
    %v9130 = vmul.f32 %v3754, %v8874
    %v9131 = vmul.f32 %v3755, %v8875
    %v9132 = vmul.f32 %v3756, %v8876
    %v9133 = vadd.f32 %v8877, 1.0
    %v9134 = vadd.f32 %v8878, 1.0
    %v9135 = vadd.f32 %v8879, 1.0
    %v9136 = vadd.f32 %v8880, 1.0
    %v9137 = vadd.f32 %v8881, 1.0
    %v9138 = vadd.f32 %v8882, 1.0
    %v9139 = vadd.f32 %v8883, 1.0
    %v9140 = vadd.f32 %v8884, 1.0
    %v9141 = vadd.f32 %v8885, 1.0
    %v9142 = vadd.f32 %v8886, 1.0
    %v9143 = vadd.f32 %v8887, 1.0
    %v9144 = vadd.f32 %v8888, 1.0
    %v9145 = vadd.f32 %v8889, 1.0
    %v9146 = vadd.f32 %v8890, 1.0
    %v9147 = vadd.f32 %v8891, 1.0
    %v9148 = vadd.f32 %v8892, 1.0
    %v9149 = vadd.f32 %v8893, 1.0
    %v9150 = vadd.f32 %v8894, 1.0
    %v9151 = vadd.f32 %v8895, 1.0
    %v9152 = vadd.f32 %v8896, 1.0
    %v9153 = vadd.f32 %v8897, 1.0
    %v9154 = vadd.f32 %v8898, 1.0
    %v9155 = vadd.f32 %v8899, 1.0
    %v9156 = vadd.f32 %v8900, 1.0
    %v9157 = vadd.f32 %v8901, 1.0
    %v9158 = vadd.f32 %v8902, 1.0
    %v9159 = vadd.f32 %v8903, 1.0
    %v9160 = vadd.f32 %v8904, 1.0
    %v9161 = vadd.f32 %v8905, 1.0
    %v9162 = vadd.f32 %v8906, 1.0
    %v9163 = vadd.f32 %v8907, 1.0
    %v9164 = vadd.f32 %v8908, 1.0
    %v9165 = vadd.f32 %v8909, 1.0
    %v9166 = vadd.f32 %v8910, 1.0
    %v9167 = vadd.f32 %v8911, 1.0
    %v9168 = vadd.f32 %v8912, 1.0
    %v9169 = vadd.f32 %v8913, 1.0
    %v9170 = vadd.f32 %v8914, 1.0
    %v9171 = vadd.f32 %v8915, 1.0
    %v9172 = vadd.f32 %v8916, 1.0
    %v9173 = vadd.f32 %v8917, 1.0
    %v9174 = vadd.f32 %v8918, 1.0
    %v9175 = vadd.f32 %v8919, 1.0
    %v9176 = vadd.f32 %v8920, 1.0
    %v9177 = vadd.f32 %v8921, 1.0
    %v9178 = vadd.f32 %v8922, 1.0
    %v9179 = vadd.f32 %v8923, 1.0
    %v9180 = vadd.f32 %v8924, 1.0
    %v9181 = vadd.f32 %v8925, 1.0
    %v9182 = vadd.f32 %v8926, 1.0
    %v9183 = vadd.f32 %v8927, 1.0
    %v9184 = vadd.f32 %v8928, 1.0
    %v9185 = vadd.f32 %v8929, 1.0
    %v9186 = vadd.f32 %v8930, 1.0
    %v9187 = vadd.f32 %v8931, 1.0
    %v9188 = vadd.f32 %v8932, 1.0
    %v9189 = vadd.f32 %v8933, 1.0
    %v9190 = vadd.f32 %v8934, 1.0
    %v9191 = vadd.f32 %v8935, 1.0
    %v9192 = vadd.f32 %v8936, 1.0
    %v9193 = vadd.f32 %v8937, 1.0
    %v9194 = vadd.f32 %v8938, 1.0
    %v9195 = vadd.f32 %v8939, 1.0
    %v9196 = vadd.f32 %v8940, 1.0
    %v9197 = vadd.f32 %v8941, 1.0
    %v9198 = vadd.f32 %v8942, 1.0
    %v9199 = vadd.f32 %v8943, 1.0
    %v9200 = vadd.f32 %v8944, 1.0
    %v9201 = vadd.f32 %v8945, 1.0
    %v9202 = vadd.f32 %v8946, 1.0
    %v9203 = vadd.f32 %v8947, 1.0
    %v9204 = vadd.f32 %v8948, 1.0
    %v9205 = vadd.f32 %v8949, 1.0
    %v9206 = vadd.f32 %v8950, 1.0
    %v9207 = vadd.f32 %v8951, 1.0
    %v9208 = vadd.f32 %v8952, 1.0
    %v9209 = vadd.f32 %v8953, 1.0
    %v9210 = vadd.f32 %v8954, 1.0
    %v9211 = vadd.f32 %v8955, 1.0
    %v9212 = vadd.f32 %v8956, 1.0
    %v9213 = vadd.f32 %v8957, 1.0
    %v9214 = vadd.f32 %v8958, 1.0
    %v9215 = vadd.f32 %v8959, 1.0
    %v9216 = vadd.f32 %v8960, 1.0
    %v9217 = vadd.f32 %v8961, 1.0
    %v9218 = vadd.f32 %v8962, 1.0
    %v9219 = vadd.f32 %v8963, 1.0
    %v9220 = vadd.f32 %v8964, 1.0
    %v9221 = vadd.f32 %v8965, 1.0
    %v9222 = vadd.f32 %v8966, 1.0
    %v9223 = vadd.f32 %v8967, 1.0
    %v9224 = vadd.f32 %v8968, 1.0
    %v9225 = vadd.f32 %v8969, 1.0
    %v9226 = vadd.f32 %v8970, 1.0
    %v9227 = vadd.f32 %v8971, 1.0
    %v9228 = vadd.f32 %v8972, 1.0
    %v9229 = vadd.f32 %v8973, 1.0
    %v9230 = vadd.f32 %v8974, 1.0
    %v9231 = vadd.f32 %v8975, 1.0
    %v9232 = vadd.f32 %v8976, 1.0
    %v9233 = vadd.f32 %v8977, 1.0
    %v9234 = vadd.f32 %v8978, 1.0
    %v9235 = vadd.f32 %v8979, 1.0
    %v9236 = vadd.f32 %v8980, 1.0
    %v9237 = vadd.f32 %v8981, 1.0
    %v9238 = vadd.f32 %v8982, 1.0
    %v9239 = vadd.f32 %v8983, 1.0
    %v9240 = vadd.f32 %v8984, 1.0
    %v9241 = vadd.f32 %v8985, 1.0
    %v9242 = vadd.f32 %v8986, 1.0
    %v9243 = vadd.f32 %v8987, 1.0
    %v9244 = vadd.f32 %v8988, 1.0
    %v9245 = vadd.f32 %v8989, 1.0
    %v9246 = vadd.f32 %v8990, 1.0
    %v9247 = vadd.f32 %v8991, 1.0
    %v9248 = vadd.f32 %v8992, 1.0
    %v9249 = vadd.f32 %v8993, 1.0
    %v9250 = vadd.f32 %v8994, 1.0
    %v9251 = vadd.f32 %v8995, 1.0
    %v9252 = vadd.f32 %v8996, 1.0
    %v9253 = vadd.f32 %v8997, 1.0
    %v9254 = vadd.f32 %v8998, 1.0
    %v9255 = vadd.f32 %v8999, 1.0
    %v9256 = vadd.f32 %v9000, 1.0
    %v9257 = vadd.f32 %v9001, 1.0
    %v9258 = vadd.f32 %v9002, 1.0
    %v9259 = vadd.f32 %v9003, 1.0
    %v9260 = vadd.f32 %v9004, 1.0
    %v9261 = vadd.f32 %v9005, 1.0
    %v9262 = vadd.f32 %v9006, 1.0
    %v9263 = vadd.f32 %v9007, 1.0
    %v9264 = vadd.f32 %v9008, 1.0
    %v9265 = vadd.f32 %v9009, 1.0
    %v9266 = vadd.f32 %v9010, 1.0
    %v9267 = vadd.f32 %v9011, 1.0
    %v9268 = vadd.f32 %v9012, 1.0
    %v9269 = vadd.f32 %v9013, 1.0
    %v9270 = vadd.f32 %v9014, 1.0
    %v9271 = vadd.f32 %v9015, 1.0
    %v9272 = vadd.f32 %v9016, 1.0
    %v9273 = vadd.f32 %v9017, 1.0
    %v9274 = vadd.f32 %v9018, 1.0
    %v9275 = vadd.f32 %v9019, 1.0
    %v9276 = vadd.f32 %v9020, 1.0
    %v9277 = vadd.f32 %v9021, 1.0
    %v9278 = vadd.f32 %v9022, 1.0
    %v9279 = vadd.f32 %v9023, 1.0
    %v9280 = vadd.f32 %v9024, 1.0
    %v9281 = vadd.f32 %v9025, 1.0
    %v9282 = vadd.f32 %v9026, 1.0
    %v9283 = vadd.f32 %v9027, 1.0
    %v9284 = vadd.f32 %v9028, 1.0
    %v9285 = vadd.f32 %v9029, 1.0
    %v9286 = vadd.f32 %v9030, 1.0
    %v9287 = vadd.f32 %v9031, 1.0
    %v9288 = vadd.f32 %v9032, 1.0
    %v9289 = vadd.f32 %v9033, 1.0
    %v9290 = vadd.f32 %v9034, 1.0
    %v9291 = vadd.f32 %v9035, 1.0
    %v9292 = vadd.f32 %v9036, 1.0
    %v9293 = vadd.f32 %v9037, 1.0
    %v9294 = vadd.f32 %v9038, 1.0
    %v9295 = vadd.f32 %v9039, 1.0
    %v9296 = vadd.f32 %v9040, 1.0
    %v9297 = vadd.f32 %v9041, 1.0
    %v9298 = vadd.f32 %v9042, 1.0
    %v9299 = vadd.f32 %v9043, 1.0
    %v9300 = vadd.f32 %v9044, 1.0
    %v9301 = vadd.f32 %v9045, 1.0
    %v9302 = vadd.f32 %v9046, 1.0
    %v9303 = vadd.f32 %v9047, 1.0
    %v9304 = vadd.f32 %v9048, 1.0
    %v9305 = vadd.f32 %v9049, 1.0
    %v9306 = vadd.f32 %v9050, 1.0
    %v9307 = vadd.f32 %v9051, 1.0
    %v9308 = vadd.f32 %v9052, 1.0
    %v9309 = vadd.f32 %v9053, 1.0
    %v9310 = vadd.f32 %v9054, 1.0
    %v9311 = vadd.f32 %v9055, 1.0
    %v9312 = vadd.f32 %v9056, 1.0
    %v9313 = vadd.f32 %v9057, 1.0
    %v9314 = vadd.f32 %v9058, 1.0
    %v9315 = vadd.f32 %v9059, 1.0
    %v9316 = vadd.f32 %v9060, 1.0
    %v9317 = vadd.f32 %v9061, 1.0
    %v9318 = vadd.f32 %v9062, 1.0
    %v9319 = vadd.f32 %v9063, 1.0
    %v9320 = vadd.f32 %v9064, 1.0
    %v9321 = vadd.f32 %v9065, 1.0
    %v9322 = vadd.f32 %v9066, 1.0
    %v9323 = vadd.f32 %v9067, 1.0
    %v9324 = vadd.f32 %v9068, 1.0
    %v9325 = vadd.f32 %v9069, 1.0
    %v9326 = vadd.f32 %v9070, 1.0
    %v9327 = vadd.f32 %v9071, 1.0
    %v9328 = vadd.f32 %v9072, 1.0
    %v9329 = vadd.f32 %v9073, 1.0
    %v9330 = vadd.f32 %v9074, 1.0
    %v9331 = vadd.f32 %v9075, 1.0
    %v9332 = vadd.f32 %v9076, 1.0
    %v9333 = vadd.f32 %v9077, 1.0
    %v9334 = vadd.f32 %v9078, 1.0
    %v9335 = vadd.f32 %v9079, 1.0
    %v9336 = vadd.f32 %v9080, 1.0
    %v9337 = vadd.f32 %v9081, 1.0
    %v9338 = vadd.f32 %v9082, 1.0
    %v9339 = vadd.f32 %v9083, 1.0
    %v9340 = vadd.f32 %v9084, 1.0
    %v9341 = vadd.f32 %v9085, 1.0
    %v9342 = vadd.f32 %v9086, 1.0
    %v9343 = vadd.f32 %v9087, 1.0
    %v9344 = vadd.f32 %v9088, 1.0
    %v9345 = vadd.f32 %v9089, 1.0
    %v9346 = vadd.f32 %v9090, 1.0
    %v9347 = vadd.f32 %v9091, 1.0
    %v9348 = vadd.f32 %v9092, 1.0
    %v9349 = vadd.f32 %v9093, 1.0
    %v9350 = vadd.f32 %v9094, 1.0
    %v9351 = vadd.f32 %v9095, 1.0
    %v9352 = vadd.f32 %v9096, 1.0
    %v9353 = vadd.f32 %v9097, 1.0
    %v9354 = vadd.f32 %v9098, 1.0
    %v9355 = vadd.f32 %v9099, 1.0
    %v9356 = vadd.f32 %v9100, 1.0
    %v9357 = vadd.f32 %v9101, 1.0
    %v9358 = vadd.f32 %v9102, 1.0
    %v9359 = vadd.f32 %v9103, 1.0
    %v9360 = vadd.f32 %v9104, 1.0
    %v9361 = vadd.f32 %v9105, 1.0
    %v9362 = vadd.f32 %v9106, 1.0
    %v9363 = vadd.f32 %v9107, 1.0
    %v9364 = vadd.f32 %v9108, 1.0
    %v9365 = vadd.f32 %v9109, 1.0
    %v9366 = vadd.f32 %v9110, 1.0
    %v9367 = vadd.f32 %v9111, 1.0
    %v9368 = vadd.f32 %v9112, 1.0
    %v9369 = vadd.f32 %v9113, 1.0
    %v9370 = vadd.f32 %v9114, 1.0
    %v9371 = vadd.f32 %v9115, 1.0
    %v9372 = vadd.f32 %v9116, 1.0
    %v9373 = vadd.f32 %v9117, 1.0
    %v9374 = vadd.f32 %v9118, 1.0
    %v9375 = vadd.f32 %v9119, 1.0
    %v9376 = vadd.f32 %v9120, 1.0
    %v9377 = vadd.f32 %v9121, 1.0
    %v9378 = vadd.f32 %v9122, 1.0
    %v9379 = vadd.f32 %v9123, 1.0
    %v9380 = vadd.f32 %v9124, 1.0
    %v9381 = vadd.f32 %v9125, 1.0
    %v9382 = vadd.f32 %v9126, 1.0
    %v9383 = vadd.f32 %v9127, 1.0
    %v9384 = vadd.f32 %v9128, 1.0
    %v9385 = vadd.f32 %v9129, 1.0
    %v9386 = vadd.f32 %v9130, 1.0
    %v9387 = vadd.f32 %v9131, 1.0
    %v9388 = vadd.f32 %v9132, 1.0
    %v9389 = vmul.f32 %v2733, %v9133
    %v9390 = vmul.f32 %v2734, %v9134
    %v9391 = vmul.f32 %v2735, %v9135
    %v9392 = vmul.f32 %v2736, %v9136
    %v9393 = vmul.f32 %v2737, %v9137
    %v9394 = vmul.f32 %v2738, %v9138
    %v9395 = vmul.f32 %v2739, %v9139
    %v9396 = vmul.f32 %v2740, %v9140
    %v9397 = vmul.f32 %v2741, %v9141
    %v9398 = vmul.f32 %v2742, %v9142
    %v9399 = vmul.f32 %v2743, %v9143
    %v9400 = vmul.f32 %v2744, %v9144
    %v9401 = vmul.f32 %v2745, %v9145
    %v9402 = vmul.f32 %v2746, %v9146
    %v9403 = vmul.f32 %v2747, %v9147
    %v9404 = vmul.f32 %v2748, %v9148
    %v9405 = vmul.f32 %v2749, %v9149
    %v9406 = vmul.f32 %v2750, %v9150
    %v9407 = vmul.f32 %v2751, %v9151
    %v9408 = vmul.f32 %v2752, %v9152
    %v9409 = vmul.f32 %v2753, %v9153
    %v9410 = vmul.f32 %v2754, %v9154
    %v9411 = vmul.f32 %v2755, %v9155
    %v9412 = vmul.f32 %v2756, %v9156
    %v9413 = vmul.f32 %v2757, %v9157
    %v9414 = vmul.f32 %v2758, %v9158
    %v9415 = vmul.f32 %v2759, %v9159
    %v9416 = vmul.f32 %v2760, %v9160
    %v9417 = vmul.f32 %v2761, %v9161
    %v9418 = vmul.f32 %v2762, %v9162
    %v9419 = vmul.f32 %v2763, %v9163
    %v9420 = vmul.f32 %v2764, %v9164
    %v9421 = vmul.f32 %v2765, %v9165
    %v9422 = vmul.f32 %v2766, %v9166
    %v9423 = vmul.f32 %v2767, %v9167
    %v9424 = vmul.f32 %v2768, %v9168
    %v9425 = vmul.f32 %v2769, %v9169
    %v9426 = vmul.f32 %v2770, %v9170
    %v9427 = vmul.f32 %v2771, %v9171
    %v9428 = vmul.f32 %v2772, %v9172
    %v9429 = vmul.f32 %v2773, %v9173
    %v9430 = vmul.f32 %v2774, %v9174
    %v9431 = vmul.f32 %v2775, %v9175
    %v9432 = vmul.f32 %v2776, %v9176
    %v9433 = vmul.f32 %v2777, %v9177
    %v9434 = vmul.f32 %v2778, %v9178
    %v9435 = vmul.f32 %v2779, %v9179
    %v9436 = vmul.f32 %v2780, %v9180
    %v9437 = vmul.f32 %v2781, %v9181
    %v9438 = vmul.f32 %v2782, %v9182
    %v9439 = vmul.f32 %v2783, %v9183
    %v9440 = vmul.f32 %v2784, %v9184
    %v9441 = vmul.f32 %v2785, %v9185
    %v9442 = vmul.f32 %v2786, %v9186
    %v9443 = vmul.f32 %v2787, %v9187
    %v9444 = vmul.f32 %v2788, %v9188
    %v9445 = vmul.f32 %v2789, %v9189
    %v9446 = vmul.f32 %v2790, %v9190
    %v9447 = vmul.f32 %v2791, %v9191
    %v9448 = vmul.f32 %v2792, %v9192
    %v9449 = vmul.f32 %v2793, %v9193
    %v9450 = vmul.f32 %v2794, %v9194
    %v9451 = vmul.f32 %v2795, %v9195
    %v9452 = vmul.f32 %v2796, %v9196
    %v9453 = vmul.f32 %v2797, %v9197
    %v9454 = vmul.f32 %v2798, %v9198
    %v9455 = vmul.f32 %v2799, %v9199
    %v9456 = vmul.f32 %v2800, %v9200
    %v9457 = vmul.f32 %v2801, %v9201
    %v9458 = vmul.f32 %v2802, %v9202
    %v9459 = vmul.f32 %v2803, %v9203
    %v9460 = vmul.f32 %v2804, %v9204
    %v9461 = vmul.f32 %v2805, %v9205
    %v9462 = vmul.f32 %v2806, %v9206
    %v9463 = vmul.f32 %v2807, %v9207
    %v9464 = vmul.f32 %v2808, %v9208
    %v9465 = vmul.f32 %v2809, %v9209
    %v9466 = vmul.f32 %v2810, %v9210
    %v9467 = vmul.f32 %v2811, %v9211
    %v9468 = vmul.f32 %v2812, %v9212
    %v9469 = vmul.f32 %v2813, %v9213
    %v9470 = vmul.f32 %v2814, %v9214
    %v9471 = vmul.f32 %v2815, %v9215
    %v9472 = vmul.f32 %v2816, %v9216
    %v9473 = vmul.f32 %v2817, %v9217
    %v9474 = vmul.f32 %v2818, %v9218
    %v9475 = vmul.f32 %v2819, %v9219
    %v9476 = vmul.f32 %v2820, %v9220
    %v9477 = vmul.f32 %v2821, %v9221
    %v9478 = vmul.f32 %v2822, %v9222
    %v9479 = vmul.f32 %v2823, %v9223
    %v9480 = vmul.f32 %v2824, %v9224
    %v9481 = vmul.f32 %v2825, %v9225
    %v9482 = vmul.f32 %v2826, %v9226
    %v9483 = vmul.f32 %v2827, %v9227
    %v9484 = vmul.f32 %v2828, %v9228
    %v9485 = vmul.f32 %v2829, %v9229
    %v9486 = vmul.f32 %v2830, %v9230
    %v9487 = vmul.f32 %v2831, %v9231
    %v9488 = vmul.f32 %v2832, %v9232
    %v9489 = vmul.f32 %v2833, %v9233
    %v9490 = vmul.f32 %v2834, %v9234
    %v9491 = vmul.f32 %v2835, %v9235
    %v9492 = vmul.f32 %v2836, %v9236
    %v9493 = vmul.f32 %v2837, %v9237
    %v9494 = vmul.f32 %v2838, %v9238
    %v9495 = vmul.f32 %v2839, %v9239
    %v9496 = vmul.f32 %v2840, %v9240
    %v9497 = vmul.f32 %v2841, %v9241
    %v9498 = vmul.f32 %v2842, %v9242
    %v9499 = vmul.f32 %v2843, %v9243
    %v9500 = vmul.f32 %v2844, %v9244
    %v9501 = vmul.f32 %v2845, %v9245
    %v9502 = vmul.f32 %v2846, %v9246
    %v9503 = vmul.f32 %v2847, %v9247
    %v9504 = vmul.f32 %v2848, %v9248
    %v9505 = vmul.f32 %v2849, %v9249
    %v9506 = vmul.f32 %v2850, %v9250
    %v9507 = vmul.f32 %v2851, %v9251
    %v9508 = vmul.f32 %v2852, %v9252
    %v9509 = vmul.f32 %v2853, %v9253
    %v9510 = vmul.f32 %v2854, %v9254
    %v9511 = vmul.f32 %v2855, %v9255
    %v9512 = vmul.f32 %v2856, %v9256
    %v9513 = vmul.f32 %v2857, %v9257
    %v9514 = vmul.f32 %v2858, %v9258
    %v9515 = vmul.f32 %v2859, %v9259
    %v9516 = vmul.f32 %v2860, %v9260
    %v9517 = vmul.f32 %v2861, %v9261
    %v9518 = vmul.f32 %v2862, %v9262
    %v9519 = vmul.f32 %v2863, %v9263
    %v9520 = vmul.f32 %v2864, %v9264
    %v9521 = vmul.f32 %v2865, %v9265
    %v9522 = vmul.f32 %v2866, %v9266
    %v9523 = vmul.f32 %v2867, %v9267
    %v9524 = vmul.f32 %v2868, %v9268
    %v9525 = vmul.f32 %v2869, %v9269
    %v9526 = vmul.f32 %v2870, %v9270
    %v9527 = vmul.f32 %v2871, %v9271
    %v9528 = vmul.f32 %v2872, %v9272
    %v9529 = vmul.f32 %v2873, %v9273
    %v9530 = vmul.f32 %v2874, %v9274
    %v9531 = vmul.f32 %v2875, %v9275
    %v9532 = vmul.f32 %v2876, %v9276
    %v9533 = vmul.f32 %v2877, %v9277
    %v9534 = vmul.f32 %v2878, %v9278
    %v9535 = vmul.f32 %v2879, %v9279
    %v9536 = vmul.f32 %v2880, %v9280
    %v9537 = vmul.f32 %v2881, %v9281
    %v9538 = vmul.f32 %v2882, %v9282
    %v9539 = vmul.f32 %v2883, %v9283
    %v9540 = vmul.f32 %v2884, %v9284
    %v9541 = vmul.f32 %v2885, %v9285
    %v9542 = vmul.f32 %v2886, %v9286
    %v9543 = vmul.f32 %v2887, %v9287
    %v9544 = vmul.f32 %v2888, %v9288
    %v9545 = vmul.f32 %v2889, %v9289
    %v9546 = vmul.f32 %v2890, %v9290
    %v9547 = vmul.f32 %v2891, %v9291
    %v9548 = vmul.f32 %v2892, %v9292
    %v9549 = vmul.f32 %v2893, %v9293
    %v9550 = vmul.f32 %v2894, %v9294
    %v9551 = vmul.f32 %v2895, %v9295
    %v9552 = vmul.f32 %v2896, %v9296
    %v9553 = vmul.f32 %v2897, %v9297
    %v9554 = vmul.f32 %v2898, %v9298
    %v9555 = vmul.f32 %v2899, %v9299
    %v9556 = vmul.f32 %v2900, %v9300
    %v9557 = vmul.f32 %v2901, %v9301
    %v9558 = vmul.f32 %v2902, %v9302
    %v9559 = vmul.f32 %v2903, %v9303
    %v9560 = vmul.f32 %v2904, %v9304
    %v9561 = vmul.f32 %v2905, %v9305
    %v9562 = vmul.f32 %v2906, %v9306
    %v9563 = vmul.f32 %v2907, %v9307
    %v9564 = vmul.f32 %v2908, %v9308
    %v9565 = vmul.f32 %v2909, %v9309
    %v9566 = vmul.f32 %v2910, %v9310
    %v9567 = vmul.f32 %v2911, %v9311
    %v9568 = vmul.f32 %v2912, %v9312
    %v9569 = vmul.f32 %v2913, %v9313
    %v9570 = vmul.f32 %v2914, %v9314
    %v9571 = vmul.f32 %v2915, %v9315
    %v9572 = vmul.f32 %v2916, %v9316
    %v9573 = vmul.f32 %v2917, %v9317
    %v9574 = vmul.f32 %v2918, %v9318
    %v9575 = vmul.f32 %v2919, %v9319
    %v9576 = vmul.f32 %v2920, %v9320
    %v9577 = vmul.f32 %v2921, %v9321
    %v9578 = vmul.f32 %v2922, %v9322
    %v9579 = vmul.f32 %v2923, %v9323
    %v9580 = vmul.f32 %v2924, %v9324
    %v9581 = vmul.f32 %v2925, %v9325
    %v9582 = vmul.f32 %v2926, %v9326
    %v9583 = vmul.f32 %v2927, %v9327
    %v9584 = vmul.f32 %v2928, %v9328
    %v9585 = vmul.f32 %v2929, %v9329
    %v9586 = vmul.f32 %v2930, %v9330
    %v9587 = vmul.f32 %v2931, %v9331
    %v9588 = vmul.f32 %v2932, %v9332
    %v9589 = vmul.f32 %v2933, %v9333
    %v9590 = vmul.f32 %v2934, %v9334
    %v9591 = vmul.f32 %v2935, %v9335
    %v9592 = vmul.f32 %v2936, %v9336
    %v9593 = vmul.f32 %v2937, %v9337
    %v9594 = vmul.f32 %v2938, %v9338
    %v9595 = vmul.f32 %v2939, %v9339
    %v9596 = vmul.f32 %v2940, %v9340
    %v9597 = vmul.f32 %v2941, %v9341
    %v9598 = vmul.f32 %v2942, %v9342
    %v9599 = vmul.f32 %v2943, %v9343
    %v9600 = vmul.f32 %v2944, %v9344
    %v9601 = vmul.f32 %v2945, %v9345
    %v9602 = vmul.f32 %v2946, %v9346
    %v9603 = vmul.f32 %v2947, %v9347
    %v9604 = vmul.f32 %v2948, %v9348
    %v9605 = vmul.f32 %v2949, %v9349
    %v9606 = vmul.f32 %v2950, %v9350
    %v9607 = vmul.f32 %v2951, %v9351
    %v9608 = vmul.f32 %v2952, %v9352
    %v9609 = vmul.f32 %v2953, %v9353
    %v9610 = vmul.f32 %v2954, %v9354
    %v9611 = vmul.f32 %v2955, %v9355
    %v9612 = vmul.f32 %v2956, %v9356
    %v9613 = vmul.f32 %v2957, %v9357
    %v9614 = vmul.f32 %v2958, %v9358
    %v9615 = vmul.f32 %v2959, %v9359
    %v9616 = vmul.f32 %v2960, %v9360
    %v9617 = vmul.f32 %v2961, %v9361
    %v9618 = vmul.f32 %v2962, %v9362
    %v9619 = vmul.f32 %v2963, %v9363
    %v9620 = vmul.f32 %v2964, %v9364
    %v9621 = vmul.f32 %v2965, %v9365
    %v9622 = vmul.f32 %v2966, %v9366
    %v9623 = vmul.f32 %v2967, %v9367
    %v9624 = vmul.f32 %v2968, %v9368
    %v9625 = vmul.f32 %v2969, %v9369
    %v9626 = vmul.f32 %v2970, %v9370
    %v9627 = vmul.f32 %v2971, %v9371
    %v9628 = vmul.f32 %v2972, %v9372
    %v9629 = vmul.f32 %v2973, %v9373
    %v9630 = vmul.f32 %v2974, %v9374
    %v9631 = vmul.f32 %v2975, %v9375
    %v9632 = vmul.f32 %v2976, %v9376
    %v9633 = vmul.f32 %v2977, %v9377
    %v9634 = vmul.f32 %v2978, %v9378
    %v9635 = vmul.f32 %v2979, %v9379
    %v9636 = vmul.f32 %v2980, %v9380
    %v9637 = vmul.f32 %v2981, %v9381
    %v9638 = vmul.f32 %v2982, %v9382
    %v9639 = vmul.f32 %v2983, %v9383
    %v9640 = vmul.f32 %v2984, %v9384
    %v9641 = vmul.f32 %v2985, %v9385
    %v9642 = vmul.f32 %v2986, %v9386
    %v9643 = vmul.f32 %v2987, %v9387
    %v9644 = vmul.f32 %v2988, %v9388
    %v9645 = vld [vmem:[#allocation11] sm:$0xff]
    %v9646 = vld [vmem:[#allocation11 + $0x8] sm:$0xff]
    %v9647 = vld [vmem:[#allocation11 + $0x10] sm:$0xff]
    %v9648 = vld [vmem:[#allocation11 + $0x18] sm:$0xff]
    %v9649 = vld [vmem:[#allocation11 + $0x20] sm:$0xff]
    %v9650 = vld [vmem:[#allocation11 + $0x28] sm:$0xff]
    %v9651 = vld [vmem:[#allocation11 + $0x30] sm:$0xff]
    %v9652 = vld [vmem:[#allocation11 + $0x38] sm:$0xff]
    %v9653 = vld [vmem:[#allocation11 + $0x40] sm:$0xff]
    %v9654 = vld [vmem:[#allocation11 + $0x48] sm:$0xff]
    %v9655 = vld [vmem:[#allocation11 + $0x50] sm:$0xff]
    %v9656 = vld [vmem:[#allocation11 + $0x58] sm:$0xff]
    %v9657 = vld [vmem:[#allocation11 + $0x60] sm:$0xff]
    %v9658 = vld [vmem:[#allocation11 + $0x68] sm:$0xff]
    %v9659 = vld [vmem:[#allocation11 + $0x70] sm:$0xff]
    %v9660 = vld [vmem:[#allocation11 + $0x78] sm:$0xff]
    %v9661 = vld [vmem:[#allocation11 + $0x80] sm:$0xff]
    %v9662 = vld [vmem:[#allocation11 + $0x88] sm:$0xff]
    %v9663 = vld [vmem:[#allocation11 + $0x90] sm:$0xff]
    %v9664 = vld [vmem:[#allocation11 + $0x98] sm:$0xff]
    %v9665 = vld [vmem:[#allocation11 + $0xa0] sm:$0xff]
    %v9666 = vld [vmem:[#allocation11 + $0xa8] sm:$0xff]
    %v9667 = vld [vmem:[#allocation11 + $0xb0] sm:$0xff]
    %v9668 = vld [vmem:[#allocation11 + $0xb8] sm:$0xff]
    %v9669 = vld [vmem:[#allocation11 + $0xc0] sm:$0xff]
    %v9670 = vld [vmem:[#allocation11 + $0xc8] sm:$0xff]
    %v9671 = vld [vmem:[#allocation11 + $0xd0] sm:$0xff]
    %v9672 = vld [vmem:[#allocation11 + $0xd8] sm:$0xff]
    %v9673 = vld [vmem:[#allocation11 + $0xe0] sm:$0xff]
    %v9674 = vld [vmem:[#allocation11 + $0xe8] sm:$0xff]
    %v9675 = vld [vmem:[#allocation11 + $0xf0] sm:$0xff]
    %v9676 = vld [vmem:[#allocation11 + $0xf8] sm:$0xff]
    %9677 = vmatprep.subr.mxu0 %v9646
    %9678 = vmatpush1.xpose.msra.mxu0 %v9645
    %9679 = vmatprep.subr.mxu0 0.0
    %9680 = vmatpush1.xpose.msra.mxu0 0.0
    %9681 = vmatprep.subr.mxu0 0.0
    %9682 = vmatpush1.xpose.msra.mxu0 0.0
    %9683 = vmatprep.subr.mxu0 0.0
    %9684 = vmatpush1.xpose.msra.mxu0 0.0
    %9685 = vmatprep.subr.mxu0 0.0
    %9686 = vmatpush1.xpose.msra.mxu0 0.0
    %9687 = vmatprep.subr.mxu0 0.0
    %9688 = vmatpush1.xpose.msra.mxu0 0.0
    %9689 = vmatprep.subr.mxu0 0.0
    %9690 = vmatpush1.xpose.msra.mxu0 0.0
    %9691 = vmatprep.subr.mxu0 0.0
    %9692 = vmatpush1.xpose.msra.mxu0 0.0
    %9693 = vmatprep.subr.mxu0 0.0
    %9694 = vmatpush1.xpose.msra.mxu0 0.0
    %9695 = vmatprep.subr.mxu0 0.0
    %9696 = vmatpush1.xpose.msra.mxu0 0.0
    %9697 = vmatprep.subr.mxu0 0.0
    %9698 = vmatpush1.xpose.msra.mxu0 0.0
    %9699 = vmatprep.subr.mxu0 0.0
    %9700 = vmatpush1.xpose.msra.mxu0 0.0
    %9701 = vmatprep.subr.mxu0 0.0
    %9702 = vmatpush1.xpose.msra.mxu0 0.0
    %9703 = vmatprep.subr.mxu0 0.0
    %9704 = vmatpush1.xpose.msra.mxu0 0.0
    %9705 = vmatprep.subr.mxu0 0.0
    %9706 = vmatpush1.xpose.msra.mxu0 0.0
    %9707 = vmatprep.subr.mxu0 0.0
    %9708 = vmatpush1.xpose.msra.mxu0 0.0
    %9709 = vmatprep.subr.mxu0 0.0
    %9710 = vmatpush1.xpose.msra.mxu0 0.0
    %9711 = vmatprep.subr.mxu0 0.0
    %9712 = vmatpush1.xpose.msra.mxu0 0.0
    %9713 = vmatprep.subr.mxu0 0.0
    %9714 = vmatpush1.xpose.msra.mxu0 0.0
    %9715 = vmatprep.subr.mxu0 0.0
    %9716 = vmatpush1.xpose.msra.mxu0 0.0
    %9717 = vmatprep.subr.mxu0 0.0
    %9718 = vmatpush1.xpose.msra.mxu0 0.0
    %9719 = vmatprep.subr.mxu0 0.0
    %9720 = vmatpush1.xpose.msra.mxu0 0.0
    %9721 = vmatprep.subr.mxu0 0.0
    %9722 = vmatpush1.xpose.msra.mxu0 0.0
    %9723 = vmatprep.subr.mxu0 0.0
    %9724 = vmatpush1.xpose.msra.mxu0 0.0
    %9725 = vmatprep.subr.mxu0 0.0
    %9726 = vmatpush1.xpose.msra.mxu0 0.0
    %9727 = vmatprep.subr.mxu0 0.0
    %9728 = vmatpush1.xpose.msra.mxu0 0.0
    %9729 = vmatprep.subr.mxu0 0.0
    %9730 = vmatpush1.xpose.msra.mxu0 0.0
    %9731 = vmatprep.subr.mxu0 0.0
    %9732 = vmatpush1.xpose.msra.mxu0 0.0
    %9733 = vmatprep.subr.mxu0 0.0
    %9734 = vmatpush1.xpose.msra.mxu0 0.0
    %9735 = vmatprep.subr.mxu0 0.0
    %9736 = vmatpush1.xpose.msra.mxu0 0.0
    %9737 = vmatprep.subr.mxu0 0.0
    %9738 = vmatpush1.xpose.msra.mxu0 0.0
    %9739 = vmatprep.subr.mxu0 0.0
    %9740 = vmatpush1.xpose.msra.mxu0 0.0
    %9741 = vmatprep.mubr.f32.mxu0 %v9390
    %9742 = vmatmul.mubr.f32.gmra.mrb[0].mxu0 %v9389
    %v9743 = vpop.f32.mrb[0].mxu0
    %v9744 = vadd.f32 0.0, %v9743
    %v9745 = vpop.f32.mrb[0].mxu0
    %9746 = vmatprep.mubr.f32.mxu0 %v9422
    %9747 = vmatmul.mubr.f32.gmra.mrb[0].mxu0 %v9421
    %v9748 = vpop.f32.mrb[0].mxu0
    %v9749 = vadd.f32 0.0, %v9748
    %v9750 = vpop.f32.mrb[0].mxu0
    %9751 = vmatprep.mubr.f32.mxu0 %v9454
    %9752 = vmatmul.mubr.f32.gmra.mrb[0].mxu0 %v9453
    %v9753 = vpop.f32.mrb[0].mxu0
    %v9754 = vadd.f32 0.0, %v9753
    %v9755 = vpop.f32.mrb[0].mxu0
    %9756 = vmatprep.mubr.f32.mxu0 %v9486
    %9757 = vmatmul.mubr.f32.gmra.mrb[0].mxu0 %v9485
    %v9758 = vpop.f32.mrb[0].mxu0
    %v9759 = vadd.f32 0.0, %v9758
    %v9760 = vpop.f32.mrb[0].mxu0
    %9761 = vmatprep.mubr.f32.mxu0 %v9518
    %9762 = vmatmul.mubr.f32.gmra.mrb[0].mxu0 %v9517
    %v9763 = vpop.f32.mrb[0].mxu0
    %v9764 = vadd.f32 0.0, %v9763
    %v9765 = vpop.f32.mrb[0].mxu0
    %9766 = vmatprep.mubr.f32.mxu0 %v9550
    %9767 = vmatmul.mubr.f32.gmra.mrb[0].mxu0 %v9549
    %v9768 = vpop.f32.mrb[0].mxu0
    %v9769 = vadd.f32 0.0, %v9768
    %v9770 = vpop.f32.mrb[0].mxu0
    %9771 = vmatprep.mubr.f32.mxu0 %v9582
    %9772 = vmatmul.mubr.f32.gmra.mrb[0].mxu0 %v9581
    %v9773 = vpop.f32.mrb[0].mxu0
    %v9774 = vadd.f32 0.0, %v9773
    %v9775 = vpop.f32.mrb[0].mxu0
    %9776 = vmatprep.mubr.f32.mxu0 %v9614
    %9777 = vmatmul.mubr.f32.gmra.mrb[0].mxu0 %v9613
    %v9778 = vpop.f32.mrb[0].mxu0
    %v9779 = vadd.f32 0.0, %v9778
    %v9780 = vpop.f32.mrb[0].mxu0
    %9781 = vdwg.mxu0
    %9782 = vmatprep.subr.mxu0 %v9648
    %9783 = vmatpush1.xpose.msra.mxu0 %v9647
    %9784 = vmatprep.subr.mxu0 0.0
    %9785 = vmatpush1.xpose.msra.mxu0 0.0
    %9786 = vmatprep.subr.mxu0 0.0
    %9787 = vmatpush1.xpose.msra.mxu0 0.0
    %9788 = vmatprep.subr.mxu0 0.0
    %9789 = vmatpush1.xpose.msra.mxu0 0.0
    %9790 = vmatprep.subr.mxu0 0.0
    %9791 = vmatpush1.xpose.msra.mxu0 0.0
    %9792 = vmatprep.subr.mxu0 0.0
    %9793 = vmatpush1.xpose.msra.mxu0 0.0
    %9794 = vmatprep.subr.mxu0 0.0
    %9795 = vmatpush1.xpose.msra.mxu0 0.0
    %9796 = vmatprep.subr.mxu0 0.0
    %9797 = vmatpush1.xpose.msra.mxu0 0.0
    %9798 = vmatprep.subr.mxu0 0.0
    %9799 = vmatpush1.xpose.msra.mxu0 0.0
    %9800 = vmatprep.subr.mxu0 0.0
    %9801 = vmatpush1.xpose.msra.mxu0 0.0
    %9802 = vmatprep.subr.mxu0 0.0
    %9803 = vmatpush1.xpose.msra.mxu0 0.0
    %9804 = vmatprep.subr.mxu0 0.0
    %9805 = vmatpush1.xpose.msra.mxu0 0.0
    %9806 = vmatprep.subr.mxu0 0.0
    %9807 = vmatpush1.xpose.msra.mxu0 0.0
    %9808 = vmatprep.subr.mxu0 0.0
    %9809 = vmatpush1.xpose.msra.mxu0 0.0
    %9810 = vmatprep.subr.mxu0 0.0
    %9811 = vmatpush1.xpose.msra.mxu0 0.0
    %9812 = vmatprep.subr.mxu0 0.0
    %9813 = vmatpush1.xpose.msra.mxu0 0.0
    %9814 = vmatprep.subr.mxu0 0.0
    %9815 = vmatpush1.xpose.msra.mxu0 0.0
    %9816 = vmatprep.subr.mxu0 0.0
    %9817 = vmatpush1.xpose.msra.mxu0 0.0
    %9818 = vmatprep.subr.mxu0 0.0
    %9819 = vmatpush1.xpose.msra.mxu0 0.0
    %9820 = vmatprep.subr.mxu0 0.0
    %9821 = vmatpush1.xpose.msra.mxu0 0.0
    %9822 = vmatprep.subr.mxu0 0.0
    %9823 = vmatpush1.xpose.msra.mxu0 0.0
    %9824 = vmatprep.subr.mxu0 0.0
    %9825 = vmatpush1.xpose.msra.mxu0 0.0
    %9826 = vmatprep.subr.mxu0 0.0
    %9827 = vmatpush1.xpose.msra.mxu0 0.0
    %9828 = vmatprep.subr.mxu0 0.0
    %9829 = vmatpush1.xpose.msra.mxu0 0.0
    %9830 = vmatprep.subr.mxu0 0.0
    %9831 = vmatpush1.xpose.msra.mxu0 0.0
    %9832 = vmatprep.subr.mxu0 0.0
    %9833 = vmatpush1.xpose.msra.mxu0 0.0
    %9834 = vmatprep.subr.mxu0 0.0
    %9835 = vmatpush1.xpose.msra.mxu0 0.0
    %9836 = vmatprep.subr.mxu0 0.0
    %9837 = vmatpush1.xpose.msra.mxu0 0.0
    %9838 = vmatprep.subr.mxu0 0.0
    %9839 = vmatpush1.xpose.msra.mxu0 0.0
    %9840 = vmatprep.subr.mxu0 0.0
    %9841 = vmatpush1.xpose.msra.mxu0 0.0
    %9842 = vmatprep.subr.mxu0 0.0
    %9843 = vmatpush1.xpose.msra.mxu0 0.0
    %9844 = vmatprep.subr.mxu0 0.0
    %9845 = vmatpush1.xpose.msra.mxu0 0.0
    %9846 = vmatprep.mubr.f32.mxu0 %v9392
    %9847 = vmatmul.mubr.f32.gmra.mrb[0].mxu0 %v9391
    %v9848 = vpop.f32.mrb[0].mxu0
    %v9849 = vadd.f32 %v9744, %v9848
    %v9850 = vpop.f32.mrb[0].mxu0
    %9851 = vmatprep.mubr.f32.mxu0 %v9424
    %9852 = vmatmul.mubr.f32.gmra.mrb[0].mxu0 %v9423
    %v9853 = vpop.f32.mrb[0].mxu0
    %v9854 = vadd.f32 %v9749, %v9853
    %v9855 = vpop.f32.mrb[0].mxu0
    %9856 = vmatprep.mubr.f32.mxu0 %v9456
    %9857 = vmatmul.mubr.f32.gmra.mrb[0].mxu0 %v9455
    %v9858 = vpop.f32.mrb[0].mxu0
    %v9859 = vadd.f32 %v9754, %v9858
    %v9860 = vpop.f32.mrb[0].mxu0
    %9861 = vmatprep.mubr.f32.mxu0 %v9488
    %9862 = vmatmul.mubr.f32.gmra.mrb[0].mxu0 %v9487
    %v9863 = vpop.f32.mrb[0].mxu0
    %v9864 = vadd.f32 %v9759, %v9863
    %v9865 = vpop.f32.mrb[0].mxu0
    %9866 = vmatprep.mubr.f32.mxu0 %v9520
    %9867 = vmatmul.mubr.f32.gmra.mrb[0].mxu0 %v9519
    %v9868 = vpop.f32.mrb[0].mxu0
    %v9869 = vadd.f32 %v9764, %v9868
    %v9870 = vpop.f32.mrb[0].mxu0
    %9871 = vmatprep.mubr.f32.mxu0 %v9552
    %9872 = vmatmul.mubr.f32.gmra.mrb[0].mxu0 %v9551
    %v9873 = vpop.f32.mrb[0].mxu0
    %v9874 = vadd.f32 %v9769, %v9873
    %v9875 = vpop.f32.mrb[0].mxu0
    %9876 = vmatprep.mubr.f32.mxu0 %v9584
    %9877 = vmatmul.mubr.f32.gmra.mrb[0].mxu0 %v9583
    %v9878 = vpop.f32.mrb[0].mxu0
    %v9879 = vadd.f32 %v9774, %v9878
    %v9880 = vpop.f32.mrb[0].mxu0
    %9881 = vmatprep.mubr.f32.mxu0 %v9616
    %9882 = vmatmul.mubr.f32.gmra.mrb[0].mxu0 %v9615
    %v9883 = vpop.f32.mrb[0].mxu0
    %v9884 = vadd.f32 %v9779, %v9883
    %v9885 = vpop.f32.mrb[0].mxu0
    %9886 = vdwg.mxu0
    %9887 = vmatprep.subr.mxu0 %v9650
    %9888 = vmatpush1.xpose.msra.mxu0 %v9649
    %9889 = vmatprep.subr.mxu0 0.0
    %9890 = vmatpush1.xpose.msra.mxu0 0.0
    %9891 = vmatprep.subr.mxu0 0.0
    %9892 = vmatpush1.xpose.msra.mxu0 0.0
    %9893 = vmatprep.subr.mxu0 0.0
    %9894 = vmatpush1.xpose.msra.mxu0 0.0
    %9895 = vmatprep.subr.mxu0 0.0
    %9896 = vmatpush1.xpose.msra.mxu0 0.0
    %9897 = vmatprep.subr.mxu0 0.0
    %9898 = vmatpush1.xpose.msra.mxu0 0.0
    %9899 = vmatprep.subr.mxu0 0.0
    %9900 = vmatpush1.xpose.msra.mxu0 0.0
    %9901 = vmatprep.subr.mxu0 0.0
    %9902 = vmatpush1.xpose.msra.mxu0 0.0
    %9903 = vmatprep.subr.mxu0 0.0
    %9904 = vmatpush1.xpose.msra.mxu0 0.0
    %9905 = vmatprep.subr.mxu0 0.0
    %9906 = vmatpush1.xpose.msra.mxu0 0.0
    %9907 = vmatprep.subr.mxu0 0.0
    %9908 = vmatpush1.xpose.msra.mxu0 0.0
    %9909 = vmatprep.subr.mxu0 0.0
    %9910 = vmatpush1.xpose.msra.mxu0 0.0
    %9911 = vmatprep.subr.mxu0 0.0
    %9912 = vmatpush1.xpose.msra.mxu0 0.0
    %9913 = vmatprep.subr.mxu0 0.0
    %9914 = vmatpush1.xpose.msra.mxu0 0.0
    %9915 = vmatprep.subr.mxu0 0.0
    %9916 = vmatpush1.xpose.msra.mxu0 0.0
    %9917 = vmatprep.subr.mxu0 0.0
    %9918 = vmatpush1.xpose.msra.mxu0 0.0
    %9919 = vmatprep.subr.mxu0 0.0
    %9920 = vmatpush1.xpose.msra.mxu0 0.0
    %9921 = vmatprep.subr.mxu0 0.0
    %9922 = vmatpush1.xpose.msra.mxu0 0.0
    %9923 = vmatprep.subr.mxu0 0.0
    %9924 = vmatpush1.xpose.msra.mxu0 0.0
    %9925 = vmatprep.subr.mxu0 0.0
    %9926 = vmatpush1.xpose.msra.mxu0 0.0
    %9927 = vmatprep.subr.mxu0 0.0
    %9928 = vmatpush1.xpose.msra.mxu0 0.0
    %9929 = vmatprep.subr.mxu0 0.0
    %9930 = vmatpush1.xpose.msra.mxu0 0.0
    %9931 = vmatprep.subr.mxu0 0.0
    %9932 = vmatpush1.xpose.msra.mxu0 0.0
    %9933 = vmatprep.subr.mxu0 0.0
    %9934 = vmatpush1.xpose.msra.mxu0 0.0
    %9935 = vmatprep.subr.mxu0 0.0
    %9936 = vmatpush1.xpose.msra.mxu0 0.0
    %9937 = vmatprep.subr.mxu0 0.0
    %9938 = vmatpush1.xpose.msra.mxu0 0.0
    %9939 = vmatprep.subr.mxu0 0.0
    %9940 = vmatpush1.xpose.msra.mxu0 0.0
    %9941 = vmatprep.subr.mxu0 0.0
    %9942 = vmatpush1.xpose.msra.mxu0 0.0
    %9943 = vmatprep.subr.mxu0 0.0
    %9944 = vmatpush1.xpose.msra.mxu0 0.0
    %9945 = vmatprep.subr.mxu0 0.0
    %9946 = vmatpush1.xpose.msra.mxu0 0.0
    %9947 = vmatprep.subr.mxu0 0.0
    %9948 = vmatpush1.xpose.msra.mxu0 0.0
    %9949 = vmatprep.subr.mxu0 0.0
    %9950 = vmatpush1.xpose.msra.mxu0 0.0
    %9951 = vmatprep.mubr.f32.mxu0 %v9394
    %9952 = vmatmul.mubr.f32.gmra.mrb[0].mxu0 %v9393
    %v9953 = vpop.f32.mrb[0].mxu0
    %v9954 = vadd.f32 %v9849, %v9953
    %v9955 = vpop.f32.mrb[0].mxu0
    %9956 = vmatprep.mubr.f32.mxu0 %v9426
    %9957 = vmatmul.mubr.f32.gmra.mrb[0].mxu0 %v9425
    %v9958 = vpop.f32.mrb[0].mxu0
    %v9959 = vadd.f32 %v9854, %v9958
    %v9960 = vpop.f32.mrb[0].mxu0
    %9961 = vmatprep.mubr.f32.mxu0 %v9458
    %9962 = vmatmul.mubr.f32.gmra.mrb[0].mxu0 %v9457
    %v9963 = vpop.f32.mrb[0].mxu0
    %v9964 = vadd.f32 %v9859, %v9963
    %v9965 = vpop.f32.mrb[0].mxu0
    %9966 = vmatprep.mubr.f32.mxu0 %v9490
    %9967 = vmatmul.mubr.f32.gmra.mrb[0].mxu0 %v9489
    %v9968 = vpop.f32.mrb[0].mxu0
    %v9969 = vadd.f32 %v9864, %v9968
    %v9970 = vpop.f32.mrb[0].mxu0
    %9971 = vmatprep.mubr.f32.mxu0 %v9522
    %9972 = vmatmul.mubr.f32.gmra.mrb[0].mxu0 %v9521
    %v9973 = vpop.f32.mrb[0].mxu0
    %v9974 = vadd.f32 %v9869, %v9973
    %v9975 = vpop.f32.mrb[0].mxu0
    %9976 = vmatprep.mubr.f32.mxu0 %v9554
    %9977 = vmatmul.mubr.f32.gmra.mrb[0].mxu0 %v9553
    %v9978 = vpop.f32.mrb[0].mxu0
    %v9979 = vadd.f32 %v9874, %v9978
    %v9980 = vpop.f32.mrb[0].mxu0
    %9981 = vmatprep.mubr.f32.mxu0 %v9586
    %9982 = vmatmul.mubr.f32.gmra.mrb[0].mxu0 %v9585
    %v9983 = vpop.f32.mrb[0].mxu0
    %v9984 = vadd.f32 %v9879, %v9983
    %v9985 = vpop.f32.mrb[0].mxu0
    %9986 = vmatprep.mubr.f32.mxu0 %v9618
    %9987 = vmatmul.mubr.f32.gmra.mrb[0].mxu0 %v9617
    %v9988 = vpop.f32.mrb[0].mxu0
    %v9989 = vadd.f32 %v9884, %v9988
    %v9990 = vpop.f32.mrb[0].mxu0
    %9991 = vdwg.mxu0
    %9992 = vmatprep.subr.mxu0 %v9652
    %9993 = vmatpush1.xpose.msra.mxu0 %v9651
    %9994 = vmatprep.subr.mxu0 0.0
    %9995 = vmatpush1.xpose.msra.mxu0 0.0
    %9996 = vmatprep.subr.mxu0 0.0
    %9997 = vmatpush1.xpose.msra.mxu0 0.0
    %9998 = vmatprep.subr.mxu0 0.0
    %9999 = vmatpush1.xpose.msra.mxu0 0.0
    %10000 = vmatprep.subr.mxu0 0.0
    %10001 = vmatpush1.xpose.msra.mxu0 0.0
    %10002 = vmatprep.subr.mxu0 0.0
    %10003 = vmatpush1.xpose.msra.mxu0 0.0
    %10004 = vmatprep.subr.mxu0 0.0
    %10005 = vmatpush1.xpose.msra.mxu0 0.0
    %10006 = vmatprep.subr.mxu0 0.0
    %10007 = vmatpush1.xpose.msra.mxu0 0.0
    %10008 = vmatprep.subr.mxu0 0.0
    %10009 = vmatpush1.xpose.msra.mxu0 0.0
    %10010 = vmatprep.subr.mxu0 0.0
    %10011 = vmatpush1.xpose.msra.mxu0 0.0
    %10012 = vmatprep.subr.mxu0 0.0
    %10013 = vmatpush1.xpose.msra.mxu0 0.0
    %10014 = vmatprep.subr.mxu0 0.0
    %10015 = vmatpush1.xpose.msra.mxu0 0.0
    %10016 = vmatprep.subr.mxu0 0.0
    %10017 = vmatpush1.xpose.msra.mxu0 0.0
    %10018 = vmatprep.subr.mxu0 0.0
    %10019 = vmatpush1.xpose.msra.mxu0 0.0
    %10020 = vmatprep.subr.mxu0 0.0
    %10021 = vmatpush1.xpose.msra.mxu0 0.0
    %10022 = vmatprep.subr.mxu0 0.0
    %10023 = vmatpush1.xpose.msra.mxu0 0.0
    %10024 = vmatprep.subr.mxu0 0.0
    %10025 = vmatpush1.xpose.msra.mxu0 0.0
    %10026 = vmatprep.subr.mxu0 0.0
    %10027 = vmatpush1.xpose.msra.mxu0 0.0
    %10028 = vmatprep.subr.mxu0 0.0
    %10029 = vmatpush1.xpose.msra.mxu0 0.0
    %10030 = vmatprep.subr.mxu0 0.0
    %10031 = vmatpush1.xpose.msra.mxu0 0.0
    %10032 = vmatprep.subr.mxu0 0.0
    %10033 = vmatpush1.xpose.msra.mxu0 0.0
    %10034 = vmatprep.subr.mxu0 0.0
    %10035 = vmatpush1.xpose.msra.mxu0 0.0
    %10036 = vmatprep.subr.mxu0 0.0
    %10037 = vmatpush1.xpose.msra.mxu0 0.0
    %10038 = vmatprep.subr.mxu0 0.0
    %10039 = vmatpush1.xpose.msra.mxu0 0.0
    %10040 = vmatprep.subr.mxu0 0.0
    %10041 = vmatpush1.xpose.msra.mxu0 0.0
    %10042 = vmatprep.subr.mxu0 0.0
    %10043 = vmatpush1.xpose.msra.mxu0 0.0
    %10044 = vmatprep.subr.mxu0 0.0
    %10045 = vmatpush1.xpose.msra.mxu0 0.0
    %10046 = vmatprep.subr.mxu0 0.0
    %10047 = vmatpush1.xpose.msra.mxu0 0.0
    %10048 = vmatprep.subr.mxu0 0.0
    %10049 = vmatpush1.xpose.msra.mxu0 0.0
    %10050 = vmatprep.subr.mxu0 0.0
    %10051 = vmatpush1.xpose.msra.mxu0 0.0
    %10052 = vmatprep.subr.mxu0 0.0
    %10053 = vmatpush1.xpose.msra.mxu0 0.0
    %10054 = vmatprep.subr.mxu0 0.0
    %10055 = vmatpush1.xpose.msra.mxu0 0.0
    %10056 = vmatprep.mubr.f32.mxu0 %v9396
    %10057 = vmatmul.mubr.f32.gmra.mrb[0].mxu0 %v9395
    %v10058 = vpop.f32.mrb[0].mxu0
    %v10059 = vadd.f32 %v9954, %v10058
    %v10060 = vpop.f32.mrb[0].mxu0
    %10061 = vmatprep.mubr.f32.mxu0 %v9428
    %10062 = vmatmul.mubr.f32.gmra.mrb[0].mxu0 %v9427
    %v10063 = vpop.f32.mrb[0].mxu0
    %v10064 = vadd.f32 %v9959, %v10063
    %v10065 = vpop.f32.mrb[0].mxu0
    %10066 = vmatprep.mubr.f32.mxu0 %v9460
    %10067 = vmatmul.mubr.f32.gmra.mrb[0].mxu0 %v9459
    %v10068 = vpop.f32.mrb[0].mxu0
    %v10069 = vadd.f32 %v9964, %v10068
    %v10070 = vpop.f32.mrb[0].mxu0
    %10071 = vmatprep.mubr.f32.mxu0 %v9492
    %10072 = vmatmul.mubr.f32.gmra.mrb[0].mxu0 %v9491
    %v10073 = vpop.f32.mrb[0].mxu0
    %v10074 = vadd.f32 %v9969, %v10073
    %v10075 = vpop.f32.mrb[0].mxu0
    %10076 = vmatprep.mubr.f32.mxu0 %v9524
    %10077 = vmatmul.mubr.f32.gmra.mrb[0].mxu0 %v9523
    %v10078 = vpop.f32.mrb[0].mxu0
    %v10079 = vadd.f32 %v9974, %v10078
    %v10080 = vpop.f32.mrb[0].mxu0
    %10081 = vmatprep.mubr.f32.mxu0 %v9556
    %10082 = vmatmul.mubr.f32.gmra.mrb[0].mxu0 %v9555
    %v10083 = vpop.f32.mrb[0].mxu0
    %v10084 = vadd.f32 %v9979, %v10083
    %v10085 = vpop.f32.mrb[0].mxu0
    %10086 = vmatprep.mubr.f32.mxu0 %v9588
    %10087 = vmatmul.mubr.f32.gmra.mrb[0].mxu0 %v9587
    %v10088 = vpop.f32.mrb[0].mxu0
    %v10089 = vadd.f32 %v9984, %v10088
    %v10090 = vpop.f32.mrb[0].mxu0
    %10091 = vmatprep.mubr.f32.mxu0 %v9620
    %10092 = vmatmul.mubr.f32.gmra.mrb[0].mxu0 %v9619
    %v10093 = vpop.f32.mrb[0].mxu0
    %v10094 = vadd.f32 %v9989, %v10093
    %v10095 = vpop.f32.mrb[0].mxu0
    %10096 = vdwg.mxu0
    %10097 = vmatprep.subr.mxu0 %v9654
    %10098 = vmatpush1.xpose.msra.mxu0 %v9653
    %10099 = vmatprep.subr.mxu0 0.0
    %10100 = vmatpush1.xpose.msra.mxu0 0.0
    %10101 = vmatprep.subr.mxu0 0.0
    %10102 = vmatpush1.xpose.msra.mxu0 0.0
    %10103 = vmatprep.subr.mxu0 0.0
    %10104 = vmatpush1.xpose.msra.mxu0 0.0
    %10105 = vmatprep.subr.mxu0 0.0
    %10106 = vmatpush1.xpose.msra.mxu0 0.0
    %10107 = vmatprep.subr.mxu0 0.0
    %10108 = vmatpush1.xpose.msra.mxu0 0.0
    %10109 = vmatprep.subr.mxu0 0.0
    %10110 = vmatpush1.xpose.msra.mxu0 0.0
    %10111 = vmatprep.subr.mxu0 0.0
    %10112 = vmatpush1.xpose.msra.mxu0 0.0
    %10113 = vmatprep.subr.mxu0 0.0
    %10114 = vmatpush1.xpose.msra.mxu0 0.0
    %10115 = vmatprep.subr.mxu0 0.0
    %10116 = vmatpush1.xpose.msra.mxu0 0.0
    %10117 = vmatprep.subr.mxu0 0.0
    %10118 = vmatpush1.xpose.msra.mxu0 0.0
    %10119 = vmatprep.subr.mxu0 0.0
    %10120 = vmatpush1.xpose.msra.mxu0 0.0
    %10121 = vmatprep.subr.mxu0 0.0
    %10122 = vmatpush1.xpose.msra.mxu0 0.0
    %10123 = vmatprep.subr.mxu0 0.0
    %10124 = vmatpush1.xpose.msra.mxu0 0.0
    %10125 = vmatprep.subr.mxu0 0.0
    %10126 = vmatpush1.xpose.msra.mxu0 0.0
    %10127 = vmatprep.subr.mxu0 0.0
    %10128 = vmatpush1.xpose.msra.mxu0 0.0
    %10129 = vmatprep.subr.mxu0 0.0
    %10130 = vmatpush1.xpose.msra.mxu0 0.0
    %10131 = vmatprep.subr.mxu0 0.0
    %10132 = vmatpush1.xpose.msra.mxu0 0.0
    %10133 = vmatprep.subr.mxu0 0.0
    %10134 = vmatpush1.xpose.msra.mxu0 0.0
    %10135 = vmatprep.subr.mxu0 0.0
    %10136 = vmatpush1.xpose.msra.mxu0 0.0
    %10137 = vmatprep.subr.mxu0 0.0
    %10138 = vmatpush1.xpose.msra.mxu0 0.0
    %10139 = vmatprep.subr.mxu0 0.0
    %10140 = vmatpush1.xpose.msra.mxu0 0.0
    %10141 = vmatprep.subr.mxu0 0.0
    %10142 = vmatpush1.xpose.msra.mxu0 0.0
    %10143 = vmatprep.subr.mxu0 0.0
    %10144 = vmatpush1.xpose.msra.mxu0 0.0
    %10145 = vmatprep.subr.mxu0 0.0
    %10146 = vmatpush1.xpose.msra.mxu0 0.0
    %10147 = vmatprep.subr.mxu0 0.0
    %10148 = vmatpush1.xpose.msra.mxu0 0.0
    %10149 = vmatprep.subr.mxu0 0.0
    %10150 = vmatpush1.xpose.msra.mxu0 0.0
    %10151 = vmatprep.subr.mxu0 0.0
    %10152 = vmatpush1.xpose.msra.mxu0 0.0
    %10153 = vmatprep.subr.mxu0 0.0
    %10154 = vmatpush1.xpose.msra.mxu0 0.0
    %10155 = vmatprep.subr.mxu0 0.0
    %10156 = vmatpush1.xpose.msra.mxu0 0.0
    %10157 = vmatprep.subr.mxu0 0.0
    %10158 = vmatpush1.xpose.msra.mxu0 0.0
    %10159 = vmatprep.subr.mxu0 0.0
    %10160 = vmatpush1.xpose.msra.mxu0 0.0
    %10161 = vmatprep.mubr.f32.mxu0 %v9398
    %10162 = vmatmul.mubr.f32.gmra.mrb[0].mxu0 %v9397
    %v10163 = vpop.f32.mrb[0].mxu0
    %v10164 = vadd.f32 %v10059, %v10163
    %v10165 = vpop.f32.mrb[0].mxu0
    %10166 = vmatprep.mubr.f32.mxu0 %v9430
    %10167 = vmatmul.mubr.f32.gmra.mrb[0].mxu0 %v9429
    %v10168 = vpop.f32.mrb[0].mxu0
    %v10169 = vadd.f32 %v10064, %v10168
    %v10170 = vpop.f32.mrb[0].mxu0
    %10171 = vmatprep.mubr.f32.mxu0 %v9462
    %10172 = vmatmul.mubr.f32.gmra.mrb[0].mxu0 %v9461
    %v10173 = vpop.f32.mrb[0].mxu0
    %v10174 = vadd.f32 %v10069, %v10173
    %v10175 = vpop.f32.mrb[0].mxu0
    %10176 = vmatprep.mubr.f32.mxu0 %v9494
    %10177 = vmatmul.mubr.f32.gmra.mrb[0].mxu0 %v9493
    %v10178 = vpop.f32.mrb[0].mxu0
    %v10179 = vadd.f32 %v10074, %v10178
    %v10180 = vpop.f32.mrb[0].mxu0
    %10181 = vmatprep.mubr.f32.mxu0 %v9526
    %10182 = vmatmul.mubr.f32.gmra.mrb[0].mxu0 %v9525
    %v10183 = vpop.f32.mrb[0].mxu0
    %v10184 = vadd.f32 %v10079, %v10183
    %v10185 = vpop.f32.mrb[0].mxu0
    %10186 = vmatprep.mubr.f32.mxu0 %v9558
    %10187 = vmatmul.mubr.f32.gmra.mrb[0].mxu0 %v9557
    %v10188 = vpop.f32.mrb[0].mxu0
    %v10189 = vadd.f32 %v10084, %v10188
    %v10190 = vpop.f32.mrb[0].mxu0
    %10191 = vmatprep.mubr.f32.mxu0 %v9590
    %10192 = vmatmul.mubr.f32.gmra.mrb[0].mxu0 %v9589
    %v10193 = vpop.f32.mrb[0].mxu0
    %v10194 = vadd.f32 %v10089, %v10193
    %v10195 = vpop.f32.mrb[0].mxu0
    %10196 = vmatprep.mubr.f32.mxu0 %v9622
    %10197 = vmatmul.mubr.f32.gmra.mrb[0].mxu0 %v9621
    %v10198 = vpop.f32.mrb[0].mxu0
    %v10199 = vadd.f32 %v10094, %v10198
    %v10200 = vpop.f32.mrb[0].mxu0
    %10201 = vdwg.mxu0
    %10202 = vmatprep.subr.mxu0 %v9656
    %10203 = vmatpush1.xpose.msra.mxu0 %v9655
    %10204 = vmatprep.subr.mxu0 0.0
    %10205 = vmatpush1.xpose.msra.mxu0 0.0
    %10206 = vmatprep.subr.mxu0 0.0
    %10207 = vmatpush1.xpose.msra.mxu0 0.0
    %10208 = vmatprep.subr.mxu0 0.0
    %10209 = vmatpush1.xpose.msra.mxu0 0.0
    %10210 = vmatprep.subr.mxu0 0.0
    %10211 = vmatpush1.xpose.msra.mxu0 0.0
    %10212 = vmatprep.subr.mxu0 0.0
    %10213 = vmatpush1.xpose.msra.mxu0 0.0
    %10214 = vmatprep.subr.mxu0 0.0
    %10215 = vmatpush1.xpose.msra.mxu0 0.0
    %10216 = vmatprep.subr.mxu0 0.0
    %10217 = vmatpush1.xpose.msra.mxu0 0.0
    %10218 = vmatprep.subr.mxu0 0.0
    %10219 = vmatpush1.xpose.msra.mxu0 0.0
    %10220 = vmatprep.subr.mxu0 0.0
    %10221 = vmatpush1.xpose.msra.mxu0 0.0
    %10222 = vmatprep.subr.mxu0 0.0
    %10223 = vmatpush1.xpose.msra.mxu0 0.0
    %10224 = vmatprep.subr.mxu0 0.0
    %10225 = vmatpush1.xpose.msra.mxu0 0.0
    %10226 = vmatprep.subr.mxu0 0.0
    %10227 = vmatpush1.xpose.msra.mxu0 0.0
    %10228 = vmatprep.subr.mxu0 0.0
    %10229 = vmatpush1.xpose.msra.mxu0 0.0
    %10230 = vmatprep.subr.mxu0 0.0
    %10231 = vmatpush1.xpose.msra.mxu0 0.0
    %10232 = vmatprep.subr.mxu0 0.0
    %10233 = vmatpush1.xpose.msra.mxu0 0.0
    %10234 = vmatprep.subr.mxu0 0.0
    %10235 = vmatpush1.xpose.msra.mxu0 0.0
    %10236 = vmatprep.subr.mxu0 0.0
    %10237 = vmatpush1.xpose.msra.mxu0 0.0
    %10238 = vmatprep.subr.mxu0 0.0
    %10239 = vmatpush1.xpose.msra.mxu0 0.0
    %10240 = vmatprep.subr.mxu0 0.0
    %10241 = vmatpush1.xpose.msra.mxu0 0.0
    %10242 = vmatprep.subr.mxu0 0.0
    %10243 = vmatpush1.xpose.msra.mxu0 0.0
    %10244 = vmatprep.subr.mxu0 0.0
    %10245 = vmatpush1.xpose.msra.mxu0 0.0
    %10246 = vmatprep.subr.mxu0 0.0
    %10247 = vmatpush1.xpose.msra.mxu0 0.0
    %10248 = vmatprep.subr.mxu0 0.0
    %10249 = vmatpush1.xpose.msra.mxu0 0.0
    %10250 = vmatprep.subr.mxu0 0.0
    %10251 = vmatpush1.xpose.msra.mxu0 0.0
    %10252 = vmatprep.subr.mxu0 0.0
    %10253 = vmatpush1.xpose.msra.mxu0 0.0
    %10254 = vmatprep.subr.mxu0 0.0
    %10255 = vmatpush1.xpose.msra.mxu0 0.0
    %10256 = vmatprep.subr.mxu0 0.0
    %10257 = vmatpush1.xpose.msra.mxu0 0.0
    %10258 = vmatprep.subr.mxu0 0.0
    %10259 = vmatpush1.xpose.msra.mxu0 0.0
    %10260 = vmatprep.subr.mxu0 0.0
    %10261 = vmatpush1.xpose.msra.mxu0 0.0
    %10262 = vmatprep.subr.mxu0 0.0
    %10263 = vmatpush1.xpose.msra.mxu0 0.0
    %10264 = vmatprep.subr.mxu0 0.0
    %10265 = vmatpush1.xpose.msra.mxu0 0.0
    %10266 = vmatprep.mubr.f32.mxu0 %v9400
    %10267 = vmatmul.mubr.f32.gmra.mrb[0].mxu0 %v9399
    %v10268 = vpop.f32.mrb[0].mxu0
    %v10269 = vadd.f32 %v10164, %v10268
    %v10270 = vpop.f32.mrb[0].mxu0
    %10271 = vmatprep.mubr.f32.mxu0 %v9432
    %10272 = vmatmul.mubr.f32.gmra.mrb[0].mxu0 %v9431
    %v10273 = vpop.f32.mrb[0].mxu0
    %v10274 = vadd.f32 %v10169, %v10273
    %v10275 = vpop.f32.mrb[0].mxu0
    %10276 = vmatprep.mubr.f32.mxu0 %v9464
    %10277 = vmatmul.mubr.f32.gmra.mrb[0].mxu0 %v9463
    %v10278 = vpop.f32.mrb[0].mxu0
    %v10279 = vadd.f32 %v10174, %v10278
    %v10280 = vpop.f32.mrb[0].mxu0
    %10281 = vmatprep.mubr.f32.mxu0 %v9496
    %10282 = vmatmul.mubr.f32.gmra.mrb[0].mxu0 %v9495
    %v10283 = vpop.f32.mrb[0].mxu0
    %v10284 = vadd.f32 %v10179, %v10283
    %v10285 = vpop.f32.mrb[0].mxu0
    %10286 = vmatprep.mubr.f32.mxu0 %v9528
    %10287 = vmatmul.mubr.f32.gmra.mrb[0].mxu0 %v9527
    %v10288 = vpop.f32.mrb[0].mxu0
    %v10289 = vadd.f32 %v10184, %v10288
    %v10290 = vpop.f32.mrb[0].mxu0
    %10291 = vmatprep.mubr.f32.mxu0 %v9560
    %10292 = vmatmul.mubr.f32.gmra.mrb[0].mxu0 %v9559
    %v10293 = vpop.f32.mrb[0].mxu0
    %v10294 = vadd.f32 %v10189, %v10293
    %v10295 = vpop.f32.mrb[0].mxu0
    %10296 = vmatprep.mubr.f32.mxu0 %v9592
    %10297 = vmatmul.mubr.f32.gmra.mrb[0].mxu0 %v9591
    %v10298 = vpop.f32.mrb[0].mxu0
    %v10299 = vadd.f32 %v10194, %v10298
    %v10300 = vpop.f32.mrb[0].mxu0
    %10301 = vmatprep.mubr.f32.mxu0 %v9624
    %10302 = vmatmul.mubr.f32.gmra.mrb[0].mxu0 %v9623
    %v10303 = vpop.f32.mrb[0].mxu0
    %v10304 = vadd.f32 %v10199, %v10303
    %v10305 = vpop.f32.mrb[0].mxu0
    %10306 = vdwg.mxu0
    %10307 = vmatprep.subr.mxu0 %v9658
    %10308 = vmatpush1.xpose.msra.mxu0 %v9657
    %10309 = vmatprep.subr.mxu0 0.0
    %10310 = vmatpush1.xpose.msra.mxu0 0.0
    %10311 = vmatprep.subr.mxu0 0.0
    %10312 = vmatpush1.xpose.msra.mxu0 0.0
    %10313 = vmatprep.subr.mxu0 0.0
    %10314 = vmatpush1.xpose.msra.mxu0 0.0
    %10315 = vmatprep.subr.mxu0 0.0
    %10316 = vmatpush1.xpose.msra.mxu0 0.0
    %10317 = vmatprep.subr.mxu0 0.0
    %10318 = vmatpush1.xpose.msra.mxu0 0.0
    %10319 = vmatprep.subr.mxu0 0.0
    %10320 = vmatpush1.xpose.msra.mxu0 0.0
    %10321 = vmatprep.subr.mxu0 0.0
    %10322 = vmatpush1.xpose.msra.mxu0 0.0
    %10323 = vmatprep.subr.mxu0 0.0
    %10324 = vmatpush1.xpose.msra.mxu0 0.0
    %10325 = vmatprep.subr.mxu0 0.0
    %10326 = vmatpush1.xpose.msra.mxu0 0.0
    %10327 = vmatprep.subr.mxu0 0.0
    %10328 = vmatpush1.xpose.msra.mxu0 0.0
    %10329 = vmatprep.subr.mxu0 0.0
    %10330 = vmatpush1.xpose.msra.mxu0 0.0
    %10331 = vmatprep.subr.mxu0 0.0
    %10332 = vmatpush1.xpose.msra.mxu0 0.0
    %10333 = vmatprep.subr.mxu0 0.0
    %10334 = vmatpush1.xpose.msra.mxu0 0.0
    %10335 = vmatprep.subr.mxu0 0.0
    %10336 = vmatpush1.xpose.msra.mxu0 0.0
    %10337 = vmatprep.subr.mxu0 0.0
    %10338 = vmatpush1.xpose.msra.mxu0 0.0
    %10339 = vmatprep.subr.mxu0 0.0
    %10340 = vmatpush1.xpose.msra.mxu0 0.0
    %10341 = vmatprep.subr.mxu0 0.0
    %10342 = vmatpush1.xpose.msra.mxu0 0.0
    %10343 = vmatprep.subr.mxu0 0.0
    %10344 = vmatpush1.xpose.msra.mxu0 0.0
    %10345 = vmatprep.subr.mxu0 0.0
    %10346 = vmatpush1.xpose.msra.mxu0 0.0
    %10347 = vmatprep.subr.mxu0 0.0
    %10348 = vmatpush1.xpose.msra.mxu0 0.0
    %10349 = vmatprep.subr.mxu0 0.0
    %10350 = vmatpush1.xpose.msra.mxu0 0.0
    %10351 = vmatprep.subr.mxu0 0.0
    %10352 = vmatpush1.xpose.msra.mxu0 0.0
    %10353 = vmatprep.subr.mxu0 0.0
    %10354 = vmatpush1.xpose.msra.mxu0 0.0
    %10355 = vmatprep.subr.mxu0 0.0
    %10356 = vmatpush1.xpose.msra.mxu0 0.0
    %10357 = vmatprep.subr.mxu0 0.0
    %10358 = vmatpush1.xpose.msra.mxu0 0.0
    %10359 = vmatprep.subr.mxu0 0.0
    %10360 = vmatpush1.xpose.msra.mxu0 0.0
    %10361 = vmatprep.subr.mxu0 0.0
    %10362 = vmatpush1.xpose.msra.mxu0 0.0
    %10363 = vmatprep.subr.mxu0 0.0
    %10364 = vmatpush1.xpose.msra.mxu0 0.0
    %10365 = vmatprep.subr.mxu0 0.0
    %10366 = vmatpush1.xpose.msra.mxu0 0.0
    %10367 = vmatprep.subr.mxu0 0.0
    %10368 = vmatpush1.xpose.msra.mxu0 0.0
    %10369 = vmatprep.subr.mxu0 0.0
    %10370 = vmatpush1.xpose.msra.mxu0 0.0
    %10371 = vmatprep.mubr.f32.mxu0 %v9402
    %10372 = vmatmul.mubr.f32.gmra.mrb[0].mxu0 %v9401
    %v10373 = vpop.f32.mrb[0].mxu0
    %v10374 = vadd.f32 %v10269, %v10373
    %v10375 = vpop.f32.mrb[0].mxu0
    %10376 = vmatprep.mubr.f32.mxu0 %v9434
    %10377 = vmatmul.mubr.f32.gmra.mrb[0].mxu0 %v9433
    %v10378 = vpop.f32.mrb[0].mxu0
    %v10379 = vadd.f32 %v10274, %v10378
    %v10380 = vpop.f32.mrb[0].mxu0
    %10381 = vmatprep.mubr.f32.mxu0 %v9466
    %10382 = vmatmul.mubr.f32.gmra.mrb[0].mxu0 %v9465
    %v10383 = vpop.f32.mrb[0].mxu0
    %v10384 = vadd.f32 %v10279, %v10383
    %v10385 = vpop.f32.mrb[0].mxu0
    %10386 = vmatprep.mubr.f32.mxu0 %v9498
    %10387 = vmatmul.mubr.f32.gmra.mrb[0].mxu0 %v9497
    %v10388 = vpop.f32.mrb[0].mxu0
    %v10389 = vadd.f32 %v10284, %v10388
    %v10390 = vpop.f32.mrb[0].mxu0
    %10391 = vmatprep.mubr.f32.mxu0 %v9530
    %10392 = vmatmul.mubr.f32.gmra.mrb[0].mxu0 %v9529
    %v10393 = vpop.f32.mrb[0].mxu0
    %v10394 = vadd.f32 %v10289, %v10393
    %v10395 = vpop.f32.mrb[0].mxu0
    %10396 = vmatprep.mubr.f32.mxu0 %v9562
    %10397 = vmatmul.mubr.f32.gmra.mrb[0].mxu0 %v9561
    %v10398 = vpop.f32.mrb[0].mxu0
    %v10399 = vadd.f32 %v10294, %v10398
    %v10400 = vpop.f32.mrb[0].mxu0
    %10401 = vmatprep.mubr.f32.mxu0 %v9594
    %10402 = vmatmul.mubr.f32.gmra.mrb[0].mxu0 %v9593
    %v10403 = vpop.f32.mrb[0].mxu0
    %v10404 = vadd.f32 %v10299, %v10403
    %v10405 = vpop.f32.mrb[0].mxu0
    %10406 = vmatprep.mubr.f32.mxu0 %v9626
    %10407 = vmatmul.mubr.f32.gmra.mrb[0].mxu0 %v9625
    %v10408 = vpop.f32.mrb[0].mxu0
    %v10409 = vadd.f32 %v10304, %v10408
    %v10410 = vpop.f32.mrb[0].mxu0
    %10411 = vdwg.mxu0
    %10412 = vmatprep.subr.mxu0 %v9660
    %10413 = vmatpush1.xpose.msra.mxu0 %v9659
    %10414 = vmatprep.subr.mxu0 0.0
    %10415 = vmatpush1.xpose.msra.mxu0 0.0
    %10416 = vmatprep.subr.mxu0 0.0
    %10417 = vmatpush1.xpose.msra.mxu0 0.0
    %10418 = vmatprep.subr.mxu0 0.0
    %10419 = vmatpush1.xpose.msra.mxu0 0.0
    %10420 = vmatprep.subr.mxu0 0.0
    %10421 = vmatpush1.xpose.msra.mxu0 0.0
    %10422 = vmatprep.subr.mxu0 0.0
    %10423 = vmatpush1.xpose.msra.mxu0 0.0
    %10424 = vmatprep.subr.mxu0 0.0
    %10425 = vmatpush1.xpose.msra.mxu0 0.0
    %10426 = vmatprep.subr.mxu0 0.0
    %10427 = vmatpush1.xpose.msra.mxu0 0.0
    %10428 = vmatprep.subr.mxu0 0.0
    %10429 = vmatpush1.xpose.msra.mxu0 0.0
    %10430 = vmatprep.subr.mxu0 0.0
    %10431 = vmatpush1.xpose.msra.mxu0 0.0
    %10432 = vmatprep.subr.mxu0 0.0
    %10433 = vmatpush1.xpose.msra.mxu0 0.0
    %10434 = vmatprep.subr.mxu0 0.0
    %10435 = vmatpush1.xpose.msra.mxu0 0.0
    %10436 = vmatprep.subr.mxu0 0.0
    %10437 = vmatpush1.xpose.msra.mxu0 0.0
    %10438 = vmatprep.subr.mxu0 0.0
    %10439 = vmatpush1.xpose.msra.mxu0 0.0
    %10440 = vmatprep.subr.mxu0 0.0
    %10441 = vmatpush1.xpose.msra.mxu0 0.0
    %10442 = vmatprep.subr.mxu0 0.0
    %10443 = vmatpush1.xpose.msra.mxu0 0.0
    %10444 = vmatprep.subr.mxu0 0.0
    %10445 = vmatpush1.xpose.msra.mxu0 0.0
    %10446 = vmatprep.subr.mxu0 0.0
    %10447 = vmatpush1.xpose.msra.mxu0 0.0
    %10448 = vmatprep.subr.mxu0 0.0
    %10449 = vmatpush1.xpose.msra.mxu0 0.0
    %10450 = vmatprep.subr.mxu0 0.0
    %10451 = vmatpush1.xpose.msra.mxu0 0.0
    %10452 = vmatprep.subr.mxu0 0.0
    %10453 = vmatpush1.xpose.msra.mxu0 0.0
    %10454 = vmatprep.subr.mxu0 0.0
    %10455 = vmatpush1.xpose.msra.mxu0 0.0
    %10456 = vmatprep.subr.mxu0 0.0
    %10457 = vmatpush1.xpose.msra.mxu0 0.0
    %10458 = vmatprep.subr.mxu0 0.0
    %10459 = vmatpush1.xpose.msra.mxu0 0.0
    %10460 = vmatprep.subr.mxu0 0.0
    %10461 = vmatpush1.xpose.msra.mxu0 0.0
    %10462 = vmatprep.subr.mxu0 0.0
    %10463 = vmatpush1.xpose.msra.mxu0 0.0
    %10464 = vmatprep.subr.mxu0 0.0
    %10465 = vmatpush1.xpose.msra.mxu0 0.0
    %10466 = vmatprep.subr.mxu0 0.0
    %10467 = vmatpush1.xpose.msra.mxu0 0.0
    %10468 = vmatprep.subr.mxu0 0.0
    %10469 = vmatpush1.xpose.msra.mxu0 0.0
    %10470 = vmatprep.subr.mxu0 0.0
    %10471 = vmatpush1.xpose.msra.mxu0 0.0
    %10472 = vmatprep.subr.mxu0 0.0
    %10473 = vmatpush1.xpose.msra.mxu0 0.0
    %10474 = vmatprep.subr.mxu0 0.0
    %10475 = vmatpush1.xpose.msra.mxu0 0.0
    %10476 = vmatprep.mubr.f32.mxu0 %v9404
    %10477 = vmatmul.mubr.f32.gmra.mrb[0].mxu0 %v9403
    %v10478 = vpop.f32.mrb[0].mxu0
    %v10479 = vadd.f32 %v10374, %v10478
    %v10480 = vpop.f32.mrb[0].mxu0
    %10481 = vmatprep.mubr.f32.mxu0 %v9436
    %10482 = vmatmul.mubr.f32.gmra.mrb[0].mxu0 %v9435
    %v10483 = vpop.f32.mrb[0].mxu0
    %v10484 = vadd.f32 %v10379, %v10483
    %v10485 = vpop.f32.mrb[0].mxu0
    %10486 = vmatprep.mubr.f32.mxu0 %v9468
    %10487 = vmatmul.mubr.f32.gmra.mrb[0].mxu0 %v9467
    %v10488 = vpop.f32.mrb[0].mxu0
    %v10489 = vadd.f32 %v10384, %v10488
    %v10490 = vpop.f32.mrb[0].mxu0
    %10491 = vmatprep.mubr.f32.mxu0 %v9500
    %10492 = vmatmul.mubr.f32.gmra.mrb[0].mxu0 %v9499
    %v10493 = vpop.f32.mrb[0].mxu0
    %v10494 = vadd.f32 %v10389, %v10493
    %v10495 = vpop.f32.mrb[0].mxu0
    %10496 = vmatprep.mubr.f32.mxu0 %v9532
    %10497 = vmatmul.mubr.f32.gmra.mrb[0].mxu0 %v9531
    %v10498 = vpop.f32.mrb[0].mxu0
    %v10499 = vadd.f32 %v10394, %v10498
    %v10500 = vpop.f32.mrb[0].mxu0
    %10501 = vmatprep.mubr.f32.mxu0 %v9564
    %10502 = vmatmul.mubr.f32.gmra.mrb[0].mxu0 %v9563
    %v10503 = vpop.f32.mrb[0].mxu0
    %v10504 = vadd.f32 %v10399, %v10503
    %v10505 = vpop.f32.mrb[0].mxu0
    %10506 = vmatprep.mubr.f32.mxu0 %v9596
    %10507 = vmatmul.mubr.f32.gmra.mrb[0].mxu0 %v9595
    %v10508 = vpop.f32.mrb[0].mxu0
    %v10509 = vadd.f32 %v10404, %v10508
    %v10510 = vpop.f32.mrb[0].mxu0
    %10511 = vmatprep.mubr.f32.mxu0 %v9628
    %10512 = vmatmul.mubr.f32.gmra.mrb[0].mxu0 %v9627
    %v10513 = vpop.f32.mrb[0].mxu0
    %v10514 = vadd.f32 %v10409, %v10513
    %v10515 = vpop.f32.mrb[0].mxu0
    %10516 = vdwg.mxu0
    %10517 = vmatprep.subr.mxu0 %v9662
    %10518 = vmatpush1.xpose.msra.mxu0 %v9661
    %10519 = vmatprep.subr.mxu0 0.0
    %10520 = vmatpush1.xpose.msra.mxu0 0.0
    %10521 = vmatprep.subr.mxu0 0.0
    %10522 = vmatpush1.xpose.msra.mxu0 0.0
    %10523 = vmatprep.subr.mxu0 0.0
    %10524 = vmatpush1.xpose.msra.mxu0 0.0
    %10525 = vmatprep.subr.mxu0 0.0
    %10526 = vmatpush1.xpose.msra.mxu0 0.0
    %10527 = vmatprep.subr.mxu0 0.0
    %10528 = vmatpush1.xpose.msra.mxu0 0.0
    %10529 = vmatprep.subr.mxu0 0.0
    %10530 = vmatpush1.xpose.msra.mxu0 0.0
    %10531 = vmatprep.subr.mxu0 0.0
    %10532 = vmatpush1.xpose.msra.mxu0 0.0
    %10533 = vmatprep.subr.mxu0 0.0
    %10534 = vmatpush1.xpose.msra.mxu0 0.0
    %10535 = vmatprep.subr.mxu0 0.0
    %10536 = vmatpush1.xpose.msra.mxu0 0.0
    %10537 = vmatprep.subr.mxu0 0.0
    %10538 = vmatpush1.xpose.msra.mxu0 0.0
    %10539 = vmatprep.subr.mxu0 0.0
    %10540 = vmatpush1.xpose.msra.mxu0 0.0
    %10541 = vmatprep.subr.mxu0 0.0
    %10542 = vmatpush1.xpose.msra.mxu0 0.0
    %10543 = vmatprep.subr.mxu0 0.0
    %10544 = vmatpush1.xpose.msra.mxu0 0.0
    %10545 = vmatprep.subr.mxu0 0.0
    %10546 = vmatpush1.xpose.msra.mxu0 0.0
    %10547 = vmatprep.subr.mxu0 0.0
    %10548 = vmatpush1.xpose.msra.mxu0 0.0
    %10549 = vmatprep.subr.mxu0 0.0
    %10550 = vmatpush1.xpose.msra.mxu0 0.0
    %10551 = vmatprep.subr.mxu0 0.0
    %10552 = vmatpush1.xpose.msra.mxu0 0.0
    %10553 = vmatprep.subr.mxu0 0.0
    %10554 = vmatpush1.xpose.msra.mxu0 0.0
    %10555 = vmatprep.subr.mxu0 0.0
    %10556 = vmatpush1.xpose.msra.mxu0 0.0
    %10557 = vmatprep.subr.mxu0 0.0
    %10558 = vmatpush1.xpose.msra.mxu0 0.0
    %10559 = vmatprep.subr.mxu0 0.0
    %10560 = vmatpush1.xpose.msra.mxu0 0.0
    %10561 = vmatprep.subr.mxu0 0.0
    %10562 = vmatpush1.xpose.msra.mxu0 0.0
    %10563 = vmatprep.subr.mxu0 0.0
    %10564 = vmatpush1.xpose.msra.mxu0 0.0
    %10565 = vmatprep.subr.mxu0 0.0
    %10566 = vmatpush1.xpose.msra.mxu0 0.0
    %10567 = vmatprep.subr.mxu0 0.0
    %10568 = vmatpush1.xpose.msra.mxu0 0.0
    %10569 = vmatprep.subr.mxu0 0.0
    %10570 = vmatpush1.xpose.msra.mxu0 0.0
    %10571 = vmatprep.subr.mxu0 0.0
    %10572 = vmatpush1.xpose.msra.mxu0 0.0
    %10573 = vmatprep.subr.mxu0 0.0
    %10574 = vmatpush1.xpose.msra.mxu0 0.0
    %10575 = vmatprep.subr.mxu0 0.0
    %10576 = vmatpush1.xpose.msra.mxu0 0.0
    %10577 = vmatprep.subr.mxu0 0.0
    %10578 = vmatpush1.xpose.msra.mxu0 0.0
    %10579 = vmatprep.subr.mxu0 0.0
    %10580 = vmatpush1.xpose.msra.mxu0 0.0
    %10581 = vmatprep.mubr.f32.mxu0 %v9406
    %10582 = vmatmul.mubr.f32.gmra.mrb[0].mxu0 %v9405
    %v10583 = vpop.f32.mrb[0].mxu0
    %v10584 = vadd.f32 %v10479, %v10583
    %v10585 = vpop.f32.mrb[0].mxu0
    %10586 = vmatprep.mubr.f32.mxu0 %v9438
    %10587 = vmatmul.mubr.f32.gmra.mrb[0].mxu0 %v9437
    %v10588 = vpop.f32.mrb[0].mxu0
    %v10589 = vadd.f32 %v10484, %v10588
    %v10590 = vpop.f32.mrb[0].mxu0
    %10591 = vmatprep.mubr.f32.mxu0 %v9470
    %10592 = vmatmul.mubr.f32.gmra.mrb[0].mxu0 %v9469
    %v10593 = vpop.f32.mrb[0].mxu0
    %v10594 = vadd.f32 %v10489, %v10593
    %v10595 = vpop.f32.mrb[0].mxu0
    %10596 = vmatprep.mubr.f32.mxu0 %v9502
    %10597 = vmatmul.mubr.f32.gmra.mrb[0].mxu0 %v9501
    %v10598 = vpop.f32.mrb[0].mxu0
    %v10599 = vadd.f32 %v10494, %v10598
    %v10600 = vpop.f32.mrb[0].mxu0
    %10601 = vmatprep.mubr.f32.mxu0 %v9534
    %10602 = vmatmul.mubr.f32.gmra.mrb[0].mxu0 %v9533
    %v10603 = vpop.f32.mrb[0].mxu0
    %v10604 = vadd.f32 %v10499, %v10603
    %v10605 = vpop.f32.mrb[0].mxu0
    %10606 = vmatprep.mubr.f32.mxu0 %v9566
    %10607 = vmatmul.mubr.f32.gmra.mrb[0].mxu0 %v9565
    %v10608 = vpop.f32.mrb[0].mxu0
    %v10609 = vadd.f32 %v10504, %v10608
    %v10610 = vpop.f32.mrb[0].mxu0
    %10611 = vmatprep.mubr.f32.mxu0 %v9598
    %10612 = vmatmul.mubr.f32.gmra.mrb[0].mxu0 %v9597
    %v10613 = vpop.f32.mrb[0].mxu0
    %v10614 = vadd.f32 %v10509, %v10613
    %v10615 = vpop.f32.mrb[0].mxu0
    %10616 = vmatprep.mubr.f32.mxu0 %v9630
    %10617 = vmatmul.mubr.f32.gmra.mrb[0].mxu0 %v9629
    %v10618 = vpop.f32.mrb[0].mxu0
    %v10619 = vadd.f32 %v10514, %v10618
    %v10620 = vpop.f32.mrb[0].mxu0
    %10621 = vdwg.mxu0
    %10622 = vmatprep.subr.mxu0 %v9664
    %10623 = vmatpush1.xpose.msra.mxu0 %v9663
    %10624 = vmatprep.subr.mxu0 0.0
    %10625 = vmatpush1.xpose.msra.mxu0 0.0
    %10626 = vmatprep.subr.mxu0 0.0
    %10627 = vmatpush1.xpose.msra.mxu0 0.0
    %10628 = vmatprep.subr.mxu0 0.0
    %10629 = vmatpush1.xpose.msra.mxu0 0.0
    %10630 = vmatprep.subr.mxu0 0.0
    %10631 = vmatpush1.xpose.msra.mxu0 0.0
    %10632 = vmatprep.subr.mxu0 0.0
    %10633 = vmatpush1.xpose.msra.mxu0 0.0
    %10634 = vmatprep.subr.mxu0 0.0
    %10635 = vmatpush1.xpose.msra.mxu0 0.0
    %10636 = vmatprep.subr.mxu0 0.0
    %10637 = vmatpush1.xpose.msra.mxu0 0.0
    %10638 = vmatprep.subr.mxu0 0.0
    %10639 = vmatpush1.xpose.msra.mxu0 0.0
    %10640 = vmatprep.subr.mxu0 0.0
    %10641 = vmatpush1.xpose.msra.mxu0 0.0
    %10642 = vmatprep.subr.mxu0 0.0
    %10643 = vmatpush1.xpose.msra.mxu0 0.0
    %10644 = vmatprep.subr.mxu0 0.0
    %10645 = vmatpush1.xpose.msra.mxu0 0.0
    %10646 = vmatprep.subr.mxu0 0.0
    %10647 = vmatpush1.xpose.msra.mxu0 0.0
    %10648 = vmatprep.subr.mxu0 0.0
    %10649 = vmatpush1.xpose.msra.mxu0 0.0
    %10650 = vmatprep.subr.mxu0 0.0
    %10651 = vmatpush1.xpose.msra.mxu0 0.0
    %10652 = vmatprep.subr.mxu0 0.0
    %10653 = vmatpush1.xpose.msra.mxu0 0.0
    %10654 = vmatprep.subr.mxu0 0.0
    %10655 = vmatpush1.xpose.msra.mxu0 0.0
    %10656 = vmatprep.subr.mxu0 0.0
    %10657 = vmatpush1.xpose.msra.mxu0 0.0
    %10658 = vmatprep.subr.mxu0 0.0
    %10659 = vmatpush1.xpose.msra.mxu0 0.0
    %10660 = vmatprep.subr.mxu0 0.0
    %10661 = vmatpush1.xpose.msra.mxu0 0.0
    %10662 = vmatprep.subr.mxu0 0.0
    %10663 = vmatpush1.xpose.msra.mxu0 0.0
    %10664 = vmatprep.subr.mxu0 0.0
    %10665 = vmatpush1.xpose.msra.mxu0 0.0
    %10666 = vmatprep.subr.mxu0 0.0
    %10667 = vmatpush1.xpose.msra.mxu0 0.0
    %10668 = vmatprep.subr.mxu0 0.0
    %10669 = vmatpush1.xpose.msra.mxu0 0.0
    %10670 = vmatprep.subr.mxu0 0.0
    %10671 = vmatpush1.xpose.msra.mxu0 0.0
    %10672 = vmatprep.subr.mxu0 0.0
    %10673 = vmatpush1.xpose.msra.mxu0 0.0
    %10674 = vmatprep.subr.mxu0 0.0
    %10675 = vmatpush1.xpose.msra.mxu0 0.0
    %10676 = vmatprep.subr.mxu0 0.0
    %10677 = vmatpush1.xpose.msra.mxu0 0.0
    %10678 = vmatprep.subr.mxu0 0.0
    %10679 = vmatpush1.xpose.msra.mxu0 0.0
    %10680 = vmatprep.subr.mxu0 0.0
    %10681 = vmatpush1.xpose.msra.mxu0 0.0
    %10682 = vmatprep.subr.mxu0 0.0
    %10683 = vmatpush1.xpose.msra.mxu0 0.0
    %10684 = vmatprep.subr.mxu0 0.0
    %10685 = vmatpush1.xpose.msra.mxu0 0.0
    %10686 = vmatprep.mubr.f32.mxu0 %v9408
    %10687 = vmatmul.mubr.f32.gmra.mrb[0].mxu0 %v9407
    %v10688 = vpop.f32.mrb[0].mxu0
    %v10689 = vadd.f32 %v10584, %v10688
    %v10690 = vpop.f32.mrb[0].mxu0
    %10691 = vmatprep.mubr.f32.mxu0 %v9440
    %10692 = vmatmul.mubr.f32.gmra.mrb[0].mxu0 %v9439
    %v10693 = vpop.f32.mrb[0].mxu0
    %v10694 = vadd.f32 %v10589, %v10693
    %v10695 = vpop.f32.mrb[0].mxu0
    %10696 = vmatprep.mubr.f32.mxu0 %v9472
    %10697 = vmatmul.mubr.f32.gmra.mrb[0].mxu0 %v9471
    %v10698 = vpop.f32.mrb[0].mxu0
    %v10699 = vadd.f32 %v10594, %v10698
    %v10700 = vpop.f32.mrb[0].mxu0
    %10701 = vmatprep.mubr.f32.mxu0 %v9504
    %10702 = vmatmul.mubr.f32.gmra.mrb[0].mxu0 %v9503
    %v10703 = vpop.f32.mrb[0].mxu0
    %v10704 = vadd.f32 %v10599, %v10703
    %v10705 = vpop.f32.mrb[0].mxu0
    %10706 = vmatprep.mubr.f32.mxu0 %v9536
    %10707 = vmatmul.mubr.f32.gmra.mrb[0].mxu0 %v9535
    %v10708 = vpop.f32.mrb[0].mxu0
    %v10709 = vadd.f32 %v10604, %v10708
    %v10710 = vpop.f32.mrb[0].mxu0
    %10711 = vmatprep.mubr.f32.mxu0 %v9568
    %10712 = vmatmul.mubr.f32.gmra.mrb[0].mxu0 %v9567
    %v10713 = vpop.f32.mrb[0].mxu0
    %v10714 = vadd.f32 %v10609, %v10713
    %v10715 = vpop.f32.mrb[0].mxu0
    %10716 = vmatprep.mubr.f32.mxu0 %v9600
    %10717 = vmatmul.mubr.f32.gmra.mrb[0].mxu0 %v9599
    %v10718 = vpop.f32.mrb[0].mxu0
    %v10719 = vadd.f32 %v10614, %v10718
    %v10720 = vpop.f32.mrb[0].mxu0
    %10721 = vmatprep.mubr.f32.mxu0 %v9632
    %10722 = vmatmul.mubr.f32.gmra.mrb[0].mxu0 %v9631
    %v10723 = vpop.f32.mrb[0].mxu0
    %v10724 = vadd.f32 %v10619, %v10723
    %v10725 = vpop.f32.mrb[0].mxu0
    %10726 = vdwg.mxu0
    %10727 = vmatprep.subr.mxu0 %v9666
    %10728 = vmatpush1.xpose.msra.mxu0 %v9665
    %10729 = vmatprep.subr.mxu0 0.0
    %10730 = vmatpush1.xpose.msra.mxu0 0.0
    %10731 = vmatprep.subr.mxu0 0.0
    %10732 = vmatpush1.xpose.msra.mxu0 0.0
    %10733 = vmatprep.subr.mxu0 0.0
    %10734 = vmatpush1.xpose.msra.mxu0 0.0
    %10735 = vmatprep.subr.mxu0 0.0
    %10736 = vmatpush1.xpose.msra.mxu0 0.0
    %10737 = vmatprep.subr.mxu0 0.0
    %10738 = vmatpush1.xpose.msra.mxu0 0.0
    %10739 = vmatprep.subr.mxu0 0.0
    %10740 = vmatpush1.xpose.msra.mxu0 0.0
    %10741 = vmatprep.subr.mxu0 0.0
    %10742 = vmatpush1.xpose.msra.mxu0 0.0
    %10743 = vmatprep.subr.mxu0 0.0
    %10744 = vmatpush1.xpose.msra.mxu0 0.0
    %10745 = vmatprep.subr.mxu0 0.0
    %10746 = vmatpush1.xpose.msra.mxu0 0.0
    %10747 = vmatprep.subr.mxu0 0.0
    %10748 = vmatpush1.xpose.msra.mxu0 0.0
    %10749 = vmatprep.subr.mxu0 0.0
    %10750 = vmatpush1.xpose.msra.mxu0 0.0
    %10751 = vmatprep.subr.mxu0 0.0
    %10752 = vmatpush1.xpose.msra.mxu0 0.0
    %10753 = vmatprep.subr.mxu0 0.0
    %10754 = vmatpush1.xpose.msra.mxu0 0.0
    %10755 = vmatprep.subr.mxu0 0.0
    %10756 = vmatpush1.xpose.msra.mxu0 0.0
    %10757 = vmatprep.subr.mxu0 0.0
    %10758 = vmatpush1.xpose.msra.mxu0 0.0
    %10759 = vmatprep.subr.mxu0 0.0
    %10760 = vmatpush1.xpose.msra.mxu0 0.0
    %10761 = vmatprep.subr.mxu0 0.0
    %10762 = vmatpush1.xpose.msra.mxu0 0.0
    %10763 = vmatprep.subr.mxu0 0.0
    %10764 = vmatpush1.xpose.msra.mxu0 0.0
    %10765 = vmatprep.subr.mxu0 0.0
    %10766 = vmatpush1.xpose.msra.mxu0 0.0
    %10767 = vmatprep.subr.mxu0 0.0
    %10768 = vmatpush1.xpose.msra.mxu0 0.0
    %10769 = vmatprep.subr.mxu0 0.0
    %10770 = vmatpush1.xpose.msra.mxu0 0.0
    %10771 = vmatprep.subr.mxu0 0.0
    %10772 = vmatpush1.xpose.msra.mxu0 0.0
    %10773 = vmatprep.subr.mxu0 0.0
    %10774 = vmatpush1.xpose.msra.mxu0 0.0
    %10775 = vmatprep.subr.mxu0 0.0
    %10776 = vmatpush1.xpose.msra.mxu0 0.0
    %10777 = vmatprep.subr.mxu0 0.0
    %10778 = vmatpush1.xpose.msra.mxu0 0.0
    %10779 = vmatprep.subr.mxu0 0.0
    %10780 = vmatpush1.xpose.msra.mxu0 0.0
    %10781 = vmatprep.subr.mxu0 0.0
    %10782 = vmatpush1.xpose.msra.mxu0 0.0
    %10783 = vmatprep.subr.mxu0 0.0
    %10784 = vmatpush1.xpose.msra.mxu0 0.0
    %10785 = vmatprep.subr.mxu0 0.0
    %10786 = vmatpush1.xpose.msra.mxu0 0.0
    %10787 = vmatprep.subr.mxu0 0.0
    %10788 = vmatpush1.xpose.msra.mxu0 0.0
    %10789 = vmatprep.subr.mxu0 0.0
    %10790 = vmatpush1.xpose.msra.mxu0 0.0
    %10791 = vmatprep.mubr.f32.mxu0 %v9410
    %10792 = vmatmul.mubr.f32.gmra.mrb[0].mxu0 %v9409
    %v10793 = vpop.f32.mrb[0].mxu0
    %v10794 = vadd.f32 %v10689, %v10793
    %v10795 = vpop.f32.mrb[0].mxu0
    %10796 = vmatprep.mubr.f32.mxu0 %v9442
    %10797 = vmatmul.mubr.f32.gmra.mrb[0].mxu0 %v9441
    %v10798 = vpop.f32.mrb[0].mxu0
    %v10799 = vadd.f32 %v10694, %v10798
    %v10800 = vpop.f32.mrb[0].mxu0
    %10801 = vmatprep.mubr.f32.mxu0 %v9474
    %10802 = vmatmul.mubr.f32.gmra.mrb[0].mxu0 %v9473
    %v10803 = vpop.f32.mrb[0].mxu0
    %v10804 = vadd.f32 %v10699, %v10803
    %v10805 = vpop.f32.mrb[0].mxu0
    %10806 = vmatprep.mubr.f32.mxu0 %v9506
    %10807 = vmatmul.mubr.f32.gmra.mrb[0].mxu0 %v9505
    %v10808 = vpop.f32.mrb[0].mxu0
    %v10809 = vadd.f32 %v10704, %v10808
    %v10810 = vpop.f32.mrb[0].mxu0
    %10811 = vmatprep.mubr.f32.mxu0 %v9538
    %10812 = vmatmul.mubr.f32.gmra.mrb[0].mxu0 %v9537
    %v10813 = vpop.f32.mrb[0].mxu0
    %v10814 = vadd.f32 %v10709, %v10813
    %v10815 = vpop.f32.mrb[0].mxu0
    %10816 = vmatprep.mubr.f32.mxu0 %v9570
    %10817 = vmatmul.mubr.f32.gmra.mrb[0].mxu0 %v9569
    %v10818 = vpop.f32.mrb[0].mxu0
    %v10819 = vadd.f32 %v10714, %v10818
    %v10820 = vpop.f32.mrb[0].mxu0
    %10821 = vmatprep.mubr.f32.mxu0 %v9602
    %10822 = vmatmul.mubr.f32.gmra.mrb[0].mxu0 %v9601
    %v10823 = vpop.f32.mrb[0].mxu0
    %v10824 = vadd.f32 %v10719, %v10823
    %v10825 = vpop.f32.mrb[0].mxu0
    %10826 = vmatprep.mubr.f32.mxu0 %v9634
    %10827 = vmatmul.mubr.f32.gmra.mrb[0].mxu0 %v9633
    %v10828 = vpop.f32.mrb[0].mxu0
    %v10829 = vadd.f32 %v10724, %v10828
    %v10830 = vpop.f32.mrb[0].mxu0
    %10831 = vdwg.mxu0
    %10832 = vmatprep.subr.mxu0 %v9668
    %10833 = vmatpush1.xpose.msra.mxu0 %v9667
    %10834 = vmatprep.subr.mxu0 0.0
    %10835 = vmatpush1.xpose.msra.mxu0 0.0
    %10836 = vmatprep.subr.mxu0 0.0
    %10837 = vmatpush1.xpose.msra.mxu0 0.0
    %10838 = vmatprep.subr.mxu0 0.0
    %10839 = vmatpush1.xpose.msra.mxu0 0.0
    %10840 = vmatprep.subr.mxu0 0.0
    %10841 = vmatpush1.xpose.msra.mxu0 0.0
    %10842 = vmatprep.subr.mxu0 0.0
    %10843 = vmatpush1.xpose.msra.mxu0 0.0
    %10844 = vmatprep.subr.mxu0 0.0
    %10845 = vmatpush1.xpose.msra.mxu0 0.0
    %10846 = vmatprep.subr.mxu0 0.0
    %10847 = vmatpush1.xpose.msra.mxu0 0.0
    %10848 = vmatprep.subr.mxu0 0.0
    %10849 = vmatpush1.xpose.msra.mxu0 0.0
    %10850 = vmatprep.subr.mxu0 0.0
    %10851 = vmatpush1.xpose.msra.mxu0 0.0
    %10852 = vmatprep.subr.mxu0 0.0
    %10853 = vmatpush1.xpose.msra.mxu0 0.0
    %10854 = vmatprep.subr.mxu0 0.0
    %10855 = vmatpush1.xpose.msra.mxu0 0.0
    %10856 = vmatprep.subr.mxu0 0.0
    %10857 = vmatpush1.xpose.msra.mxu0 0.0
    %10858 = vmatprep.subr.mxu0 0.0
    %10859 = vmatpush1.xpose.msra.mxu0 0.0
    %10860 = vmatprep.subr.mxu0 0.0
    %10861 = vmatpush1.xpose.msra.mxu0 0.0
    %10862 = vmatprep.subr.mxu0 0.0
    %10863 = vmatpush1.xpose.msra.mxu0 0.0
    %10864 = vmatprep.subr.mxu0 0.0
    %10865 = vmatpush1.xpose.msra.mxu0 0.0
    %10866 = vmatprep.subr.mxu0 0.0
    %10867 = vmatpush1.xpose.msra.mxu0 0.0
    %10868 = vmatprep.subr.mxu0 0.0
    %10869 = vmatpush1.xpose.msra.mxu0 0.0
    %10870 = vmatprep.subr.mxu0 0.0
    %10871 = vmatpush1.xpose.msra.mxu0 0.0
    %10872 = vmatprep.subr.mxu0 0.0
    %10873 = vmatpush1.xpose.msra.mxu0 0.0
    %10874 = vmatprep.subr.mxu0 0.0
    %10875 = vmatpush1.xpose.msra.mxu0 0.0
    %10876 = vmatprep.subr.mxu0 0.0
    %10877 = vmatpush1.xpose.msra.mxu0 0.0
    %10878 = vmatprep.subr.mxu0 0.0
    %10879 = vmatpush1.xpose.msra.mxu0 0.0
    %10880 = vmatprep.subr.mxu0 0.0
    %10881 = vmatpush1.xpose.msra.mxu0 0.0
    %10882 = vmatprep.subr.mxu0 0.0
    %10883 = vmatpush1.xpose.msra.mxu0 0.0
    %10884 = vmatprep.subr.mxu0 0.0
    %10885 = vmatpush1.xpose.msra.mxu0 0.0
    %10886 = vmatprep.subr.mxu0 0.0
    %10887 = vmatpush1.xpose.msra.mxu0 0.0
    %10888 = vmatprep.subr.mxu0 0.0
    %10889 = vmatpush1.xpose.msra.mxu0 0.0
    %10890 = vmatprep.subr.mxu0 0.0
    %10891 = vmatpush1.xpose.msra.mxu0 0.0
    %10892 = vmatprep.subr.mxu0 0.0
    %10893 = vmatpush1.xpose.msra.mxu0 0.0
    %10894 = vmatprep.subr.mxu0 0.0
    %10895 = vmatpush1.xpose.msra.mxu0 0.0
    %10896 = vmatprep.mubr.f32.mxu0 %v9412
    %10897 = vmatmul.mubr.f32.gmra.mrb[0].mxu0 %v9411
    %v10898 = vpop.f32.mrb[0].mxu0
    %v10899 = vadd.f32 %v10794, %v10898
    %v10900 = vpop.f32.mrb[0].mxu0
    %10901 = vmatprep.mubr.f32.mxu0 %v9444
    %10902 = vmatmul.mubr.f32.gmra.mrb[0].mxu0 %v9443
    %v10903 = vpop.f32.mrb[0].mxu0
    %v10904 = vadd.f32 %v10799, %v10903
    %v10905 = vpop.f32.mrb[0].mxu0
    %10906 = vmatprep.mubr.f32.mxu0 %v9476
    %10907 = vmatmul.mubr.f32.gmra.mrb[0].mxu0 %v9475
    %v10908 = vpop.f32.mrb[0].mxu0
    %v10909 = vadd.f32 %v10804, %v10908
    %v10910 = vpop.f32.mrb[0].mxu0
    %10911 = vmatprep.mubr.f32.mxu0 %v9508
    %10912 = vmatmul.mubr.f32.gmra.mrb[0].mxu0 %v9507
    %v10913 = vpop.f32.mrb[0].mxu0
    %v10914 = vadd.f32 %v10809, %v10913
    %v10915 = vpop.f32.mrb[0].mxu0
    %10916 = vmatprep.mubr.f32.mxu0 %v9540
    %10917 = vmatmul.mubr.f32.gmra.mrb[0].mxu0 %v9539
    %v10918 = vpop.f32.mrb[0].mxu0
    %v10919 = vadd.f32 %v10814, %v10918
    %v10920 = vpop.f32.mrb[0].mxu0
    %10921 = vmatprep.mubr.f32.mxu0 %v9572
    %10922 = vmatmul.mubr.f32.gmra.mrb[0].mxu0 %v9571
    %v10923 = vpop.f32.mrb[0].mxu0
    %v10924 = vadd.f32 %v10819, %v10923
    %v10925 = vpop.f32.mrb[0].mxu0
    %10926 = vmatprep.mubr.f32.mxu0 %v9604
    %10927 = vmatmul.mubr.f32.gmra.mrb[0].mxu0 %v9603
    %v10928 = vpop.f32.mrb[0].mxu0
    %v10929 = vadd.f32 %v10824, %v10928
    %v10930 = vpop.f32.mrb[0].mxu0
    %10931 = vmatprep.mubr.f32.mxu0 %v9636
    %10932 = vmatmul.mubr.f32.gmra.mrb[0].mxu0 %v9635
    %v10933 = vpop.f32.mrb[0].mxu0
    %v10934 = vadd.f32 %v10829, %v10933
    %v10935 = vpop.f32.mrb[0].mxu0
    %10936 = vdwg.mxu0
    %10937 = vmatprep.subr.mxu0 %v9670
    %10938 = vmatpush1.xpose.msra.mxu0 %v9669
    %10939 = vmatprep.subr.mxu0 0.0
    %10940 = vmatpush1.xpose.msra.mxu0 0.0
    %10941 = vmatprep.subr.mxu0 0.0
    %10942 = vmatpush1.xpose.msra.mxu0 0.0
    %10943 = vmatprep.subr.mxu0 0.0
    %10944 = vmatpush1.xpose.msra.mxu0 0.0
    %10945 = vmatprep.subr.mxu0 0.0
    %10946 = vmatpush1.xpose.msra.mxu0 0.0
    %10947 = vmatprep.subr.mxu0 0.0
    %10948 = vmatpush1.xpose.msra.mxu0 0.0
    %10949 = vmatprep.subr.mxu0 0.0
    %10950 = vmatpush1.xpose.msra.mxu0 0.0
    %10951 = vmatprep.subr.mxu0 0.0
    %10952 = vmatpush1.xpose.msra.mxu0 0.0
    %10953 = vmatprep.subr.mxu0 0.0
    %10954 = vmatpush1.xpose.msra.mxu0 0.0
    %10955 = vmatprep.subr.mxu0 0.0
    %10956 = vmatpush1.xpose.msra.mxu0 0.0
    %10957 = vmatprep.subr.mxu0 0.0
    %10958 = vmatpush1.xpose.msra.mxu0 0.0
    %10959 = vmatprep.subr.mxu0 0.0
    %10960 = vmatpush1.xpose.msra.mxu0 0.0
    %10961 = vmatprep.subr.mxu0 0.0
    %10962 = vmatpush1.xpose.msra.mxu0 0.0
    %10963 = vmatprep.subr.mxu0 0.0
    %10964 = vmatpush1.xpose.msra.mxu0 0.0
    %10965 = vmatprep.subr.mxu0 0.0
    %10966 = vmatpush1.xpose.msra.mxu0 0.0
    %10967 = vmatprep.subr.mxu0 0.0
    %10968 = vmatpush1.xpose.msra.mxu0 0.0
    %10969 = vmatprep.subr.mxu0 0.0
    %10970 = vmatpush1.xpose.msra.mxu0 0.0
    %10971 = vmatprep.subr.mxu0 0.0
    %10972 = vmatpush1.xpose.msra.mxu0 0.0
    %10973 = vmatprep.subr.mxu0 0.0
    %10974 = vmatpush1.xpose.msra.mxu0 0.0
    %10975 = vmatprep.subr.mxu0 0.0
    %10976 = vmatpush1.xpose.msra.mxu0 0.0
    %10977 = vmatprep.subr.mxu0 0.0
    %10978 = vmatpush1.xpose.msra.mxu0 0.0
    %10979 = vmatprep.subr.mxu0 0.0
    %10980 = vmatpush1.xpose.msra.mxu0 0.0
    %10981 = vmatprep.subr.mxu0 0.0
    %10982 = vmatpush1.xpose.msra.mxu0 0.0
    %10983 = vmatprep.subr.mxu0 0.0
    %10984 = vmatpush1.xpose.msra.mxu0 0.0
    %10985 = vmatprep.subr.mxu0 0.0
    %10986 = vmatpush1.xpose.msra.mxu0 0.0
    %10987 = vmatprep.subr.mxu0 0.0
    %10988 = vmatpush1.xpose.msra.mxu0 0.0
    %10989 = vmatprep.subr.mxu0 0.0
    %10990 = vmatpush1.xpose.msra.mxu0 0.0
    %10991 = vmatprep.subr.mxu0 0.0
    %10992 = vmatpush1.xpose.msra.mxu0 0.0
    %10993 = vmatprep.subr.mxu0 0.0
    %10994 = vmatpush1.xpose.msra.mxu0 0.0
    %10995 = vmatprep.subr.mxu0 0.0
    %10996 = vmatpush1.xpose.msra.mxu0 0.0
    %10997 = vmatprep.subr.mxu0 0.0
    %10998 = vmatpush1.xpose.msra.mxu0 0.0
    %10999 = vmatprep.subr.mxu0 0.0
    %11000 = vmatpush1.xpose.msra.mxu0 0.0
    %11001 = vmatprep.mubr.f32.mxu0 %v9414
    %11002 = vmatmul.mubr.f32.gmra.mrb[0].mxu0 %v9413
    %v11003 = vpop.f32.mrb[0].mxu0
    %v11004 = vadd.f32 %v10899, %v11003
    %v11005 = vpop.f32.mrb[0].mxu0
    %11006 = vmatprep.mubr.f32.mxu0 %v9446
    %11007 = vmatmul.mubr.f32.gmra.mrb[0].mxu0 %v9445
    %v11008 = vpop.f32.mrb[0].mxu0
    %v11009 = vadd.f32 %v10904, %v11008
    %v11010 = vpop.f32.mrb[0].mxu0
    %11011 = vmatprep.mubr.f32.mxu0 %v9478
    %11012 = vmatmul.mubr.f32.gmra.mrb[0].mxu0 %v9477
    %v11013 = vpop.f32.mrb[0].mxu0
    %v11014 = vadd.f32 %v10909, %v11013
    %v11015 = vpop.f32.mrb[0].mxu0
    %11016 = vmatprep.mubr.f32.mxu0 %v9510
    %11017 = vmatmul.mubr.f32.gmra.mrb[0].mxu0 %v9509
    %v11018 = vpop.f32.mrb[0].mxu0
    %v11019 = vadd.f32 %v10914, %v11018
    %v11020 = vpop.f32.mrb[0].mxu0
    %11021 = vmatprep.mubr.f32.mxu0 %v9542
    %11022 = vmatmul.mubr.f32.gmra.mrb[0].mxu0 %v9541
    %v11023 = vpop.f32.mrb[0].mxu0
    %v11024 = vadd.f32 %v10919, %v11023
    %v11025 = vpop.f32.mrb[0].mxu0
    %11026 = vmatprep.mubr.f32.mxu0 %v9574
    %11027 = vmatmul.mubr.f32.gmra.mrb[0].mxu0 %v9573
    %v11028 = vpop.f32.mrb[0].mxu0
    %v11029 = vadd.f32 %v10924, %v11028
    %v11030 = vpop.f32.mrb[0].mxu0
    %11031 = vmatprep.mubr.f32.mxu0 %v9606
    %11032 = vmatmul.mubr.f32.gmra.mrb[0].mxu0 %v9605
    %v11033 = vpop.f32.mrb[0].mxu0
    %v11034 = vadd.f32 %v10929, %v11033
    %v11035 = vpop.f32.mrb[0].mxu0
    %11036 = vmatprep.mubr.f32.mxu0 %v9638
    %11037 = vmatmul.mubr.f32.gmra.mrb[0].mxu0 %v9637
    %v11038 = vpop.f32.mrb[0].mxu0
    %v11039 = vadd.f32 %v10934, %v11038
    %v11040 = vpop.f32.mrb[0].mxu0
    %11041 = vdwg.mxu0
    %11042 = vmatprep.subr.mxu0 %v9672
    %11043 = vmatpush1.xpose.msra.mxu0 %v9671
    %11044 = vmatprep.subr.mxu0 0.0
    %11045 = vmatpush1.xpose.msra.mxu0 0.0
    %11046 = vmatprep.subr.mxu0 0.0
    %11047 = vmatpush1.xpose.msra.mxu0 0.0
    %11048 = vmatprep.subr.mxu0 0.0
    %11049 = vmatpush1.xpose.msra.mxu0 0.0
    %11050 = vmatprep.subr.mxu0 0.0
    %11051 = vmatpush1.xpose.msra.mxu0 0.0
    %11052 = vmatprep.subr.mxu0 0.0
    %11053 = vmatpush1.xpose.msra.mxu0 0.0
    %11054 = vmatprep.subr.mxu0 0.0
    %11055 = vmatpush1.xpose.msra.mxu0 0.0
    %11056 = vmatprep.subr.mxu0 0.0
    %11057 = vmatpush1.xpose.msra.mxu0 0.0
    %11058 = vmatprep.subr.mxu0 0.0
    %11059 = vmatpush1.xpose.msra.mxu0 0.0
    %11060 = vmatprep.subr.mxu0 0.0
    %11061 = vmatpush1.xpose.msra.mxu0 0.0
    %11062 = vmatprep.subr.mxu0 0.0
    %11063 = vmatpush1.xpose.msra.mxu0 0.0
    %11064 = vmatprep.subr.mxu0 0.0
    %11065 = vmatpush1.xpose.msra.mxu0 0.0
    %11066 = vmatprep.subr.mxu0 0.0
    %11067 = vmatpush1.xpose.msra.mxu0 0.0
    %11068 = vmatprep.subr.mxu0 0.0
    %11069 = vmatpush1.xpose.msra.mxu0 0.0
    %11070 = vmatprep.subr.mxu0 0.0
    %11071 = vmatpush1.xpose.msra.mxu0 0.0
    %11072 = vmatprep.subr.mxu0 0.0
    %11073 = vmatpush1.xpose.msra.mxu0 0.0
    %11074 = vmatprep.subr.mxu0 0.0
    %11075 = vmatpush1.xpose.msra.mxu0 0.0
    %11076 = vmatprep.subr.mxu0 0.0
    %11077 = vmatpush1.xpose.msra.mxu0 0.0
    %11078 = vmatprep.subr.mxu0 0.0
    %11079 = vmatpush1.xpose.msra.mxu0 0.0
    %11080 = vmatprep.subr.mxu0 0.0
    %11081 = vmatpush1.xpose.msra.mxu0 0.0
    %11082 = vmatprep.subr.mxu0 0.0
    %11083 = vmatpush1.xpose.msra.mxu0 0.0
    %11084 = vmatprep.subr.mxu0 0.0
    %11085 = vmatpush1.xpose.msra.mxu0 0.0
    %11086 = vmatprep.subr.mxu0 0.0
    %11087 = vmatpush1.xpose.msra.mxu0 0.0
    %11088 = vmatprep.subr.mxu0 0.0
    %11089 = vmatpush1.xpose.msra.mxu0 0.0
    %11090 = vmatprep.subr.mxu0 0.0
    %11091 = vmatpush1.xpose.msra.mxu0 0.0
    %11092 = vmatprep.subr.mxu0 0.0
    %11093 = vmatpush1.xpose.msra.mxu0 0.0
    %11094 = vmatprep.subr.mxu0 0.0
    %11095 = vmatpush1.xpose.msra.mxu0 0.0
    %11096 = vmatprep.subr.mxu0 0.0
    %11097 = vmatpush1.xpose.msra.mxu0 0.0
    %11098 = vmatprep.subr.mxu0 0.0
    %11099 = vmatpush1.xpose.msra.mxu0 0.0
    %11100 = vmatprep.subr.mxu0 0.0
    %11101 = vmatpush1.xpose.msra.mxu0 0.0
    %11102 = vmatprep.subr.mxu0 0.0
    %11103 = vmatpush1.xpose.msra.mxu0 0.0
    %11104 = vmatprep.subr.mxu0 0.0
    %11105 = vmatpush1.xpose.msra.mxu0 0.0
    %11106 = vmatprep.mubr.f32.mxu0 %v9416
    %11107 = vmatmul.mubr.f32.gmra.mrb[0].mxu0 %v9415
    %v11108 = vpop.f32.mrb[0].mxu0
    %v11109 = vadd.f32 %v11004, %v11108
    %v11110 = vpop.f32.mrb[0].mxu0
    %11111 = vmatprep.mubr.f32.mxu0 %v9448
    %11112 = vmatmul.mubr.f32.gmra.mrb[0].mxu0 %v9447
    %v11113 = vpop.f32.mrb[0].mxu0
    %v11114 = vadd.f32 %v11009, %v11113
    %v11115 = vpop.f32.mrb[0].mxu0
    %11116 = vmatprep.mubr.f32.mxu0 %v9480
    %11117 = vmatmul.mubr.f32.gmra.mrb[0].mxu0 %v9479
    %v11118 = vpop.f32.mrb[0].mxu0
    %v11119 = vadd.f32 %v11014, %v11118
    %v11120 = vpop.f32.mrb[0].mxu0
    %11121 = vmatprep.mubr.f32.mxu0 %v9512
    %11122 = vmatmul.mubr.f32.gmra.mrb[0].mxu0 %v9511
    %v11123 = vpop.f32.mrb[0].mxu0
    %v11124 = vadd.f32 %v11019, %v11123
    %v11125 = vpop.f32.mrb[0].mxu0
    %11126 = vmatprep.mubr.f32.mxu0 %v9544
    %11127 = vmatmul.mubr.f32.gmra.mrb[0].mxu0 %v9543
    %v11128 = vpop.f32.mrb[0].mxu0
    %v11129 = vadd.f32 %v11024, %v11128
    %v11130 = vpop.f32.mrb[0].mxu0
    %11131 = vmatprep.mubr.f32.mxu0 %v9576
    %11132 = vmatmul.mubr.f32.gmra.mrb[0].mxu0 %v9575
    %v11133 = vpop.f32.mrb[0].mxu0
    %v11134 = vadd.f32 %v11029, %v11133
    %v11135 = vpop.f32.mrb[0].mxu0
    %11136 = vmatprep.mubr.f32.mxu0 %v9608
    %11137 = vmatmul.mubr.f32.gmra.mrb[0].mxu0 %v9607
    %v11138 = vpop.f32.mrb[0].mxu0
    %v11139 = vadd.f32 %v11034, %v11138
    %v11140 = vpop.f32.mrb[0].mxu0
    %11141 = vmatprep.mubr.f32.mxu0 %v9640
    %11142 = vmatmul.mubr.f32.gmra.mrb[0].mxu0 %v9639
    %v11143 = vpop.f32.mrb[0].mxu0
    %v11144 = vadd.f32 %v11039, %v11143
    %v11145 = vpop.f32.mrb[0].mxu0
    %11146 = vdwg.mxu0
    %11147 = vmatprep.subr.mxu0 %v9674
    %11148 = vmatpush1.xpose.msra.mxu0 %v9673
    %11149 = vmatprep.subr.mxu0 0.0
    %11150 = vmatpush1.xpose.msra.mxu0 0.0
    %11151 = vmatprep.subr.mxu0 0.0
    %11152 = vmatpush1.xpose.msra.mxu0 0.0
    %11153 = vmatprep.subr.mxu0 0.0
    %11154 = vmatpush1.xpose.msra.mxu0 0.0
    %11155 = vmatprep.subr.mxu0 0.0
    %11156 = vmatpush1.xpose.msra.mxu0 0.0
    %11157 = vmatprep.subr.mxu0 0.0
    %11158 = vmatpush1.xpose.msra.mxu0 0.0
    %11159 = vmatprep.subr.mxu0 0.0
    %11160 = vmatpush1.xpose.msra.mxu0 0.0
    %11161 = vmatprep.subr.mxu0 0.0
    %11162 = vmatpush1.xpose.msra.mxu0 0.0
    %11163 = vmatprep.subr.mxu0 0.0
    %11164 = vmatpush1.xpose.msra.mxu0 0.0
    %11165 = vmatprep.subr.mxu0 0.0
    %11166 = vmatpush1.xpose.msra.mxu0 0.0
    %11167 = vmatprep.subr.mxu0 0.0
    %11168 = vmatpush1.xpose.msra.mxu0 0.0
    %11169 = vmatprep.subr.mxu0 0.0
    %11170 = vmatpush1.xpose.msra.mxu0 0.0
    %11171 = vmatprep.subr.mxu0 0.0
    %11172 = vmatpush1.xpose.msra.mxu0 0.0
    %11173 = vmatprep.subr.mxu0 0.0
    %11174 = vmatpush1.xpose.msra.mxu0 0.0
    %11175 = vmatprep.subr.mxu0 0.0
    %11176 = vmatpush1.xpose.msra.mxu0 0.0
    %11177 = vmatprep.subr.mxu0 0.0
    %11178 = vmatpush1.xpose.msra.mxu0 0.0
    %11179 = vmatprep.subr.mxu0 0.0
    %11180 = vmatpush1.xpose.msra.mxu0 0.0
    %11181 = vmatprep.subr.mxu0 0.0
    %11182 = vmatpush1.xpose.msra.mxu0 0.0
    %11183 = vmatprep.subr.mxu0 0.0
    %11184 = vmatpush1.xpose.msra.mxu0 0.0
    %11185 = vmatprep.subr.mxu0 0.0
    %11186 = vmatpush1.xpose.msra.mxu0 0.0
    %11187 = vmatprep.subr.mxu0 0.0
    %11188 = vmatpush1.xpose.msra.mxu0 0.0
    %11189 = vmatprep.subr.mxu0 0.0
    %11190 = vmatpush1.xpose.msra.mxu0 0.0
    %11191 = vmatprep.subr.mxu0 0.0
    %11192 = vmatpush1.xpose.msra.mxu0 0.0
    %11193 = vmatprep.subr.mxu0 0.0
    %11194 = vmatpush1.xpose.msra.mxu0 0.0
    %11195 = vmatprep.subr.mxu0 0.0
    %11196 = vmatpush1.xpose.msra.mxu0 0.0
    %11197 = vmatprep.subr.mxu0 0.0
    %11198 = vmatpush1.xpose.msra.mxu0 0.0
    %11199 = vmatprep.subr.mxu0 0.0
    %11200 = vmatpush1.xpose.msra.mxu0 0.0
    %11201 = vmatprep.subr.mxu0 0.0
    %11202 = vmatpush1.xpose.msra.mxu0 0.0
    %11203 = vmatprep.subr.mxu0 0.0
    %11204 = vmatpush1.xpose.msra.mxu0 0.0
    %11205 = vmatprep.subr.mxu0 0.0
    %11206 = vmatpush1.xpose.msra.mxu0 0.0
    %11207 = vmatprep.subr.mxu0 0.0
    %11208 = vmatpush1.xpose.msra.mxu0 0.0
    %11209 = vmatprep.subr.mxu0 0.0
    %11210 = vmatpush1.xpose.msra.mxu0 0.0
    %11211 = vmatprep.mubr.f32.mxu0 %v9418
    %11212 = vmatmul.mubr.f32.gmra.mrb[0].mxu0 %v9417
    %v11213 = vpop.f32.mrb[0].mxu0
    %v11214 = vadd.f32 %v11109, %v11213
    %v11215 = vpop.f32.mrb[0].mxu0
    %11216 = vmatprep.mubr.f32.mxu0 %v9450
    %11217 = vmatmul.mubr.f32.gmra.mrb[0].mxu0 %v9449
    %v11218 = vpop.f32.mrb[0].mxu0
    %v11219 = vadd.f32 %v11114, %v11218
    %v11220 = vpop.f32.mrb[0].mxu0
    %11221 = vmatprep.mubr.f32.mxu0 %v9482
    %11222 = vmatmul.mubr.f32.gmra.mrb[0].mxu0 %v9481
    %v11223 = vpop.f32.mrb[0].mxu0
    %v11224 = vadd.f32 %v11119, %v11223
    %v11225 = vpop.f32.mrb[0].mxu0
    %11226 = vmatprep.mubr.f32.mxu0 %v9514
    %11227 = vmatmul.mubr.f32.gmra.mrb[0].mxu0 %v9513
    %v11228 = vpop.f32.mrb[0].mxu0
    %v11229 = vadd.f32 %v11124, %v11228
    %v11230 = vpop.f32.mrb[0].mxu0
    %11231 = vmatprep.mubr.f32.mxu0 %v9546
    %11232 = vmatmul.mubr.f32.gmra.mrb[0].mxu0 %v9545
    %v11233 = vpop.f32.mrb[0].mxu0
    %v11234 = vadd.f32 %v11129, %v11233
    %v11235 = vpop.f32.mrb[0].mxu0
    %11236 = vmatprep.mubr.f32.mxu0 %v9578
    %11237 = vmatmul.mubr.f32.gmra.mrb[0].mxu0 %v9577
    %v11238 = vpop.f32.mrb[0].mxu0
    %v11239 = vadd.f32 %v11134, %v11238
    %v11240 = vpop.f32.mrb[0].mxu0
    %11241 = vmatprep.mubr.f32.mxu0 %v9610
    %11242 = vmatmul.mubr.f32.gmra.mrb[0].mxu0 %v9609
    %v11243 = vpop.f32.mrb[0].mxu0
    %v11244 = vadd.f32 %v11139, %v11243
    %v11245 = vpop.f32.mrb[0].mxu0
    %11246 = vmatprep.mubr.f32.mxu0 %v9642
    %11247 = vmatmul.mubr.f32.gmra.mrb[0].mxu0 %v9641
    %v11248 = vpop.f32.mrb[0].mxu0
    %v11249 = vadd.f32 %v11144, %v11248
    %v11250 = vpop.f32.mrb[0].mxu0
    %11251 = vdwg.mxu0
    %11252 = vmatprep.subr.mxu0 %v9676
    %11253 = vmatpush1.xpose.msra.mxu0 %v9675
    %11254 = vmatprep.subr.mxu0 0.0
    %11255 = vmatpush1.xpose.msra.mxu0 0.0
    %11256 = vmatprep.subr.mxu0 0.0
    %11257 = vmatpush1.xpose.msra.mxu0 0.0
    %11258 = vmatprep.subr.mxu0 0.0
    %11259 = vmatpush1.xpose.msra.mxu0 0.0
    %11260 = vmatprep.subr.mxu0 0.0
    %11261 = vmatpush1.xpose.msra.mxu0 0.0
    %11262 = vmatprep.subr.mxu0 0.0
    %11263 = vmatpush1.xpose.msra.mxu0 0.0
    %11264 = vmatprep.subr.mxu0 0.0
    %11265 = vmatpush1.xpose.msra.mxu0 0.0
    %11266 = vmatprep.subr.mxu0 0.0
    %11267 = vmatpush1.xpose.msra.mxu0 0.0
    %11268 = vmatprep.subr.mxu0 0.0
    %11269 = vmatpush1.xpose.msra.mxu0 0.0
    %11270 = vmatprep.subr.mxu0 0.0
    %11271 = vmatpush1.xpose.msra.mxu0 0.0
    %11272 = vmatprep.subr.mxu0 0.0
    %11273 = vmatpush1.xpose.msra.mxu0 0.0
    %11274 = vmatprep.subr.mxu0 0.0
    %11275 = vmatpush1.xpose.msra.mxu0 0.0
    %11276 = vmatprep.subr.mxu0 0.0
    %11277 = vmatpush1.xpose.msra.mxu0 0.0
    %11278 = vmatprep.subr.mxu0 0.0
    %11279 = vmatpush1.xpose.msra.mxu0 0.0
    %11280 = vmatprep.subr.mxu0 0.0
    %11281 = vmatpush1.xpose.msra.mxu0 0.0
    %11282 = vmatprep.subr.mxu0 0.0
    %11283 = vmatpush1.xpose.msra.mxu0 0.0
    %11284 = vmatprep.subr.mxu0 0.0
    %11285 = vmatpush1.xpose.msra.mxu0 0.0
    %11286 = vmatprep.subr.mxu0 0.0
    %11287 = vmatpush1.xpose.msra.mxu0 0.0
    %11288 = vmatprep.subr.mxu0 0.0
    %11289 = vmatpush1.xpose.msra.mxu0 0.0
    %11290 = vmatprep.subr.mxu0 0.0
    %11291 = vmatpush1.xpose.msra.mxu0 0.0
    %11292 = vmatprep.subr.mxu0 0.0
    %11293 = vmatpush1.xpose.msra.mxu0 0.0
    %11294 = vmatprep.subr.mxu0 0.0
    %11295 = vmatpush1.xpose.msra.mxu0 0.0
    %11296 = vmatprep.subr.mxu0 0.0
    %11297 = vmatpush1.xpose.msra.mxu0 0.0
    %11298 = vmatprep.subr.mxu0 0.0
    %11299 = vmatpush1.xpose.msra.mxu0 0.0
    %11300 = vmatprep.subr.mxu0 0.0
    %11301 = vmatpush1.xpose.msra.mxu0 0.0
    %11302 = vmatprep.subr.mxu0 0.0
    %11303 = vmatpush1.xpose.msra.mxu0 0.0
    %11304 = vmatprep.subr.mxu0 0.0
    %11305 = vmatpush1.xpose.msra.mxu0 0.0
    %11306 = vmatprep.subr.mxu0 0.0
    %11307 = vmatpush1.xpose.msra.mxu0 0.0
    %11308 = vmatprep.subr.mxu0 0.0
    %11309 = vmatpush1.xpose.msra.mxu0 0.0
    %11310 = vmatprep.subr.mxu0 0.0
    %11311 = vmatpush1.xpose.msra.mxu0 0.0
    %11312 = vmatprep.subr.mxu0 0.0
    %11313 = vmatpush1.xpose.msra.mxu0 0.0
    %11314 = vmatprep.subr.mxu0 0.0
    %11315 = vmatpush1.xpose.msra.mxu0 0.0
    %11316 = vmatprep.mubr.f32.mxu0 %v9420
    %11317 = vmatmul.mubr.f32.gmra.mrb[0].mxu0 %v9419
    %v11318 = vpop.f32.mrb[0].mxu0
    %v11319 = vadd.f32 %v11214, %v11318
    %v11320 = vpop.f32.mrb[0].mxu0
    %11321 = vmatprep.mubr.f32.mxu0 %v9452
    %11322 = vmatmul.mubr.f32.gmra.mrb[0].mxu0 %v9451
    %v11323 = vpop.f32.mrb[0].mxu0
    %v11324 = vadd.f32 %v11219, %v11323
    %v11325 = vpop.f32.mrb[0].mxu0
    %11326 = vmatprep.mubr.f32.mxu0 %v9484
    %11327 = vmatmul.mubr.f32.gmra.mrb[0].mxu0 %v9483
    %v11328 = vpop.f32.mrb[0].mxu0
    %v11329 = vadd.f32 %v11224, %v11328
    %v11330 = vpop.f32.mrb[0].mxu0
    %11331 = vmatprep.mubr.f32.mxu0 %v9516
    %11332 = vmatmul.mubr.f32.gmra.mrb[0].mxu0 %v9515
    %v11333 = vpop.f32.mrb[0].mxu0
    %v11334 = vadd.f32 %v11229, %v11333
    %v11335 = vpop.f32.mrb[0].mxu0
    %11336 = vmatprep.mubr.f32.mxu0 %v9548
    %11337 = vmatmul.mubr.f32.gmra.mrb[0].mxu0 %v9547
    %v11338 = vpop.f32.mrb[0].mxu0
    %v11339 = vadd.f32 %v11234, %v11338
    %v11340 = vpop.f32.mrb[0].mxu0
    %11341 = vmatprep.mubr.f32.mxu0 %v9580
    %11342 = vmatmul.mubr.f32.gmra.mrb[0].mxu0 %v9579
    %v11343 = vpop.f32.mrb[0].mxu0
    %v11344 = vadd.f32 %v11239, %v11343
    %v11345 = vpop.f32.mrb[0].mxu0
    %11346 = vmatprep.mubr.f32.mxu0 %v9612
    %11347 = vmatmul.mubr.f32.gmra.mrb[0].mxu0 %v9611
    %v11348 = vpop.f32.mrb[0].mxu0
    %v11349 = vadd.f32 %v11244, %v11348
    %v11350 = vpop.f32.mrb[0].mxu0
    %11351 = vmatprep.mubr.f32.mxu0 %v9644
    %11352 = vmatmul.mubr.f32.gmra.mrb[0].mxu0 %v9643
    %v11353 = vpop.f32.mrb[0].mxu0
    %v11354 = vadd.f32 %v11249, %v11353
    %v11355 = vpop.f32.mrb[0].mxu0
    %11356 = vdwg.mxu0
    %v11357 = vadd.f32 %v475, %v11319
    %v11358 = vadd.f32 %v480, %v11324
    %v11359 = vadd.f32 %v485, %v11329
    %v11360 = vadd.f32 %v490, %v11334
    %v11361 = vadd.f32 %v495, %v11339
    %v11362 = vadd.f32 %v500, %v11344
    %v11363 = vadd.f32 %v505, %v11349
    %v11364 = vadd.f32 %v510, %v11354
    %v11365 = vld [vmem:[%s12] sm:$0x1]
    %v11367 = vlaneseq
    %v11368 = vshrl.u32 %v11367, 7
    %v11369 = vsub.s32 0, %v11368
    %v11370 = vrot.slane %v11365, %v11369
    %v11372 = vadd.f32 %v11357, %v11370
    %v11373 = vadd.f32 %v11358, %v11370
    %v11374 = vadd.f32 %v11359, %v11370
    %v11375 = vadd.f32 %v11360, %v11370
    %v11376 = vadd.f32 %v11361, %v11370
    %v11377 = vadd.f32 %v11362, %v11370
    %v11378 = vadd.f32 %v11363, %v11370
    %v11379 = vadd.f32 %v11364, %v11370
    %11380 = vst.msk [vmem:[#allocation13] sm:$0xff] %vm118, %v11372
    %11381 = vst.msk [vmem:[#allocation13 + $0x8] sm:$0xff] %vm118, %v11373
    %11382 = vst.msk [vmem:[#allocation13 + $0x10] sm:$0xff] %vm118, %v11374
    %11383 = vst.msk [vmem:[#allocation13 + $0x18] sm:$0xff] %vm118, %v11375
    %11384 = vst.msk [vmem:[#allocation13 + $0x20] sm:$0xff] %vm118, %v11376
    %11385 = vst.msk [vmem:[#allocation13 + $0x28] sm:$0xff] %vm118, %v11377
    %11386 = vst.msk [vmem:[#allocation13 + $0x30] sm:$0xff] %vm118, %v11378
    %11387 = vst.msk [vmem:[#allocation13 + $0x38] sm:$0xff] %vm118, %v11379
    // Predicated region
    $region78: #{_lambda_.1} parent=1 // pred_check
      _
    $region79: #{_lambda_.1} parent=1 // pred_check_branch
      %11389 = sbr.rel (0) target = $region81
    $region80: #{_lambda_.1} parent=1 // pred_region
      %s11391 = ssub.s32 1024, 1024
      %11392 = vsyncadd [#allocation4], %s11391
      %s11393 = sshll.u32 [#allocation13], 4
      %s11394 = int_to_ptr.vmem [resolvable:$true] %s11393
      %11399 = dma.vmem_to_hbm [thread:$0]  %s11394, 1024, %s13, [#allocation4], 128, 128, 8
    $region81: #{_lambda_.1} parent=1 // pred_fallthru
      _
    // Predicated region
    $region82: #{_lambda_.1} parent=1 // pred_check
      _
    $region83: #{_lambda_.1} parent=1 // pred_check_branch
      %11401 = sbr.rel (0) target = $region85
    $region84: #{_lambda_.1} parent=1 // pred_region
      %11402 = dma.done [#allocation4], 1024
    $region85: #{_lambda_.1} parent=1 // pred_fallthru
      _
    %11403 = vsyncpa [#allocation3], 1
    %11404 = vsyncpa [#allocation6], 1
    %11405 = vsyncpa [#allocation9], 1
    %11406 = vsyncpa [#allocation12], 1
    %11407 = vsyncpa [#allocation4], 1

</llo_original>
